<compile_context>
chip_gen: v7x
topology: tpu7x:2x2x1
jax: 0.10.0
libtpu: 0.0.40
codegen_flags: <defaults>
</compile_context>

<pallas_src>
import functools

import jax
import jax.numpy as jnp
from jax.experimental import pallas as pl
from jax.experimental.pallas import tpu as pltpu

EPS = 1e-5


def _round_up(x, m):
    return ((x + m - 1) // m) * m


def _apply_activation(z, activation):
    if activation == "silu":
        return z * jax.nn.sigmoid(z)
    # default branch of conv_block -> nn.ReLU()
    return jnp.maximum(z, 0.0)


# ----------------------------------------------------------------------------
# Kernel 1/2: [optional fused input BN+act] -> 3x3 conv (9 shifted MXU matmuls)
#             -> raw conv output + per-image partial sum / sum-of-squares.
# ----------------------------------------------------------------------------
def _conv_stage_kernel(*refs, H, W, fuse_bn, activation):
    if fuse_bn:
        x_ref, sc_ref, sh_ref, w_ref, y_ref, sum_ref, ssq_ref, zpad_ref = refs
    else:
        x_ref, w_ref, y_ref, sum_ref, ssq_ref, zpad_ref = refs

    c_in = x_ref.shape[-1]
    c_out = y_ref.shape[-1]
    hw = H * W

    # Zero the padded activation buffer every step (cheap; keeps the halo
    # correct even when the "parallel" grid axis is sharded across cores).
    zpad_ref[...] = jnp.zeros_like(zpad_ref)

    # Input tile -> (optional fused BN + activation) -> padded VMEM buffer.
    z = x_ref[0].astype(jnp.float32)                      # (H, W, c_in)
    if fuse_bn:
        z = z * sc_ref[...] + sh_ref[...]                 # (1, c_in) broadcasts
        z = _apply_activation(z, activation)
    zpad_ref[pl.ds(1, H), pl.ds(1, W), :] = z

    # 3x3 conv as 9 accumulated MXU matmuls over shifted slices of the padded
    # tile (bf16 inputs, fp32 accumulation).
    acc = jnp.zeros((hw, c_out), jnp.float32)
    for kh in range(3):
        for kw in range(3):
            tap = zpad_ref[pl.ds(kh, H), pl.ds(kw, W), :]
            tap = tap.reshape(hw, c_in).astype(jnp.bfloat16)
            acc = acc + jnp.dot(tap, w_ref[kh * 3 + kw],
                                preferred_element_type=jnp.float32)

    y_ref[0] = acc

    # Per-image partial batch statistics for the output's BatchNorm
    # (reduced across images in a tiny JAX epilogue).
    s = jnp.sum(acc, axis=0, keepdims=True)               # (1, c_out)
    q = jnp.sum(acc * acc, axis=0, keepdims=True)
    sum_ref[...] = jnp.broadcast_to(s.reshape(1, 1, c_out), (1, 8, c_out))
    ssq_ref[...] = jnp.broadcast_to(q.reshape(1, 1, c_out), (1, 8, c_out))


def _conv_stage(x_img, w9, scale, shift, activation, fuse_bn):
    """One conv stage. x_img: (N, H, W, C). Returns raw conv y (N, H*W, Coutp),
    plus summed per-channel sum and sum-of-squares of y."""
    n, h, w, c = x_img.shape
    coutp = w9.shape[-1]
    hw = h * w

    kern = functools.partial(_conv_stage_kernel, H=h, W=w,
                             fuse_bn=fuse_bn, activation=activation)

    in_specs = [pl.BlockSpec((1, h, w, c), lambda i: (i, 0, 0, 0))]
    inputs = [x_img]
    if fuse_bn:
        in_specs += [pl.BlockSpec((1, coutp), lambda i: (0, 0)),
                     pl.BlockSpec((1, coutp), lambda i: (0, 0))]
        inputs += [scale, shift]
    in_specs += [pl.BlockSpec((9, c, coutp), lambda i: (0, 0, 0))]
    inputs += [w9]

    y, s, q = pl.pallas_call(
        kern,
        out_shape=(jax.ShapeDtypeStruct((n, hw, coutp), jnp.float32),
                   jax.ShapeDtypeStruct((n, 8, coutp), jnp.float32),
                   jax.ShapeDtypeStruct((n, 8, coutp), jnp.float32)),
        grid_spec=pltpu.PrefetchScalarGridSpec(
            num_scalar_prefetch=0,
            grid=(n,),
            in_specs=in_specs,
            out_specs=(pl.BlockSpec((1, hw, coutp), lambda i: (i, 0, 0)),
                       pl.BlockSpec((1, 8, coutp), lambda i: (i, 0, 0)),
                       pl.BlockSpec((1, 8, coutp), lambda i: (i, 0, 0))),
            scratch_shapes=[pltpu.VMEM((h + 2, w + 2, c), jnp.float32)]),
        compiler_params=pltpu.CompilerParams(
            dimension_semantics=("parallel",)),
    )(*inputs)
    # Finish the (tiny) stats reduction over images in plain JAX.
    return y, s[:, 0, :].sum(axis=0), q[:, 0, :].sum(axis=0)


# ----------------------------------------------------------------------------
# Kernel 3: final elementwise BN (folded to scale/shift) + activation epilogue.
# ----------------------------------------------------------------------------
def _bn_act_kernel(y_ref, sc_ref, sh_ref, o_ref, *, activation):
    z = y_ref[...] * sc_ref[...] + sh_ref[...]
    o_ref[...] = _apply_activation(z, activation)


def _bn_act(y, scale, shift, activation):
    n, hw, coutp = y.shape
    kern = functools.partial(_bn_act_kernel, activation=activation)
    return pl.pallas_call(
        kern,
        out_shape=jax.ShapeDtypeStruct((n, hw, coutp), jnp.float32),
        grid_spec=pltpu.PrefetchScalarGridSpec(
            num_scalar_prefetch=0,
            grid=(n,),
            in_specs=[pl.BlockSpec((1, hw, coutp), lambda i: (i, 0, 0)),
                      pl.BlockSpec((1, coutp), lambda i: (0, 0)),
                      pl.BlockSpec((1, coutp), lambda i: (0, 0))],
            out_specs=pl.BlockSpec((1, hw, coutp), lambda i: (i, 0, 0))),
        compiler_params=pltpu.CompilerParams(
            dimension_semantics=("parallel",)),
    )(y, scale, shift)


# ----------------------------------------------------------------------------
# Glue: weight prep, BN folding, full forward.
# ----------------------------------------------------------------------------
def _prep_weight(w_oihw, coutp, cin_pad=None):
    """OIHW conv weight -> (9, cin[_pad], coutp) bf16, (kh, kw) major order."""
    cout, cin = w_oihw.shape[0], w_oihw.shape[1]
    w = jnp.transpose(w_oihw, (2, 3, 1, 0)).reshape(9, cin, cout)
    if cin_pad is not None and cin_pad > cin:
        w = jnp.pad(w, ((0, 0), (0, cin_pad - cin), (0, 0)))
    if coutp > cout:
        w = jnp.pad(w, ((0, 0), (0, 0), (0, coutp - cout)))
    return w.astype(jnp.bfloat16)


def _pad_channels(v, coutp):
    v = v.astype(jnp.float32)
    return jnp.pad(v, (0, coutp - v.shape[0]))


def _bn_scale_shift(s_sum, s_ssq, count, gamma_p, beta_p):
    mean = s_sum / count
    var = jnp.maximum(s_ssq / count - mean * mean, 0.0)  # clamp: fp32 cancellation
    scale = gamma_p * jax.lax.rsqrt(var + EPS)
    shift = beta_p - mean * scale
    return scale.reshape(1, -1), shift.reshape(1, -1)


def conv_block_forward(x_nchw, params, activation="relu"):
    """Pallas implementation of conv_block.forward. Input/output are NCHW."""
    if activation == "tilu":
        # TODO(synk): utils.TilU is not defined in the provided source.
        raise NotImplementedError("'tilu' (utils.TilU) is not available")

    n, _, h, w = x_nchw.shape
    cout = params["w1"].shape[0]
    coutp = _round_up(cout, 128)

    x = jnp.transpose(x_nchw, (0, 2, 3, 1)).astype(jnp.bfloat16)   # NHWC, bf16

    w1 = _prep_weight(params["w1"], coutp)                  # (9, cin,   coutp)
    w2 = _prep_weight(params["w2"], coutp, cin_pad=coutp)   # (9, coutp, coutp)
    g1, be1 = _pad_channels(params["g1"], coutp), _pad_channels(params["be1"], coutp)
    g2, be2 = _pad_channels(params["g2"], coutp), _pad_channels(params["be2"], coutp)
    # NOTE: conv biases (params["b1"], params["b2"]) are intentionally NOT
    # applied: training-mode BatchNorm subtracts the batch mean, which cancels
    # a per-channel constant exactly and leaves the variance unchanged.

    count = jnp.float32(n * h * w)

    # Stage 1: raw conv1 + partial batch stats.
    y1, s1, q1 = _conv_stage(x, w1, None, None, activation, fuse_bn=False)
    sc1, sh1 = _bn_scale_shift(s1, q1, count, g1, be1)

    # Stage 2: fused (BN1 + act) -> conv2 + partial batch stats.
    y2, s2, q2 = _conv_stage(y1.reshape(n, h, w, coutp), w2, sc1, sh1,
                             activation, fuse_bn=True)
    sc2, sh2 = _bn_scale_shift(s2, q2, count, g2, be2)

    # Final elementwise BN2 + activation epilogue.
    out = _bn_act(y2, sc2, sh2, activation)                 # (n, h*w, coutp)
    out = out.reshape(n, h, w, coutp)[..., :cout]
    return jnp.transpose(out, (0, 3, 1, 2))                 # -> NCHW


def init_params(key, input_d, output_d):
    ks = jax.random.split(key, 8)
    scale1 = 1.0 / jnp.sqrt(jnp.float32(input_d * 9))
    scale2 = 1.0 / jnp.sqrt(jnp.float32(output_d * 9))
    return {
        # conv weights in PyTorch OIHW layout
        "w1": jax.random.normal(ks[0], (output_d, input_d, 3, 3), jnp.float32) * scale1,
        "b1": jax.random.normal(ks[1], (output_d,), jnp.float32) * 0.1,
        "w2": jax.random.normal(ks[2], (output_d, output_d, 3, 3), jnp.float32) * scale2,
        "b2": jax.random.normal(ks[3], (output_d,), jnp.float32) * 0.1,
        # BatchNorm affine params (deterministic, non-trivial)
        "g1": 1.0 + 0.1 * jax.random.normal(ks[4], (output_d,), jnp.float32),
        "be1": 0.1 * jax.random.normal(ks[5], (output_d,), jnp.float32),
        "g2": 1.0 + 0.1 * jax.random.normal(ks[6], (output_d,), jnp.float32),
        "be2": 0.1 * jax.random.normal(ks[7], (output_d,), jnp.float32),
    }


def _reference_forward(x, params, activation="relu"):
    """Pure-JAX (XLA) reference with the exact module semantics (incl. bias)."""
    def act(z):
        return z * jax.nn.sigmoid(z) if activation == "silu" else jnp.maximum(z, 0.0)

    def stage(x, w, b, g, be):
        y = jax.lax.conv_general_dilated(
            x, w, window_strides=(1, 1), padding=((1, 1), (1, 1)),
            dimension_numbers=("NCHW", "OIHW", "NCHW"))
        y = y + b.reshape(1, -1, 1, 1)
        mean = jnp.mean(y, axis=(0, 2, 3), keepdims=True)
        var = jnp.var(y, axis=(0, 2, 3), keepdims=True)   # biased, like torch BN
        z = (y - mean) * jax.lax.rsqrt(var + EPS)
        return act(z * g.reshape(1, -1, 1, 1) + be.reshape(1, -1, 1, 1))

    x = stage(x, params["w1"], params["b1"], params["g1"], params["be1"])
    x = stage(x, params["w2"], params["b2"], params["g2"], params["be2"])
    return x


if __name__ == "__main__":
    key = jax.random.PRNGKey(0)
    k_x, k_p = jax.random.split(key)

    N, Cin, Cout, H, W = 2, 4, 8, 16, 16
    x = jax.random.normal(k_x, (N, Cin, H, W), jnp.float32)
    params = init_params(k_p, Cin, Cout)

    fwd = jax.jit(functools.partial(conv_block_forward, activation="relu"))
    out = fwd(x, params)
    jax.block_until_ready(out)
    assert out.shape == (N, Cout, H, W), out.shape

    # Sanity check against a pure-JAX reference (bf16 MXU inputs -> loose tol).
    ref = _reference_forward(x, params, activation="relu")
    err = float(jnp.max(jnp.abs(out - ref)))
    assert err < 1e-1, f"max abs error too large: {err}"

    print("KERNEL_OK")
</pallas_src>

<mosaic_0001>
module attributes {stable_mosaic.version = 11 : i64} {
  func.func @_conv_stage_kernel(%arg0: i32, %arg1: memref<1x16x16x4xbf16, #tpu.memory_space<vmem>>, %arg2: memref<9x4x128xbf16, #tpu.memory_space<vmem>>, %arg3: memref<1x256x128xf32, #tpu.memory_space<vmem>>, %arg4: memref<1x8x128xf32, #tpu.memory_space<vmem>>, %arg5: memref<1x8x128xf32, #tpu.memory_space<vmem>>, %arg6: memref<18x18x4xf32, #tpu.memory_space<vmem>>) attributes {dimension_semantics = [#tpu.dimension_semantics<parallel>], iteration_bounds = array<i64: 2>, scalar_prefetch = 0 : i64, scratch_operands = 1 : i64, tpu.core_type = #tpu.core_type<tc>, window_params = [{transform_indices = @transform_0, window_bounds = array<i64: 1, 16, 16, 4>}, {pipeline_mode = #tpu.pipeline_mode<synchronous>, transform_indices = @transform_1, window_bounds = array<i64: 9, 4, 128>}, {transform_indices = @transform_2, window_bounds = array<i64: 1, 256, 128>}, {transform_indices = @transform_3, window_bounds = array<i64: 1, 8, 128>}, {transform_indices = @transform_4, window_bounds = array<i64: 1, 8, 128>}]} {
    %cst = arith.constant 0.000000e+00 : f32
    %0 = vector.broadcast %cst : f32 to vector<18x18x4xf32>
    %c0 = arith.constant 0 : index
    %c0_0 = arith.constant 0 : index
    %c0_1 = arith.constant 0 : index
    %1 = vector.load %arg6[%c0, %c0_0, %c0_1] : memref<18x18x4xf32, #tpu.memory_space<vmem>>, vector<18x18x4xf32>
    tpu.vector_store %arg6[%c0, %c0_0, %c0_1], %0 {strides = array<i32>} : memref<18x18x4xf32, #tpu.memory_space<vmem>>, vector<18x18x4xf32>,
    %c0_2 = arith.constant 0 : index
    %c0_3 = arith.constant 0 : index
    %c0_4 = arith.constant 0 : index
    %c0_5 = arith.constant 0 : index
    %2 = vector.load %arg1[%c0_2, %c0_3, %c0_4, %c0_5] : memref<1x16x16x4xbf16, #tpu.memory_space<vmem>>, vector<1x16x16x4xbf16>
    %3 = vector.shape_cast %2 : vector<1x16x16x4xbf16> to vector<16x16x4xbf16>
    %4 = arith.extf %3 : vector<16x16x4xbf16> to vector<16x16x4xf32>
    %c1 = arith.constant 1 : index
    %c1_6 = arith.constant 1 : index
    %c0_7 = arith.constant 0 : index
    %5 = vector.load %arg6[%c1, %c1_6, %c0_7] : memref<18x18x4xf32, #tpu.memory_space<vmem>>, vector<16x16x4xf32>
    tpu.vector_store %arg6[%c1, %c1_6, %c0_7], %4 {strides = array<i32>} : memref<18x18x4xf32, #tpu.memory_space<vmem>>, vector<16x16x4xf32>,
    %cst_8 = arith.constant 0.000000e+00 : f32
    %6 = vector.broadcast %cst_8 : f32 to vector<256x128xf32>
    %c0_9 = arith.constant 0 : index
    %c0_10 = arith.constant 0 : index
    %c0_11 = arith.constant 0 : index
    %7 = vector.load %arg6[%c0_9, %c0_10, %c0_11] : memref<18x18x4xf32, #tpu.memory_space<vmem>>, vector<16x16x4xf32>
    %8 = vector.shape_cast %7 : vector<16x16x4xf32> to vector<256x4xf32>
    %9 = arith.truncf %8 : vector<256x4xf32> to vector<256x4xbf16>
    %c0_12 = arith.constant 0 : index
    %c0_13 = arith.constant 0 : index
    %c0_14 = arith.constant 0 : index
    %10 = vector.load %arg2[%c0_12, %c0_13, %c0_14] : memref<9x4x128xbf16, #tpu.memory_space<vmem>>, vector<1x4x128xbf16>
    %11 = vector.shape_cast %10 : vector<1x4x128xbf16> to vector<4x128xbf16>
    %cst_15 = arith.constant dense<0.000000e+00> : vector<256x128xf32>
    %12 = tpu.matmul %9, %11, %cst_15 {dimension_numbers = #tpu.dot_dimension_numbers<[1], [0], [0], [1], [0, 0, 1, 1], [], []>} : vector<256x4xbf16>, vector<4x128xbf16>, vector<256x128xf32> -> vector<256x128xf32>
    %13 = arith.addf %6, %12 : vector<256x128xf32>
    %c0_16 = arith.constant 0 : index
    %c1_17 = arith.constant 1 : index
    %c0_18 = arith.constant 0 : index
    %14 = vector.load %arg6[%c0_16, %c1_17, %c0_18] : memref<18x18x4xf32, #tpu.memory_space<vmem>>, vector<16x16x4xf32>
    %15 = vector.shape_cast %14 : vector<16x16x4xf32> to vector<256x4xf32>
    %16 = arith.truncf %15 : vector<256x4xf32> to vector<256x4xbf16>
    %c1_19 = arith.constant 1 : index
    %c0_20 = arith.constant 0 : index
    %c0_21 = arith.constant 0 : index
    %17 = vector.load %arg2[%c1_19, %c0_20, %c0_21] : memref<9x4x128xbf16, #tpu.memory_space<vmem>>, vector<1x4x128xbf16>
    %18 = vector.shape_cast %17 : vector<1x4x128xbf16> to vector<4x128xbf16>
    %cst_22 = arith.constant dense<0.000000e+00> : vector<256x128xf32>
    %19 = tpu.matmul %16, %18, %cst_22 {dimension_numbers = #tpu.dot_dimension_numbers<[1], [0], [0], [1], [0, 0, 1, 1], [], []>} : vector<256x4xbf16>, vector<4x128xbf16>, vector<256x128xf32> -> vector<256x128xf32>
    %20 = arith.addf %13, %19 : vector<256x128xf32>
    %c0_23 = arith.constant 0 : index
    %c2 = arith.constant 2 : index
    %c0_24 = arith.constant 0 : index
    %21 = vector.load %arg6[%c0_23, %c2, %c0_24] : memref<18x18x4xf32, #tpu.memory_space<vmem>>, vector<16x16x4xf32>
    %22 = vector.shape_cast %21 : vector<16x16x4xf32> to vector<256x4xf32>
    %23 = arith.truncf %22 : vector<256x4xf32> to vector<256x4xbf16>
    %c2_25 = arith.constant 2 : index
    %c0_26 = arith.constant 0 : index
    %c0_27 = arith.constant 0 : index
    %24 = vector.load %arg2[%c2_25, %c0_26, %c0_27] : memref<9x4x128xbf16, #tpu.memory_space<vmem>>, vector<1x4x128xbf16>
    %25 = vector.shape_cast %24 : vector<1x4x128xbf16> to vector<4x128xbf16>
    %cst_28 = arith.constant dense<0.000000e+00> : vector<256x128xf32>
    %26 = tpu.matmul %23, %25, %cst_28 {dimension_numbers = #tpu.dot_dimension_numbers<[1], [0], [0], [1], [0, 0, 1, 1], [], []>} : vector<256x4xbf16>, vector<4x128xbf16>, vector<256x128xf32> -> vector<256x128xf32>
    %27 = arith.addf %20, %26 : vector<256x128xf32>
    %c1_29 = arith.constant 1 : index
    %c0_30 = arith.constant 0 : index
    %c0_31 = arith.constant 0 : index
    %28 = vector.load %arg6[%c1_29, %c0_30, %c0_31] : memref<18x18x4xf32, #tpu.memory_space<vmem>>, vector<16x16x4xf32>
    %29 = vector.shape_cast %28 : vector<16x16x4xf32> to vector<256x4xf32>
    %30 = arith.truncf %29 : vector<256x4xf32> to vector<256x4xbf16>
    %c3 = arith.constant 3 : index
    %c0_32 = arith.constant 0 : index
    %c0_33 = arith.constant 0 : index
    %31 = vector.load %arg2[%c3, %c0_32, %c0_33] : memref<9x4x128xbf16, #tpu.memory_space<vmem>>, vector<1x4x128xbf16>
    %32 = vector.shape_cast %31 : vector<1x4x128xbf16> to vector<4x128xbf16>
    %cst_34 = arith.constant dense<0.000000e+00> : vector<256x128xf32>
    %33 = tpu.matmul %30, %32, %cst_34 {dimension_numbers = #tpu.dot_dimension_numbers<[1], [0], [0], [1], [0, 0, 1, 1], [], []>} : vector<256x4xbf16>, vector<4x128xbf16>, vector<256x128xf32> -> vector<256x128xf32>
    %34 = arith.addf %27, %33 : vector<256x128xf32>
    %c1_35 = arith.constant 1 : index
    %c1_36 = arith.constant 1 : index
    %c0_37 = arith.constant 0 : index
    %35 = vector.load %arg6[%c1_35, %c1_36, %c0_37] : memref<18x18x4xf32, #tpu.memory_space<vmem>>, vector<16x16x4xf32>
    %36 = vector.shape_cast %35 : vector<16x16x4xf32> to vector<256x4xf32>
    %37 = arith.truncf %36 : vector<256x4xf32> to vector<256x4xbf16>
    %c4 = arith.constant 4 : index
    %c0_38 = arith.constant 0 : index
    %c0_39 = arith.constant 0 : index
    %38 = vector.load %arg2[%c4, %c0_38, %c0_39] : memref<9x4x128xbf16, #tpu.memory_space<vmem>>, vector<1x4x128xbf16>
    %39 = vector.shape_cast %38 : vector<1x4x128xbf16> to vector<4x128xbf16>
    %cst_40 = arith.constant dense<0.000000e+00> : vector<256x128xf32>
    %40 = tpu.matmul %37, %39, %cst_40 {dimension_numbers = #tpu.dot_dimension_numbers<[1], [0], [0], [1], [0, 0, 1, 1], [], []>} : vector<256x4xbf16>, vector<4x128xbf16>, vector<256x128xf32> -> vector<256x128xf32>
    %41 = arith.addf %34, %40 : vector<256x128xf32>
    %c1_41 = arith.constant 1 : index
    %c2_42 = arith.constant 2 : index
    %c0_43 = arith.constant 0 : index
    %42 = vector.load %arg6[%c1_41, %c2_42, %c0_43] : memref<18x18x4xf32, #tpu.memory_space<vmem>>, vector<16x16x4xf32>
    %43 = vector.shape_cast %42 : vector<16x16x4xf32> to vector<256x4xf32>
    %44 = arith.truncf %43 : vector<256x4xf32> to vector<256x4xbf16>
    %c5 = arith.constant 5 : index
    %c0_44 = arith.constant 0 : index
    %c0_45 = arith.constant 0 : index
    %45 = vector.load %arg2[%c5, %c0_44, %c0_45] : memref<9x4x128xbf16, #tpu.memory_space<vmem>>, vector<1x4x128xbf16>
    %46 = vector.shape_cast %45 : vector<1x4x128xbf16> to vector<4x128xbf16>
    %cst_46 = arith.constant dense<0.000000e+00> : vector<256x128xf32>
    %47 = tpu.matmul %44, %46, %cst_46 {dimension_numbers = #tpu.dot_dimension_numbers<[1], [0], [0], [1], [0, 0, 1, 1], [], []>} : vector<256x4xbf16>, vector<4x128xbf16>, vector<256x128xf32> -> vector<256x128xf32>
    %48 = arith.addf %41, %47 : vector<256x128xf32>
    %c2_47 = arith.constant 2 : index
    %c0_48 = arith.constant 0 : index
    %c0_49 = arith.constant 0 : index
    %49 = vector.load %arg6[%c2_47, %c0_48, %c0_49] : memref<18x18x4xf32, #tpu.memory_space<vmem>>, vector<16x16x4xf32>
    %50 = vector.shape_cast %49 : vector<16x16x4xf32> to vector<256x4xf32>
    %51 = arith.truncf %50 : vector<256x4xf32> to vector<256x4xbf16>
    %c6 = arith.constant 6 : index
    %c0_50 = arith.constant 0 : index
    %c0_51 = arith.constant 0 : index
    %52 = vector.load %arg2[%c6, %c0_50, %c0_51] : memref<9x4x128xbf16, #tpu.memory_space<vmem>>, vector<1x4x128xbf16>
    %53 = vector.shape_cast %52 : vector<1x4x128xbf16> to vector<4x128xbf16>
    %cst_52 = arith.constant dense<0.000000e+00> : vector<256x128xf32>
    %54 = tpu.matmul %51, %53, %cst_52 {dimension_numbers = #tpu.dot_dimension_numbers<[1], [0], [0], [1], [0, 0, 1, 1], [], []>} : vector<256x4xbf16>, vector<4x128xbf16>, vector<256x128xf32> -> vector<256x128xf32>
    %55 = arith.addf %48, %54 : vector<256x128xf32>
    %c2_53 = arith.constant 2 : index
    %c1_54 = arith.constant 1 : index
    %c0_55 = arith.constant 0 : index
    %56 = vector.load %arg6[%c2_53, %c1_54, %c0_55] : memref<18x18x4xf32, #tpu.memory_space<vmem>>, vector<16x16x4xf32>
    %57 = vector.shape_cast %56 : vector<16x16x4xf32> to vector<256x4xf32>
    %58 = arith.truncf %57 : vector<256x4xf32> to vector<256x4xbf16>
    %c7 = arith.constant 7 : index
    %c0_56 = arith.constant 0 : index
    %c0_57 = arith.constant 0 : index
    %59 = vector.load %arg2[%c7, %c0_56, %c0_57] : memref<9x4x128xbf16, #tpu.memory_space<vmem>>, vector<1x4x128xbf16>
    %60 = vector.shape_cast %59 : vector<1x4x128xbf16> to vector<4x128xbf16>
    %cst_58 = arith.constant dense<0.000000e+00> : vector<256x128xf32>
    %61 = tpu.matmul %58, %60, %cst_58 {dimension_numbers = #tpu.dot_dimension_numbers<[1], [0], [0], [1], [0, 0, 1, 1], [], []>} : vector<256x4xbf16>, vector<4x128xbf16>, vector<256x128xf32> -> vector<256x128xf32>
    %62 = arith.addf %55, %61 : vector<256x128xf32>
    %c2_59 = arith.constant 2 : index
    %c2_60 = arith.constant 2 : index
    %c0_61 = arith.constant 0 : index
    %63 = vector.load %arg6[%c2_59, %c2_60, %c0_61] : memref<18x18x4xf32, #tpu.memory_space<vmem>>, vector<16x16x4xf32>
    %64 = vector.shape_cast %63 : vector<16x16x4xf32> to vector<256x4xf32>
    %65 = arith.truncf %64 : vector<256x4xf32> to vector<256x4xbf16>
    %c8 = arith.constant 8 : index
    %c0_62 = arith.constant 0 : index
    %c0_63 = arith.constant 0 : index
    %66 = vector.load %arg2[%c8, %c0_62, %c0_63] : memref<9x4x128xbf16, #tpu.memory_space<vmem>>, vector<1x4x128xbf16>
    %67 = vector.shape_cast %66 : vector<1x4x128xbf16> to vector<4x128xbf16>
    %cst_64 = arith.constant dense<0.000000e+00> : vector<256x128xf32>
    %68 = tpu.matmul %65, %67, %cst_64 {dimension_numbers = #tpu.dot_dimension_numbers<[1], [0], [0], [1], [0, 0, 1, 1], [], []>} : vector<256x4xbf16>, vector<4x128xbf16>, vector<256x128xf32> -> vector<256x128xf32>
    %69 = arith.addf %62, %68 : vector<256x128xf32>
    %c0_65 = arith.constant 0 : index
    %c0_66 = arith.constant 0 : index
    %c0_67 = arith.constant 0 : index
    %70 = vector.load %arg3[%c0_65, %c0_66, %c0_67] : memref<1x256x128xf32, #tpu.memory_space<vmem>>, vector<1x256x128xf32>
    %71 = vector.shape_cast %70 : vector<1x256x128xf32> to vector<256x128xf32>
    %72 = vector.shape_cast %69 : vector<256x128xf32> to vector<1x256x128xf32>
    tpu.vector_store %arg3[%c0_65, %c0_66, %c0_67], %72 {strides = array<i32>} : memref<1x256x128xf32, #tpu.memory_space<vmem>>, vector<1x256x128xf32>,
    %cst_68 = arith.constant dense<0.000000e+00> : vector<128xf32>
    %73 = vector.multi_reduction <add>, %69, %cst_68 [0] : vector<256x128xf32> to vector<128xf32>
    %74 = vector.shape_cast %73 : vector<128xf32> to vector<1x128xf32>
    %75 = arith.mulf %69, %69 : vector<256x128xf32>
    %cst_69 = arith.constant dense<0.000000e+00> : vector<128xf32>
    %76 = vector.multi_reduction <add>, %75, %cst_69 [0] : vector<256x128xf32> to vector<128xf32>
    %77 = vector.shape_cast %76 : vector<128xf32> to vector<1x128xf32>
    %78 = vector.shape_cast %74 : vector<1x128xf32> to vector<1x1x128xf32>
    %79 = vector.shape_cast %78 : vector<1x1x128xf32> to vector<1x1x128xf32>
    %80 = vector.broadcast %79 : vector<1x1x128xf32> to vector<1x8x128xf32>
    %c0_70 = arith.constant 0 : index
    %c0_71 = arith.constant 0 : index
    %c0_72 = arith.constant 0 : index
    %81 = vector.load %arg4[%c0_70, %c0_71, %c0_72] : memref<1x8x128xf32, #tpu.memory_space<vmem>>, vector<1x8x128xf32>
    tpu.vector_store %arg4[%c0_70, %c0_71, %c0_72], %80 {strides = array<i32>} : memref<1x8x128xf32, #tpu.memory_space<vmem>>, vector<1x8x128xf32>,
    %82 = vector.shape_cast %77 : vector<1x128xf32> to vector<1x1x128xf32>
    %83 = vector.shape_cast %82 : vector<1x1x128xf32> to vector<1x1x128xf32>
    %84 = vector.broadcast %83 : vector<1x1x128xf32> to vector<1x8x128xf32>
    %c0_73 = arith.constant 0 : index
    %c0_74 = arith.constant 0 : index
    %c0_75 = arith.constant 0 : index
    %85 = vector.load %arg5[%c0_73, %c0_74, %c0_75] : memref<1x8x128xf32, #tpu.memory_space<vmem>>, vector<1x8x128xf32>
    tpu.vector_store %arg5[%c0_73, %c0_74, %c0_75], %84 {strides = array<i32>} : memref<1x8x128xf32, #tpu.memory_space<vmem>>, vector<1x8x128xf32>,
    return
  }
  func.func @transform_0(%arg0: i32) -> (i32, i32, i32, i32) {
    %c0_i32 = arith.constant 0 : i32
    %c0_i32_0 = arith.constant 0 : i32
    %c0_i32_1 = arith.constant 0 : i32
    %c0_i32_2 = arith.constant 0 : i32
    return %arg0, %c0_i32, %c0_i32_0, %c0_i32_1 : i32, i32, i32, i32
  }
  func.func @transform_1(%arg0: i32) -> (i32, i32, i32) {
    %c0_i32 = arith.constant 0 : i32
    %c0_i32_0 = arith.constant 0 : i32
    %c0_i32_1 = arith.constant 0 : i32
    %c0_i32_2 = arith.constant 0 : i32
    return %c0_i32, %c0_i32_0, %c0_i32_1 : i32, i32, i32
  }
  func.func @transform_2(%arg0: i32) -> (i32, i32, i32) {
    %c0_i32 = arith.constant 0 : i32
    %c0_i32_0 = arith.constant 0 : i32
    %c0_i32_1 = arith.constant 0 : i32
    return %arg0, %c0_i32, %c0_i32_0 : i32, i32, i32
  }
  func.func @transform_3(%arg0: i32) -> (i32, i32, i32) {
    %c0_i32 = arith.constant 0 : i32
    %c0_i32_0 = arith.constant 0 : i32
    %c0_i32_1 = arith.constant 0 : i32
    return %arg0, %c0_i32, %c0_i32_0 : i32, i32, i32
  }
  func.func @transform_4(%arg0: i32) -> (i32, i32, i32) {
    %c0_i32 = arith.constant 0 : i32
    %c0_i32_0 = arith.constant 0 : i32
    %c0_i32_1 = arith.constant 0 : i32
    return %arg0, %c0_i32, %c0_i32_0 : i32, i32, i32
  }
}

module attributes {stable_mosaic.version = 11 : i64} {
  func.func @_conv_stage_kernel(%arg0: i32, %arg1: memref<1x16x16x128xf32, #tpu.memory_space<vmem>>, %arg2: memref<1x128xf32, #tpu.memory_space<vmem>>, %arg3: memref<1x128xf32, #tpu.memory_space<vmem>>, %arg4: memref<9x128x128xbf16, #tpu.memory_space<vmem>>, %arg5: memref<1x256x128xf32, #tpu.memory_space<vmem>>, %arg6: memref<1x8x128xf32, #tpu.memory_space<vmem>>, %arg7: memref<1x8x128xf32, #tpu.memory_space<vmem>>, %arg8: memref<18x18x128xf32, #tpu.memory_space<vmem>>) attributes {dimension_semantics = [#tpu.dimension_semantics<parallel>], iteration_bounds = array<i64: 2>, scalar_prefetch = 0 : i64, scratch_operands = 1 : i64, tpu.core_type = #tpu.core_type<tc>, window_params = [{transform_indices = @transform_0, window_bounds = array<i64: 1, 16, 16, 128>}, {pipeline_mode = #tpu.pipeline_mode<synchronous>, transform_indices = @transform_1, window_bounds = array<i64: 1, 128>}, {pipeline_mode = #tpu.pipeline_mode<synchronous>, transform_indices = @transform_2, window_bounds = array<i64: 1, 128>}, {pipeline_mode = #tpu.pipeline_mode<synchronous>, transform_indices = @transform_3, window_bounds = array<i64: 9, 128, 128>}, {transform_indices = @transform_4, window_bounds = array<i64: 1, 256, 128>}, {transform_indices = @transform_5, window_bounds = array<i64: 1, 8, 128>}, {transform_indices = @transform_6, window_bounds = array<i64: 1, 8, 128>}]} {
    %cst = arith.constant 0.000000e+00 : f32
    %0 = vector.broadcast %cst : f32 to vector<18x18x128xf32>
    %c0 = arith.constant 0 : index
    %c0_0 = arith.constant 0 : index
    %c0_1 = arith.constant 0 : index
    %1 = vector.load %arg8[%c0, %c0_0, %c0_1] : memref<18x18x128xf32, #tpu.memory_space<vmem>>, vector<18x18x128xf32>
    tpu.vector_store %arg8[%c0, %c0_0, %c0_1], %0 {strides = array<i32>} : memref<18x18x128xf32, #tpu.memory_space<vmem>>, vector<18x18x128xf32>,
    %c0_2 = arith.constant 0 : index
    %c0_3 = arith.constant 0 : index
    %c0_4 = arith.constant 0 : index
    %c0_5 = arith.constant 0 : index
    %2 = vector.load %arg1[%c0_2, %c0_3, %c0_4, %c0_5] : memref<1x16x16x128xf32, #tpu.memory_space<vmem>>, vector<1x16x16x128xf32>
    %3 = vector.shape_cast %2 : vector<1x16x16x128xf32> to vector<16x16x128xf32>
    %c0_6 = arith.constant 0 : index
    %c0_7 = arith.constant 0 : index
    %4 = vector.load %arg2[%c0_6, %c0_7] : memref<1x128xf32, #tpu.memory_space<vmem>>, vector<1x128xf32>
    %5 = vector.shape_cast %4 : vector<1x128xf32> to vector<1x1x128xf32>
    %6 = vector.broadcast %5 : vector<1x1x128xf32> to vector<16x16x128xf32>
    %7 = arith.mulf %3, %6 : vector<16x16x128xf32>
    %c0_8 = arith.constant 0 : index
    %c0_9 = arith.constant 0 : index
    %8 = vector.load %arg3[%c0_8, %c0_9] : memref<1x128xf32, #tpu.memory_space<vmem>>, vector<1x128xf32>
    %9 = vector.shape_cast %8 : vector<1x128xf32> to vector<1x1x128xf32>
    %10 = vector.broadcast %9 : vector<1x1x128xf32> to vector<16x16x128xf32>
    %11 = arith.addf %7, %10 : vector<16x16x128xf32>
    %cst_10 = arith.constant 0.000000e+00 : f32
    %12 = vector.broadcast %cst_10 : f32 to vector<16x16x128xf32>
    %13 = arith.maximumf %11, %12 : vector<16x16x128xf32>
    %c1 = arith.constant 1 : index
    %c1_11 = arith.constant 1 : index
    %c0_12 = arith.constant 0 : index
    %14 = vector.load %arg8[%c1, %c1_11, %c0_12] : memref<18x18x128xf32, #tpu.memory_space<vmem>>, vector<16x16x128xf32>
    tpu.vector_store %arg8[%c1, %c1_11, %c0_12], %13 {strides = array<i32>} : memref<18x18x128xf32, #tpu.memory_space<vmem>>, vector<16x16x128xf32>,
    %cst_13 = arith.constant 0.000000e+00 : f32
    %15 = vector.broadcast %cst_13 : f32 to vector<256x128xf32>
    %c0_14 = arith.constant 0 : index
    %c0_15 = arith.constant 0 : index
    %c0_16 = arith.constant 0 : index
    %16 = vector.load %arg8[%c0_14, %c0_15, %c0_16] : memref<18x18x128xf32, #tpu.memory_space<vmem>>, vector<16x16x128xf32>
    %17 = vector.shape_cast %16 : vector<16x16x128xf32> to vector<256x128xf32>
    %18 = arith.truncf %17 : vector<256x128xf32> to vector<256x128xbf16>
    %c0_17 = arith.constant 0 : index
    %c0_18 = arith.constant 0 : index
    %c0_19 = arith.constant 0 : index
    %19 = vector.load %arg4[%c0_17, %c0_18, %c0_19] : memref<9x128x128xbf16, #tpu.memory_space<vmem>>, vector<1x128x128xbf16>
    %20 = vector.shape_cast %19 : vector<1x128x128xbf16> to vector<128x128xbf16>
    %cst_20 = arith.constant dense<0.000000e+00> : vector<256x128xf32>
    %21 = tpu.matmul %18, %20, %cst_20 {dimension_numbers = #tpu.dot_dimension_numbers<[1], [0], [0], [1], [0, 0, 1, 1], [], []>} : vector<256x128xbf16>, vector<128x128xbf16>, vector<256x128xf32> -> vector<256x128xf32>
    %22 = arith.addf %15, %21 : vector<256x128xf32>
    %c0_21 = arith.constant 0 : index
    %c1_22 = arith.constant 1 : index
    %c0_23 = arith.constant 0 : index
    %23 = vector.load %arg8[%c0_21, %c1_22, %c0_23] : memref<18x18x128xf32, #tpu.memory_space<vmem>>, vector<16x16x128xf32>
    %24 = vector.shape_cast %23 : vector<16x16x128xf32> to vector<256x128xf32>
    %25 = arith.truncf %24 : vector<256x128xf32> to vector<256x128xbf16>
    %c1_24 = arith.constant 1 : index
    %c0_25 = arith.constant 0 : index
    %c0_26 = arith.constant 0 : index
    %26 = vector.load %arg4[%c1_24, %c0_25, %c0_26] : memref<9x128x128xbf16, #tpu.memory_space<vmem>>, vector<1x128x128xbf16>
    %27 = vector.shape_cast %26 : vector<1x128x128xbf16> to vector<128x128xbf16>
    %cst_27 = arith.constant dense<0.000000e+00> : vector<256x128xf32>
    %28 = tpu.matmul %25, %27, %cst_27 {dimension_numbers = #tpu.dot_dimension_numbers<[1], [0], [0], [1], [0, 0, 1, 1], [], []>} : vector<256x128xbf16>, vector<128x128xbf16>, vector<256x128xf32> -> vector<256x128xf32>
    %29 = arith.addf %22, %28 : vector<256x128xf32>
    %c0_28 = arith.constant 0 : index
    %c2 = arith.constant 2 : index
    %c0_29 = arith.constant 0 : index
    %30 = vector.load %arg8[%c0_28, %c2, %c0_29] : memref<18x18x128xf32, #tpu.memory_space<vmem>>, vector<16x16x128xf32>
    %31 = vector.shape_cast %30 : vector<16x16x128xf32> to vector<256x128xf32>
    %32 = arith.truncf %31 : vector<256x128xf32> to vector<256x128xbf16>
    %c2_30 = arith.constant 2 : index
    %c0_31 = arith.constant 0 : index
    %c0_32 = arith.constant 0 : index
    %33 = vector.load %arg4[%c2_30, %c0_31, %c0_32] : memref<9x128x128xbf16, #tpu.memory_space<vmem>>, vector<1x128x128xbf16>
    %34 = vector.shape_cast %33 : vector<1x128x128xbf16> to vector<128x128xbf16>
    %cst_33 = arith.constant dense<0.000000e+00> : vector<256x128xf32>
    %35 = tpu.matmul %32, %34, %cst_33 {dimension_numbers = #tpu.dot_dimension_numbers<[1], [0], [0], [1], [0, 0, 1, 1], [], []>} : vector<256x128xbf16>, vector<128x128xbf16>, vector<256x128xf32> -> vector<256x128xf32>
    %36 = arith.addf %29, %35 : vector<256x128xf32>
    %c1_34 = arith.constant 1 : index
    %c0_35 = arith.constant 0 : index
    %c0_36 = arith.constant 0 : index
    %37 = vector.load %arg8[%c1_34, %c0_35, %c0_36] : memref<18x18x128xf32, #tpu.memory_space<vmem>>, vector<16x16x128xf32>
    %38 = vector.shape_cast %37 : vector<16x16x128xf32> to vector<256x128xf32>
    %39 = arith.truncf %38 : vector<256x128xf32> to vector<256x128xbf16>
    %c3 = arith.constant 3 : index
    %c0_37 = arith.constant 0 : index
    %c0_38 = arith.constant 0 : index
    %40 = vector.load %arg4[%c3, %c0_37, %c0_38] : memref<9x128x128xbf16, #tpu.memory_space<vmem>>, vector<1x128x128xbf16>
    %41 = vector.shape_cast %40 : vector<1x128x128xbf16> to vector<128x128xbf16>
    %cst_39 = arith.constant dense<0.000000e+00> : vector<256x128xf32>
    %42 = tpu.matmul %39, %41, %cst_39 {dimension_numbers = #tpu.dot_dimension_numbers<[1], [0], [0], [1], [0, 0, 1, 1], [], []>} : vector<256x128xbf16>, vector<128x128xbf16>, vector<256x128xf32> -> vector<256x128xf32>
    %43 = arith.addf %36, %42 : vector<256x128xf32>
    %c1_40 = arith.constant 1 : index
    %c1_41 = arith.constant 1 : index
    %c0_42 = arith.constant 0 : index
    %44 = vector.load %arg8[%c1_40, %c1_41, %c0_42] : memref<18x18x128xf32, #tpu.memory_space<vmem>>, vector<16x16x128xf32>
    %45 = vector.shape_cast %44 : vector<16x16x128xf32> to vector<256x128xf32>
    %46 = arith.truncf %45 : vector<256x128xf32> to vector<256x128xbf16>
    %c4 = arith.constant 4 : index
    %c0_43 = arith.constant 0 : index
    %c0_44 = arith.constant 0 : index
    %47 = vector.load %arg4[%c4, %c0_43, %c0_44] : memref<9x128x128xbf16, #tpu.memory_space<vmem>>, vector<1x128x128xbf16>
    %48 = vector.shape_cast %47 : vector<1x128x128xbf16> to vector<128x128xbf16>
    %cst_45 = arith.constant dense<0.000000e+00> : vector<256x128xf32>
    %49 = tpu.matmul %46, %48, %cst_45 {dimension_numbers = #tpu.dot_dimension_numbers<[1], [0], [0], [1], [0, 0, 1, 1], [], []>} : vector<256x128xbf16>, vector<128x128xbf16>, vector<256x128xf32> -> vector<256x128xf32>
    %50 = arith.addf %43, %49 : vector<256x128xf32>
    %c1_46 = arith.constant 1 : index
    %c2_47 = arith.constant 2 : index
    %c0_48 = arith.constant 0 : index
    %51 = vector.load %arg8[%c1_46, %c2_47, %c0_48] : memref<18x18x128xf32, #tpu.memory_space<vmem>>, vector<16x16x128xf32>
    %52 = vector.shape_cast %51 : vector<16x16x128xf32> to vector<256x128xf32>
    %53 = arith.truncf %52 : vector<256x128xf32> to vector<256x128xbf16>
    %c5 = arith.constant 5 : index
    %c0_49 = arith.constant 0 : index
    %c0_50 = arith.constant 0 : index
    %54 = vector.load %arg4[%c5, %c0_49, %c0_50] : memref<9x128x128xbf16, #tpu.memory_space<vmem>>, vector<1x128x128xbf16>
    %55 = vector.shape_cast %54 : vector<1x128x128xbf16> to vector<128x128xbf16>
    %cst_51 = arith.constant dense<0.000000e+00> : vector<256x128xf32>
    %56 = tpu.matmul %53, %55, %cst_51 {dimension_numbers = #tpu.dot_dimension_numbers<[1], [0], [0], [1], [0, 0, 1, 1], [], []>} : vector<256x128xbf16>, vector<128x128xbf16>, vector<256x128xf32> -> vector<256x128xf32>
    %57 = arith.addf %50, %56 : vector<256x128xf32>
    %c2_52 = arith.constant 2 : index
    %c0_53 = arith.constant 0 : index
    %c0_54 = arith.constant 0 : index
    %58 = vector.load %arg8[%c2_52, %c0_53, %c0_54] : memref<18x18x128xf32, #tpu.memory_space<vmem>>, vector<16x16x128xf32>
    %59 = vector.shape_cast %58 : vector<16x16x128xf32> to vector<256x128xf32>
    %60 = arith.truncf %59 : vector<256x128xf32> to vector<256x128xbf16>
    %c6 = arith.constant 6 : index
    %c0_55 = arith.constant 0 : index
    %c0_56 = arith.constant 0 : index
    %61 = vector.load %arg4[%c6, %c0_55, %c0_56] : memref<9x128x128xbf16, #tpu.memory_space<vmem>>, vector<1x128x128xbf16>
    %62 = vector.shape_cast %61 : vector<1x128x128xbf16> to vector<128x128xbf16>
    %cst_57 = arith.constant dense<0.000000e+00> : vector<256x128xf32>
    %63 = tpu.matmul %60, %62, %cst_57 {dimension_numbers = #tpu.dot_dimension_numbers<[1], [0], [0], [1], [0, 0, 1, 1], [], []>} : vector<256x128xbf16>, vector<128x128xbf16>, vector<256x128xf32> -> vector<256x128xf32>
    %64 = arith.addf %57, %63 : vector<256x128xf32>
    %c2_58 = arith.constant 2 : index
    %c1_59 = arith.constant 1 : index
    %c0_60 = arith.constant 0 : index
    %65 = vector.load %arg8[%c2_58, %c1_59, %c0_60] : memref<18x18x128xf32, #tpu.memory_space<vmem>>, vector<16x16x128xf32>
    %66 = vector.shape_cast %65 : vector<16x16x128xf32> to vector<256x128xf32>
    %67 = arith.truncf %66 : vector<256x128xf32> to vector<256x128xbf16>
    %c7 = arith.constant 7 : index
    %c0_61 = arith.constant 0 : index
    %c0_62 = arith.constant 0 : index
    %68 = vector.load %arg4[%c7, %c0_61, %c0_62] : memref<9x128x128xbf16, #tpu.memory_space<vmem>>, vector<1x128x128xbf16>
    %69 = vector.shape_cast %68 : vector<1x128x128xbf16> to vector<128x128xbf16>
    %cst_63 = arith.constant dense<0.000000e+00> : vector<256x128xf32>
    %70 = tpu.matmul %67, %69, %cst_63 {dimension_numbers = #tpu.dot_dimension_numbers<[1], [0], [0], [1], [0, 0, 1, 1], [], []>} : vector<256x128xbf16>, vector<128x128xbf16>, vector<256x128xf32> -> vector<256x128xf32>
    %71 = arith.addf %64, %70 : vector<256x128xf32>
    %c2_64 = arith.constant 2 : index
    %c2_65 = arith.constant 2 : index
    %c0_66 = arith.constant 0 : index
    %72 = vector.load %arg8[%c2_64, %c2_65, %c0_66] : memref<18x18x128xf32, #tpu.memory_space<vmem>>, vector<16x16x128xf32>
    %73 = vector.shape_cast %72 : vector<16x16x128xf32> to vector<256x128xf32>
    %74 = arith.truncf %73 : vector<256x128xf32> to vector<256x128xbf16>
    %c8 = arith.constant 8 : index
    %c0_67 = arith.constant 0 : index
    %c0_68 = arith.constant 0 : index
    %75 = vector.load %arg4[%c8, %c0_67, %c0_68] : memref<9x128x128xbf16, #tpu.memory_space<vmem>>, vector<1x128x128xbf16>
    %76 = vector.shape_cast %75 : vector<1x128x128xbf16> to vector<128x128xbf16>
    %cst_69 = arith.constant dense<0.000000e+00> : vector<256x128xf32>
    %77 = tpu.matmul %74, %76, %cst_69 {dimension_numbers = #tpu.dot_dimension_numbers<[1], [0], [0], [1], [0, 0, 1, 1], [], []>} : vector<256x128xbf16>, vector<128x128xbf16>, vector<256x128xf32> -> vector<256x128xf32>
    %78 = arith.addf %71, %77 : vector<256x128xf32>
    %c0_70 = arith.constant 0 : index
    %c0_71 = arith.constant 0 : index
    %c0_72 = arith.constant 0 : index
    %79 = vector.load %arg5[%c0_70, %c0_71, %c0_72] : memref<1x256x128xf32, #tpu.memory_space<vmem>>, vector<1x256x128xf32>
    %80 = vector.shape_cast %79 : vector<1x256x128xf32> to vector<256x128xf32>
    %81 = vector.shape_cast %78 : vector<256x128xf32> to vector<1x256x128xf32>
    tpu.vector_store %arg5[%c0_70, %c0_71, %c0_72], %81 {strides = array<i32>} : memref<1x256x128xf32, #tpu.memory_space<vmem>>, vector<1x256x128xf32>,
    %cst_73 = arith.constant dense<0.000000e+00> : vector<128xf32>
    %82 = vector.multi_reduction <add>, %78, %cst_73 [0] : vector<256x128xf32> to vector<128xf32>
    %83 = vector.shape_cast %82 : vector<128xf32> to vector<1x128xf32>
    %84 = arith.mulf %78, %78 : vector<256x128xf32>
    %cst_74 = arith.constant dense<0.000000e+00> : vector<128xf32>
    %85 = vector.multi_reduction <add>, %84, %cst_74 [0] : vector<256x128xf32> to vector<128xf32>
    %86 = vector.shape_cast %85 : vector<128xf32> to vector<1x128xf32>
    %87 = vector.shape_cast %83 : vector<1x128xf32> to vector<1x1x128xf32>
    %88 = vector.shape_cast %87 : vector<1x1x128xf32> to vector<1x1x128xf32>
    %89 = vector.broadcast %88 : vector<1x1x128xf32> to vector<1x8x128xf32>
    %c0_75 = arith.constant 0 : index
    %c0_76 = arith.constant 0 : index
    %c0_77 = arith.constant 0 : index
    %90 = vector.load %arg6[%c0_75, %c0_76, %c0_77] : memref<1x8x128xf32, #tpu.memory_space<vmem>>, vector<1x8x128xf32>
    tpu.vector_store %arg6[%c0_75, %c0_76, %c0_77], %89 {strides = array<i32>} : memref<1x8x128xf32, #tpu.memory_space<vmem>>, vector<1x8x128xf32>,
    %91 = vector.shape_cast %86 : vector<1x128xf32> to vector<1x1x128xf32>
    %92 = vector.shape_cast %91 : vector<1x1x128xf32> to vector<1x1x128xf32>
    %93 = vector.broadcast %92 : vector<1x1x128xf32> to vector<1x8x128xf32>
    %c0_78 = arith.constant 0 : index
    %c0_79 = arith.constant 0 : index
    %c0_80 = arith.constant 0 : index
    %94 = vector.load %arg7[%c0_78, %c0_79, %c0_80] : memref<1x8x128xf32, #tpu.memory_space<vmem>>, vector<1x8x128xf32>
    tpu.vector_store %arg7[%c0_78, %c0_79, %c0_80], %93 {strides = array<i32>} : memref<1x8x128xf32, #tpu.memory_space<vmem>>, vector<1x8x128xf32>,
    return
  }
  func.func @transform_0(%arg0: i32) -> (i32, i32, i32, i32) {
    %c0_i32 = arith.constant 0 : i32
    %c0_i32_0 = arith.constant 0 : i32
    %c0_i32_1 = arith.constant 0 : i32
    %c0_i32_2 = arith.constant 0 : i32
    return %arg0, %c0_i32, %c0_i32_0, %c0_i32_1 : i32, i32, i32, i32
  }
  func.func @transform_1(%arg0: i32) -> (i32, i32) {
    %c0_i32 = arith.constant 0 : i32
    %c0_i32_0 = arith.constant 0 : i32
    %c0_i32_1 = arith.constant 0 : i32
    return %c0_i32, %c0_i32_0 : i32, i32
  }
  func.func @transform_2(%arg0: i32) -> (i32, i32) {
    %c0_i32 = arith.constant 0 : i32
    %c0_i32_0 = arith.constant 0 : i32
    %c0_i32_1 = arith.constant 0 : i32
    return %c0_i32, %c0_i32_0 : i32, i32
  }
  func.func @transform_3(%arg0: i32) -> (i32, i32, i32) {
    %c0_i32 = arith.constant 0 : i32
    %c0_i32_0 = arith.constant 0 : i32
    %c0_i32_1 = arith.constant 0 : i32
    %c0_i32_2 = arith.constant 0 : i32
    return %c0_i32, %c0_i32_0, %c0_i32_1 : i32, i32, i32
  }
  func.func @transform_4(%arg0: i32) -> (i32, i32, i32) {
    %c0_i32 = arith.constant 0 : i32
    %c0_i32_0 = arith.constant 0 : i32
    %c0_i32_1 = arith.constant 0 : i32
    return %arg0, %c0_i32, %c0_i32_0 : i32, i32, i32
  }
  func.func @transform_5(%arg0: i32) -> (i32, i32, i32) {
    %c0_i32 = arith.constant 0 : i32
    %c0_i32_0 = arith.constant 0 : i32
    %c0_i32_1 = arith.constant 0 : i32
    return %arg0, %c0_i32, %c0_i32_0 : i32, i32, i32
  }
  func.func @transform_6(%arg0: i32) -> (i32, i32, i32) {
    %c0_i32 = arith.constant 0 : i32
    %c0_i32_0 = arith.constant 0 : i32
    %c0_i32_1 = arith.constant 0 : i32
    return %arg0, %c0_i32, %c0_i32_0 : i32, i32, i32
  }
}

module attributes {stable_mosaic.version = 11 : i64} {
  func.func @_bn_act_kernel(%arg0: i32, %arg1: memref<1x256x128xf32, #tpu.memory_space<vmem>>, %arg2: memref<1x128xf32, #tpu.memory_space<vmem>>, %arg3: memref<1x128xf32, #tpu.memory_space<vmem>>, %arg4: memref<1x256x128xf32, #tpu.memory_space<vmem>>) attributes {dimension_semantics = [#tpu.dimension_semantics<parallel>], iteration_bounds = array<i64: 2>, scalar_prefetch = 0 : i64, scratch_operands = 0 : i64, tpu.core_type = #tpu.core_type<tc>, window_params = [{transform_indices = @transform_0, window_bounds = array<i64: 1, 256, 128>}, {pipeline_mode = #tpu.pipeline_mode<synchronous>, transform_indices = @transform_1, window_bounds = array<i64: 1, 128>}, {pipeline_mode = #tpu.pipeline_mode<synchronous>, transform_indices = @transform_2, window_bounds = array<i64: 1, 128>}, {transform_indices = @transform_3, window_bounds = array<i64: 1, 256, 128>}]} {
    %c0 = arith.constant 0 : index
    %c0_0 = arith.constant 0 : index
    %c0_1 = arith.constant 0 : index
    %0 = vector.load %arg1[%c0, %c0_0, %c0_1] : memref<1x256x128xf32, #tpu.memory_space<vmem>>, vector<1x256x128xf32>
    %c0_2 = arith.constant 0 : index
    %c0_3 = arith.constant 0 : index
    %1 = vector.load %arg2[%c0_2, %c0_3] : memref<1x128xf32, #tpu.memory_space<vmem>>, vector<1x128xf32>
    %2 = vector.shape_cast %1 : vector<1x128xf32> to vector<1x1x128xf32>
    %3 = vector.broadcast %2 : vector<1x1x128xf32> to vector<1x256x128xf32>
    %4 = arith.mulf %0, %3 : vector<1x256x128xf32>
    %c0_4 = arith.constant 0 : index
    %c0_5 = arith.constant 0 : index
    %5 = vector.load %arg3[%c0_4, %c0_5] : memref<1x128xf32, #tpu.memory_space<vmem>>, vector<1x128xf32>
    %6 = vector.shape_cast %5 : vector<1x128xf32> to vector<1x1x128xf32>
    %7 = vector.broadcast %6 : vector<1x1x128xf32> to vector<1x256x128xf32>
    %8 = arith.addf %4, %7 : vector<1x256x128xf32>
    %cst = arith.constant 0.000000e+00 : f32
    %9 = vector.broadcast %cst : f32 to vector<1x256x128xf32>
    %10 = arith.maximumf %8, %9 : vector<1x256x128xf32>
    %c0_6 = arith.constant 0 : index
    %c0_7 = arith.constant 0 : index
    %c0_8 = arith.constant 0 : index
    %11 = vector.load %arg4[%c0_6, %c0_7, %c0_8] : memref<1x256x128xf32, #tpu.memory_space<vmem>>, vector<1x256x128xf32>
    tpu.vector_store %arg4[%c0_6, %c0_7, %c0_8], %10 {strides = array<i32>} : memref<1x256x128xf32, #tpu.memory_space<vmem>>, vector<1x256x128xf32>,
    return
  }
  func.func @transform_0(%arg0: i32) -> (i32, i32, i32) {
    %c0_i32 = arith.constant 0 : i32
    %c0_i32_0 = arith.constant 0 : i32
    %c0_i32_1 = arith.constant 0 : i32
    return %arg0, %c0_i32, %c0_i32_0 : i32, i32, i32
  }
  func.func @transform_1(%arg0: i32) -> (i32, i32) {
    %c0_i32 = arith.constant 0 : i32
    %c0_i32_0 = arith.constant 0 : i32
    %c0_i32_1 = arith.constant 0 : i32
    return %c0_i32, %c0_i32_0 : i32, i32
  }
  func.func @transform_2(%arg0: i32) -> (i32, i32) {
    %c0_i32 = arith.constant 0 : i32
    %c0_i32_0 = arith.constant 0 : i32
    %c0_i32_1 = arith.constant 0 : i32
    return %c0_i32, %c0_i32_0 : i32, i32
  }
  func.func @transform_3(%arg0: i32) -> (i32, i32, i32) {
    %c0_i32 = arith.constant 0 : i32
    %c0_i32_0 = arith.constant 0 : i32
    %c0_i32_1 = arith.constant 0 : i32
    return %arg0, %c0_i32, %c0_i32_0 : i32, i32, i32
  }
}

</mosaic_0001>

<llo_original>
// kernel: conv_block_forward.5
$region0: #{conv_block_forward.5}
  #allocation0 [shape = 'u32[]', space=smem, size = 0x4, offset = 0x4, fixed_abs, tag = 'smem constant byte address 0x4 - core index']
  #allocation1 [shape = 'u32[144,128]{1,0:T(1,128)}', space=vmem, size = 0x12000, scoped, tag = 'internal scratch']
  %s0 = inlined_call_operand.vmem [shape: f32[2,256,128], index: 0, kind: input, shape index: {}]
  %s1 = inlined_call_operand.vmem [shape: f32[1,128], index: 1, kind: input, shape index: {}]
  %s2 = inlined_call_operand.vmem [shape: f32[1,128], index: 2, kind: input, shape index: {}]
  %s3 = inlined_call_operand.vmem [shape: f32[2,256,128], index: 3, kind: output, shape index: {}]
  %s4 = sld [smem:[#allocation0]]
  $region45: #{conv_block_forward.5} parent=0
    _
  %s6 = ssub.s32 1, %s4
  %s7 = scalar_select 0, %s6, %s4
  loop: start=0, step=1, limit=4
  $region2: #{conv_block_forward.5} parent=0 // loop_pre_header
    _
  $region3: #{conv_block_forward.5} parent=0 // loop_header
    %s9 = sphi 0, %s13
    %p10 = scmp.ge.s32.totalorder %s9, 4
    %s19 = sphi 0, %s21
    %s22 = sphi 0, %s19
    %s23 = sphi 0, %s22
    %s39 = sphi 0, %s23
    %s43 = sphi 0, %s43
    %s45 = sphi 0, %s43
    %s46 = sphi 0, %s45
    %s60 = sphi 0, %s46
    %s64 = sphi 0, %s64
    %s66 = sphi 0, %s64
    %s67 = sphi 0, %s66
    %s81 = sphi 0, %s67
    %s87 = sphi 0, %s89
    %s90 = sphi 0, %s87
    %s91 = sphi 0, %s90
    %s107 = sphi 0, %s91
  $region4: #{conv_block_forward.5} parent=0 // loop_header_branch
    %12 = sbr.rel (%p10) target = $region8
  $region5: #{conv_block_forward.5} parent=0 // loop_body
    %s14 = ssub.s32 %s9, 1
    %s15 = ssub.s32 %s9, 2
    %s16 = sadd.s32 %s9, 1
    %s17 = ssub.s32 %s9, %s16
    %p18 = scmp.eq.s32.totalorder %s17, 0
    %s20 = sadd.s32 %s19, 1
    %s21 = scalar_select %p18, %s19, %s20
    %p24 = pneg %p18
    %p25 = scmp.eq.s32.totalorder %s9, 1
    %p26 = por %p24, %p25
    %p27 = scmp.ne.s32.totalorder %s19, %s22
    %p28 = scmp.eq.s32.totalorder %s9, 0
    %p29 = por %p27, %p28
    %p30 = scmp.ne.s32.totalorder %s19, %s22
    %p31 = scmp.eq.s32.totalorder %s14, 1
    %p32 = por %p30, %p31
    %p33 = scmp.ne.s32.totalorder %s22, %s23
    %p34 = scmp.eq.s32.totalorder %s14, 0
    %p35 = por %p33, %p34
    %p36 = scmp.ne.s32.totalorder %s22, %s23
    %p37 = scmp.eq.s32.totalorder %s15, 1
    %p38 = por %p36, %p37
    %p40 = scmp.ne.s32.totalorder %s23, %s39
    %p41 = scmp.eq.s32.totalorder %s15, 0
    %p42 = por %p40, %p41
    %s44 = sadd.s32 %s43, 1
    %p47 = scmp.eq.s32.totalorder %s9, 1
    %p48 = scmp.ne.s32.totalorder %s43, %s45
    %p49 = scmp.eq.s32.totalorder %s9, 0
    %p50 = por %p48, %p49
    %p51 = scmp.ne.s32.totalorder %s43, %s45
    %p52 = scmp.eq.s32.totalorder %s14, 1
    %p53 = por %p51, %p52
    %p54 = scmp.ne.s32.totalorder %s45, %s46
    %p55 = scmp.eq.s32.totalorder %s14, 0
    %p56 = por %p54, %p55
    %p57 = scmp.ne.s32.totalorder %s45, %s46
    %p58 = scmp.eq.s32.totalorder %s15, 1
    %p59 = por %p57, %p58
    %p61 = scmp.ne.s32.totalorder %s46, %s60
    %p62 = scmp.eq.s32.totalorder %s15, 0
    %p63 = por %p61, %p62
    %s65 = sadd.s32 %s64, 1
    %p68 = scmp.eq.s32.totalorder %s9, 1
    %p69 = scmp.ne.s32.totalorder %s64, %s66
    %p70 = scmp.eq.s32.totalorder %s9, 0
    %p71 = por %p69, %p70
    %p72 = scmp.ne.s32.totalorder %s64, %s66
    %p73 = scmp.eq.s32.totalorder %s14, 1
    %p74 = por %p72, %p73
    %p75 = scmp.ne.s32.totalorder %s66, %s67
    %p76 = scmp.eq.s32.totalorder %s14, 0
    %p77 = por %p75, %p76
    %p78 = scmp.ne.s32.totalorder %s66, %s67
    %p79 = scmp.eq.s32.totalorder %s15, 1
    %p80 = por %p78, %p79
    %p82 = scmp.ne.s32.totalorder %s67, %s81
    %p83 = scmp.eq.s32.totalorder %s15, 0
    %p84 = por %p82, %p83
    %s85 = ssub.s32 %s9, %s16
    %p86 = scmp.eq.s32.totalorder %s85, 0
    %s88 = sadd.s32 %s87, 1
    %s89 = scalar_select %p86, %s87, %s88
    %p92 = pneg %p86
    %p93 = scmp.eq.s32.totalorder %s9, 1
    %p94 = por %p92, %p93
    %p95 = scmp.ne.s32.totalorder %s87, %s90
    %p96 = scmp.eq.s32.totalorder %s9, 0
    %p97 = por %p95, %p96
    %p98 = scmp.ne.s32.totalorder %s87, %s90
    %p99 = scmp.eq.s32.totalorder %s14, 1
    %p100 = por %p98, %p99
    %p101 = scmp.ne.s32.totalorder %s90, %s91
    %p102 = scmp.eq.s32.totalorder %s14, 0
    %p103 = por %p101, %p102
    %p104 = scmp.ne.s32.totalorder %s90, %s91
    %p105 = scmp.eq.s32.totalorder %s15, 1
    %p106 = por %p104, %p105
    %p108 = scmp.ne.s32.totalorder %s91, %s107
    %p109 = scmp.eq.s32.totalorder %s15, 0
    %p110 = por %p108, %p109
    %p111 = scmp.le.s32.totalorder 1, %s9
    %p112 = scmp.lt.s32.totalorder %s9, 3
    %p113 = pnand %p111, %p112
    %p114 = pneg %p113
    // Predicated region
    $region9: #{conv_block_forward.5} parent=5 // pred_check
      _
    $region10: #{conv_block_forward.5} parent=5 // pred_check_branch
      %116 = sbr.rel (%p113) target = $region12
    $region11: #{conv_block_forward.5} parent=5 // pred_region
      %s117 = ssub.s32 %s9, 1
      // Predicated region
      $region13: #{conv_block_forward.5} parent=11 // pred_check
        %p118 = pneg %p56
      $region14: #{conv_block_forward.5} parent=11 // pred_check_branch
        %120 = sbr.rel (%p118) target = $region16
      $region15: #{conv_block_forward.5} parent=11 // pred_region
        _
      $region16: #{conv_block_forward.5} parent=11 // pred_fallthru
        _
      // Predicated region
      $region17: #{conv_block_forward.5} parent=11 // pred_check
        %p121 = pneg %p77
      $region18: #{conv_block_forward.5} parent=11 // pred_check_branch
        %123 = sbr.rel (%p121) target = $region20
      $region19: #{conv_block_forward.5} parent=11 // pred_region
        _
      $region20: #{conv_block_forward.5} parent=11 // pred_fallthru
        _
    $region12: #{conv_block_forward.5} parent=5 // pred_fallthru
      _
    %p124 = scmp.lt.s32.totalorder %s9, 2
    // Predicated region
    $region21: #{conv_block_forward.5} parent=5 // pred_check
      %p125 = pneg %p124
    $region22: #{conv_block_forward.5} parent=5 // pred_check_branch
      %127 = sbr.rel (%p125) target = $region24
    $region23: #{conv_block_forward.5} parent=5 // pred_region
      // Predicated region
      $region25: #{conv_block_forward.5} parent=23 // pred_check
        %p128 = pneg %p29
      $region26: #{conv_block_forward.5} parent=23 // pred_check_branch
        %130 = sbr.rel (%p128) target = $region28
      $region27: #{conv_block_forward.5} parent=23 // pred_region
        %p131 = scmp.lt.s32.totalorder %s9, 1
        %s132 = scalar_select %p131, %s9, 1
        %s133 = smul.addr %s132, 32
        %s134 = smul.addr %s133, 8
        %s135 = scalar_lea.vmem %s0, %s134
      $region28: #{conv_block_forward.5} parent=23 // pred_fallthru
        _
    $region24: #{conv_block_forward.5} parent=5 // pred_fallthru
      _
    %p136 = scmp.le.s32.totalorder 1, %s9
    %p137 = scmp.lt.s32.totalorder %s9, 3
    %p138 = pnand %p136, %p137
    %p139 = pneg %p138
    // Predicated region
    $region29: #{conv_block_forward.5} parent=5 // pred_check
      _
    $region30: #{conv_block_forward.5} parent=5 // pred_check_branch
      %141 = sbr.rel (%p138) target = $region32
    $region31: #{conv_block_forward.5} parent=5 // pred_region
      %s142 = ssub.s32 %s9, 1
      %p143 = scmp.lt.s32.totalorder %s14, 1
      %s144 = scalar_select %p143, %s14, 1
      %s145 = smul.addr %s144, 32
      %s146 = smul.addr %s145, 8
      %s147 = scalar_lea.vmem %s0, %s146
      %p148 = pneg %p35
      %p149 = pneg %p32
      %p150 = pneg %p56
      %p151 = pneg %p53
      %p152 = pneg %p77
      %p153 = pneg %p74
      %p154 = pneg %p103
      %p155 = pneg %p100
      %p156 = scmp.lt.s32.totalorder %s14, 1
      %s157 = scalar_select %p156, %s14, 1
      %s158 = smul.addr %s157, 32
      %s159 = smul.addr %s158, 8
      %s160 = scalar_lea.vmem %s3, %s159
      %p161 = scmp.lt.s32.totalorder %s14, 1
      %s162 = scalar_select %p161, %s14, 1
      %s163 = smul.addr %s162, 32
      %s164 = smul.addr %s163, 8
      %s165 = scalar_lea.vmem %s0, %s164
      %p166 = scmp.lt.s32.totalorder %s14, 1
      %s167 = scalar_select %p166, %s14, 1
      %s168 = smul.addr %s167, 32
      %s169 = smul.addr %s168, 8
      %s170 = scalar_lea.vmem %s3, %s169
      %v171 = vld [vmem:[%s165] sm:$0xff]
      %v172 = vld [vmem:[%s165 + $0x8] sm:$0xff]
      %v173 = vld [vmem:[%s165 + $0x10] sm:$0xff]
      %v174 = vld [vmem:[%s165 + $0x18] sm:$0xff]
      %v175 = vld [vmem:[%s165 + $0x20] sm:$0xff]
      %v176 = vld [vmem:[%s165 + $0x28] sm:$0xff]
      %v177 = vld [vmem:[%s165 + $0x30] sm:$0xff]
      %v178 = vld [vmem:[%s165 + $0x38] sm:$0xff]
      %v179 = vld [vmem:[%s165 + $0x40] sm:$0xff]
      %v180 = vld [vmem:[%s165 + $0x48] sm:$0xff]
      %v181 = vld [vmem:[%s165 + $0x50] sm:$0xff]
      %v182 = vld [vmem:[%s165 + $0x58] sm:$0xff]
      %v183 = vld [vmem:[%s165 + $0x60] sm:$0xff]
      %v184 = vld [vmem:[%s165 + $0x68] sm:$0xff]
      %v185 = vld [vmem:[%s165 + $0x70] sm:$0xff]
      %v186 = vld [vmem:[%s165 + $0x78] sm:$0xff]
      %v187 = vld [vmem:[%s165 + $0x80] sm:$0xff]
      %v188 = vld [vmem:[%s165 + $0x88] sm:$0xff]
      %v189 = vld [vmem:[%s165 + $0x90] sm:$0xff]
      %v190 = vld [vmem:[%s165 + $0x98] sm:$0xff]
      %v191 = vld [vmem:[%s165 + $0xa0] sm:$0xff]
      %v192 = vld [vmem:[%s165 + $0xa8] sm:$0xff]
      %v193 = vld [vmem:[%s165 + $0xb0] sm:$0xff]
      %v194 = vld [vmem:[%s165 + $0xb8] sm:$0xff]
      %v195 = vld [vmem:[%s165 + $0xc0] sm:$0xff]
      %v196 = vld [vmem:[%s165 + $0xc8] sm:$0xff]
      %v197 = vld [vmem:[%s165 + $0xd0] sm:$0xff]
      %v198 = vld [vmem:[%s165 + $0xd8] sm:$0xff]
      %v199 = vld [vmem:[%s165 + $0xe0] sm:$0xff]
      %v200 = vld [vmem:[%s165 + $0xe8] sm:$0xff]
      %v201 = vld [vmem:[%s165 + $0xf0] sm:$0xff]
      %v202 = vld [vmem:[%s165 + $0xf8] sm:$0xff]
      %v203 = vld [vmem:[%s1] sm:$0x1]
      %v205 = vlaneseq
      %v206 = vshrl.u32 %v205, 7
      %v207 = vsub.s32 0, %v206
      %v208 = vrot.slane %v203, %v207
      %v210 = vmul.f32 %v171, %v208
      %v211 = vmul.f32 %v172, %v208
      %v212 = vmul.f32 %v173, %v208
      %v213 = vmul.f32 %v174, %v208
      %v214 = vmul.f32 %v175, %v208
      %v215 = vmul.f32 %v176, %v208
      %v216 = vmul.f32 %v177, %v208
      %v217 = vmul.f32 %v178, %v208
      %v218 = vmul.f32 %v179, %v208
      %v219 = vmul.f32 %v180, %v208
      %v220 = vmul.f32 %v181, %v208
      %v221 = vmul.f32 %v182, %v208
      %v222 = vmul.f32 %v183, %v208
      %v223 = vmul.f32 %v184, %v208
      %v224 = vmul.f32 %v185, %v208
      %v225 = vmul.f32 %v186, %v208
      %v226 = vmul.f32 %v187, %v208
      %v227 = vmul.f32 %v188, %v208
      %v228 = vmul.f32 %v189, %v208
      %v229 = vmul.f32 %v190, %v208
      %v230 = vmul.f32 %v191, %v208
      %v231 = vmul.f32 %v192, %v208
      %v232 = vmul.f32 %v193, %v208
      %v233 = vmul.f32 %v194, %v208
      %v234 = vmul.f32 %v195, %v208
      %v235 = vmul.f32 %v196, %v208
      %v236 = vmul.f32 %v197, %v208
      %v237 = vmul.f32 %v198, %v208
      %v238 = vmul.f32 %v199, %v208
      %v239 = vmul.f32 %v200, %v208
      %v240 = vmul.f32 %v201, %v208
      %v241 = vmul.f32 %v202, %v208
      %v242 = vld [vmem:[%s2] sm:$0x1]
      %v244 = vlaneseq
      %v245 = vshrl.u32 %v244, 7
      %v246 = vsub.s32 0, %v245
      %v247 = vrot.slane %v242, %v246
      %v249 = vadd.f32 %v210, %v247
      %v250 = vadd.f32 %v211, %v247
      %v251 = vadd.f32 %v212, %v247
      %v252 = vadd.f32 %v213, %v247
      %v253 = vadd.f32 %v214, %v247
      %v254 = vadd.f32 %v215, %v247
      %v255 = vadd.f32 %v216, %v247
      %v256 = vadd.f32 %v217, %v247
      %v257 = vadd.f32 %v218, %v247
      %v258 = vadd.f32 %v219, %v247
      %v259 = vadd.f32 %v220, %v247
      %v260 = vadd.f32 %v221, %v247
      %v261 = vadd.f32 %v222, %v247
      %v262 = vadd.f32 %v223, %v247
      %v263 = vadd.f32 %v224, %v247
      %v264 = vadd.f32 %v225, %v247
      %v265 = vadd.f32 %v226, %v247
      %v266 = vadd.f32 %v227, %v247
      %v267 = vadd.f32 %v228, %v247
      %v268 = vadd.f32 %v229, %v247
      %v269 = vadd.f32 %v230, %v247
      %v270 = vadd.f32 %v231, %v247
      %v271 = vadd.f32 %v232, %v247
      %v272 = vadd.f32 %v233, %v247
      %v273 = vadd.f32 %v234, %v247
      %v274 = vadd.f32 %v235, %v247
      %v275 = vadd.f32 %v236, %v247
      %v276 = vadd.f32 %v237, %v247
      %v277 = vadd.f32 %v238, %v247
      %v278 = vadd.f32 %v239, %v247
      %v279 = vadd.f32 %v240, %v247
      %v280 = vadd.f32 %v241, %v247
      %v281 = vmax.f32 %v249, 0.0
      %v282 = vmax.f32 %v250, 0.0
      %v283 = vmax.f32 %v251, 0.0
      %v284 = vmax.f32 %v252, 0.0
      %v285 = vmax.f32 %v253, 0.0
      %v286 = vmax.f32 %v254, 0.0
      %v287 = vmax.f32 %v255, 0.0
      %v288 = vmax.f32 %v256, 0.0
      %v289 = vmax.f32 %v257, 0.0
      %v290 = vmax.f32 %v258, 0.0
      %v291 = vmax.f32 %v259, 0.0
      %v292 = vmax.f32 %v260, 0.0
      %v293 = vmax.f32 %v261, 0.0
      %v294 = vmax.f32 %v262, 0.0
      %v295 = vmax.f32 %v263, 0.0
      %v296 = vmax.f32 %v264, 0.0
      %v297 = vmax.f32 %v265, 0.0
      %v298 = vmax.f32 %v266, 0.0
      %v299 = vmax.f32 %v267, 0.0
      %v300 = vmax.f32 %v268, 0.0
      %v301 = vmax.f32 %v269, 0.0
      %v302 = vmax.f32 %v270, 0.0
      %v303 = vmax.f32 %v271, 0.0
      %v304 = vmax.f32 %v272, 0.0
      %v305 = vmax.f32 %v273, 0.0
      %v306 = vmax.f32 %v274, 0.0
      %v307 = vmax.f32 %v275, 0.0
      %v308 = vmax.f32 %v276, 0.0
      %v309 = vmax.f32 %v277, 0.0
      %v310 = vmax.f32 %v278, 0.0
      %v311 = vmax.f32 %v279, 0.0
      %v312 = vmax.f32 %v280, 0.0
      %313 = vst [vmem:[%s170] sm:$0xff] %v281
      %314 = vst [vmem:[%s170 + $0x8] sm:$0xff] %v282
      %315 = vst [vmem:[%s170 + $0x10] sm:$0xff] %v283
      %316 = vst [vmem:[%s170 + $0x18] sm:$0xff] %v284
      %317 = vst [vmem:[%s170 + $0x20] sm:$0xff] %v285
      %318 = vst [vmem:[%s170 + $0x28] sm:$0xff] %v286
      %319 = vst [vmem:[%s170 + $0x30] sm:$0xff] %v287
      %320 = vst [vmem:[%s170 + $0x38] sm:$0xff] %v288
      %321 = vst [vmem:[%s170 + $0x40] sm:$0xff] %v289
      %322 = vst [vmem:[%s170 + $0x48] sm:$0xff] %v290
      %323 = vst [vmem:[%s170 + $0x50] sm:$0xff] %v291
      %324 = vst [vmem:[%s170 + $0x58] sm:$0xff] %v292
      %325 = vst [vmem:[%s170 + $0x60] sm:$0xff] %v293
      %326 = vst [vmem:[%s170 + $0x68] sm:$0xff] %v294
      %327 = vst [vmem:[%s170 + $0x70] sm:$0xff] %v295
      %328 = vst [vmem:[%s170 + $0x78] sm:$0xff] %v296
      %329 = vst [vmem:[%s170 + $0x80] sm:$0xff] %v297
      %330 = vst [vmem:[%s170 + $0x88] sm:$0xff] %v298
      %331 = vst [vmem:[%s170 + $0x90] sm:$0xff] %v299
      %332 = vst [vmem:[%s170 + $0x98] sm:$0xff] %v300
      %333 = vst [vmem:[%s170 + $0xa0] sm:$0xff] %v301
      %334 = vst [vmem:[%s170 + $0xa8] sm:$0xff] %v302
      %335 = vst [vmem:[%s170 + $0xb0] sm:$0xff] %v303
      %336 = vst [vmem:[%s170 + $0xb8] sm:$0xff] %v304
      %337 = vst [vmem:[%s170 + $0xc0] sm:$0xff] %v305
      %338 = vst [vmem:[%s170 + $0xc8] sm:$0xff] %v306
      %339 = vst [vmem:[%s170 + $0xd0] sm:$0xff] %v307
      %340 = vst [vmem:[%s170 + $0xd8] sm:$0xff] %v308
      %341 = vst [vmem:[%s170 + $0xe0] sm:$0xff] %v309
      %342 = vst [vmem:[%s170 + $0xe8] sm:$0xff] %v310
      %343 = vst [vmem:[%s170 + $0xf0] sm:$0xff] %v311
      %344 = vst [vmem:[%s170 + $0xf8] sm:$0xff] %v312
      %p345 = scmp.lt.s32.totalorder %s14, 1
      %s346 = scalar_select %p345, %s14, 1
      %s347 = smul.addr %s346, 32
      %s348 = smul.addr %s347, 8
      %s349 = scalar_lea.vmem %s3, %s348
      // Predicated region
      $region33: #{conv_block_forward.5} parent=31 // pred_check
        %p350 = pneg %p100
      $region34: #{conv_block_forward.5} parent=31 // pred_check_branch
        %352 = sbr.rel (%p350) target = $region36
      $region35: #{conv_block_forward.5} parent=31 // pred_region
        _
      $region36: #{conv_block_forward.5} parent=31 // pred_fallthru
        _
    $region32: #{conv_block_forward.5} parent=5 // pred_fallthru
      _
    %p353 = scmp.le.s32.totalorder 2, %s9
    // Predicated region
    $region37: #{conv_block_forward.5} parent=5 // pred_check
      %p354 = pneg %p353
    $region38: #{conv_block_forward.5} parent=5 // pred_check_branch
      %356 = sbr.rel (%p354) target = $region40
    $region39: #{conv_block_forward.5} parent=5 // pred_region
      %s357 = ssub.s32 %s9, 2
      // Predicated region
      $region41: #{conv_block_forward.5} parent=39 // pred_check
        %p358 = pneg %p106
      $region42: #{conv_block_forward.5} parent=39 // pred_check_branch
        %360 = sbr.rel (%p358) target = $region44
      $region43: #{conv_block_forward.5} parent=39 // pred_region
        %p361 = scmp.lt.s32.totalorder %s15, 1
        %s362 = scalar_select %p361, %s15, 1
        %s363 = smul.addr %s362, 32
        %s364 = smul.addr %s363, 8
        %s365 = scalar_lea.vmem %s3, %s364
      $region44: #{conv_block_forward.5} parent=39 // pred_fallthru
        _
    $region40: #{conv_block_forward.5} parent=5 // pred_fallthru
      _
  $region6: #{conv_block_forward.5} parent=0 // loop_footer
    %s13 = sadd.s32 1, %s9
  $region7: #{conv_block_forward.5} parent=0 // loop_footer_branch
    %8 = sbr.rel target = $region3
  $region8: #{conv_block_forward.5} parent=0 // loop_exit
    _

// kernel: conv_block_forward.4
$region0: #{conv_block_forward.4}
  #allocation0 [shape = 'u32[]', space=smem, size = 0x4, offset = 0x4, fixed_abs, tag = 'smem constant byte address 0x4 - core index']
  #allocation1 [shape = 'u32[144,128]{1,0:T(1,128)}', space=vmem, size = 0x12000, scoped, tag = 'internal scratch']
  #allocation2 [shape = 'f32[18,18,128]{2,1,0:T(8,128)}', space=vmem, size = 0x36000, scoped, tag = 'scratch operand']
  %s0 = inlined_call_operand.vmem [shape: f32[2,16,16,128], index: 0, kind: input, shape index: {}]
  %s1 = inlined_call_operand.vmem [shape: f32[1,128], index: 1, kind: input, shape index: {}]
  %s2 = inlined_call_operand.vmem [shape: f32[1,128], index: 2, kind: input, shape index: {}]
  %s3 = inlined_call_operand.vmem [shape: bf16[9,128,128], index: 3, kind: input, shape index: {}]
  %s4 = inlined_call_operand.vmem [shape: f32[2,256,128], index: 4, kind: output, shape index: {0}]
  %s5 = inlined_call_operand.vmem [shape: f32[2,8,128], index: 5, kind: output, shape index: {1}]
  %s6 = inlined_call_operand.vmem [shape: f32[2,8,128], index: 6, kind: output, shape index: {2}]
  %7 = xla_tuple %s4, %s5, %s6
  %s8 = sld [smem:[#allocation0]]
  $region65: #{conv_block_forward.4} parent=0
    _
  %s10 = ssub.s32 1, %s8
  %s11 = scalar_select 0, %s10, %s8
  loop: start=0, step=1, limit=4
  $region2: #{conv_block_forward.4} parent=0 // loop_pre_header
    _
  $region3: #{conv_block_forward.4} parent=0 // loop_header
    %s13 = sphi 0, %s17
    %p14 = scmp.ge.s32.totalorder %s13, 4
    %s23 = sphi 0, %s25
    %s26 = sphi 0, %s23
    %s27 = sphi 0, %s26
    %s43 = sphi 0, %s27
    %s47 = sphi 0, %s47
    %s49 = sphi 0, %s47
    %s50 = sphi 0, %s49
    %s64 = sphi 0, %s50
    %s68 = sphi 0, %s68
    %s70 = sphi 0, %s68
    %s71 = sphi 0, %s70
    %s85 = sphi 0, %s71
    %s89 = sphi 0, %s89
    %s91 = sphi 0, %s89
    %s92 = sphi 0, %s91
    %s106 = sphi 0, %s92
    %s112 = sphi 0, %s114
    %s115 = sphi 0, %s112
    %s116 = sphi 0, %s115
    %s132 = sphi 0, %s116
    %s138 = sphi 0, %s140
    %s141 = sphi 0, %s138
    %s142 = sphi 0, %s141
    %s158 = sphi 0, %s142
    %s164 = sphi 0, %s166
    %s167 = sphi 0, %s164
    %s168 = sphi 0, %s167
    %s184 = sphi 0, %s168
  $region4: #{conv_block_forward.4} parent=0 // loop_header_branch
    %16 = sbr.rel (%p14) target = $region8
  $region5: #{conv_block_forward.4} parent=0 // loop_body
    %s18 = ssub.s32 %s13, 1
    %s19 = ssub.s32 %s13, 2
    %s20 = sadd.s32 %s13, 1
    %s21 = ssub.s32 %s13, %s20
    %p22 = scmp.eq.s32.totalorder %s21, 0
    %s24 = sadd.s32 %s23, 1
    %s25 = scalar_select %p22, %s23, %s24
    %p28 = pneg %p22
    %p29 = scmp.eq.s32.totalorder %s13, 1
    %p30 = por %p28, %p29
    %p31 = scmp.ne.s32.totalorder %s23, %s26
    %p32 = scmp.eq.s32.totalorder %s13, 0
    %p33 = por %p31, %p32
    %p34 = scmp.ne.s32.totalorder %s23, %s26
    %p35 = scmp.eq.s32.totalorder %s18, 1
    %p36 = por %p34, %p35
    %p37 = scmp.ne.s32.totalorder %s26, %s27
    %p38 = scmp.eq.s32.totalorder %s18, 0
    %p39 = por %p37, %p38
    %p40 = scmp.ne.s32.totalorder %s26, %s27
    %p41 = scmp.eq.s32.totalorder %s19, 1
    %p42 = por %p40, %p41
    %p44 = scmp.ne.s32.totalorder %s27, %s43
    %p45 = scmp.eq.s32.totalorder %s19, 0
    %p46 = por %p44, %p45
    %s48 = sadd.s32 %s47, 1
    %p51 = scmp.eq.s32.totalorder %s13, 1
    %p52 = scmp.ne.s32.totalorder %s47, %s49
    %p53 = scmp.eq.s32.totalorder %s13, 0
    %p54 = por %p52, %p53
    %p55 = scmp.ne.s32.totalorder %s47, %s49
    %p56 = scmp.eq.s32.totalorder %s18, 1
    %p57 = por %p55, %p56
    %p58 = scmp.ne.s32.totalorder %s49, %s50
    %p59 = scmp.eq.s32.totalorder %s18, 0
    %p60 = por %p58, %p59
    %p61 = scmp.ne.s32.totalorder %s49, %s50
    %p62 = scmp.eq.s32.totalorder %s19, 1
    %p63 = por %p61, %p62
    %p65 = scmp.ne.s32.totalorder %s50, %s64
    %p66 = scmp.eq.s32.totalorder %s19, 0
    %p67 = por %p65, %p66
    %s69 = sadd.s32 %s68, 1
    %p72 = scmp.eq.s32.totalorder %s13, 1
    %p73 = scmp.ne.s32.totalorder %s68, %s70
    %p74 = scmp.eq.s32.totalorder %s13, 0
    %p75 = por %p73, %p74
    %p76 = scmp.ne.s32.totalorder %s68, %s70
    %p77 = scmp.eq.s32.totalorder %s18, 1
    %p78 = por %p76, %p77
    %p79 = scmp.ne.s32.totalorder %s70, %s71
    %p80 = scmp.eq.s32.totalorder %s18, 0
    %p81 = por %p79, %p80
    %p82 = scmp.ne.s32.totalorder %s70, %s71
    %p83 = scmp.eq.s32.totalorder %s19, 1
    %p84 = por %p82, %p83
    %p86 = scmp.ne.s32.totalorder %s71, %s85
    %p87 = scmp.eq.s32.totalorder %s19, 0
    %p88 = por %p86, %p87
    %s90 = sadd.s32 %s89, 1
    %p93 = scmp.eq.s32.totalorder %s13, 1
    %p94 = scmp.ne.s32.totalorder %s89, %s91
    %p95 = scmp.eq.s32.totalorder %s13, 0
    %p96 = por %p94, %p95
    %p97 = scmp.ne.s32.totalorder %s89, %s91
    %p98 = scmp.eq.s32.totalorder %s18, 1
    %p99 = por %p97, %p98
    %p100 = scmp.ne.s32.totalorder %s91, %s92
    %p101 = scmp.eq.s32.totalorder %s18, 0
    %p102 = por %p100, %p101
    %p103 = scmp.ne.s32.totalorder %s91, %s92
    %p104 = scmp.eq.s32.totalorder %s19, 1
    %p105 = por %p103, %p104
    %p107 = scmp.ne.s32.totalorder %s92, %s106
    %p108 = scmp.eq.s32.totalorder %s19, 0
    %p109 = por %p107, %p108
    %s110 = ssub.s32 %s13, %s20
    %p111 = scmp.eq.s32.totalorder %s110, 0
    %s113 = sadd.s32 %s112, 1
    %s114 = scalar_select %p111, %s112, %s113
    %p117 = pneg %p111
    %p118 = scmp.eq.s32.totalorder %s13, 1
    %p119 = por %p117, %p118
    %p120 = scmp.ne.s32.totalorder %s112, %s115
    %p121 = scmp.eq.s32.totalorder %s13, 0
    %p122 = por %p120, %p121
    %p123 = scmp.ne.s32.totalorder %s112, %s115
    %p124 = scmp.eq.s32.totalorder %s18, 1
    %p125 = por %p123, %p124
    %p126 = scmp.ne.s32.totalorder %s115, %s116
    %p127 = scmp.eq.s32.totalorder %s18, 0
    %p128 = por %p126, %p127
    %p129 = scmp.ne.s32.totalorder %s115, %s116
    %p130 = scmp.eq.s32.totalorder %s19, 1
    %p131 = por %p129, %p130
    %p133 = scmp.ne.s32.totalorder %s116, %s132
    %p134 = scmp.eq.s32.totalorder %s19, 0
    %p135 = por %p133, %p134
    %s136 = ssub.s32 %s13, %s20
    %p137 = scmp.eq.s32.totalorder %s136, 0
    %s139 = sadd.s32 %s138, 1
    %s140 = scalar_select %p137, %s138, %s139
    %p143 = pneg %p137
    %p144 = scmp.eq.s32.totalorder %s13, 1
    %p145 = por %p143, %p144
    %p146 = scmp.ne.s32.totalorder %s138, %s141
    %p147 = scmp.eq.s32.totalorder %s13, 0
    %p148 = por %p146, %p147
    %p149 = scmp.ne.s32.totalorder %s138, %s141
    %p150 = scmp.eq.s32.totalorder %s18, 1
    %p151 = por %p149, %p150
    %p152 = scmp.ne.s32.totalorder %s141, %s142
    %p153 = scmp.eq.s32.totalorder %s18, 0
    %p154 = por %p152, %p153
    %p155 = scmp.ne.s32.totalorder %s141, %s142
    %p156 = scmp.eq.s32.totalorder %s19, 1
    %p157 = por %p155, %p156
    %p159 = scmp.ne.s32.totalorder %s142, %s158
    %p160 = scmp.eq.s32.totalorder %s19, 0
    %p161 = por %p159, %p160
    %s162 = ssub.s32 %s13, %s20
    %p163 = scmp.eq.s32.totalorder %s162, 0
    %s165 = sadd.s32 %s164, 1
    %s166 = scalar_select %p163, %s164, %s165
    %p169 = pneg %p163
    %p170 = scmp.eq.s32.totalorder %s13, 1
    %p171 = por %p169, %p170
    %p172 = scmp.ne.s32.totalorder %s164, %s167
    %p173 = scmp.eq.s32.totalorder %s13, 0
    %p174 = por %p172, %p173
    %p175 = scmp.ne.s32.totalorder %s164, %s167
    %p176 = scmp.eq.s32.totalorder %s18, 1
    %p177 = por %p175, %p176
    %p178 = scmp.ne.s32.totalorder %s167, %s168
    %p179 = scmp.eq.s32.totalorder %s18, 0
    %p180 = por %p178, %p179
    %p181 = scmp.ne.s32.totalorder %s167, %s168
    %p182 = scmp.eq.s32.totalorder %s19, 1
    %p183 = por %p181, %p182
    %p185 = scmp.ne.s32.totalorder %s168, %s184
    %p186 = scmp.eq.s32.totalorder %s19, 0
    %p187 = por %p185, %p186
    %p188 = scmp.le.s32.totalorder 1, %s13
    %p189 = scmp.lt.s32.totalorder %s13, 3
    %p190 = pnand %p188, %p189
    %p191 = pneg %p190
    // Predicated region
    $region9: #{conv_block_forward.4} parent=5 // pred_check
      _
    $region10: #{conv_block_forward.4} parent=5 // pred_check_branch
      %193 = sbr.rel (%p190) target = $region12
    $region11: #{conv_block_forward.4} parent=5 // pred_region
      %s194 = ssub.s32 %s13, 1
      // Predicated region
      $region13: #{conv_block_forward.4} parent=11 // pred_check
        %p195 = pneg %p60
      $region14: #{conv_block_forward.4} parent=11 // pred_check_branch
        %197 = sbr.rel (%p195) target = $region16
      $region15: #{conv_block_forward.4} parent=11 // pred_region
        _
      $region16: #{conv_block_forward.4} parent=11 // pred_fallthru
        _
      // Predicated region
      $region17: #{conv_block_forward.4} parent=11 // pred_check
        %p198 = pneg %p81
      $region18: #{conv_block_forward.4} parent=11 // pred_check_branch
        %200 = sbr.rel (%p198) target = $region20
      $region19: #{conv_block_forward.4} parent=11 // pred_region
        _
      $region20: #{conv_block_forward.4} parent=11 // pred_fallthru
        _
      // Predicated region
      $region21: #{conv_block_forward.4} parent=11 // pred_check
        %p201 = pneg %p102
      $region22: #{conv_block_forward.4} parent=11 // pred_check_branch
        %203 = sbr.rel (%p201) target = $region24
      $region23: #{conv_block_forward.4} parent=11 // pred_region
        _
      $region24: #{conv_block_forward.4} parent=11 // pred_fallthru
        _
    $region12: #{conv_block_forward.4} parent=5 // pred_fallthru
      _
    %p204 = scmp.lt.s32.totalorder %s13, 2
    // Predicated region
    $region25: #{conv_block_forward.4} parent=5 // pred_check
      %p205 = pneg %p204
    $region26: #{conv_block_forward.4} parent=5 // pred_check_branch
      %207 = sbr.rel (%p205) target = $region28
    $region27: #{conv_block_forward.4} parent=5 // pred_region
      // Predicated region
      $region29: #{conv_block_forward.4} parent=27 // pred_check
        %p208 = pneg %p33
      $region30: #{conv_block_forward.4} parent=27 // pred_check_branch
        %210 = sbr.rel (%p208) target = $region32
      $region31: #{conv_block_forward.4} parent=27 // pred_region
        %p211 = scmp.lt.s32.totalorder %s13, 1
        %s212 = scalar_select %p211, %s13, 1
        %s213 = smul.addr %s212, 32
        %s214 = smul.addr %s213, 8
        %s215 = scalar_lea.vmem %s0, %s214
      $region32: #{conv_block_forward.4} parent=27 // pred_fallthru
        _
    $region28: #{conv_block_forward.4} parent=5 // pred_fallthru
      _
    %p216 = scmp.le.s32.totalorder 1, %s13
    %p217 = scmp.lt.s32.totalorder %s13, 3
    %p218 = pnand %p216, %p217
    %p219 = pneg %p218
    // Predicated region
    $region33: #{conv_block_forward.4} parent=5 // pred_check
      _
    $region34: #{conv_block_forward.4} parent=5 // pred_check_branch
      %221 = sbr.rel (%p218) target = $region36
    $region35: #{conv_block_forward.4} parent=5 // pred_region
      %s222 = ssub.s32 %s13, 1
      %p223 = scmp.lt.s32.totalorder %s18, 1
      %s224 = scalar_select %p223, %s18, 1
      %s225 = smul.addr %s224, 32
      %s226 = smul.addr %s225, 8
      %s227 = scalar_lea.vmem %s0, %s226
      %p228 = pneg %p39
      %p229 = pneg %p36
      %p230 = pneg %p60
      %p231 = pneg %p57
      %p232 = pneg %p81
      %p233 = pneg %p78
      %p234 = pneg %p102
      %p235 = pneg %p99
      %p236 = pneg %p128
      %p237 = pneg %p125
      %p238 = scmp.lt.s32.totalorder %s18, 1
      %s239 = scalar_select %p238, %s18, 1
      %s240 = smul.addr %s239, 32
      %s241 = smul.addr %s240, 8
      %s242 = scalar_lea.vmem %s4, %s241
      %p243 = pneg %p154
      %p244 = pneg %p151
      %p245 = scmp.lt.s32.totalorder %s18, 1
      %s246 = scalar_select %p245, %s18, 1
      %s247 = smul.addr %s246, 8
      %s248 = scalar_lea.vmem %s5, %s247
      %p249 = pneg %p180
      %p250 = pneg %p177
      %p251 = scmp.lt.s32.totalorder %s18, 1
      %s252 = scalar_select %p251, %s18, 1
      %s253 = smul.addr %s252, 8
      %s254 = scalar_lea.vmem %s6, %s253
      %p255 = scmp.lt.s32.totalorder %s18, 1
      %s256 = scalar_select %p255, %s18, 1
      %s257 = smul.addr %s256, 32
      %s258 = smul.addr %s257, 8
      %s259 = scalar_lea.vmem %s0, %s258
      %p260 = scmp.lt.s32.totalorder %s18, 1
      %s261 = scalar_select %p260, %s18, 1
      %s262 = smul.addr %s261, 32
      %s263 = smul.addr %s262, 8
      %s264 = scalar_lea.vmem %s4, %s263
      %p265 = scmp.lt.s32.totalorder %s18, 1
      %s266 = scalar_select %p265, %s18, 1
      %s267 = smul.addr %s266, 8
      %s268 = scalar_lea.vmem %s5, %s267
      %p269 = scmp.lt.s32.totalorder %s18, 1
      %s270 = scalar_select %p269, %s18, 1
      %s271 = smul.addr %s270, 8
      %s272 = scalar_lea.vmem %s6, %s271
      %274 = vst [vmem:[#allocation2] sm:$0xff] 0.0
      %275 = vst [vmem:[#allocation2 + $0x8] sm:$0xff] 0.0
      %276 = vst [vmem:[#allocation2 + $0x10] sm:$0x3] 0.0
      %277 = vst [vmem:[#allocation2 + $0x18] sm:$0xff] 0.0
      %278 = vst [vmem:[#allocation2 + $0x20] sm:$0xff] 0.0
      %279 = vst [vmem:[#allocation2 + $0x28] sm:$0x3] 0.0
      %280 = vst [vmem:[#allocation2 + $0x30] sm:$0xff] 0.0
      %281 = vst [vmem:[#allocation2 + $0x38] sm:$0xff] 0.0
      %282 = vst [vmem:[#allocation2 + $0x40] sm:$0x3] 0.0
      %283 = vst [vmem:[#allocation2 + $0x48] sm:$0xff] 0.0
      %284 = vst [vmem:[#allocation2 + $0x50] sm:$0xff] 0.0
      %285 = vst [vmem:[#allocation2 + $0x58] sm:$0x3] 0.0
      %286 = vst [vmem:[#allocation2 + $0x60] sm:$0xff] 0.0
      %287 = vst [vmem:[#allocation2 + $0x68] sm:$0xff] 0.0
      %288 = vst [vmem:[#allocation2 + $0x70] sm:$0x3] 0.0
      %289 = vst [vmem:[#allocation2 + $0x78] sm:$0xff] 0.0
      %290 = vst [vmem:[#allocation2 + $0x80] sm:$0xff] 0.0
      %291 = vst [vmem:[#allocation2 + $0x88] sm:$0x3] 0.0
      %292 = vst [vmem:[#allocation2 + $0x90] sm:$0xff] 0.0
      %293 = vst [vmem:[#allocation2 + $0x98] sm:$0xff] 0.0
      %294 = vst [vmem:[#allocation2 + $0xa0] sm:$0x3] 0.0
      %295 = vst [vmem:[#allocation2 + $0xa8] sm:$0xff] 0.0
      %296 = vst [vmem:[#allocation2 + $0xb0] sm:$0xff] 0.0
      %297 = vst [vmem:[#allocation2 + $0xb8] sm:$0x3] 0.0
      %298 = vst [vmem:[#allocation2 + $0xc0] sm:$0xff] 0.0
      %299 = vst [vmem:[#allocation2 + $0xc8] sm:$0xff] 0.0
      %300 = vst [vmem:[#allocation2 + $0xd0] sm:$0x3] 0.0
      %301 = vst [vmem:[#allocation2 + $0xd8] sm:$0xff] 0.0
      %302 = vst [vmem:[#allocation2 + $0xe0] sm:$0xff] 0.0
      %303 = vst [vmem:[#allocation2 + $0xe8] sm:$0x3] 0.0
      %304 = vst [vmem:[#allocation2 + $0xf0] sm:$0xff] 0.0
      %305 = vst [vmem:[#allocation2 + $0xf8] sm:$0xff] 0.0
      %306 = vst [vmem:[#allocation2 + $0x100] sm:$0x3] 0.0
      %307 = vst [vmem:[#allocation2 + $0x108] sm:$0xff] 0.0
      %308 = vst [vmem:[#allocation2 + $0x110] sm:$0xff] 0.0
      %309 = vst [vmem:[#allocation2 + $0x118] sm:$0x3] 0.0
      %310 = vst [vmem:[#allocation2 + $0x120] sm:$0xff] 0.0
      %311 = vst [vmem:[#allocation2 + $0x128] sm:$0xff] 0.0
      %312 = vst [vmem:[#allocation2 + $0x130] sm:$0x3] 0.0
      %313 = vst [vmem:[#allocation2 + $0x138] sm:$0xff] 0.0
      %314 = vst [vmem:[#allocation2 + $0x140] sm:$0xff] 0.0
      %315 = vst [vmem:[#allocation2 + $0x148] sm:$0x3] 0.0
      %316 = vst [vmem:[#allocation2 + $0x150] sm:$0xff] 0.0
      %317 = vst [vmem:[#allocation2 + $0x158] sm:$0xff] 0.0
      %318 = vst [vmem:[#allocation2 + $0x160] sm:$0x3] 0.0
      %319 = vst [vmem:[#allocation2 + $0x168] sm:$0xff] 0.0
      %320 = vst [vmem:[#allocation2 + $0x170] sm:$0xff] 0.0
      %321 = vst [vmem:[#allocation2 + $0x178] sm:$0x3] 0.0
      %322 = vst [vmem:[#allocation2 + $0x180] sm:$0xff] 0.0
      %323 = vst [vmem:[#allocation2 + $0x188] sm:$0xff] 0.0
      %324 = vst [vmem:[#allocation2 + $0x190] sm:$0x3] 0.0
      %325 = vst [vmem:[#allocation2 + $0x198] sm:$0xff] 0.0
      %326 = vst [vmem:[#allocation2 + $0x1a0] sm:$0xff] 0.0
      %327 = vst [vmem:[#allocation2 + $0x1a8] sm:$0x3] 0.0
      %v328 = vld [vmem:[%s259] sm:$0xff]
      %v329 = vld [vmem:[%s259 + $0x8] sm:$0xff]
      %v330 = vld [vmem:[%s259 + $0x10] sm:$0xff]
      %v331 = vld [vmem:[%s259 + $0x18] sm:$0xff]
      %v332 = vld [vmem:[%s259 + $0x20] sm:$0xff]
      %v333 = vld [vmem:[%s259 + $0x28] sm:$0xff]
      %v334 = vld [vmem:[%s259 + $0x30] sm:$0xff]
      %v335 = vld [vmem:[%s259 + $0x38] sm:$0xff]
      %v336 = vld [vmem:[%s259 + $0x40] sm:$0xff]
      %v337 = vld [vmem:[%s259 + $0x48] sm:$0xff]
      %v338 = vld [vmem:[%s259 + $0x50] sm:$0xff]
      %v339 = vld [vmem:[%s259 + $0x58] sm:$0xff]
      %v340 = vld [vmem:[%s259 + $0x60] sm:$0xff]
      %v341 = vld [vmem:[%s259 + $0x68] sm:$0xff]
      %v342 = vld [vmem:[%s259 + $0x70] sm:$0xff]
      %v343 = vld [vmem:[%s259 + $0x78] sm:$0xff]
      %v344 = vld [vmem:[%s259 + $0x80] sm:$0xff]
      %v345 = vld [vmem:[%s259 + $0x88] sm:$0xff]
      %v346 = vld [vmem:[%s259 + $0x90] sm:$0xff]
      %v347 = vld [vmem:[%s259 + $0x98] sm:$0xff]
      %v348 = vld [vmem:[%s259 + $0xa0] sm:$0xff]
      %v349 = vld [vmem:[%s259 + $0xa8] sm:$0xff]
      %v350 = vld [vmem:[%s259 + $0xb0] sm:$0xff]
      %v351 = vld [vmem:[%s259 + $0xb8] sm:$0xff]
      %v352 = vld [vmem:[%s259 + $0xc0] sm:$0xff]
      %v353 = vld [vmem:[%s259 + $0xc8] sm:$0xff]
      %v354 = vld [vmem:[%s259 + $0xd0] sm:$0xff]
      %v355 = vld [vmem:[%s259 + $0xd8] sm:$0xff]
      %v356 = vld [vmem:[%s259 + $0xe0] sm:$0xff]
      %v357 = vld [vmem:[%s259 + $0xe8] sm:$0xff]
      %v358 = vld [vmem:[%s259 + $0xf0] sm:$0xff]
      %v359 = vld [vmem:[%s259 + $0xf8] sm:$0xff]
      %v360 = vld [vmem:[%s1] sm:$0x1]
      %v362 = vlaneseq
      %v363 = vshrl.u32 %v362, 7
      %v364 = vsub.s32 0, %v363
      %v365 = vrot.slane %v360, %v364
      %v367 = vmul.f32 %v328, %v365
      %v368 = vmul.f32 %v329, %v365
      %v369 = vmul.f32 %v330, %v365
      %v370 = vmul.f32 %v331, %v365
      %v371 = vmul.f32 %v332, %v365
      %v372 = vmul.f32 %v333, %v365
      %v373 = vmul.f32 %v334, %v365
      %v374 = vmul.f32 %v335, %v365
      %v375 = vmul.f32 %v336, %v365
      %v376 = vmul.f32 %v337, %v365
      %v377 = vmul.f32 %v338, %v365
      %v378 = vmul.f32 %v339, %v365
      %v379 = vmul.f32 %v340, %v365
      %v380 = vmul.f32 %v341, %v365
      %v381 = vmul.f32 %v342, %v365
      %v382 = vmul.f32 %v343, %v365
      %v383 = vmul.f32 %v344, %v365
      %v384 = vmul.f32 %v345, %v365
      %v385 = vmul.f32 %v346, %v365
      %v386 = vmul.f32 %v347, %v365
      %v387 = vmul.f32 %v348, %v365
      %v388 = vmul.f32 %v349, %v365
      %v389 = vmul.f32 %v350, %v365
      %v390 = vmul.f32 %v351, %v365
      %v391 = vmul.f32 %v352, %v365
      %v392 = vmul.f32 %v353, %v365
      %v393 = vmul.f32 %v354, %v365
      %v394 = vmul.f32 %v355, %v365
      %v395 = vmul.f32 %v356, %v365
      %v396 = vmul.f32 %v357, %v365
      %v397 = vmul.f32 %v358, %v365
      %v398 = vmul.f32 %v359, %v365
      %v399 = vld [vmem:[%s2] sm:$0x1]
      %v401 = vlaneseq
      %v402 = vshrl.u32 %v401, 7
      %v403 = vsub.s32 0, %v402
      %v404 = vrot.slane %v399, %v403
      %v406 = vadd.f32 %v367, %v404
      %v407 = vadd.f32 %v368, %v404
      %v408 = vadd.f32 %v369, %v404
      %v409 = vadd.f32 %v370, %v404
      %v410 = vadd.f32 %v371, %v404
      %v411 = vadd.f32 %v372, %v404
      %v412 = vadd.f32 %v373, %v404
      %v413 = vadd.f32 %v374, %v404
      %v414 = vadd.f32 %v375, %v404
      %v415 = vadd.f32 %v376, %v404
      %v416 = vadd.f32 %v377, %v404
      %v417 = vadd.f32 %v378, %v404
      %v418 = vadd.f32 %v379, %v404
      %v419 = vadd.f32 %v380, %v404
      %v420 = vadd.f32 %v381, %v404
      %v421 = vadd.f32 %v382, %v404
      %v422 = vadd.f32 %v383, %v404
      %v423 = vadd.f32 %v384, %v404
      %v424 = vadd.f32 %v385, %v404
      %v425 = vadd.f32 %v386, %v404
      %v426 = vadd.f32 %v387, %v404
      %v427 = vadd.f32 %v388, %v404
      %v428 = vadd.f32 %v389, %v404
      %v429 = vadd.f32 %v390, %v404
      %v430 = vadd.f32 %v391, %v404
      %v431 = vadd.f32 %v392, %v404
      %v432 = vadd.f32 %v393, %v404
      %v433 = vadd.f32 %v394, %v404
      %v434 = vadd.f32 %v395, %v404
      %v435 = vadd.f32 %v396, %v404
      %v436 = vadd.f32 %v397, %v404
      %v437 = vadd.f32 %v398, %v404
      %v438 = vmax.f32 %v406, 0.0
      %v439 = vmax.f32 %v407, 0.0
      %v440 = vmax.f32 %v408, 0.0
      %v441 = vmax.f32 %v409, 0.0
      %v442 = vmax.f32 %v410, 0.0
      %v443 = vmax.f32 %v411, 0.0
      %v444 = vmax.f32 %v412, 0.0
      %v445 = vmax.f32 %v413, 0.0
      %v446 = vmax.f32 %v414, 0.0
      %v447 = vmax.f32 %v415, 0.0
      %v448 = vmax.f32 %v416, 0.0
      %v449 = vmax.f32 %v417, 0.0
      %v450 = vmax.f32 %v418, 0.0
      %v451 = vmax.f32 %v419, 0.0
      %v452 = vmax.f32 %v420, 0.0
      %v453 = vmax.f32 %v421, 0.0
      %v454 = vmax.f32 %v422, 0.0
      %v455 = vmax.f32 %v423, 0.0
      %v456 = vmax.f32 %v424, 0.0
      %v457 = vmax.f32 %v425, 0.0
      %v458 = vmax.f32 %v426, 0.0
      %v459 = vmax.f32 %v427, 0.0
      %v460 = vmax.f32 %v428, 0.0
      %v461 = vmax.f32 %v429, 0.0
      %v462 = vmax.f32 %v430, 0.0
      %v463 = vmax.f32 %v431, 0.0
      %v464 = vmax.f32 %v432, 0.0
      %v465 = vmax.f32 %v433, 0.0
      %v466 = vmax.f32 %v434, 0.0
      %v467 = vmax.f32 %v435, 0.0
      %v468 = vmax.f32 %v436, 0.0
      %v469 = vmax.f32 %v437, 0.0
      %s470 = scalar_lea.vmem [#allocation2], 24
      %471 = vst [vmem:[%s470 + $0x1] sm:$0xff] %v438
      %472 = vst [vmem:[%s470 + $0x9] sm:$0xff] %v439
      %473 = vst [vmem:[%s470 + $0x19] sm:$0xff] %v440
      %474 = vst [vmem:[%s470 + $0x21] sm:$0xff] %v441
      %475 = vst [vmem:[%s470 + $0x31] sm:$0xff] %v442
      %476 = vst [vmem:[%s470 + $0x39] sm:$0xff] %v443
      %477 = vst [vmem:[%s470 + $0x49] sm:$0xff] %v444
      %478 = vst [vmem:[%s470 + $0x51] sm:$0xff] %v445
      %479 = vst [vmem:[%s470 + $0x61] sm:$0xff] %v446
      %480 = vst [vmem:[%s470 + $0x69] sm:$0xff] %v447
      %481 = vst [vmem:[%s470 + $0x79] sm:$0xff] %v448
      %482 = vst [vmem:[%s470 + $0x81] sm:$0xff] %v449
      %483 = vst [vmem:[%s470 + $0x91] sm:$0xff] %v450
      %484 = vst [vmem:[%s470 + $0x99] sm:$0xff] %v451
      %485 = vst [vmem:[%s470 + $0xa9] sm:$0xff] %v452
      %486 = vst [vmem:[%s470 + $0xb1] sm:$0xff] %v453
      %487 = vst [vmem:[%s470 + $0xc1] sm:$0xff] %v454
      %488 = vst [vmem:[%s470 + $0xc9] sm:$0xff] %v455
      %489 = vst [vmem:[%s470 + $0xd9] sm:$0xff] %v456
      %490 = vst [vmem:[%s470 + $0xe1] sm:$0xff] %v457
      %491 = vst [vmem:[%s470 + $0xf1] sm:$0xff] %v458
      %492 = vst [vmem:[%s470 + $0xf9] sm:$0xff] %v459
      %493 = vst [vmem:[%s470 + $0x109] sm:$0xff] %v460
      %494 = vst [vmem:[%s470 + $0x111] sm:$0xff] %v461
      %495 = vst [vmem:[%s470 + $0x121] sm:$0xff] %v462
      %496 = vst [vmem:[%s470 + $0x129] sm:$0xff] %v463
      %497 = vst [vmem:[%s470 + $0x139] sm:$0xff] %v464
      %498 = vst [vmem:[%s470 + $0x141] sm:$0xff] %v465
      %499 = vst [vmem:[%s470 + $0x151] sm:$0xff] %v466
      %500 = vst [vmem:[%s470 + $0x159] sm:$0xff] %v467
      %501 = vst [vmem:[%s470 + $0x169] sm:$0xff] %v468
      %502 = vst [vmem:[%s470 + $0x171] sm:$0xff] %v469
      %v503 = vld [vmem:[#allocation2] sm:$0xff]
      %v504 = vld [vmem:[#allocation2 + $0x8] sm:$0xff]
      %v505 = vld [vmem:[#allocation2 + $0x18] sm:$0xff]
      %v506 = vld [vmem:[#allocation2 + $0x20] sm:$0xff]
      %v507 = vld [vmem:[#allocation2 + $0x30] sm:$0xff]
      %v508 = vld [vmem:[#allocation2 + $0x38] sm:$0xff]
      %v509 = vld [vmem:[#allocation2 + $0x48] sm:$0xff]
      %v510 = vld [vmem:[#allocation2 + $0x50] sm:$0xff]
      %v511 = vld [vmem:[#allocation2 + $0x60] sm:$0xff]
      %v512 = vld [vmem:[#allocation2 + $0x68] sm:$0xff]
      %v513 = vld [vmem:[#allocation2 + $0x78] sm:$0xff]
      %v514 = vld [vmem:[#allocation2 + $0x80] sm:$0xff]
      %v515 = vld [vmem:[#allocation2 + $0x90] sm:$0xff]
      %v516 = vld [vmem:[#allocation2 + $0x98] sm:$0xff]
      %v517 = vld [vmem:[#allocation2 + $0xa8] sm:$0xff]
      %v518 = vld [vmem:[#allocation2 + $0xb0] sm:$0xff]
      %v519 = vld [vmem:[#allocation2 + $0xc0] sm:$0xff]
      %v520 = vld [vmem:[#allocation2 + $0xc8] sm:$0xff]
      %v521 = vld [vmem:[#allocation2 + $0xd8] sm:$0xff]
      %v522 = vld [vmem:[#allocation2 + $0xe0] sm:$0xff]
      %v523 = vld [vmem:[#allocation2 + $0xf0] sm:$0xff]
      %v524 = vld [vmem:[#allocation2 + $0xf8] sm:$0xff]
      %v525 = vld [vmem:[#allocation2 + $0x108] sm:$0xff]
      %v526 = vld [vmem:[#allocation2 + $0x110] sm:$0xff]
      %v527 = vld [vmem:[#allocation2 + $0x120] sm:$0xff]
      %v528 = vld [vmem:[#allocation2 + $0x128] sm:$0xff]
      %v529 = vld [vmem:[#allocation2 + $0x138] sm:$0xff]
      %v530 = vld [vmem:[#allocation2 + $0x140] sm:$0xff]
      %v531 = vld [vmem:[#allocation2 + $0x150] sm:$0xff]
      %v532 = vld [vmem:[#allocation2 + $0x158] sm:$0xff]
      %v533 = vld [vmem:[#allocation2 + $0x168] sm:$0xff]
      %v534 = vld [vmem:[#allocation2 + $0x170] sm:$0xff]
      %v535 = vpack.c.bf16 %v504, %v503
      %v536 = vpack.c.bf16 %v506, %v505
      %v537 = vpack.c.bf16 %v508, %v507
      %v538 = vpack.c.bf16 %v510, %v509
      %v539 = vpack.c.bf16 %v512, %v511
      %v540 = vpack.c.bf16 %v514, %v513
      %v541 = vpack.c.bf16 %v516, %v515
      %v542 = vpack.c.bf16 %v518, %v517
      %v543 = vpack.c.bf16 %v520, %v519
      %v544 = vpack.c.bf16 %v522, %v521
      %v545 = vpack.c.bf16 %v524, %v523
      %v546 = vpack.c.bf16 %v526, %v525
      %v547 = vpack.c.bf16 %v528, %v527
      %v548 = vpack.c.bf16 %v530, %v529
      %v549 = vpack.c.bf16 %v532, %v531
      %v550 = vpack.c.bf16 %v534, %v533
      %v551 = vld [vmem:[%s3] sm:$0xf]
      %v552 = vld [vmem:[%s3 + $0x4] sm:$0xf]
      %v553 = vld [vmem:[%s3 + $0x8] sm:$0xf]
      %v554 = vld [vmem:[%s3 + $0xc] sm:$0xf]
      %v555 = vld [vmem:[%s3 + $0x10] sm:$0xf]
      %v556 = vld [vmem:[%s3 + $0x14] sm:$0xf]
      %v557 = vld [vmem:[%s3 + $0x18] sm:$0xf]
      %v558 = vld [vmem:[%s3 + $0x1c] sm:$0xf]
      %v559 = vld [vmem:[%s3 + $0x20] sm:$0xf]
      %v560 = vld [vmem:[%s3 + $0x24] sm:$0xf]
      %v561 = vld [vmem:[%s3 + $0x28] sm:$0xf]
      %v562 = vld [vmem:[%s3 + $0x2c] sm:$0xf]
      %v563 = vld [vmem:[%s3 + $0x30] sm:$0xf]
      %v564 = vld [vmem:[%s3 + $0x34] sm:$0xf]
      %v565 = vld [vmem:[%s3 + $0x38] sm:$0xf]
      %v566 = vld [vmem:[%s3 + $0x3c] sm:$0xf]
      %v567 = vld [vmem:[#allocation2 + $0x1] sm:$0xff]
      %v568 = vld [vmem:[#allocation2 + $0x9] sm:$0xff]
      %v569 = vld [vmem:[#allocation2 + $0x19] sm:$0xff]
      %v570 = vld [vmem:[#allocation2 + $0x21] sm:$0xff]
      %v571 = vld [vmem:[#allocation2 + $0x31] sm:$0xff]
      %v572 = vld [vmem:[#allocation2 + $0x39] sm:$0xff]
      %v573 = vld [vmem:[#allocation2 + $0x49] sm:$0xff]
      %v574 = vld [vmem:[#allocation2 + $0x51] sm:$0xff]
      %v575 = vld [vmem:[#allocation2 + $0x61] sm:$0xff]
      %v576 = vld [vmem:[#allocation2 + $0x69] sm:$0xff]
      %v577 = vld [vmem:[#allocation2 + $0x79] sm:$0xff]
      %v578 = vld [vmem:[#allocation2 + $0x81] sm:$0xff]
      %v579 = vld [vmem:[#allocation2 + $0x91] sm:$0xff]
      %v580 = vld [vmem:[#allocation2 + $0x99] sm:$0xff]
      %v581 = vld [vmem:[#allocation2 + $0xa9] sm:$0xff]
      %v582 = vld [vmem:[#allocation2 + $0xb1] sm:$0xff]
      %v583 = vld [vmem:[#allocation2 + $0xc1] sm:$0xff]
      %v584 = vld [vmem:[#allocation2 + $0xc9] sm:$0xff]
      %v585 = vld [vmem:[#allocation2 + $0xd9] sm:$0xff]
      %v586 = vld [vmem:[#allocation2 + $0xe1] sm:$0xff]
      %v587 = vld [vmem:[#allocation2 + $0xf1] sm:$0xff]
      %v588 = vld [vmem:[#allocation2 + $0xf9] sm:$0xff]
      %v589 = vld [vmem:[#allocation2 + $0x109] sm:$0xff]
      %v590 = vld [vmem:[#allocation2 + $0x111] sm:$0xff]
      %v591 = vld [vmem:[#allocation2 + $0x121] sm:$0xff]
      %v592 = vld [vmem:[#allocation2 + $0x129] sm:$0xff]
      %v593 = vld [vmem:[#allocation2 + $0x139] sm:$0xff]
      %v594 = vld [vmem:[#allocation2 + $0x141] sm:$0xff]
      %v595 = vld [vmem:[#allocation2 + $0x151] sm:$0xff]
      %v596 = vld [vmem:[#allocation2 + $0x159] sm:$0xff]
      %v597 = vld [vmem:[#allocation2 + $0x169] sm:$0xff]
      %v598 = vld [vmem:[#allocation2 + $0x171] sm:$0xff]
      %v599 = vpack.c.bf16 %v568, %v567
      %v600 = vpack.c.bf16 %v570, %v569
      %v601 = vpack.c.bf16 %v572, %v571
      %v602 = vpack.c.bf16 %v574, %v573
      %v603 = vpack.c.bf16 %v576, %v575
      %v604 = vpack.c.bf16 %v578, %v577
      %v605 = vpack.c.bf16 %v580, %v579
      %v606 = vpack.c.bf16 %v582, %v581
      %v607 = vpack.c.bf16 %v584, %v583
      %v608 = vpack.c.bf16 %v586, %v585
      %v609 = vpack.c.bf16 %v588, %v587
      %v610 = vpack.c.bf16 %v590, %v589
      %v611 = vpack.c.bf16 %v592, %v591
      %v612 = vpack.c.bf16 %v594, %v593
      %v613 = vpack.c.bf16 %v596, %v595
      %v614 = vpack.c.bf16 %v598, %v597
      %s615 = scalar_lea.vmem %s3, 64
      %v616 = vld [vmem:[%s615] sm:$0xf]
      %v617 = vld [vmem:[%s615 + $0x4] sm:$0xf]
      %v618 = vld [vmem:[%s615 + $0x8] sm:$0xf]
      %v619 = vld [vmem:[%s615 + $0xc] sm:$0xf]
      %v620 = vld [vmem:[%s615 + $0x10] sm:$0xf]
      %v621 = vld [vmem:[%s615 + $0x14] sm:$0xf]
      %v622 = vld [vmem:[%s615 + $0x18] sm:$0xf]
      %v623 = vld [vmem:[%s615 + $0x1c] sm:$0xf]
      %v624 = vld [vmem:[%s615 + $0x20] sm:$0xf]
      %v625 = vld [vmem:[%s615 + $0x24] sm:$0xf]
      %v626 = vld [vmem:[%s615 + $0x28] sm:$0xf]
      %v627 = vld [vmem:[%s615 + $0x2c] sm:$0xf]
      %v628 = vld [vmem:[%s615 + $0x30] sm:$0xf]
      %v629 = vld [vmem:[%s615 + $0x34] sm:$0xf]
      %v630 = vld [vmem:[%s615 + $0x38] sm:$0xf]
      %v631 = vld [vmem:[%s615 + $0x3c] sm:$0xf]
      %v648 = vunpack.c.l.b16 %v616
      %v649 = vunpack.c.l.b16 %v617
      %v650 = vunpack.c.l.b16 %v618
      %v651 = vunpack.c.l.b16 %v619
      %v652 = vunpack.c.l.b16 %v620
      %v653 = vunpack.c.l.b16 %v621
      %v654 = vunpack.c.l.b16 %v622
      %v655 = vunpack.c.l.b16 %v623
      %v656 = vunpack.c.l.b16 %v624
      %v657 = vunpack.c.l.b16 %v625
      %v658 = vunpack.c.l.b16 %v626
      %v659 = vunpack.c.l.b16 %v627
      %v660 = vunpack.c.l.b16 %v628
      %v661 = vunpack.c.l.b16 %v629
      %v662 = vunpack.c.l.b16 %v630
      %v663 = vunpack.c.l.b16 %v631
      %v664 = vpack.c.b16 %v649, %v648
      %v665 = vpack.c.b16 %v651, %v650
      %v666 = vpack.c.b16 %v653, %v652
      %v667 = vpack.c.b16 %v655, %v654
      %v668 = vpack.c.b16 %v657, %v656
      %v669 = vpack.c.b16 %v659, %v658
      %v670 = vpack.c.b16 %v661, %v660
      %v671 = vpack.c.b16 %v663, %v662
      %680 = vmatprep.subr.bf16.mxu0 0
      %681 = vmatpush1.bf16.msra.mxu0 %v664
      %682 = vmatprep.subr.bf16.mxu0 0
      %683 = vmatpush1.bf16.msra.mxu0 %v665
      %684 = vmatprep.subr.bf16.mxu0 0
      %685 = vmatpush1.bf16.msra.mxu0 %v666
      %686 = vmatprep.subr.bf16.mxu0 0
      %687 = vmatpush1.bf16.msra.mxu0 %v667
      %688 = vmatprep.subr.bf16.mxu0 0
      %689 = vmatpush1.bf16.msra.mxu0 %v668
      %690 = vmatprep.subr.bf16.mxu0 0
      %691 = vmatpush1.bf16.msra.mxu0 %v669
      %692 = vmatprep.subr.bf16.mxu0 0
      %693 = vmatpush1.bf16.msra.mxu0 %v670
      %694 = vmatprep.subr.bf16.mxu0 0
      %695 = vmatpush1.bf16.msra.mxu0 %v671
      %696 = vmatprep.subr.bf16.mxu0 0
      %697 = vmatpush1.bf16.msra.mxu0 0
      %698 = vmatprep.subr.bf16.mxu0 0
      %699 = vmatpush1.bf16.msra.mxu0 0
      %700 = vmatprep.subr.bf16.mxu0 0
      %701 = vmatpush1.bf16.msra.mxu0 0
      %702 = vmatprep.subr.bf16.mxu0 0
      %703 = vmatpush1.bf16.msra.mxu0 0
      %704 = vmatprep.subr.bf16.mxu0 0
      %705 = vmatpush1.bf16.msra.mxu0 0
      %706 = vmatprep.subr.bf16.mxu0 0
      %707 = vmatpush1.bf16.msra.mxu0 0
      %708 = vmatprep.subr.bf16.mxu0 0
      %709 = vmatpush1.bf16.msra.mxu0 0
      %710 = vmatprep.subr.bf16.mxu0 0
      %711 = vmatpush1.bf16.msra.mxu0 0
      %712 = vmatprep.mubr.bf16.mxu0 0
      %713 = vmatmul.mubr.bf16.gmra.mrb[0].mxu0 %v599
      %v714 = vpop.f32.mrb[0].mxu0
      %v715 = vadd.f32 0.0, %v714
      %v716 = vpop.f32.mrb[0].mxu0
      %v717 = vpop.f32.mrb[0].mxu0
      %v718 = vadd.f32 0.0, %v717
      %v719 = vpop.f32.mrb[0].mxu0
      %720 = vmatprep.mubr.bf16.mxu0 0
      %721 = vmatmul.mubr.bf16.gmra.mrb[0].mxu0 %v600
      %v722 = vpop.f32.mrb[0].mxu0
      %v723 = vadd.f32 0.0, %v722
      %v724 = vpop.f32.mrb[0].mxu0
      %v725 = vpop.f32.mrb[0].mxu0
      %v726 = vadd.f32 0.0, %v725
      %v727 = vpop.f32.mrb[0].mxu0
      %728 = vmatprep.mubr.bf16.mxu0 0
      %729 = vmatmul.mubr.bf16.gmra.mrb[0].mxu0 %v601
      %v730 = vpop.f32.mrb[0].mxu0
      %v731 = vadd.f32 0.0, %v730
      %v732 = vpop.f32.mrb[0].mxu0
      %v733 = vpop.f32.mrb[0].mxu0
      %v734 = vadd.f32 0.0, %v733
      %v735 = vpop.f32.mrb[0].mxu0
      %736 = vmatprep.mubr.bf16.mxu0 0
      %737 = vmatmul.mubr.bf16.gmra.mrb[0].mxu0 %v602
      %v738 = vpop.f32.mrb[0].mxu0
      %v739 = vadd.f32 0.0, %v738
      %v740 = vpop.f32.mrb[0].mxu0
      %v741 = vpop.f32.mrb[0].mxu0
      %v742 = vadd.f32 0.0, %v741
      %v743 = vpop.f32.mrb[0].mxu0
      %744 = vmatprep.mubr.bf16.mxu0 0
      %745 = vmatmul.mubr.bf16.gmra.mrb[0].mxu0 %v603
      %v746 = vpop.f32.mrb[0].mxu0
      %v747 = vadd.f32 0.0, %v746
      %v748 = vpop.f32.mrb[0].mxu0
      %v749 = vpop.f32.mrb[0].mxu0
      %v750 = vadd.f32 0.0, %v749
      %v751 = vpop.f32.mrb[0].mxu0
      %752 = vmatprep.mubr.bf16.mxu0 0
      %753 = vmatmul.mubr.bf16.gmra.mrb[0].mxu0 %v604
      %v754 = vpop.f32.mrb[0].mxu0
      %v755 = vadd.f32 0.0, %v754
      %v756 = vpop.f32.mrb[0].mxu0
      %v757 = vpop.f32.mrb[0].mxu0
      %v758 = vadd.f32 0.0, %v757
      %v759 = vpop.f32.mrb[0].mxu0
      %760 = vmatprep.mubr.bf16.mxu0 0
      %761 = vmatmul.mubr.bf16.gmra.mrb[0].mxu0 %v605
      %v762 = vpop.f32.mrb[0].mxu0
      %v763 = vadd.f32 0.0, %v762
      %v764 = vpop.f32.mrb[0].mxu0
      %v765 = vpop.f32.mrb[0].mxu0
      %v766 = vadd.f32 0.0, %v765
      %v767 = vpop.f32.mrb[0].mxu0
      %768 = vmatprep.mubr.bf16.mxu0 0
      %769 = vmatmul.mubr.bf16.gmra.mrb[0].mxu0 %v606
      %v770 = vpop.f32.mrb[0].mxu0
      %v771 = vadd.f32 0.0, %v770
      %v772 = vpop.f32.mrb[0].mxu0
      %v773 = vpop.f32.mrb[0].mxu0
      %v774 = vadd.f32 0.0, %v773
      %v775 = vpop.f32.mrb[0].mxu0
      %776 = vmatprep.mubr.bf16.mxu0 0
      %777 = vmatmul.mubr.bf16.gmra.mrb[0].mxu0 %v607
      %v778 = vpop.f32.mrb[0].mxu0
      %v779 = vadd.f32 0.0, %v778
      %v780 = vpop.f32.mrb[0].mxu0
      %v781 = vpop.f32.mrb[0].mxu0
      %v782 = vadd.f32 0.0, %v781
      %v783 = vpop.f32.mrb[0].mxu0
      %784 = vmatprep.mubr.bf16.mxu0 0
      %785 = vmatmul.mubr.bf16.gmra.mrb[0].mxu0 %v608
      %v786 = vpop.f32.mrb[0].mxu0
      %v787 = vadd.f32 0.0, %v786
      %v788 = vpop.f32.mrb[0].mxu0
      %v789 = vpop.f32.mrb[0].mxu0
      %v790 = vadd.f32 0.0, %v789
      %v791 = vpop.f32.mrb[0].mxu0
      %792 = vmatprep.mubr.bf16.mxu0 0
      %793 = vmatmul.mubr.bf16.gmra.mrb[0].mxu0 %v609
      %v794 = vpop.f32.mrb[0].mxu0
      %v795 = vadd.f32 0.0, %v794
      %v796 = vpop.f32.mrb[0].mxu0
      %v797 = vpop.f32.mrb[0].mxu0
      %v798 = vadd.f32 0.0, %v797
      %v799 = vpop.f32.mrb[0].mxu0
      %800 = vmatprep.mubr.bf16.mxu0 0
      %801 = vmatmul.mubr.bf16.gmra.mrb[0].mxu0 %v610
      %v802 = vpop.f32.mrb[0].mxu0
      %v803 = vadd.f32 0.0, %v802
      %v804 = vpop.f32.mrb[0].mxu0
      %v805 = vpop.f32.mrb[0].mxu0
      %v806 = vadd.f32 0.0, %v805
      %v807 = vpop.f32.mrb[0].mxu0
      %808 = vmatprep.mubr.bf16.mxu0 0
      %809 = vmatmul.mubr.bf16.gmra.mrb[0].mxu0 %v611
      %v810 = vpop.f32.mrb[0].mxu0
      %v811 = vadd.f32 0.0, %v810
      %v812 = vpop.f32.mrb[0].mxu0
      %v813 = vpop.f32.mrb[0].mxu0
      %v814 = vadd.f32 0.0, %v813
      %v815 = vpop.f32.mrb[0].mxu0
      %816 = vmatprep.mubr.bf16.mxu0 0
      %817 = vmatmul.mubr.bf16.gmra.mrb[0].mxu0 %v612
      %v818 = vpop.f32.mrb[0].mxu0
      %v819 = vadd.f32 0.0, %v818
      %v820 = vpop.f32.mrb[0].mxu0
      %v821 = vpop.f32.mrb[0].mxu0
      %v822 = vadd.f32 0.0, %v821
      %v823 = vpop.f32.mrb[0].mxu0
      %824 = vmatprep.mubr.bf16.mxu0 0
      %825 = vmatmul.mubr.bf16.gmra.mrb[0].mxu0 %v613
      %v826 = vpop.f32.mrb[0].mxu0
      %v827 = vadd.f32 0.0, %v826
      %v828 = vpop.f32.mrb[0].mxu0
      %v829 = vpop.f32.mrb[0].mxu0
      %v830 = vadd.f32 0.0, %v829
      %v831 = vpop.f32.mrb[0].mxu0
      %832 = vmatprep.mubr.bf16.mxu0 0
      %833 = vmatmul.mubr.bf16.gmra.mrb[0].mxu0 %v614
      %v834 = vpop.f32.mrb[0].mxu0
      %v835 = vadd.f32 0.0, %v834
      %v836 = vpop.f32.mrb[0].mxu0
      %v837 = vpop.f32.mrb[0].mxu0
      %v838 = vadd.f32 0.0, %v837
      %v839 = vpop.f32.mrb[0].mxu0
      %840 = vdwg.mxu0
      %v857 = vunpack.c.l.b16 %v551
      %v858 = vunpack.c.l.b16 %v552
      %v859 = vunpack.c.l.b16 %v553
      %v860 = vunpack.c.l.b16 %v554
      %v861 = vunpack.c.l.b16 %v555
      %v862 = vunpack.c.l.b16 %v556
      %v863 = vunpack.c.l.b16 %v557
      %v864 = vunpack.c.l.b16 %v558
      %v865 = vunpack.c.l.b16 %v559
      %v866 = vunpack.c.l.b16 %v560
      %v867 = vunpack.c.l.b16 %v561
      %v868 = vunpack.c.l.b16 %v562
      %v869 = vunpack.c.l.b16 %v563
      %v870 = vunpack.c.l.b16 %v564
      %v871 = vunpack.c.l.b16 %v565
      %v872 = vunpack.c.l.b16 %v566
      %v873 = vpack.c.b16 %v858, %v857
      %v874 = vpack.c.b16 %v860, %v859
      %v875 = vpack.c.b16 %v862, %v861
      %v876 = vpack.c.b16 %v864, %v863
      %v877 = vpack.c.b16 %v866, %v865
      %v878 = vpack.c.b16 %v868, %v867
      %v879 = vpack.c.b16 %v870, %v869
      %v880 = vpack.c.b16 %v872, %v871
      %889 = vmatprep.subr.bf16.mxu0 0
      %890 = vmatpush1.bf16.msra.mxu0 %v873
      %891 = vmatprep.subr.bf16.mxu0 0
      %892 = vmatpush1.bf16.msra.mxu0 %v874
      %893 = vmatprep.subr.bf16.mxu0 0
      %894 = vmatpush1.bf16.msra.mxu0 %v875
      %895 = vmatprep.subr.bf16.mxu0 0
      %896 = vmatpush1.bf16.msra.mxu0 %v876
      %897 = vmatprep.subr.bf16.mxu0 0
      %898 = vmatpush1.bf16.msra.mxu0 %v877
      %899 = vmatprep.subr.bf16.mxu0 0
      %900 = vmatpush1.bf16.msra.mxu0 %v878
      %901 = vmatprep.subr.bf16.mxu0 0
      %902 = vmatpush1.bf16.msra.mxu0 %v879
      %903 = vmatprep.subr.bf16.mxu0 0
      %904 = vmatpush1.bf16.msra.mxu0 %v880
      %905 = vmatprep.subr.bf16.mxu0 0
      %906 = vmatpush1.bf16.msra.mxu0 0
      %907 = vmatprep.subr.bf16.mxu0 0
      %908 = vmatpush1.bf16.msra.mxu0 0
      %909 = vmatprep.subr.bf16.mxu0 0
      %910 = vmatpush1.bf16.msra.mxu0 0
      %911 = vmatprep.subr.bf16.mxu0 0
      %912 = vmatpush1.bf16.msra.mxu0 0
      %913 = vmatprep.subr.bf16.mxu0 0
      %914 = vmatpush1.bf16.msra.mxu0 0
      %915 = vmatprep.subr.bf16.mxu0 0
      %916 = vmatpush1.bf16.msra.mxu0 0
      %917 = vmatprep.subr.bf16.mxu0 0
      %918 = vmatpush1.bf16.msra.mxu0 0
      %919 = vmatprep.subr.bf16.mxu0 0
      %920 = vmatpush1.bf16.msra.mxu0 0
      %921 = vmatprep.mubr.bf16.mxu0 0
      %922 = vmatmul.mubr.bf16.gmra.mrb[0].mxu0 %v535
      %v923 = vpop.f32.mrb[0].mxu0
      %v924 = vadd.f32 %v715, %v923
      %v925 = vpop.f32.mrb[0].mxu0
      %v926 = vpop.f32.mrb[0].mxu0
      %v927 = vadd.f32 %v718, %v926
      %v928 = vpop.f32.mrb[0].mxu0
      %929 = vmatprep.mubr.bf16.mxu0 0
      %930 = vmatmul.mubr.bf16.gmra.mrb[0].mxu0 %v536
      %v931 = vpop.f32.mrb[0].mxu0
      %v932 = vadd.f32 %v723, %v931
      %v933 = vpop.f32.mrb[0].mxu0
      %v934 = vpop.f32.mrb[0].mxu0
      %v935 = vadd.f32 %v726, %v934
      %v936 = vpop.f32.mrb[0].mxu0
      %937 = vmatprep.mubr.bf16.mxu0 0
      %938 = vmatmul.mubr.bf16.gmra.mrb[0].mxu0 %v537
      %v939 = vpop.f32.mrb[0].mxu0
      %v940 = vadd.f32 %v731, %v939
      %v941 = vpop.f32.mrb[0].mxu0
      %v942 = vpop.f32.mrb[0].mxu0
      %v943 = vadd.f32 %v734, %v942
      %v944 = vpop.f32.mrb[0].mxu0
      %945 = vmatprep.mubr.bf16.mxu0 0
      %946 = vmatmul.mubr.bf16.gmra.mrb[0].mxu0 %v538
      %v947 = vpop.f32.mrb[0].mxu0
      %v948 = vadd.f32 %v739, %v947
      %v949 = vpop.f32.mrb[0].mxu0
      %v950 = vpop.f32.mrb[0].mxu0
      %v951 = vadd.f32 %v742, %v950
      %v952 = vpop.f32.mrb[0].mxu0
      %953 = vmatprep.mubr.bf16.mxu0 0
      %954 = vmatmul.mubr.bf16.gmra.mrb[0].mxu0 %v539
      %v955 = vpop.f32.mrb[0].mxu0
      %v956 = vadd.f32 %v747, %v955
      %v957 = vpop.f32.mrb[0].mxu0
      %v958 = vpop.f32.mrb[0].mxu0
      %v959 = vadd.f32 %v750, %v958
      %v960 = vpop.f32.mrb[0].mxu0
      %961 = vmatprep.mubr.bf16.mxu0 0
      %962 = vmatmul.mubr.bf16.gmra.mrb[0].mxu0 %v540
      %v963 = vpop.f32.mrb[0].mxu0
      %v964 = vadd.f32 %v755, %v963
      %v965 = vpop.f32.mrb[0].mxu0
      %v966 = vpop.f32.mrb[0].mxu0
      %v967 = vadd.f32 %v758, %v966
      %v968 = vpop.f32.mrb[0].mxu0
      %969 = vmatprep.mubr.bf16.mxu0 0
      %970 = vmatmul.mubr.bf16.gmra.mrb[0].mxu0 %v541
      %v971 = vpop.f32.mrb[0].mxu0
      %v972 = vadd.f32 %v763, %v971
      %v973 = vpop.f32.mrb[0].mxu0
      %v974 = vpop.f32.mrb[0].mxu0
      %v975 = vadd.f32 %v766, %v974
      %v976 = vpop.f32.mrb[0].mxu0
      %977 = vmatprep.mubr.bf16.mxu0 0
      %978 = vmatmul.mubr.bf16.gmra.mrb[0].mxu0 %v542
      %v979 = vpop.f32.mrb[0].mxu0
      %v980 = vadd.f32 %v771, %v979
      %v981 = vpop.f32.mrb[0].mxu0
      %v982 = vpop.f32.mrb[0].mxu0
      %v983 = vadd.f32 %v774, %v982
      %v984 = vpop.f32.mrb[0].mxu0
      %985 = vmatprep.mubr.bf16.mxu0 0
      %986 = vmatmul.mubr.bf16.gmra.mrb[0].mxu0 %v543
      %v987 = vpop.f32.mrb[0].mxu0
      %v988 = vadd.f32 %v779, %v987
      %v989 = vpop.f32.mrb[0].mxu0
      %v990 = vpop.f32.mrb[0].mxu0
      %v991 = vadd.f32 %v782, %v990
      %v992 = vpop.f32.mrb[0].mxu0
      %993 = vmatprep.mubr.bf16.mxu0 0
      %994 = vmatmul.mubr.bf16.gmra.mrb[0].mxu0 %v544
      %v995 = vpop.f32.mrb[0].mxu0
      %v996 = vadd.f32 %v787, %v995
      %v997 = vpop.f32.mrb[0].mxu0
      %v998 = vpop.f32.mrb[0].mxu0
      %v999 = vadd.f32 %v790, %v998
      %v1000 = vpop.f32.mrb[0].mxu0
      %1001 = vmatprep.mubr.bf16.mxu0 0
      %1002 = vmatmul.mubr.bf16.gmra.mrb[0].mxu0 %v545
      %v1003 = vpop.f32.mrb[0].mxu0
      %v1004 = vadd.f32 %v795, %v1003
      %v1005 = vpop.f32.mrb[0].mxu0
      %v1006 = vpop.f32.mrb[0].mxu0
      %v1007 = vadd.f32 %v798, %v1006
      %v1008 = vpop.f32.mrb[0].mxu0
      %1009 = vmatprep.mubr.bf16.mxu0 0
      %1010 = vmatmul.mubr.bf16.gmra.mrb[0].mxu0 %v546
      %v1011 = vpop.f32.mrb[0].mxu0
      %v1012 = vadd.f32 %v803, %v1011
      %v1013 = vpop.f32.mrb[0].mxu0
      %v1014 = vpop.f32.mrb[0].mxu0
      %v1015 = vadd.f32 %v806, %v1014
      %v1016 = vpop.f32.mrb[0].mxu0
      %1017 = vmatprep.mubr.bf16.mxu0 0
      %1018 = vmatmul.mubr.bf16.gmra.mrb[0].mxu0 %v547
      %v1019 = vpop.f32.mrb[0].mxu0
      %v1020 = vadd.f32 %v811, %v1019
      %v1021 = vpop.f32.mrb[0].mxu0
      %v1022 = vpop.f32.mrb[0].mxu0
      %v1023 = vadd.f32 %v814, %v1022
      %v1024 = vpop.f32.mrb[0].mxu0
      %1025 = vmatprep.mubr.bf16.mxu0 0
      %1026 = vmatmul.mubr.bf16.gmra.mrb[0].mxu0 %v548
      %v1027 = vpop.f32.mrb[0].mxu0
      %v1028 = vadd.f32 %v819, %v1027
      %v1029 = vpop.f32.mrb[0].mxu0
      %v1030 = vpop.f32.mrb[0].mxu0
      %v1031 = vadd.f32 %v822, %v1030
      %v1032 = vpop.f32.mrb[0].mxu0
      %1033 = vmatprep.mubr.bf16.mxu0 0
      %1034 = vmatmul.mubr.bf16.gmra.mrb[0].mxu0 %v549
      %v1035 = vpop.f32.mrb[0].mxu0
      %v1036 = vadd.f32 %v827, %v1035
      %v1037 = vpop.f32.mrb[0].mxu0
      %v1038 = vpop.f32.mrb[0].mxu0
      %v1039 = vadd.f32 %v830, %v1038
      %v1040 = vpop.f32.mrb[0].mxu0
      %1041 = vmatprep.mubr.bf16.mxu0 0
      %1042 = vmatmul.mubr.bf16.gmra.mrb[0].mxu0 %v550
      %v1043 = vpop.f32.mrb[0].mxu0
      %v1044 = vadd.f32 %v835, %v1043
      %v1045 = vpop.f32.mrb[0].mxu0
      %v1046 = vpop.f32.mrb[0].mxu0
      %v1047 = vadd.f32 %v838, %v1046
      %v1048 = vpop.f32.mrb[0].mxu0
      %1049 = vdwg.mxu0
      %v1050 = vld [vmem:[#allocation2 + $0x2] sm:$0xff]
      %v1051 = vld [vmem:[#allocation2 + $0xa] sm:$0xff]
      %v1052 = vld [vmem:[#allocation2 + $0x1a] sm:$0xff]
      %v1053 = vld [vmem:[#allocation2 + $0x22] sm:$0xff]
      %v1054 = vld [vmem:[#allocation2 + $0x32] sm:$0xff]
      %v1055 = vld [vmem:[#allocation2 + $0x3a] sm:$0xff]
      %v1056 = vld [vmem:[#allocation2 + $0x4a] sm:$0xff]
      %v1057 = vld [vmem:[#allocation2 + $0x52] sm:$0xff]
      %v1058 = vld [vmem:[#allocation2 + $0x62] sm:$0xff]
      %v1059 = vld [vmem:[#allocation2 + $0x6a] sm:$0xff]
      %v1060 = vld [vmem:[#allocation2 + $0x7a] sm:$0xff]
      %v1061 = vld [vmem:[#allocation2 + $0x82] sm:$0xff]
      %v1062 = vld [vmem:[#allocation2 + $0x92] sm:$0xff]
      %v1063 = vld [vmem:[#allocation2 + $0x9a] sm:$0xff]
      %v1064 = vld [vmem:[#allocation2 + $0xaa] sm:$0xff]
      %v1065 = vld [vmem:[#allocation2 + $0xb2] sm:$0xff]
      %v1066 = vld [vmem:[#allocation2 + $0xc2] sm:$0xff]
      %v1067 = vld [vmem:[#allocation2 + $0xca] sm:$0xff]
      %v1068 = vld [vmem:[#allocation2 + $0xda] sm:$0xff]
      %v1069 = vld [vmem:[#allocation2 + $0xe2] sm:$0xff]
      %v1070 = vld [vmem:[#allocation2 + $0xf2] sm:$0xff]
      %v1071 = vld [vmem:[#allocation2 + $0xfa] sm:$0xff]
      %v1072 = vld [vmem:[#allocation2 + $0x10a] sm:$0xff]
      %v1073 = vld [vmem:[#allocation2 + $0x112] sm:$0xff]
      %v1074 = vld [vmem:[#allocation2 + $0x122] sm:$0xff]
      %v1075 = vld [vmem:[#allocation2 + $0x12a] sm:$0xff]
      %v1076 = vld [vmem:[#allocation2 + $0x13a] sm:$0xff]
      %v1077 = vld [vmem:[#allocation2 + $0x142] sm:$0xff]
      %v1078 = vld [vmem:[#allocation2 + $0x152] sm:$0xff]
      %v1079 = vld [vmem:[#allocation2 + $0x15a] sm:$0xff]
      %v1080 = vld [vmem:[#allocation2 + $0x16a] sm:$0xff]
      %v1081 = vld [vmem:[#allocation2 + $0x172] sm:$0xff]
      %v1082 = vpack.c.bf16 %v1051, %v1050
      %v1083 = vpack.c.bf16 %v1053, %v1052
      %v1084 = vpack.c.bf16 %v1055, %v1054
      %v1085 = vpack.c.bf16 %v1057, %v1056
      %v1086 = vpack.c.bf16 %v1059, %v1058
      %v1087 = vpack.c.bf16 %v1061, %v1060
      %v1088 = vpack.c.bf16 %v1063, %v1062
      %v1089 = vpack.c.bf16 %v1065, %v1064
      %v1090 = vpack.c.bf16 %v1067, %v1066
      %v1091 = vpack.c.bf16 %v1069, %v1068
      %v1092 = vpack.c.bf16 %v1071, %v1070
      %v1093 = vpack.c.bf16 %v1073, %v1072
      %v1094 = vpack.c.bf16 %v1075, %v1074
      %v1095 = vpack.c.bf16 %v1077, %v1076
      %v1096 = vpack.c.bf16 %v1079, %v1078
      %v1097 = vpack.c.bf16 %v1081, %v1080
      %s1098 = scalar_lea.vmem %s3, 128
      %v1099 = vld [vmem:[%s1098] sm:$0xf]
      %v1100 = vld [vmem:[%s1098 + $0x4] sm:$0xf]
      %v1101 = vld [vmem:[%s1098 + $0x8] sm:$0xf]
      %v1102 = vld [vmem:[%s1098 + $0xc] sm:$0xf]
      %v1103 = vld [vmem:[%s1098 + $0x10] sm:$0xf]
      %v1104 = vld [vmem:[%s1098 + $0x14] sm:$0xf]
      %v1105 = vld [vmem:[%s1098 + $0x18] sm:$0xf]
      %v1106 = vld [vmem:[%s1098 + $0x1c] sm:$0xf]
      %v1107 = vld [vmem:[%s1098 + $0x20] sm:$0xf]
      %v1108 = vld [vmem:[%s1098 + $0x24] sm:$0xf]
      %v1109 = vld [vmem:[%s1098 + $0x28] sm:$0xf]
      %v1110 = vld [vmem:[%s1098 + $0x2c] sm:$0xf]
      %v1111 = vld [vmem:[%s1098 + $0x30] sm:$0xf]
      %v1112 = vld [vmem:[%s1098 + $0x34] sm:$0xf]
      %v1113 = vld [vmem:[%s1098 + $0x38] sm:$0xf]
      %v1114 = vld [vmem:[%s1098 + $0x3c] sm:$0xf]
      %v1131 = vunpack.c.l.b16 %v1099
      %v1132 = vunpack.c.l.b16 %v1100
      %v1133 = vunpack.c.l.b16 %v1101
      %v1134 = vunpack.c.l.b16 %v1102
      %v1135 = vunpack.c.l.b16 %v1103
      %v1136 = vunpack.c.l.b16 %v1104
      %v1137 = vunpack.c.l.b16 %v1105
      %v1138 = vunpack.c.l.b16 %v1106
      %v1139 = vunpack.c.l.b16 %v1107
      %v1140 = vunpack.c.l.b16 %v1108
      %v1141 = vunpack.c.l.b16 %v1109
      %v1142 = vunpack.c.l.b16 %v1110
      %v1143 = vunpack.c.l.b16 %v1111
      %v1144 = vunpack.c.l.b16 %v1112
      %v1145 = vunpack.c.l.b16 %v1113
      %v1146 = vunpack.c.l.b16 %v1114
      %v1147 = vpack.c.b16 %v1132, %v1131
      %v1148 = vpack.c.b16 %v1134, %v1133
      %v1149 = vpack.c.b16 %v1136, %v1135
      %v1150 = vpack.c.b16 %v1138, %v1137
      %v1151 = vpack.c.b16 %v1140, %v1139
      %v1152 = vpack.c.b16 %v1142, %v1141
      %v1153 = vpack.c.b16 %v1144, %v1143
      %v1154 = vpack.c.b16 %v1146, %v1145
      %1163 = vmatprep.subr.bf16.mxu0 0
      %1164 = vmatpush1.bf16.msra.mxu0 %v1147
      %1165 = vmatprep.subr.bf16.mxu0 0
      %1166 = vmatpush1.bf16.msra.mxu0 %v1148
      %1167 = vmatprep.subr.bf16.mxu0 0
      %1168 = vmatpush1.bf16.msra.mxu0 %v1149
      %1169 = vmatprep.subr.bf16.mxu0 0
      %1170 = vmatpush1.bf16.msra.mxu0 %v1150
      %1171 = vmatprep.subr.bf16.mxu0 0
      %1172 = vmatpush1.bf16.msra.mxu0 %v1151
      %1173 = vmatprep.subr.bf16.mxu0 0
      %1174 = vmatpush1.bf16.msra.mxu0 %v1152
      %1175 = vmatprep.subr.bf16.mxu0 0
      %1176 = vmatpush1.bf16.msra.mxu0 %v1153
      %1177 = vmatprep.subr.bf16.mxu0 0
      %1178 = vmatpush1.bf16.msra.mxu0 %v1154
      %1179 = vmatprep.subr.bf16.mxu0 0
      %1180 = vmatpush1.bf16.msra.mxu0 0
      %1181 = vmatprep.subr.bf16.mxu0 0
      %1182 = vmatpush1.bf16.msra.mxu0 0
      %1183 = vmatprep.subr.bf16.mxu0 0
      %1184 = vmatpush1.bf16.msra.mxu0 0
      %1185 = vmatprep.subr.bf16.mxu0 0
      %1186 = vmatpush1.bf16.msra.mxu0 0
      %1187 = vmatprep.subr.bf16.mxu0 0
      %1188 = vmatpush1.bf16.msra.mxu0 0
      %1189 = vmatprep.subr.bf16.mxu0 0
      %1190 = vmatpush1.bf16.msra.mxu0 0
      %1191 = vmatprep.subr.bf16.mxu0 0
      %1192 = vmatpush1.bf16.msra.mxu0 0
      %1193 = vmatprep.subr.bf16.mxu0 0
      %1194 = vmatpush1.bf16.msra.mxu0 0
      %1195 = vmatprep.mubr.bf16.mxu0 0
      %1196 = vmatmul.mubr.bf16.gmra.mrb[0].mxu0 %v1082
      %v1197 = vpop.f32.mrb[0].mxu0
      %v1198 = vadd.f32 0.0, %v1197
      %v1199 = vpop.f32.mrb[0].mxu0
      %v1200 = vpop.f32.mrb[0].mxu0
      %v1201 = vadd.f32 0.0, %v1200
      %v1202 = vpop.f32.mrb[0].mxu0
      %1203 = vmatprep.mubr.bf16.mxu0 0
      %1204 = vmatmul.mubr.bf16.gmra.mrb[0].mxu0 %v1083
      %v1205 = vpop.f32.mrb[0].mxu0
      %v1206 = vadd.f32 0.0, %v1205
      %v1207 = vpop.f32.mrb[0].mxu0
      %v1208 = vpop.f32.mrb[0].mxu0
      %v1209 = vadd.f32 0.0, %v1208
      %v1210 = vpop.f32.mrb[0].mxu0
      %1211 = vmatprep.mubr.bf16.mxu0 0
      %1212 = vmatmul.mubr.bf16.gmra.mrb[0].mxu0 %v1084
      %v1213 = vpop.f32.mrb[0].mxu0
      %v1214 = vadd.f32 0.0, %v1213
      %v1215 = vpop.f32.mrb[0].mxu0
      %v1216 = vpop.f32.mrb[0].mxu0
      %v1217 = vadd.f32 0.0, %v1216
      %v1218 = vpop.f32.mrb[0].mxu0
      %1219 = vmatprep.mubr.bf16.mxu0 0
      %1220 = vmatmul.mubr.bf16.gmra.mrb[0].mxu0 %v1085
      %v1221 = vpop.f32.mrb[0].mxu0
      %v1222 = vadd.f32 0.0, %v1221
      %v1223 = vpop.f32.mrb[0].mxu0
      %v1224 = vpop.f32.mrb[0].mxu0
      %v1225 = vadd.f32 0.0, %v1224
      %v1226 = vpop.f32.mrb[0].mxu0
      %1227 = vmatprep.mubr.bf16.mxu0 0
      %1228 = vmatmul.mubr.bf16.gmra.mrb[0].mxu0 %v1086
      %v1229 = vpop.f32.mrb[0].mxu0
      %v1230 = vadd.f32 0.0, %v1229
      %v1231 = vpop.f32.mrb[0].mxu0
      %v1232 = vpop.f32.mrb[0].mxu0
      %v1233 = vadd.f32 0.0, %v1232
      %v1234 = vpop.f32.mrb[0].mxu0
      %1235 = vmatprep.mubr.bf16.mxu0 0
      %1236 = vmatmul.mubr.bf16.gmra.mrb[0].mxu0 %v1087
      %v1237 = vpop.f32.mrb[0].mxu0
      %v1238 = vadd.f32 0.0, %v1237
      %v1239 = vpop.f32.mrb[0].mxu0
      %v1240 = vpop.f32.mrb[0].mxu0
      %v1241 = vadd.f32 0.0, %v1240
      %v1242 = vpop.f32.mrb[0].mxu0
      %1243 = vmatprep.mubr.bf16.mxu0 0
      %1244 = vmatmul.mubr.bf16.gmra.mrb[0].mxu0 %v1088
      %v1245 = vpop.f32.mrb[0].mxu0
      %v1246 = vadd.f32 0.0, %v1245
      %v1247 = vpop.f32.mrb[0].mxu0
      %v1248 = vpop.f32.mrb[0].mxu0
      %v1249 = vadd.f32 0.0, %v1248
      %v1250 = vpop.f32.mrb[0].mxu0
      %1251 = vmatprep.mubr.bf16.mxu0 0
      %1252 = vmatmul.mubr.bf16.gmra.mrb[0].mxu0 %v1089
      %v1253 = vpop.f32.mrb[0].mxu0
      %v1254 = vadd.f32 0.0, %v1253
      %v1255 = vpop.f32.mrb[0].mxu0
      %v1256 = vpop.f32.mrb[0].mxu0
      %v1257 = vadd.f32 0.0, %v1256
      %v1258 = vpop.f32.mrb[0].mxu0
      %1259 = vmatprep.mubr.bf16.mxu0 0
      %1260 = vmatmul.mubr.bf16.gmra.mrb[0].mxu0 %v1090
      %v1261 = vpop.f32.mrb[0].mxu0
      %v1262 = vadd.f32 0.0, %v1261
      %v1263 = vpop.f32.mrb[0].mxu0
      %v1264 = vpop.f32.mrb[0].mxu0
      %v1265 = vadd.f32 0.0, %v1264
      %v1266 = vpop.f32.mrb[0].mxu0
      %1267 = vmatprep.mubr.bf16.mxu0 0
      %1268 = vmatmul.mubr.bf16.gmra.mrb[0].mxu0 %v1091
      %v1269 = vpop.f32.mrb[0].mxu0
      %v1270 = vadd.f32 0.0, %v1269
      %v1271 = vpop.f32.mrb[0].mxu0
      %v1272 = vpop.f32.mrb[0].mxu0
      %v1273 = vadd.f32 0.0, %v1272
      %v1274 = vpop.f32.mrb[0].mxu0
      %1275 = vmatprep.mubr.bf16.mxu0 0
      %1276 = vmatmul.mubr.bf16.gmra.mrb[0].mxu0 %v1092
      %v1277 = vpop.f32.mrb[0].mxu0
      %v1278 = vadd.f32 0.0, %v1277
      %v1279 = vpop.f32.mrb[0].mxu0
      %v1280 = vpop.f32.mrb[0].mxu0
      %v1281 = vadd.f32 0.0, %v1280
      %v1282 = vpop.f32.mrb[0].mxu0
      %1283 = vmatprep.mubr.bf16.mxu0 0
      %1284 = vmatmul.mubr.bf16.gmra.mrb[0].mxu0 %v1093
      %v1285 = vpop.f32.mrb[0].mxu0
      %v1286 = vadd.f32 0.0, %v1285
      %v1287 = vpop.f32.mrb[0].mxu0
      %v1288 = vpop.f32.mrb[0].mxu0
      %v1289 = vadd.f32 0.0, %v1288
      %v1290 = vpop.f32.mrb[0].mxu0
      %1291 = vmatprep.mubr.bf16.mxu0 0
      %1292 = vmatmul.mubr.bf16.gmra.mrb[0].mxu0 %v1094
      %v1293 = vpop.f32.mrb[0].mxu0
      %v1294 = vadd.f32 0.0, %v1293
      %v1295 = vpop.f32.mrb[0].mxu0
      %v1296 = vpop.f32.mrb[0].mxu0
      %v1297 = vadd.f32 0.0, %v1296
      %v1298 = vpop.f32.mrb[0].mxu0
      %1299 = vmatprep.mubr.bf16.mxu0 0
      %1300 = vmatmul.mubr.bf16.gmra.mrb[0].mxu0 %v1095
      %v1301 = vpop.f32.mrb[0].mxu0
      %v1302 = vadd.f32 0.0, %v1301
      %v1303 = vpop.f32.mrb[0].mxu0
      %v1304 = vpop.f32.mrb[0].mxu0
      %v1305 = vadd.f32 0.0, %v1304
      %v1306 = vpop.f32.mrb[0].mxu0
      %1307 = vmatprep.mubr.bf16.mxu0 0
      %1308 = vmatmul.mubr.bf16.gmra.mrb[0].mxu0 %v1096
      %v1309 = vpop.f32.mrb[0].mxu0
      %v1310 = vadd.f32 0.0, %v1309
      %v1311 = vpop.f32.mrb[0].mxu0
      %v1312 = vpop.f32.mrb[0].mxu0
      %v1313 = vadd.f32 0.0, %v1312
      %v1314 = vpop.f32.mrb[0].mxu0
      %1315 = vmatprep.mubr.bf16.mxu0 0
      %1316 = vmatmul.mubr.bf16.gmra.mrb[0].mxu0 %v1097
      %v1317 = vpop.f32.mrb[0].mxu0
      %v1318 = vadd.f32 0.0, %v1317
      %v1319 = vpop.f32.mrb[0].mxu0
      %v1320 = vpop.f32.mrb[0].mxu0
      %v1321 = vadd.f32 0.0, %v1320
      %v1322 = vpop.f32.mrb[0].mxu0
      %1323 = vdwg.mxu0
      %v1324 = vadd.f32 %v924, %v1198
      %v1325 = vadd.f32 %v927, %v1201
      %v1326 = vadd.f32 %v932, %v1206
      %v1327 = vadd.f32 %v935, %v1209
      %v1328 = vadd.f32 %v940, %v1214
      %v1329 = vadd.f32 %v943, %v1217
      %v1330 = vadd.f32 %v948, %v1222
      %v1331 = vadd.f32 %v951, %v1225
      %v1332 = vadd.f32 %v956, %v1230
      %v1333 = vadd.f32 %v959, %v1233
      %v1334 = vadd.f32 %v964, %v1238
      %v1335 = vadd.f32 %v967, %v1241
      %v1336 = vadd.f32 %v972, %v1246
      %v1337 = vadd.f32 %v975, %v1249
      %v1338 = vadd.f32 %v980, %v1254
      %v1339 = vadd.f32 %v983, %v1257
      %v1340 = vadd.f32 %v988, %v1262
      %v1341 = vadd.f32 %v991, %v1265
      %v1342 = vadd.f32 %v996, %v1270
      %v1343 = vadd.f32 %v999, %v1273
      %v1344 = vadd.f32 %v1004, %v1278
      %v1345 = vadd.f32 %v1007, %v1281
      %v1346 = vadd.f32 %v1012, %v1286
      %v1347 = vadd.f32 %v1015, %v1289
      %v1348 = vadd.f32 %v1020, %v1294
      %v1349 = vadd.f32 %v1023, %v1297
      %v1350 = vadd.f32 %v1028, %v1302
      %v1351 = vadd.f32 %v1031, %v1305
      %v1352 = vadd.f32 %v1036, %v1310
      %v1353 = vadd.f32 %v1039, %v1313
      %v1354 = vadd.f32 %v1044, %v1318
      %v1355 = vadd.f32 %v1047, %v1321
      %v1356 = vld [vmem:[%s470] sm:$0xff]
      %v1357 = vld [vmem:[%s470 + $0x8] sm:$0xff]
      %v1358 = vld [vmem:[%s470 + $0x18] sm:$0xff]
      %v1359 = vld [vmem:[%s470 + $0x20] sm:$0xff]
      %v1360 = vld [vmem:[%s470 + $0x30] sm:$0xff]
      %v1361 = vld [vmem:[%s470 + $0x38] sm:$0xff]
      %v1362 = vld [vmem:[%s470 + $0x48] sm:$0xff]
      %v1363 = vld [vmem:[%s470 + $0x50] sm:$0xff]
      %v1364 = vld [vmem:[%s470 + $0x60] sm:$0xff]
      %v1365 = vld [vmem:[%s470 + $0x68] sm:$0xff]
      %v1366 = vld [vmem:[%s470 + $0x78] sm:$0xff]
      %v1367 = vld [vmem:[%s470 + $0x80] sm:$0xff]
      %v1368 = vld [vmem:[%s470 + $0x90] sm:$0xff]
      %v1369 = vld [vmem:[%s470 + $0x98] sm:$0xff]
      %v1370 = vld [vmem:[%s470 + $0xa8] sm:$0xff]
      %v1371 = vld [vmem:[%s470 + $0xb0] sm:$0xff]
      %v1372 = vld [vmem:[%s470 + $0xc0] sm:$0xff]
      %v1373 = vld [vmem:[%s470 + $0xc8] sm:$0xff]
      %v1374 = vld [vmem:[%s470 + $0xd8] sm:$0xff]
      %v1375 = vld [vmem:[%s470 + $0xe0] sm:$0xff]
      %v1376 = vld [vmem:[%s470 + $0xf0] sm:$0xff]
      %v1377 = vld [vmem:[%s470 + $0xf8] sm:$0xff]
      %v1378 = vld [vmem:[%s470 + $0x108] sm:$0xff]
      %v1379 = vld [vmem:[%s470 + $0x110] sm:$0xff]
      %v1380 = vld [vmem:[%s470 + $0x120] sm:$0xff]
      %v1381 = vld [vmem:[%s470 + $0x128] sm:$0xff]
      %v1382 = vld [vmem:[%s470 + $0x138] sm:$0xff]
      %v1383 = vld [vmem:[%s470 + $0x140] sm:$0xff]
      %v1384 = vld [vmem:[%s470 + $0x150] sm:$0xff]
      %v1385 = vld [vmem:[%s470 + $0x158] sm:$0xff]
      %v1386 = vld [vmem:[%s470 + $0x168] sm:$0xff]
      %v1387 = vld [vmem:[%s470 + $0x170] sm:$0xff]
      %v1388 = vpack.c.bf16 %v1357, %v1356
      %v1389 = vpack.c.bf16 %v1359, %v1358
      %v1390 = vpack.c.bf16 %v1361, %v1360
      %v1391 = vpack.c.bf16 %v1363, %v1362
      %v1392 = vpack.c.bf16 %v1365, %v1364
      %v1393 = vpack.c.bf16 %v1367, %v1366
      %v1394 = vpack.c.bf16 %v1369, %v1368
      %v1395 = vpack.c.bf16 %v1371, %v1370
      %v1396 = vpack.c.bf16 %v1373, %v1372
      %v1397 = vpack.c.bf16 %v1375, %v1374
      %v1398 = vpack.c.bf16 %v1377, %v1376
      %v1399 = vpack.c.bf16 %v1379, %v1378
      %v1400 = vpack.c.bf16 %v1381, %v1380
      %v1401 = vpack.c.bf16 %v1383, %v1382
      %v1402 = vpack.c.bf16 %v1385, %v1384
      %v1403 = vpack.c.bf16 %v1387, %v1386
      %s1404 = scalar_lea.vmem %s3, 192
      %v1405 = vld [vmem:[%s1404] sm:$0xf]
      %v1406 = vld [vmem:[%s1404 + $0x4] sm:$0xf]
      %v1407 = vld [vmem:[%s1404 + $0x8] sm:$0xf]
      %v1408 = vld [vmem:[%s1404 + $0xc] sm:$0xf]
      %v1409 = vld [vmem:[%s1404 + $0x10] sm:$0xf]
      %v1410 = vld [vmem:[%s1404 + $0x14] sm:$0xf]
      %v1411 = vld [vmem:[%s1404 + $0x18] sm:$0xf]
      %v1412 = vld [vmem:[%s1404 + $0x1c] sm:$0xf]
      %v1413 = vld [vmem:[%s1404 + $0x20] sm:$0xf]
      %v1414 = vld [vmem:[%s1404 + $0x24] sm:$0xf]
      %v1415 = vld [vmem:[%s1404 + $0x28] sm:$0xf]
      %v1416 = vld [vmem:[%s1404 + $0x2c] sm:$0xf]
      %v1417 = vld [vmem:[%s1404 + $0x30] sm:$0xf]
      %v1418 = vld [vmem:[%s1404 + $0x34] sm:$0xf]
      %v1419 = vld [vmem:[%s1404 + $0x38] sm:$0xf]
      %v1420 = vld [vmem:[%s1404 + $0x3c] sm:$0xf]
      %v1437 = vunpack.c.l.b16 %v1405
      %v1438 = vunpack.c.l.b16 %v1406
      %v1439 = vunpack.c.l.b16 %v1407
      %v1440 = vunpack.c.l.b16 %v1408
      %v1441 = vunpack.c.l.b16 %v1409
      %v1442 = vunpack.c.l.b16 %v1410
      %v1443 = vunpack.c.l.b16 %v1411
      %v1444 = vunpack.c.l.b16 %v1412
      %v1445 = vunpack.c.l.b16 %v1413
      %v1446 = vunpack.c.l.b16 %v1414
      %v1447 = vunpack.c.l.b16 %v1415
      %v1448 = vunpack.c.l.b16 %v1416
      %v1449 = vunpack.c.l.b16 %v1417
      %v1450 = vunpack.c.l.b16 %v1418
      %v1451 = vunpack.c.l.b16 %v1419
      %v1452 = vunpack.c.l.b16 %v1420
      %v1453 = vpack.c.b16 %v1438, %v1437
      %v1454 = vpack.c.b16 %v1440, %v1439
      %v1455 = vpack.c.b16 %v1442, %v1441
      %v1456 = vpack.c.b16 %v1444, %v1443
      %v1457 = vpack.c.b16 %v1446, %v1445
      %v1458 = vpack.c.b16 %v1448, %v1447
      %v1459 = vpack.c.b16 %v1450, %v1449
      %v1460 = vpack.c.b16 %v1452, %v1451
      %1469 = vmatprep.subr.bf16.mxu0 0
      %1470 = vmatpush1.bf16.msra.mxu0 %v1453
      %1471 = vmatprep.subr.bf16.mxu0 0
      %1472 = vmatpush1.bf16.msra.mxu0 %v1454
      %1473 = vmatprep.subr.bf16.mxu0 0
      %1474 = vmatpush1.bf16.msra.mxu0 %v1455
      %1475 = vmatprep.subr.bf16.mxu0 0
      %1476 = vmatpush1.bf16.msra.mxu0 %v1456
      %1477 = vmatprep.subr.bf16.mxu0 0
      %1478 = vmatpush1.bf16.msra.mxu0 %v1457
      %1479 = vmatprep.subr.bf16.mxu0 0
      %1480 = vmatpush1.bf16.msra.mxu0 %v1458
      %1481 = vmatprep.subr.bf16.mxu0 0
      %1482 = vmatpush1.bf16.msra.mxu0 %v1459
      %1483 = vmatprep.subr.bf16.mxu0 0
      %1484 = vmatpush1.bf16.msra.mxu0 %v1460
      %1485 = vmatprep.subr.bf16.mxu0 0
      %1486 = vmatpush1.bf16.msra.mxu0 0
      %1487 = vmatprep.subr.bf16.mxu0 0
      %1488 = vmatpush1.bf16.msra.mxu0 0
      %1489 = vmatprep.subr.bf16.mxu0 0
      %1490 = vmatpush1.bf16.msra.mxu0 0
      %1491 = vmatprep.subr.bf16.mxu0 0
      %1492 = vmatpush1.bf16.msra.mxu0 0
      %1493 = vmatprep.subr.bf16.mxu0 0
      %1494 = vmatpush1.bf16.msra.mxu0 0
      %1495 = vmatprep.subr.bf16.mxu0 0
      %1496 = vmatpush1.bf16.msra.mxu0 0
      %1497 = vmatprep.subr.bf16.mxu0 0
      %1498 = vmatpush1.bf16.msra.mxu0 0
      %1499 = vmatprep.subr.bf16.mxu0 0
      %1500 = vmatpush1.bf16.msra.mxu0 0
      %1501 = vmatprep.mubr.bf16.mxu0 0
      %1502 = vmatmul.mubr.bf16.gmra.mrb[0].mxu0 %v1388
      %v1503 = vpop.f32.mrb[0].mxu0
      %v1504 = vadd.f32 0.0, %v1503
      %v1505 = vpop.f32.mrb[0].mxu0
      %v1506 = vpop.f32.mrb[0].mxu0
      %v1507 = vadd.f32 0.0, %v1506
      %v1508 = vpop.f32.mrb[0].mxu0
      %1509 = vmatprep.mubr.bf16.mxu0 0
      %1510 = vmatmul.mubr.bf16.gmra.mrb[0].mxu0 %v1389
      %v1511 = vpop.f32.mrb[0].mxu0
      %v1512 = vadd.f32 0.0, %v1511
      %v1513 = vpop.f32.mrb[0].mxu0
      %v1514 = vpop.f32.mrb[0].mxu0
      %v1515 = vadd.f32 0.0, %v1514
      %v1516 = vpop.f32.mrb[0].mxu0
      %1517 = vmatprep.mubr.bf16.mxu0 0
      %1518 = vmatmul.mubr.bf16.gmra.mrb[0].mxu0 %v1390
      %v1519 = vpop.f32.mrb[0].mxu0
      %v1520 = vadd.f32 0.0, %v1519
      %v1521 = vpop.f32.mrb[0].mxu0
      %v1522 = vpop.f32.mrb[0].mxu0
      %v1523 = vadd.f32 0.0, %v1522
      %v1524 = vpop.f32.mrb[0].mxu0
      %1525 = vmatprep.mubr.bf16.mxu0 0
      %1526 = vmatmul.mubr.bf16.gmra.mrb[0].mxu0 %v1391
      %v1527 = vpop.f32.mrb[0].mxu0
      %v1528 = vadd.f32 0.0, %v1527
      %v1529 = vpop.f32.mrb[0].mxu0
      %v1530 = vpop.f32.mrb[0].mxu0
      %v1531 = vadd.f32 0.0, %v1530
      %v1532 = vpop.f32.mrb[0].mxu0
      %1533 = vmatprep.mubr.bf16.mxu0 0
      %1534 = vmatmul.mubr.bf16.gmra.mrb[0].mxu0 %v1392
      %v1535 = vpop.f32.mrb[0].mxu0
      %v1536 = vadd.f32 0.0, %v1535
      %v1537 = vpop.f32.mrb[0].mxu0
      %v1538 = vpop.f32.mrb[0].mxu0
      %v1539 = vadd.f32 0.0, %v1538
      %v1540 = vpop.f32.mrb[0].mxu0
      %1541 = vmatprep.mubr.bf16.mxu0 0
      %1542 = vmatmul.mubr.bf16.gmra.mrb[0].mxu0 %v1393
      %v1543 = vpop.f32.mrb[0].mxu0
      %v1544 = vadd.f32 0.0, %v1543
      %v1545 = vpop.f32.mrb[0].mxu0
      %v1546 = vpop.f32.mrb[0].mxu0
      %v1547 = vadd.f32 0.0, %v1546
      %v1548 = vpop.f32.mrb[0].mxu0
      %1549 = vmatprep.mubr.bf16.mxu0 0
      %1550 = vmatmul.mubr.bf16.gmra.mrb[0].mxu0 %v1394
      %v1551 = vpop.f32.mrb[0].mxu0
      %v1552 = vadd.f32 0.0, %v1551
      %v1553 = vpop.f32.mrb[0].mxu0
      %v1554 = vpop.f32.mrb[0].mxu0
      %v1555 = vadd.f32 0.0, %v1554
      %v1556 = vpop.f32.mrb[0].mxu0
      %1557 = vmatprep.mubr.bf16.mxu0 0
      %1558 = vmatmul.mubr.bf16.gmra.mrb[0].mxu0 %v1395
      %v1559 = vpop.f32.mrb[0].mxu0
      %v1560 = vadd.f32 0.0, %v1559
      %v1561 = vpop.f32.mrb[0].mxu0
      %v1562 = vpop.f32.mrb[0].mxu0
      %v1563 = vadd.f32 0.0, %v1562
      %v1564 = vpop.f32.mrb[0].mxu0
      %1565 = vmatprep.mubr.bf16.mxu0 0
      %1566 = vmatmul.mubr.bf16.gmra.mrb[0].mxu0 %v1396
      %v1567 = vpop.f32.mrb[0].mxu0
      %v1568 = vadd.f32 0.0, %v1567
      %v1569 = vpop.f32.mrb[0].mxu0
      %v1570 = vpop.f32.mrb[0].mxu0
      %v1571 = vadd.f32 0.0, %v1570
      %v1572 = vpop.f32.mrb[0].mxu0
      %1573 = vmatprep.mubr.bf16.mxu0 0
      %1574 = vmatmul.mubr.bf16.gmra.mrb[0].mxu0 %v1397
      %v1575 = vpop.f32.mrb[0].mxu0
      %v1576 = vadd.f32 0.0, %v1575
      %v1577 = vpop.f32.mrb[0].mxu0
      %v1578 = vpop.f32.mrb[0].mxu0
      %v1579 = vadd.f32 0.0, %v1578
      %v1580 = vpop.f32.mrb[0].mxu0
      %1581 = vmatprep.mubr.bf16.mxu0 0
      %1582 = vmatmul.mubr.bf16.gmra.mrb[0].mxu0 %v1398
      %v1583 = vpop.f32.mrb[0].mxu0
      %v1584 = vadd.f32 0.0, %v1583
      %v1585 = vpop.f32.mrb[0].mxu0
      %v1586 = vpop.f32.mrb[0].mxu0
      %v1587 = vadd.f32 0.0, %v1586
      %v1588 = vpop.f32.mrb[0].mxu0
      %1589 = vmatprep.mubr.bf16.mxu0 0
      %1590 = vmatmul.mubr.bf16.gmra.mrb[0].mxu0 %v1399
      %v1591 = vpop.f32.mrb[0].mxu0
      %v1592 = vadd.f32 0.0, %v1591
      %v1593 = vpop.f32.mrb[0].mxu0
      %v1594 = vpop.f32.mrb[0].mxu0
      %v1595 = vadd.f32 0.0, %v1594
      %v1596 = vpop.f32.mrb[0].mxu0
      %1597 = vmatprep.mubr.bf16.mxu0 0
      %1598 = vmatmul.mubr.bf16.gmra.mrb[0].mxu0 %v1400
      %v1599 = vpop.f32.mrb[0].mxu0
      %v1600 = vadd.f32 0.0, %v1599
      %v1601 = vpop.f32.mrb[0].mxu0
      %v1602 = vpop.f32.mrb[0].mxu0
      %v1603 = vadd.f32 0.0, %v1602
      %v1604 = vpop.f32.mrb[0].mxu0
      %1605 = vmatprep.mubr.bf16.mxu0 0
      %1606 = vmatmul.mubr.bf16.gmra.mrb[0].mxu0 %v1401
      %v1607 = vpop.f32.mrb[0].mxu0
      %v1608 = vadd.f32 0.0, %v1607
      %v1609 = vpop.f32.mrb[0].mxu0
      %v1610 = vpop.f32.mrb[0].mxu0
      %v1611 = vadd.f32 0.0, %v1610
      %v1612 = vpop.f32.mrb[0].mxu0
      %1613 = vmatprep.mubr.bf16.mxu0 0
      %1614 = vmatmul.mubr.bf16.gmra.mrb[0].mxu0 %v1402
      %v1615 = vpop.f32.mrb[0].mxu0
      %v1616 = vadd.f32 0.0, %v1615
      %v1617 = vpop.f32.mrb[0].mxu0
      %v1618 = vpop.f32.mrb[0].mxu0
      %v1619 = vadd.f32 0.0, %v1618
      %v1620 = vpop.f32.mrb[0].mxu0
      %1621 = vmatprep.mubr.bf16.mxu0 0
      %1622 = vmatmul.mubr.bf16.gmra.mrb[0].mxu0 %v1403
      %v1623 = vpop.f32.mrb[0].mxu0
      %v1624 = vadd.f32 0.0, %v1623
      %v1625 = vpop.f32.mrb[0].mxu0
      %v1626 = vpop.f32.mrb[0].mxu0
      %v1627 = vadd.f32 0.0, %v1626
      %v1628 = vpop.f32.mrb[0].mxu0
      %1629 = vdwg.mxu0
      %v1630 = vadd.f32 %v1324, %v1504
      %v1631 = vadd.f32 %v1325, %v1507
      %v1632 = vadd.f32 %v1326, %v1512
      %v1633 = vadd.f32 %v1327, %v1515
      %v1634 = vadd.f32 %v1328, %v1520
      %v1635 = vadd.f32 %v1329, %v1523
      %v1636 = vadd.f32 %v1330, %v1528
      %v1637 = vadd.f32 %v1331, %v1531
      %v1638 = vadd.f32 %v1332, %v1536
      %v1639 = vadd.f32 %v1333, %v1539
      %v1640 = vadd.f32 %v1334, %v1544
      %v1641 = vadd.f32 %v1335, %v1547
      %v1642 = vadd.f32 %v1336, %v1552
      %v1643 = vadd.f32 %v1337, %v1555
      %v1644 = vadd.f32 %v1338, %v1560
      %v1645 = vadd.f32 %v1339, %v1563
      %v1646 = vadd.f32 %v1340, %v1568
      %v1647 = vadd.f32 %v1341, %v1571
      %v1648 = vadd.f32 %v1342, %v1576
      %v1649 = vadd.f32 %v1343, %v1579
      %v1650 = vadd.f32 %v1344, %v1584
      %v1651 = vadd.f32 %v1345, %v1587
      %v1652 = vadd.f32 %v1346, %v1592
      %v1653 = vadd.f32 %v1347, %v1595
      %v1654 = vadd.f32 %v1348, %v1600
      %v1655 = vadd.f32 %v1349, %v1603
      %v1656 = vadd.f32 %v1350, %v1608
      %v1657 = vadd.f32 %v1351, %v1611
      %v1658 = vadd.f32 %v1352, %v1616
      %v1659 = vadd.f32 %v1353, %v1619
      %v1660 = vadd.f32 %v1354, %v1624
      %v1661 = vadd.f32 %v1355, %v1627
      %v1662 = vld [vmem:[%s470 + $0x1] sm:$0xff]
      %v1663 = vld [vmem:[%s470 + $0x9] sm:$0xff]
      %v1664 = vld [vmem:[%s470 + $0x19] sm:$0xff]
      %v1665 = vld [vmem:[%s470 + $0x21] sm:$0xff]
      %v1666 = vld [vmem:[%s470 + $0x31] sm:$0xff]
      %v1667 = vld [vmem:[%s470 + $0x39] sm:$0xff]
      %v1668 = vld [vmem:[%s470 + $0x49] sm:$0xff]
      %v1669 = vld [vmem:[%s470 + $0x51] sm:$0xff]
      %v1670 = vld [vmem:[%s470 + $0x61] sm:$0xff]
      %v1671 = vld [vmem:[%s470 + $0x69] sm:$0xff]
      %v1672 = vld [vmem:[%s470 + $0x79] sm:$0xff]
      %v1673 = vld [vmem:[%s470 + $0x81] sm:$0xff]
      %v1674 = vld [vmem:[%s470 + $0x91] sm:$0xff]
      %v1675 = vld [vmem:[%s470 + $0x99] sm:$0xff]
      %v1676 = vld [vmem:[%s470 + $0xa9] sm:$0xff]
      %v1677 = vld [vmem:[%s470 + $0xb1] sm:$0xff]
      %v1678 = vld [vmem:[%s470 + $0xc1] sm:$0xff]
      %v1679 = vld [vmem:[%s470 + $0xc9] sm:$0xff]
      %v1680 = vld [vmem:[%s470 + $0xd9] sm:$0xff]
      %v1681 = vld [vmem:[%s470 + $0xe1] sm:$0xff]
      %v1682 = vld [vmem:[%s470 + $0xf1] sm:$0xff]
      %v1683 = vld [vmem:[%s470 + $0xf9] sm:$0xff]
      %v1684 = vld [vmem:[%s470 + $0x109] sm:$0xff]
      %v1685 = vld [vmem:[%s470 + $0x111] sm:$0xff]
      %v1686 = vld [vmem:[%s470 + $0x121] sm:$0xff]
      %v1687 = vld [vmem:[%s470 + $0x129] sm:$0xff]
      %v1688 = vld [vmem:[%s470 + $0x139] sm:$0xff]
      %v1689 = vld [vmem:[%s470 + $0x141] sm:$0xff]
      %v1690 = vld [vmem:[%s470 + $0x151] sm:$0xff]
      %v1691 = vld [vmem:[%s470 + $0x159] sm:$0xff]
      %v1692 = vld [vmem:[%s470 + $0x169] sm:$0xff]
      %v1693 = vld [vmem:[%s470 + $0x171] sm:$0xff]
      %v1694 = vpack.c.bf16 %v1663, %v1662
      %v1695 = vpack.c.bf16 %v1665, %v1664
      %v1696 = vpack.c.bf16 %v1667, %v1666
      %v1697 = vpack.c.bf16 %v1669, %v1668
      %v1698 = vpack.c.bf16 %v1671, %v1670
      %v1699 = vpack.c.bf16 %v1673, %v1672
      %v1700 = vpack.c.bf16 %v1675, %v1674
      %v1701 = vpack.c.bf16 %v1677, %v1676
      %v1702 = vpack.c.bf16 %v1679, %v1678
      %v1703 = vpack.c.bf16 %v1681, %v1680
      %v1704 = vpack.c.bf16 %v1683, %v1682
      %v1705 = vpack.c.bf16 %v1685, %v1684
      %v1706 = vpack.c.bf16 %v1687, %v1686
      %v1707 = vpack.c.bf16 %v1689, %v1688
      %v1708 = vpack.c.bf16 %v1691, %v1690
      %v1709 = vpack.c.bf16 %v1693, %v1692
      %s1710 = scalar_lea.vmem %s3, 256
      %v1711 = vld [vmem:[%s1710] sm:$0xf]
      %v1712 = vld [vmem:[%s1710 + $0x4] sm:$0xf]
      %v1713 = vld [vmem:[%s1710 + $0x8] sm:$0xf]
      %v1714 = vld [vmem:[%s1710 + $0xc] sm:$0xf]
      %v1715 = vld [vmem:[%s1710 + $0x10] sm:$0xf]
      %v1716 = vld [vmem:[%s1710 + $0x14] sm:$0xf]
      %v1717 = vld [vmem:[%s1710 + $0x18] sm:$0xf]
      %v1718 = vld [vmem:[%s1710 + $0x1c] sm:$0xf]
      %v1719 = vld [vmem:[%s1710 + $0x20] sm:$0xf]
      %v1720 = vld [vmem:[%s1710 + $0x24] sm:$0xf]
      %v1721 = vld [vmem:[%s1710 + $0x28] sm:$0xf]
      %v1722 = vld [vmem:[%s1710 + $0x2c] sm:$0xf]
      %v1723 = vld [vmem:[%s1710 + $0x30] sm:$0xf]
      %v1724 = vld [vmem:[%s1710 + $0x34] sm:$0xf]
      %v1725 = vld [vmem:[%s1710 + $0x38] sm:$0xf]
      %v1726 = vld [vmem:[%s1710 + $0x3c] sm:$0xf]
      %v1743 = vunpack.c.l.b16 %v1711
      %v1744 = vunpack.c.l.b16 %v1712
      %v1745 = vunpack.c.l.b16 %v1713
      %v1746 = vunpack.c.l.b16 %v1714
      %v1747 = vunpack.c.l.b16 %v1715
      %v1748 = vunpack.c.l.b16 %v1716
      %v1749 = vunpack.c.l.b16 %v1717
      %v1750 = vunpack.c.l.b16 %v1718
      %v1751 = vunpack.c.l.b16 %v1719
      %v1752 = vunpack.c.l.b16 %v1720
      %v1753 = vunpack.c.l.b16 %v1721
      %v1754 = vunpack.c.l.b16 %v1722
      %v1755 = vunpack.c.l.b16 %v1723
      %v1756 = vunpack.c.l.b16 %v1724
      %v1757 = vunpack.c.l.b16 %v1725
      %v1758 = vunpack.c.l.b16 %v1726
      %v1759 = vpack.c.b16 %v1744, %v1743
      %v1760 = vpack.c.b16 %v1746, %v1745
      %v1761 = vpack.c.b16 %v1748, %v1747
      %v1762 = vpack.c.b16 %v1750, %v1749
      %v1763 = vpack.c.b16 %v1752, %v1751
      %v1764 = vpack.c.b16 %v1754, %v1753
      %v1765 = vpack.c.b16 %v1756, %v1755
      %v1766 = vpack.c.b16 %v1758, %v1757
      %1775 = vmatprep.subr.bf16.mxu0 0
      %1776 = vmatpush1.bf16.msra.mxu0 %v1759
      %1777 = vmatprep.subr.bf16.mxu0 0
      %1778 = vmatpush1.bf16.msra.mxu0 %v1760
      %1779 = vmatprep.subr.bf16.mxu0 0
      %1780 = vmatpush1.bf16.msra.mxu0 %v1761
      %1781 = vmatprep.subr.bf16.mxu0 0
      %1782 = vmatpush1.bf16.msra.mxu0 %v1762
      %1783 = vmatprep.subr.bf16.mxu0 0
      %1784 = vmatpush1.bf16.msra.mxu0 %v1763
      %1785 = vmatprep.subr.bf16.mxu0 0
      %1786 = vmatpush1.bf16.msra.mxu0 %v1764
      %1787 = vmatprep.subr.bf16.mxu0 0
      %1788 = vmatpush1.bf16.msra.mxu0 %v1765
      %1789 = vmatprep.subr.bf16.mxu0 0
      %1790 = vmatpush1.bf16.msra.mxu0 %v1766
      %1791 = vmatprep.subr.bf16.mxu0 0
      %1792 = vmatpush1.bf16.msra.mxu0 0
      %1793 = vmatprep.subr.bf16.mxu0 0
      %1794 = vmatpush1.bf16.msra.mxu0 0
      %1795 = vmatprep.subr.bf16.mxu0 0
      %1796 = vmatpush1.bf16.msra.mxu0 0
      %1797 = vmatprep.subr.bf16.mxu0 0
      %1798 = vmatpush1.bf16.msra.mxu0 0
      %1799 = vmatprep.subr.bf16.mxu0 0
      %1800 = vmatpush1.bf16.msra.mxu0 0
      %1801 = vmatprep.subr.bf16.mxu0 0
      %1802 = vmatpush1.bf16.msra.mxu0 0
      %1803 = vmatprep.subr.bf16.mxu0 0
      %1804 = vmatpush1.bf16.msra.mxu0 0
      %1805 = vmatprep.subr.bf16.mxu0 0
      %1806 = vmatpush1.bf16.msra.mxu0 0
      %1807 = vmatprep.mubr.bf16.mxu0 0
      %1808 = vmatmul.mubr.bf16.gmra.mrb[0].mxu0 %v1694
      %v1809 = vpop.f32.mrb[0].mxu0
      %v1810 = vadd.f32 0.0, %v1809
      %v1811 = vpop.f32.mrb[0].mxu0
      %v1812 = vpop.f32.mrb[0].mxu0
      %v1813 = vadd.f32 0.0, %v1812
      %v1814 = vpop.f32.mrb[0].mxu0
      %1815 = vmatprep.mubr.bf16.mxu0 0
      %1816 = vmatmul.mubr.bf16.gmra.mrb[0].mxu0 %v1695
      %v1817 = vpop.f32.mrb[0].mxu0
      %v1818 = vadd.f32 0.0, %v1817
      %v1819 = vpop.f32.mrb[0].mxu0
      %v1820 = vpop.f32.mrb[0].mxu0
      %v1821 = vadd.f32 0.0, %v1820
      %v1822 = vpop.f32.mrb[0].mxu0
      %1823 = vmatprep.mubr.bf16.mxu0 0
      %1824 = vmatmul.mubr.bf16.gmra.mrb[0].mxu0 %v1696
      %v1825 = vpop.f32.mrb[0].mxu0
      %v1826 = vadd.f32 0.0, %v1825
      %v1827 = vpop.f32.mrb[0].mxu0
      %v1828 = vpop.f32.mrb[0].mxu0
      %v1829 = vadd.f32 0.0, %v1828
      %v1830 = vpop.f32.mrb[0].mxu0
      %1831 = vmatprep.mubr.bf16.mxu0 0
      %1832 = vmatmul.mubr.bf16.gmra.mrb[0].mxu0 %v1697
      %v1833 = vpop.f32.mrb[0].mxu0
      %v1834 = vadd.f32 0.0, %v1833
      %v1835 = vpop.f32.mrb[0].mxu0
      %v1836 = vpop.f32.mrb[0].mxu0
      %v1837 = vadd.f32 0.0, %v1836
      %v1838 = vpop.f32.mrb[0].mxu0
      %1839 = vmatprep.mubr.bf16.mxu0 0
      %1840 = vmatmul.mubr.bf16.gmra.mrb[0].mxu0 %v1698
      %v1841 = vpop.f32.mrb[0].mxu0
      %v1842 = vadd.f32 0.0, %v1841
      %v1843 = vpop.f32.mrb[0].mxu0
      %v1844 = vpop.f32.mrb[0].mxu0
      %v1845 = vadd.f32 0.0, %v1844
      %v1846 = vpop.f32.mrb[0].mxu0
      %1847 = vmatprep.mubr.bf16.mxu0 0
      %1848 = vmatmul.mubr.bf16.gmra.mrb[0].mxu0 %v1699
      %v1849 = vpop.f32.mrb[0].mxu0
      %v1850 = vadd.f32 0.0, %v1849
      %v1851 = vpop.f32.mrb[0].mxu0
      %v1852 = vpop.f32.mrb[0].mxu0
      %v1853 = vadd.f32 0.0, %v1852
      %v1854 = vpop.f32.mrb[0].mxu0
      %1855 = vmatprep.mubr.bf16.mxu0 0
      %1856 = vmatmul.mubr.bf16.gmra.mrb[0].mxu0 %v1700
      %v1857 = vpop.f32.mrb[0].mxu0
      %v1858 = vadd.f32 0.0, %v1857
      %v1859 = vpop.f32.mrb[0].mxu0
      %v1860 = vpop.f32.mrb[0].mxu0
      %v1861 = vadd.f32 0.0, %v1860
      %v1862 = vpop.f32.mrb[0].mxu0
      %1863 = vmatprep.mubr.bf16.mxu0 0
      %1864 = vmatmul.mubr.bf16.gmra.mrb[0].mxu0 %v1701
      %v1865 = vpop.f32.mrb[0].mxu0
      %v1866 = vadd.f32 0.0, %v1865
      %v1867 = vpop.f32.mrb[0].mxu0
      %v1868 = vpop.f32.mrb[0].mxu0
      %v1869 = vadd.f32 0.0, %v1868
      %v1870 = vpop.f32.mrb[0].mxu0
      %1871 = vmatprep.mubr.bf16.mxu0 0
      %1872 = vmatmul.mubr.bf16.gmra.mrb[0].mxu0 %v1702
      %v1873 = vpop.f32.mrb[0].mxu0
      %v1874 = vadd.f32 0.0, %v1873
      %v1875 = vpop.f32.mrb[0].mxu0
      %v1876 = vpop.f32.mrb[0].mxu0
      %v1877 = vadd.f32 0.0, %v1876
      %v1878 = vpop.f32.mrb[0].mxu0
      %1879 = vmatprep.mubr.bf16.mxu0 0
      %1880 = vmatmul.mubr.bf16.gmra.mrb[0].mxu0 %v1703
      %v1881 = vpop.f32.mrb[0].mxu0
      %v1882 = vadd.f32 0.0, %v1881
      %v1883 = vpop.f32.mrb[0].mxu0
      %v1884 = vpop.f32.mrb[0].mxu0
      %v1885 = vadd.f32 0.0, %v1884
      %v1886 = vpop.f32.mrb[0].mxu0
      %1887 = vmatprep.mubr.bf16.mxu0 0
      %1888 = vmatmul.mubr.bf16.gmra.mrb[0].mxu0 %v1704
      %v1889 = vpop.f32.mrb[0].mxu0
      %v1890 = vadd.f32 0.0, %v1889
      %v1891 = vpop.f32.mrb[0].mxu0
      %v1892 = vpop.f32.mrb[0].mxu0
      %v1893 = vadd.f32 0.0, %v1892
      %v1894 = vpop.f32.mrb[0].mxu0
      %1895 = vmatprep.mubr.bf16.mxu0 0
      %1896 = vmatmul.mubr.bf16.gmra.mrb[0].mxu0 %v1705
      %v1897 = vpop.f32.mrb[0].mxu0
      %v1898 = vadd.f32 0.0, %v1897
      %v1899 = vpop.f32.mrb[0].mxu0
      %v1900 = vpop.f32.mrb[0].mxu0
      %v1901 = vadd.f32 0.0, %v1900
      %v1902 = vpop.f32.mrb[0].mxu0
      %1903 = vmatprep.mubr.bf16.mxu0 0
      %1904 = vmatmul.mubr.bf16.gmra.mrb[0].mxu0 %v1706
      %v1905 = vpop.f32.mrb[0].mxu0
      %v1906 = vadd.f32 0.0, %v1905
      %v1907 = vpop.f32.mrb[0].mxu0
      %v1908 = vpop.f32.mrb[0].mxu0
      %v1909 = vadd.f32 0.0, %v1908
      %v1910 = vpop.f32.mrb[0].mxu0
      %1911 = vmatprep.mubr.bf16.mxu0 0
      %1912 = vmatmul.mubr.bf16.gmra.mrb[0].mxu0 %v1707
      %v1913 = vpop.f32.mrb[0].mxu0
      %v1914 = vadd.f32 0.0, %v1913
      %v1915 = vpop.f32.mrb[0].mxu0
      %v1916 = vpop.f32.mrb[0].mxu0
      %v1917 = vadd.f32 0.0, %v1916
      %v1918 = vpop.f32.mrb[0].mxu0
      %1919 = vmatprep.mubr.bf16.mxu0 0
      %1920 = vmatmul.mubr.bf16.gmra.mrb[0].mxu0 %v1708
      %v1921 = vpop.f32.mrb[0].mxu0
      %v1922 = vadd.f32 0.0, %v1921
      %v1923 = vpop.f32.mrb[0].mxu0
      %v1924 = vpop.f32.mrb[0].mxu0
      %v1925 = vadd.f32 0.0, %v1924
      %v1926 = vpop.f32.mrb[0].mxu0
      %1927 = vmatprep.mubr.bf16.mxu0 0
      %1928 = vmatmul.mubr.bf16.gmra.mrb[0].mxu0 %v1709
      %v1929 = vpop.f32.mrb[0].mxu0
      %v1930 = vadd.f32 0.0, %v1929
      %v1931 = vpop.f32.mrb[0].mxu0
      %v1932 = vpop.f32.mrb[0].mxu0
      %v1933 = vadd.f32 0.0, %v1932
      %v1934 = vpop.f32.mrb[0].mxu0
      %1935 = vdwg.mxu0
      %v1936 = vadd.f32 %v1630, %v1810
      %v1937 = vadd.f32 %v1631, %v1813
      %v1938 = vadd.f32 %v1632, %v1818
      %v1939 = vadd.f32 %v1633, %v1821
      %v1940 = vadd.f32 %v1634, %v1826
      %v1941 = vadd.f32 %v1635, %v1829
      %v1942 = vadd.f32 %v1636, %v1834
      %v1943 = vadd.f32 %v1637, %v1837
      %v1944 = vadd.f32 %v1638, %v1842
      %v1945 = vadd.f32 %v1639, %v1845
      %v1946 = vadd.f32 %v1640, %v1850
      %v1947 = vadd.f32 %v1641, %v1853
      %v1948 = vadd.f32 %v1642, %v1858
      %v1949 = vadd.f32 %v1643, %v1861
      %v1950 = vadd.f32 %v1644, %v1866
      %v1951 = vadd.f32 %v1645, %v1869
      %v1952 = vadd.f32 %v1646, %v1874
      %v1953 = vadd.f32 %v1647, %v1877
      %v1954 = vadd.f32 %v1648, %v1882
      %v1955 = vadd.f32 %v1649, %v1885
      %v1956 = vadd.f32 %v1650, %v1890
      %v1957 = vadd.f32 %v1651, %v1893
      %v1958 = vadd.f32 %v1652, %v1898
      %v1959 = vadd.f32 %v1653, %v1901
      %v1960 = vadd.f32 %v1654, %v1906
      %v1961 = vadd.f32 %v1655, %v1909
      %v1962 = vadd.f32 %v1656, %v1914
      %v1963 = vadd.f32 %v1657, %v1917
      %v1964 = vadd.f32 %v1658, %v1922
      %v1965 = vadd.f32 %v1659, %v1925
      %v1966 = vadd.f32 %v1660, %v1930
      %v1967 = vadd.f32 %v1661, %v1933
      %v1968 = vld [vmem:[%s470 + $0x2] sm:$0xff]
      %v1969 = vld [vmem:[%s470 + $0xa] sm:$0xff]
      %v1970 = vld [vmem:[%s470 + $0x1a] sm:$0xff]
      %v1971 = vld [vmem:[%s470 + $0x22] sm:$0xff]
      %v1972 = vld [vmem:[%s470 + $0x32] sm:$0xff]
      %v1973 = vld [vmem:[%s470 + $0x3a] sm:$0xff]
      %v1974 = vld [vmem:[%s470 + $0x4a] sm:$0xff]
      %v1975 = vld [vmem:[%s470 + $0x52] sm:$0xff]
      %v1976 = vld [vmem:[%s470 + $0x62] sm:$0xff]
      %v1977 = vld [vmem:[%s470 + $0x6a] sm:$0xff]
      %v1978 = vld [vmem:[%s470 + $0x7a] sm:$0xff]
      %v1979 = vld [vmem:[%s470 + $0x82] sm:$0xff]
      %v1980 = vld [vmem:[%s470 + $0x92] sm:$0xff]
      %v1981 = vld [vmem:[%s470 + $0x9a] sm:$0xff]
      %v1982 = vld [vmem:[%s470 + $0xaa] sm:$0xff]
      %v1983 = vld [vmem:[%s470 + $0xb2] sm:$0xff]
      %v1984 = vld [vmem:[%s470 + $0xc2] sm:$0xff]
      %v1985 = vld [vmem:[%s470 + $0xca] sm:$0xff]
      %v1986 = vld [vmem:[%s470 + $0xda] sm:$0xff]
      %v1987 = vld [vmem:[%s470 + $0xe2] sm:$0xff]
      %v1988 = vld [vmem:[%s470 + $0xf2] sm:$0xff]
      %v1989 = vld [vmem:[%s470 + $0xfa] sm:$0xff]
      %v1990 = vld [vmem:[%s470 + $0x10a] sm:$0xff]
      %v1991 = vld [vmem:[%s470 + $0x112] sm:$0xff]
      %v1992 = vld [vmem:[%s470 + $0x122] sm:$0xff]
      %v1993 = vld [vmem:[%s470 + $0x12a] sm:$0xff]
      %v1994 = vld [vmem:[%s470 + $0x13a] sm:$0xff]
      %v1995 = vld [vmem:[%s470 + $0x142] sm:$0xff]
      %v1996 = vld [vmem:[%s470 + $0x152] sm:$0xff]
      %v1997 = vld [vmem:[%s470 + $0x15a] sm:$0xff]
      %v1998 = vld [vmem:[%s470 + $0x16a] sm:$0xff]
      %v1999 = vld [vmem:[%s470 + $0x172] sm:$0xff]
      %v2000 = vpack.c.bf16 %v1969, %v1968
      %v2001 = vpack.c.bf16 %v1971, %v1970
      %v2002 = vpack.c.bf16 %v1973, %v1972
      %v2003 = vpack.c.bf16 %v1975, %v1974
      %v2004 = vpack.c.bf16 %v1977, %v1976
      %v2005 = vpack.c.bf16 %v1979, %v1978
      %v2006 = vpack.c.bf16 %v1981, %v1980
      %v2007 = vpack.c.bf16 %v1983, %v1982
      %v2008 = vpack.c.bf16 %v1985, %v1984
      %v2009 = vpack.c.bf16 %v1987, %v1986
      %v2010 = vpack.c.bf16 %v1989, %v1988
      %v2011 = vpack.c.bf16 %v1991, %v1990
      %v2012 = vpack.c.bf16 %v1993, %v1992
      %v2013 = vpack.c.bf16 %v1995, %v1994
      %v2014 = vpack.c.bf16 %v1997, %v1996
      %v2015 = vpack.c.bf16 %v1999, %v1998
      %s2016 = scalar_lea.vmem %s3, 320
      %v2017 = vld [vmem:[%s2016] sm:$0xf]
      %v2018 = vld [vmem:[%s2016 + $0x4] sm:$0xf]
      %v2019 = vld [vmem:[%s2016 + $0x8] sm:$0xf]
      %v2020 = vld [vmem:[%s2016 + $0xc] sm:$0xf]
      %v2021 = vld [vmem:[%s2016 + $0x10] sm:$0xf]
      %v2022 = vld [vmem:[%s2016 + $0x14] sm:$0xf]
      %v2023 = vld [vmem:[%s2016 + $0x18] sm:$0xf]
      %v2024 = vld [vmem:[%s2016 + $0x1c] sm:$0xf]
      %v2025 = vld [vmem:[%s2016 + $0x20] sm:$0xf]
      %v2026 = vld [vmem:[%s2016 + $0x24] sm:$0xf]
      %v2027 = vld [vmem:[%s2016 + $0x28] sm:$0xf]
      %v2028 = vld [vmem:[%s2016 + $0x2c] sm:$0xf]
      %v2029 = vld [vmem:[%s2016 + $0x30] sm:$0xf]
      %v2030 = vld [vmem:[%s2016 + $0x34] sm:$0xf]
      %v2031 = vld [vmem:[%s2016 + $0x38] sm:$0xf]
      %v2032 = vld [vmem:[%s2016 + $0x3c] sm:$0xf]
      %v2049 = vunpack.c.l.b16 %v2017
      %v2050 = vunpack.c.l.b16 %v2018
      %v2051 = vunpack.c.l.b16 %v2019
      %v2052 = vunpack.c.l.b16 %v2020
      %v2053 = vunpack.c.l.b16 %v2021
      %v2054 = vunpack.c.l.b16 %v2022
      %v2055 = vunpack.c.l.b16 %v2023
      %v2056 = vunpack.c.l.b16 %v2024
      %v2057 = vunpack.c.l.b16 %v2025
      %v2058 = vunpack.c.l.b16 %v2026
      %v2059 = vunpack.c.l.b16 %v2027
      %v2060 = vunpack.c.l.b16 %v2028
      %v2061 = vunpack.c.l.b16 %v2029
      %v2062 = vunpack.c.l.b16 %v2030
      %v2063 = vunpack.c.l.b16 %v2031
      %v2064 = vunpack.c.l.b16 %v2032
      %v2065 = vpack.c.b16 %v2050, %v2049
      %v2066 = vpack.c.b16 %v2052, %v2051
      %v2067 = vpack.c.b16 %v2054, %v2053
      %v2068 = vpack.c.b16 %v2056, %v2055
      %v2069 = vpack.c.b16 %v2058, %v2057
      %v2070 = vpack.c.b16 %v2060, %v2059
      %v2071 = vpack.c.b16 %v2062, %v2061
      %v2072 = vpack.c.b16 %v2064, %v2063
      %2081 = vmatprep.subr.bf16.mxu0 0
      %2082 = vmatpush1.bf16.msra.mxu0 %v2065
      %2083 = vmatprep.subr.bf16.mxu0 0
      %2084 = vmatpush1.bf16.msra.mxu0 %v2066
      %2085 = vmatprep.subr.bf16.mxu0 0
      %2086 = vmatpush1.bf16.msra.mxu0 %v2067
      %2087 = vmatprep.subr.bf16.mxu0 0
      %2088 = vmatpush1.bf16.msra.mxu0 %v2068
      %2089 = vmatprep.subr.bf16.mxu0 0
      %2090 = vmatpush1.bf16.msra.mxu0 %v2069
      %2091 = vmatprep.subr.bf16.mxu0 0
      %2092 = vmatpush1.bf16.msra.mxu0 %v2070
      %2093 = vmatprep.subr.bf16.mxu0 0
      %2094 = vmatpush1.bf16.msra.mxu0 %v2071
      %2095 = vmatprep.subr.bf16.mxu0 0
      %2096 = vmatpush1.bf16.msra.mxu0 %v2072
      %2097 = vmatprep.subr.bf16.mxu0 0
      %2098 = vmatpush1.bf16.msra.mxu0 0
      %2099 = vmatprep.subr.bf16.mxu0 0
      %2100 = vmatpush1.bf16.msra.mxu0 0
      %2101 = vmatprep.subr.bf16.mxu0 0
      %2102 = vmatpush1.bf16.msra.mxu0 0
      %2103 = vmatprep.subr.bf16.mxu0 0
      %2104 = vmatpush1.bf16.msra.mxu0 0
      %2105 = vmatprep.subr.bf16.mxu0 0
      %2106 = vmatpush1.bf16.msra.mxu0 0
      %2107 = vmatprep.subr.bf16.mxu0 0
      %2108 = vmatpush1.bf16.msra.mxu0 0
      %2109 = vmatprep.subr.bf16.mxu0 0
      %2110 = vmatpush1.bf16.msra.mxu0 0
      %2111 = vmatprep.subr.bf16.mxu0 0
      %2112 = vmatpush1.bf16.msra.mxu0 0
      %2113 = vmatprep.mubr.bf16.mxu0 0
      %2114 = vmatmul.mubr.bf16.gmra.mrb[0].mxu0 %v2000
      %v2115 = vpop.f32.mrb[0].mxu0
      %v2116 = vadd.f32 0.0, %v2115
      %v2117 = vpop.f32.mrb[0].mxu0
      %v2118 = vpop.f32.mrb[0].mxu0
      %v2119 = vadd.f32 0.0, %v2118
      %v2120 = vpop.f32.mrb[0].mxu0
      %2121 = vmatprep.mubr.bf16.mxu0 0
      %2122 = vmatmul.mubr.bf16.gmra.mrb[0].mxu0 %v2001
      %v2123 = vpop.f32.mrb[0].mxu0
      %v2124 = vadd.f32 0.0, %v2123
      %v2125 = vpop.f32.mrb[0].mxu0
      %v2126 = vpop.f32.mrb[0].mxu0
      %v2127 = vadd.f32 0.0, %v2126
      %v2128 = vpop.f32.mrb[0].mxu0
      %2129 = vmatprep.mubr.bf16.mxu0 0
      %2130 = vmatmul.mubr.bf16.gmra.mrb[0].mxu0 %v2002
      %v2131 = vpop.f32.mrb[0].mxu0
      %v2132 = vadd.f32 0.0, %v2131
      %v2133 = vpop.f32.mrb[0].mxu0
      %v2134 = vpop.f32.mrb[0].mxu0
      %v2135 = vadd.f32 0.0, %v2134
      %v2136 = vpop.f32.mrb[0].mxu0
      %2137 = vmatprep.mubr.bf16.mxu0 0
      %2138 = vmatmul.mubr.bf16.gmra.mrb[0].mxu0 %v2003
      %v2139 = vpop.f32.mrb[0].mxu0
      %v2140 = vadd.f32 0.0, %v2139
      %v2141 = vpop.f32.mrb[0].mxu0
      %v2142 = vpop.f32.mrb[0].mxu0
      %v2143 = vadd.f32 0.0, %v2142
      %v2144 = vpop.f32.mrb[0].mxu0
      %2145 = vmatprep.mubr.bf16.mxu0 0
      %2146 = vmatmul.mubr.bf16.gmra.mrb[0].mxu0 %v2004
      %v2147 = vpop.f32.mrb[0].mxu0
      %v2148 = vadd.f32 0.0, %v2147
      %v2149 = vpop.f32.mrb[0].mxu0
      %v2150 = vpop.f32.mrb[0].mxu0
      %v2151 = vadd.f32 0.0, %v2150
      %v2152 = vpop.f32.mrb[0].mxu0
      %2153 = vmatprep.mubr.bf16.mxu0 0
      %2154 = vmatmul.mubr.bf16.gmra.mrb[0].mxu0 %v2005
      %v2155 = vpop.f32.mrb[0].mxu0
      %v2156 = vadd.f32 0.0, %v2155
      %v2157 = vpop.f32.mrb[0].mxu0
      %v2158 = vpop.f32.mrb[0].mxu0
      %v2159 = vadd.f32 0.0, %v2158
      %v2160 = vpop.f32.mrb[0].mxu0
      %2161 = vmatprep.mubr.bf16.mxu0 0
      %2162 = vmatmul.mubr.bf16.gmra.mrb[0].mxu0 %v2006
      %v2163 = vpop.f32.mrb[0].mxu0
      %v2164 = vadd.f32 0.0, %v2163
      %v2165 = vpop.f32.mrb[0].mxu0
      %v2166 = vpop.f32.mrb[0].mxu0
      %v2167 = vadd.f32 0.0, %v2166
      %v2168 = vpop.f32.mrb[0].mxu0
      %2169 = vmatprep.mubr.bf16.mxu0 0
      %2170 = vmatmul.mubr.bf16.gmra.mrb[0].mxu0 %v2007
      %v2171 = vpop.f32.mrb[0].mxu0
      %v2172 = vadd.f32 0.0, %v2171
      %v2173 = vpop.f32.mrb[0].mxu0
      %v2174 = vpop.f32.mrb[0].mxu0
      %v2175 = vadd.f32 0.0, %v2174
      %v2176 = vpop.f32.mrb[0].mxu0
      %2177 = vmatprep.mubr.bf16.mxu0 0
      %2178 = vmatmul.mubr.bf16.gmra.mrb[0].mxu0 %v2008
      %v2179 = vpop.f32.mrb[0].mxu0
      %v2180 = vadd.f32 0.0, %v2179
      %v2181 = vpop.f32.mrb[0].mxu0
      %v2182 = vpop.f32.mrb[0].mxu0
      %v2183 = vadd.f32 0.0, %v2182
      %v2184 = vpop.f32.mrb[0].mxu0
      %2185 = vmatprep.mubr.bf16.mxu0 0
      %2186 = vmatmul.mubr.bf16.gmra.mrb[0].mxu0 %v2009
      %v2187 = vpop.f32.mrb[0].mxu0
      %v2188 = vadd.f32 0.0, %v2187
      %v2189 = vpop.f32.mrb[0].mxu0
      %v2190 = vpop.f32.mrb[0].mxu0
      %v2191 = vadd.f32 0.0, %v2190
      %v2192 = vpop.f32.mrb[0].mxu0
      %2193 = vmatprep.mubr.bf16.mxu0 0
      %2194 = vmatmul.mubr.bf16.gmra.mrb[0].mxu0 %v2010
      %v2195 = vpop.f32.mrb[0].mxu0
      %v2196 = vadd.f32 0.0, %v2195
      %v2197 = vpop.f32.mrb[0].mxu0
      %v2198 = vpop.f32.mrb[0].mxu0
      %v2199 = vadd.f32 0.0, %v2198
      %v2200 = vpop.f32.mrb[0].mxu0
      %2201 = vmatprep.mubr.bf16.mxu0 0
      %2202 = vmatmul.mubr.bf16.gmra.mrb[0].mxu0 %v2011
      %v2203 = vpop.f32.mrb[0].mxu0
      %v2204 = vadd.f32 0.0, %v2203
      %v2205 = vpop.f32.mrb[0].mxu0
      %v2206 = vpop.f32.mrb[0].mxu0
      %v2207 = vadd.f32 0.0, %v2206
      %v2208 = vpop.f32.mrb[0].mxu0
      %2209 = vmatprep.mubr.bf16.mxu0 0
      %2210 = vmatmul.mubr.bf16.gmra.mrb[0].mxu0 %v2012
      %v2211 = vpop.f32.mrb[0].mxu0
      %v2212 = vadd.f32 0.0, %v2211
      %v2213 = vpop.f32.mrb[0].mxu0
      %v2214 = vpop.f32.mrb[0].mxu0
      %v2215 = vadd.f32 0.0, %v2214
      %v2216 = vpop.f32.mrb[0].mxu0
      %2217 = vmatprep.mubr.bf16.mxu0 0
      %2218 = vmatmul.mubr.bf16.gmra.mrb[0].mxu0 %v2013
      %v2219 = vpop.f32.mrb[0].mxu0
      %v2220 = vadd.f32 0.0, %v2219
      %v2221 = vpop.f32.mrb[0].mxu0
      %v2222 = vpop.f32.mrb[0].mxu0
      %v2223 = vadd.f32 0.0, %v2222
      %v2224 = vpop.f32.mrb[0].mxu0
      %2225 = vmatprep.mubr.bf16.mxu0 0
      %2226 = vmatmul.mubr.bf16.gmra.mrb[0].mxu0 %v2014
      %v2227 = vpop.f32.mrb[0].mxu0
      %v2228 = vadd.f32 0.0, %v2227
      %v2229 = vpop.f32.mrb[0].mxu0
      %v2230 = vpop.f32.mrb[0].mxu0
      %v2231 = vadd.f32 0.0, %v2230
      %v2232 = vpop.f32.mrb[0].mxu0
      %2233 = vmatprep.mubr.bf16.mxu0 0
      %2234 = vmatmul.mubr.bf16.gmra.mrb[0].mxu0 %v2015
      %v2235 = vpop.f32.mrb[0].mxu0
      %v2236 = vadd.f32 0.0, %v2235
      %v2237 = vpop.f32.mrb[0].mxu0
      %v2238 = vpop.f32.mrb[0].mxu0
      %v2239 = vadd.f32 0.0, %v2238
      %v2240 = vpop.f32.mrb[0].mxu0
      %2241 = vdwg.mxu0
      %v2242 = vadd.f32 %v1936, %v2116
      %v2243 = vadd.f32 %v1937, %v2119
      %v2244 = vadd.f32 %v1938, %v2124
      %v2245 = vadd.f32 %v1939, %v2127
      %v2246 = vadd.f32 %v1940, %v2132
      %v2247 = vadd.f32 %v1941, %v2135
      %v2248 = vadd.f32 %v1942, %v2140
      %v2249 = vadd.f32 %v1943, %v2143
      %v2250 = vadd.f32 %v1944, %v2148
      %v2251 = vadd.f32 %v1945, %v2151
      %v2252 = vadd.f32 %v1946, %v2156
      %v2253 = vadd.f32 %v1947, %v2159
      %v2254 = vadd.f32 %v1948, %v2164
      %v2255 = vadd.f32 %v1949, %v2167
      %v2256 = vadd.f32 %v1950, %v2172
      %v2257 = vadd.f32 %v1951, %v2175
      %v2258 = vadd.f32 %v1952, %v2180
      %v2259 = vadd.f32 %v1953, %v2183
      %v2260 = vadd.f32 %v1954, %v2188
      %v2261 = vadd.f32 %v1955, %v2191
      %v2262 = vadd.f32 %v1956, %v2196
      %v2263 = vadd.f32 %v1957, %v2199
      %v2264 = vadd.f32 %v1958, %v2204
      %v2265 = vadd.f32 %v1959, %v2207
      %v2266 = vadd.f32 %v1960, %v2212
      %v2267 = vadd.f32 %v1961, %v2215
      %v2268 = vadd.f32 %v1962, %v2220
      %v2269 = vadd.f32 %v1963, %v2223
      %v2270 = vadd.f32 %v1964, %v2228
      %v2271 = vadd.f32 %v1965, %v2231
      %v2272 = vadd.f32 %v1966, %v2236
      %v2273 = vadd.f32 %v1967, %v2239
      %s2274 = scalar_lea.vmem [#allocation2], 48
      %v2275 = vld [vmem:[%s2274] sm:$0xff]
      %v2276 = vld [vmem:[%s2274 + $0x8] sm:$0xff]
      %v2277 = vld [vmem:[%s2274 + $0x18] sm:$0xff]
      %v2278 = vld [vmem:[%s2274 + $0x20] sm:$0xff]
      %v2279 = vld [vmem:[%s2274 + $0x30] sm:$0xff]
      %v2280 = vld [vmem:[%s2274 + $0x38] sm:$0xff]
      %v2281 = vld [vmem:[%s2274 + $0x48] sm:$0xff]
      %v2282 = vld [vmem:[%s2274 + $0x50] sm:$0xff]
      %v2283 = vld [vmem:[%s2274 + $0x60] sm:$0xff]
      %v2284 = vld [vmem:[%s2274 + $0x68] sm:$0xff]
      %v2285 = vld [vmem:[%s2274 + $0x78] sm:$0xff]
      %v2286 = vld [vmem:[%s2274 + $0x80] sm:$0xff]
      %v2287 = vld [vmem:[%s2274 + $0x90] sm:$0xff]
      %v2288 = vld [vmem:[%s2274 + $0x98] sm:$0xff]
      %v2289 = vld [vmem:[%s2274 + $0xa8] sm:$0xff]
      %v2290 = vld [vmem:[%s2274 + $0xb0] sm:$0xff]
      %v2291 = vld [vmem:[%s2274 + $0xc0] sm:$0xff]
      %v2292 = vld [vmem:[%s2274 + $0xc8] sm:$0xff]
      %v2293 = vld [vmem:[%s2274 + $0xd8] sm:$0xff]
      %v2294 = vld [vmem:[%s2274 + $0xe0] sm:$0xff]
      %v2295 = vld [vmem:[%s2274 + $0xf0] sm:$0xff]
      %v2296 = vld [vmem:[%s2274 + $0xf8] sm:$0xff]
      %v2297 = vld [vmem:[%s2274 + $0x108] sm:$0xff]
      %v2298 = vld [vmem:[%s2274 + $0x110] sm:$0xff]
      %v2299 = vld [vmem:[%s2274 + $0x120] sm:$0xff]
      %v2300 = vld [vmem:[%s2274 + $0x128] sm:$0xff]
      %v2301 = vld [vmem:[%s2274 + $0x138] sm:$0xff]
      %v2302 = vld [vmem:[%s2274 + $0x140] sm:$0xff]
      %v2303 = vld [vmem:[%s2274 + $0x150] sm:$0xff]
      %v2304 = vld [vmem:[%s2274 + $0x158] sm:$0xff]
      %v2305 = vld [vmem:[%s2274 + $0x168] sm:$0xff]
      %v2306 = vld [vmem:[%s2274 + $0x170] sm:$0xff]
      %v2307 = vpack.c.bf16 %v2276, %v2275
      %v2308 = vpack.c.bf16 %v2278, %v2277
      %v2309 = vpack.c.bf16 %v2280, %v2279
      %v2310 = vpack.c.bf16 %v2282, %v2281
      %v2311 = vpack.c.bf16 %v2284, %v2283
      %v2312 = vpack.c.bf16 %v2286, %v2285
      %v2313 = vpack.c.bf16 %v2288, %v2287
      %v2314 = vpack.c.bf16 %v2290, %v2289
      %v2315 = vpack.c.bf16 %v2292, %v2291
      %v2316 = vpack.c.bf16 %v2294, %v2293
      %v2317 = vpack.c.bf16 %v2296, %v2295
      %v2318 = vpack.c.bf16 %v2298, %v2297
      %v2319 = vpack.c.bf16 %v2300, %v2299
      %v2320 = vpack.c.bf16 %v2302, %v2301
      %v2321 = vpack.c.bf16 %v2304, %v2303
      %v2322 = vpack.c.bf16 %v2306, %v2305
      %s2323 = scalar_lea.vmem %s3, 384
      %v2324 = vld [vmem:[%s2323] sm:$0xf]
      %v2325 = vld [vmem:[%s2323 + $0x4] sm:$0xf]
      %v2326 = vld [vmem:[%s2323 + $0x8] sm:$0xf]
      %v2327 = vld [vmem:[%s2323 + $0xc] sm:$0xf]
      %v2328 = vld [vmem:[%s2323 + $0x10] sm:$0xf]
      %v2329 = vld [vmem:[%s2323 + $0x14] sm:$0xf]
      %v2330 = vld [vmem:[%s2323 + $0x18] sm:$0xf]
      %v2331 = vld [vmem:[%s2323 + $0x1c] sm:$0xf]
      %v2332 = vld [vmem:[%s2323 + $0x20] sm:$0xf]
      %v2333 = vld [vmem:[%s2323 + $0x24] sm:$0xf]
      %v2334 = vld [vmem:[%s2323 + $0x28] sm:$0xf]
      %v2335 = vld [vmem:[%s2323 + $0x2c] sm:$0xf]
      %v2336 = vld [vmem:[%s2323 + $0x30] sm:$0xf]
      %v2337 = vld [vmem:[%s2323 + $0x34] sm:$0xf]
      %v2338 = vld [vmem:[%s2323 + $0x38] sm:$0xf]
      %v2339 = vld [vmem:[%s2323 + $0x3c] sm:$0xf]
      %v2356 = vunpack.c.l.b16 %v2324
      %v2357 = vunpack.c.l.b16 %v2325
      %v2358 = vunpack.c.l.b16 %v2326
      %v2359 = vunpack.c.l.b16 %v2327
      %v2360 = vunpack.c.l.b16 %v2328
      %v2361 = vunpack.c.l.b16 %v2329
      %v2362 = vunpack.c.l.b16 %v2330
      %v2363 = vunpack.c.l.b16 %v2331
      %v2364 = vunpack.c.l.b16 %v2332
      %v2365 = vunpack.c.l.b16 %v2333
      %v2366 = vunpack.c.l.b16 %v2334
      %v2367 = vunpack.c.l.b16 %v2335
      %v2368 = vunpack.c.l.b16 %v2336
      %v2369 = vunpack.c.l.b16 %v2337
      %v2370 = vunpack.c.l.b16 %v2338
      %v2371 = vunpack.c.l.b16 %v2339
      %v2372 = vpack.c.b16 %v2357, %v2356
      %v2373 = vpack.c.b16 %v2359, %v2358
      %v2374 = vpack.c.b16 %v2361, %v2360
      %v2375 = vpack.c.b16 %v2363, %v2362
      %v2376 = vpack.c.b16 %v2365, %v2364
      %v2377 = vpack.c.b16 %v2367, %v2366
      %v2378 = vpack.c.b16 %v2369, %v2368
      %v2379 = vpack.c.b16 %v2371, %v2370
      %2388 = vmatprep.subr.bf16.mxu0 0
      %2389 = vmatpush1.bf16.msra.mxu0 %v2372
      %2390 = vmatprep.subr.bf16.mxu0 0
      %2391 = vmatpush1.bf16.msra.mxu0 %v2373
      %2392 = vmatprep.subr.bf16.mxu0 0
      %2393 = vmatpush1.bf16.msra.mxu0 %v2374
      %2394 = vmatprep.subr.bf16.mxu0 0
      %2395 = vmatpush1.bf16.msra.mxu0 %v2375
      %2396 = vmatprep.subr.bf16.mxu0 0
      %2397 = vmatpush1.bf16.msra.mxu0 %v2376
      %2398 = vmatprep.subr.bf16.mxu0 0
      %2399 = vmatpush1.bf16.msra.mxu0 %v2377
      %2400 = vmatprep.subr.bf16.mxu0 0
      %2401 = vmatpush1.bf16.msra.mxu0 %v2378
      %2402 = vmatprep.subr.bf16.mxu0 0
      %2403 = vmatpush1.bf16.msra.mxu0 %v2379
      %2404 = vmatprep.subr.bf16.mxu0 0
      %2405 = vmatpush1.bf16.msra.mxu0 0
      %2406 = vmatprep.subr.bf16.mxu0 0
      %2407 = vmatpush1.bf16.msra.mxu0 0
      %2408 = vmatprep.subr.bf16.mxu0 0
      %2409 = vmatpush1.bf16.msra.mxu0 0
      %2410 = vmatprep.subr.bf16.mxu0 0
      %2411 = vmatpush1.bf16.msra.mxu0 0
      %2412 = vmatprep.subr.bf16.mxu0 0
      %2413 = vmatpush1.bf16.msra.mxu0 0
      %2414 = vmatprep.subr.bf16.mxu0 0
      %2415 = vmatpush1.bf16.msra.mxu0 0
      %2416 = vmatprep.subr.bf16.mxu0 0
      %2417 = vmatpush1.bf16.msra.mxu0 0
      %2418 = vmatprep.subr.bf16.mxu0 0
      %2419 = vmatpush1.bf16.msra.mxu0 0
      %2420 = vmatprep.mubr.bf16.mxu0 0
      %2421 = vmatmul.mubr.bf16.gmra.mrb[0].mxu0 %v2307
      %v2422 = vpop.f32.mrb[0].mxu0
      %v2423 = vadd.f32 0.0, %v2422
      %v2424 = vpop.f32.mrb[0].mxu0
      %v2425 = vpop.f32.mrb[0].mxu0
      %v2426 = vadd.f32 0.0, %v2425
      %v2427 = vpop.f32.mrb[0].mxu0
      %2428 = vmatprep.mubr.bf16.mxu0 0
      %2429 = vmatmul.mubr.bf16.gmra.mrb[0].mxu0 %v2308
      %v2430 = vpop.f32.mrb[0].mxu0
      %v2431 = vadd.f32 0.0, %v2430
      %v2432 = vpop.f32.mrb[0].mxu0
      %v2433 = vpop.f32.mrb[0].mxu0
      %v2434 = vadd.f32 0.0, %v2433
      %v2435 = vpop.f32.mrb[0].mxu0
      %2436 = vmatprep.mubr.bf16.mxu0 0
      %2437 = vmatmul.mubr.bf16.gmra.mrb[0].mxu0 %v2309
      %v2438 = vpop.f32.mrb[0].mxu0
      %v2439 = vadd.f32 0.0, %v2438
      %v2440 = vpop.f32.mrb[0].mxu0
      %v2441 = vpop.f32.mrb[0].mxu0
      %v2442 = vadd.f32 0.0, %v2441
      %v2443 = vpop.f32.mrb[0].mxu0
      %2444 = vmatprep.mubr.bf16.mxu0 0
      %2445 = vmatmul.mubr.bf16.gmra.mrb[0].mxu0 %v2310
      %v2446 = vpop.f32.mrb[0].mxu0
      %v2447 = vadd.f32 0.0, %v2446
      %v2448 = vpop.f32.mrb[0].mxu0
      %v2449 = vpop.f32.mrb[0].mxu0
      %v2450 = vadd.f32 0.0, %v2449
      %v2451 = vpop.f32.mrb[0].mxu0
      %2452 = vmatprep.mubr.bf16.mxu0 0
      %2453 = vmatmul.mubr.bf16.gmra.mrb[0].mxu0 %v2311
      %v2454 = vpop.f32.mrb[0].mxu0
      %v2455 = vadd.f32 0.0, %v2454
      %v2456 = vpop.f32.mrb[0].mxu0
      %v2457 = vpop.f32.mrb[0].mxu0
      %v2458 = vadd.f32 0.0, %v2457
      %v2459 = vpop.f32.mrb[0].mxu0
      %2460 = vmatprep.mubr.bf16.mxu0 0
      %2461 = vmatmul.mubr.bf16.gmra.mrb[0].mxu0 %v2312
      %v2462 = vpop.f32.mrb[0].mxu0
      %v2463 = vadd.f32 0.0, %v2462
      %v2464 = vpop.f32.mrb[0].mxu0
      %v2465 = vpop.f32.mrb[0].mxu0
      %v2466 = vadd.f32 0.0, %v2465
      %v2467 = vpop.f32.mrb[0].mxu0
      %2468 = vmatprep.mubr.bf16.mxu0 0
      %2469 = vmatmul.mubr.bf16.gmra.mrb[0].mxu0 %v2313
      %v2470 = vpop.f32.mrb[0].mxu0
      %v2471 = vadd.f32 0.0, %v2470
      %v2472 = vpop.f32.mrb[0].mxu0
      %v2473 = vpop.f32.mrb[0].mxu0
      %v2474 = vadd.f32 0.0, %v2473
      %v2475 = vpop.f32.mrb[0].mxu0
      %2476 = vmatprep.mubr.bf16.mxu0 0
      %2477 = vmatmul.mubr.bf16.gmra.mrb[0].mxu0 %v2314
      %v2478 = vpop.f32.mrb[0].mxu0
      %v2479 = vadd.f32 0.0, %v2478
      %v2480 = vpop.f32.mrb[0].mxu0
      %v2481 = vpop.f32.mrb[0].mxu0
      %v2482 = vadd.f32 0.0, %v2481
      %v2483 = vpop.f32.mrb[0].mxu0
      %2484 = vmatprep.mubr.bf16.mxu0 0
      %2485 = vmatmul.mubr.bf16.gmra.mrb[0].mxu0 %v2315
      %v2486 = vpop.f32.mrb[0].mxu0
      %v2487 = vadd.f32 0.0, %v2486
      %v2488 = vpop.f32.mrb[0].mxu0
      %v2489 = vpop.f32.mrb[0].mxu0
      %v2490 = vadd.f32 0.0, %v2489
      %v2491 = vpop.f32.mrb[0].mxu0
      %2492 = vmatprep.mubr.bf16.mxu0 0
      %2493 = vmatmul.mubr.bf16.gmra.mrb[0].mxu0 %v2316
      %v2494 = vpop.f32.mrb[0].mxu0
      %v2495 = vadd.f32 0.0, %v2494
      %v2496 = vpop.f32.mrb[0].mxu0
      %v2497 = vpop.f32.mrb[0].mxu0
      %v2498 = vadd.f32 0.0, %v2497
      %v2499 = vpop.f32.mrb[0].mxu0
      %2500 = vmatprep.mubr.bf16.mxu0 0
      %2501 = vmatmul.mubr.bf16.gmra.mrb[0].mxu0 %v2317
      %v2502 = vpop.f32.mrb[0].mxu0
      %v2503 = vadd.f32 0.0, %v2502
      %v2504 = vpop.f32.mrb[0].mxu0
      %v2505 = vpop.f32.mrb[0].mxu0
      %v2506 = vadd.f32 0.0, %v2505
      %v2507 = vpop.f32.mrb[0].mxu0
      %2508 = vmatprep.mubr.bf16.mxu0 0
      %2509 = vmatmul.mubr.bf16.gmra.mrb[0].mxu0 %v2318
      %v2510 = vpop.f32.mrb[0].mxu0
      %v2511 = vadd.f32 0.0, %v2510
      %v2512 = vpop.f32.mrb[0].mxu0
      %v2513 = vpop.f32.mrb[0].mxu0
      %v2514 = vadd.f32 0.0, %v2513
      %v2515 = vpop.f32.mrb[0].mxu0
      %2516 = vmatprep.mubr.bf16.mxu0 0
      %2517 = vmatmul.mubr.bf16.gmra.mrb[0].mxu0 %v2319
      %v2518 = vpop.f32.mrb[0].mxu0
      %v2519 = vadd.f32 0.0, %v2518
      %v2520 = vpop.f32.mrb[0].mxu0
      %v2521 = vpop.f32.mrb[0].mxu0
      %v2522 = vadd.f32 0.0, %v2521
      %v2523 = vpop.f32.mrb[0].mxu0
      %2524 = vmatprep.mubr.bf16.mxu0 0
      %2525 = vmatmul.mubr.bf16.gmra.mrb[0].mxu0 %v2320
      %v2526 = vpop.f32.mrb[0].mxu0
      %v2527 = vadd.f32 0.0, %v2526
      %v2528 = vpop.f32.mrb[0].mxu0
      %v2529 = vpop.f32.mrb[0].mxu0
      %v2530 = vadd.f32 0.0, %v2529
      %v2531 = vpop.f32.mrb[0].mxu0
      %2532 = vmatprep.mubr.bf16.mxu0 0
      %2533 = vmatmul.mubr.bf16.gmra.mrb[0].mxu0 %v2321
      %v2534 = vpop.f32.mrb[0].mxu0
      %v2535 = vadd.f32 0.0, %v2534
      %v2536 = vpop.f32.mrb[0].mxu0
      %v2537 = vpop.f32.mrb[0].mxu0
      %v2538 = vadd.f32 0.0, %v2537
      %v2539 = vpop.f32.mrb[0].mxu0
      %2540 = vmatprep.mubr.bf16.mxu0 0
      %2541 = vmatmul.mubr.bf16.gmra.mrb[0].mxu0 %v2322
      %v2542 = vpop.f32.mrb[0].mxu0
      %v2543 = vadd.f32 0.0, %v2542
      %v2544 = vpop.f32.mrb[0].mxu0
      %v2545 = vpop.f32.mrb[0].mxu0
      %v2546 = vadd.f32 0.0, %v2545
      %v2547 = vpop.f32.mrb[0].mxu0
      %2548 = vdwg.mxu0
      %v2549 = vadd.f32 %v2242, %v2423
      %v2550 = vadd.f32 %v2243, %v2426
      %v2551 = vadd.f32 %v2244, %v2431
      %v2552 = vadd.f32 %v2245, %v2434
      %v2553 = vadd.f32 %v2246, %v2439
      %v2554 = vadd.f32 %v2247, %v2442
      %v2555 = vadd.f32 %v2248, %v2447
      %v2556 = vadd.f32 %v2249, %v2450
      %v2557 = vadd.f32 %v2250, %v2455
      %v2558 = vadd.f32 %v2251, %v2458
      %v2559 = vadd.f32 %v2252, %v2463
      %v2560 = vadd.f32 %v2253, %v2466
      %v2561 = vadd.f32 %v2254, %v2471
      %v2562 = vadd.f32 %v2255, %v2474
      %v2563 = vadd.f32 %v2256, %v2479
      %v2564 = vadd.f32 %v2257, %v2482
      %v2565 = vadd.f32 %v2258, %v2487
      %v2566 = vadd.f32 %v2259, %v2490
      %v2567 = vadd.f32 %v2260, %v2495
      %v2568 = vadd.f32 %v2261, %v2498
      %v2569 = vadd.f32 %v2262, %v2503
      %v2570 = vadd.f32 %v2263, %v2506
      %v2571 = vadd.f32 %v2264, %v2511
      %v2572 = vadd.f32 %v2265, %v2514
      %v2573 = vadd.f32 %v2266, %v2519
      %v2574 = vadd.f32 %v2267, %v2522
      %v2575 = vadd.f32 %v2268, %v2527
      %v2576 = vadd.f32 %v2269, %v2530
      %v2577 = vadd.f32 %v2270, %v2535
      %v2578 = vadd.f32 %v2271, %v2538
      %v2579 = vadd.f32 %v2272, %v2543
      %v2580 = vadd.f32 %v2273, %v2546
      %v2581 = vld [vmem:[%s2274 + $0x1] sm:$0xff]
      %v2582 = vld [vmem:[%s2274 + $0x9] sm:$0xff]
      %v2583 = vld [vmem:[%s2274 + $0x19] sm:$0xff]
      %v2584 = vld [vmem:[%s2274 + $0x21] sm:$0xff]
      %v2585 = vld [vmem:[%s2274 + $0x31] sm:$0xff]
      %v2586 = vld [vmem:[%s2274 + $0x39] sm:$0xff]
      %v2587 = vld [vmem:[%s2274 + $0x49] sm:$0xff]
      %v2588 = vld [vmem:[%s2274 + $0x51] sm:$0xff]
      %v2589 = vld [vmem:[%s2274 + $0x61] sm:$0xff]
      %v2590 = vld [vmem:[%s2274 + $0x69] sm:$0xff]
      %v2591 = vld [vmem:[%s2274 + $0x79] sm:$0xff]
      %v2592 = vld [vmem:[%s2274 + $0x81] sm:$0xff]
      %v2593 = vld [vmem:[%s2274 + $0x91] sm:$0xff]
      %v2594 = vld [vmem:[%s2274 + $0x99] sm:$0xff]
      %v2595 = vld [vmem:[%s2274 + $0xa9] sm:$0xff]
      %v2596 = vld [vmem:[%s2274 + $0xb1] sm:$0xff]
      %v2597 = vld [vmem:[%s2274 + $0xc1] sm:$0xff]
      %v2598 = vld [vmem:[%s2274 + $0xc9] sm:$0xff]
      %v2599 = vld [vmem:[%s2274 + $0xd9] sm:$0xff]
      %v2600 = vld [vmem:[%s2274 + $0xe1] sm:$0xff]
      %v2601 = vld [vmem:[%s2274 + $0xf1] sm:$0xff]
      %v2602 = vld [vmem:[%s2274 + $0xf9] sm:$0xff]
      %v2603 = vld [vmem:[%s2274 + $0x109] sm:$0xff]
      %v2604 = vld [vmem:[%s2274 + $0x111] sm:$0xff]
      %v2605 = vld [vmem:[%s2274 + $0x121] sm:$0xff]
      %v2606 = vld [vmem:[%s2274 + $0x129] sm:$0xff]
      %v2607 = vld [vmem:[%s2274 + $0x139] sm:$0xff]
      %v2608 = vld [vmem:[%s2274 + $0x141] sm:$0xff]
      %v2609 = vld [vmem:[%s2274 + $0x151] sm:$0xff]
      %v2610 = vld [vmem:[%s2274 + $0x159] sm:$0xff]
      %v2611 = vld [vmem:[%s2274 + $0x169] sm:$0xff]
      %v2612 = vld [vmem:[%s2274 + $0x171] sm:$0xff]
      %v2613 = vpack.c.bf16 %v2582, %v2581
      %v2614 = vpack.c.bf16 %v2584, %v2583
      %v2615 = vpack.c.bf16 %v2586, %v2585
      %v2616 = vpack.c.bf16 %v2588, %v2587
      %v2617 = vpack.c.bf16 %v2590, %v2589
      %v2618 = vpack.c.bf16 %v2592, %v2591
      %v2619 = vpack.c.bf16 %v2594, %v2593
      %v2620 = vpack.c.bf16 %v2596, %v2595
      %v2621 = vpack.c.bf16 %v2598, %v2597
      %v2622 = vpack.c.bf16 %v2600, %v2599
      %v2623 = vpack.c.bf16 %v2602, %v2601
      %v2624 = vpack.c.bf16 %v2604, %v2603
      %v2625 = vpack.c.bf16 %v2606, %v2605
      %v2626 = vpack.c.bf16 %v2608, %v2607
      %v2627 = vpack.c.bf16 %v2610, %v2609
      %v2628 = vpack.c.bf16 %v2612, %v2611
      %s2629 = scalar_lea.vmem %s3, 448
      %v2630 = vld [vmem:[%s2629] sm:$0xf]
      %v2631 = vld [vmem:[%s2629 + $0x4] sm:$0xf]
      %v2632 = vld [vmem:[%s2629 + $0x8] sm:$0xf]
      %v2633 = vld [vmem:[%s2629 + $0xc] sm:$0xf]
      %v2634 = vld [vmem:[%s2629 + $0x10] sm:$0xf]
      %v2635 = vld [vmem:[%s2629 + $0x14] sm:$0xf]
      %v2636 = vld [vmem:[%s2629 + $0x18] sm:$0xf]
      %v2637 = vld [vmem:[%s2629 + $0x1c] sm:$0xf]
      %v2638 = vld [vmem:[%s2629 + $0x20] sm:$0xf]
      %v2639 = vld [vmem:[%s2629 + $0x24] sm:$0xf]
      %v2640 = vld [vmem:[%s2629 + $0x28] sm:$0xf]
      %v2641 = vld [vmem:[%s2629 + $0x2c] sm:$0xf]
      %v2642 = vld [vmem:[%s2629 + $0x30] sm:$0xf]
      %v2643 = vld [vmem:[%s2629 + $0x34] sm:$0xf]
      %v2644 = vld [vmem:[%s2629 + $0x38] sm:$0xf]
      %v2645 = vld [vmem:[%s2629 + $0x3c] sm:$0xf]
      %v2662 = vunpack.c.l.b16 %v2630
      %v2663 = vunpack.c.l.b16 %v2631
      %v2664 = vunpack.c.l.b16 %v2632
      %v2665 = vunpack.c.l.b16 %v2633
      %v2666 = vunpack.c.l.b16 %v2634
      %v2667 = vunpack.c.l.b16 %v2635
      %v2668 = vunpack.c.l.b16 %v2636
      %v2669 = vunpack.c.l.b16 %v2637
      %v2670 = vunpack.c.l.b16 %v2638
      %v2671 = vunpack.c.l.b16 %v2639
      %v2672 = vunpack.c.l.b16 %v2640
      %v2673 = vunpack.c.l.b16 %v2641
      %v2674 = vunpack.c.l.b16 %v2642
      %v2675 = vunpack.c.l.b16 %v2643
      %v2676 = vunpack.c.l.b16 %v2644
      %v2677 = vunpack.c.l.b16 %v2645
      %v2678 = vpack.c.b16 %v2663, %v2662
      %v2679 = vpack.c.b16 %v2665, %v2664
      %v2680 = vpack.c.b16 %v2667, %v2666
      %v2681 = vpack.c.b16 %v2669, %v2668
      %v2682 = vpack.c.b16 %v2671, %v2670
      %v2683 = vpack.c.b16 %v2673, %v2672
      %v2684 = vpack.c.b16 %v2675, %v2674
      %v2685 = vpack.c.b16 %v2677, %v2676
      %2694 = vmatprep.subr.bf16.mxu0 0
      %2695 = vmatpush1.bf16.msra.mxu0 %v2678
      %2696 = vmatprep.subr.bf16.mxu0 0
      %2697 = vmatpush1.bf16.msra.mxu0 %v2679
      %2698 = vmatprep.subr.bf16.mxu0 0
      %2699 = vmatpush1.bf16.msra.mxu0 %v2680
      %2700 = vmatprep.subr.bf16.mxu0 0
      %2701 = vmatpush1.bf16.msra.mxu0 %v2681
      %2702 = vmatprep.subr.bf16.mxu0 0
      %2703 = vmatpush1.bf16.msra.mxu0 %v2682
      %2704 = vmatprep.subr.bf16.mxu0 0
      %2705 = vmatpush1.bf16.msra.mxu0 %v2683
      %2706 = vmatprep.subr.bf16.mxu0 0
      %2707 = vmatpush1.bf16.msra.mxu0 %v2684
      %2708 = vmatprep.subr.bf16.mxu0 0
      %2709 = vmatpush1.bf16.msra.mxu0 %v2685
      %2710 = vmatprep.subr.bf16.mxu0 0
      %2711 = vmatpush1.bf16.msra.mxu0 0
      %2712 = vmatprep.subr.bf16.mxu0 0
      %2713 = vmatpush1.bf16.msra.mxu0 0
      %2714 = vmatprep.subr.bf16.mxu0 0
      %2715 = vmatpush1.bf16.msra.mxu0 0
      %2716 = vmatprep.subr.bf16.mxu0 0
      %2717 = vmatpush1.bf16.msra.mxu0 0
      %2718 = vmatprep.subr.bf16.mxu0 0
      %2719 = vmatpush1.bf16.msra.mxu0 0
      %2720 = vmatprep.subr.bf16.mxu0 0
      %2721 = vmatpush1.bf16.msra.mxu0 0
      %2722 = vmatprep.subr.bf16.mxu0 0
      %2723 = vmatpush1.bf16.msra.mxu0 0
      %2724 = vmatprep.subr.bf16.mxu0 0
      %2725 = vmatpush1.bf16.msra.mxu0 0
      %2726 = vmatprep.mubr.bf16.mxu0 0
      %2727 = vmatmul.mubr.bf16.gmra.mrb[0].mxu0 %v2613
      %v2728 = vpop.f32.mrb[0].mxu0
      %v2729 = vadd.f32 0.0, %v2728
      %v2730 = vpop.f32.mrb[0].mxu0
      %v2731 = vpop.f32.mrb[0].mxu0
      %v2732 = vadd.f32 0.0, %v2731
      %v2733 = vpop.f32.mrb[0].mxu0
      %2734 = vmatprep.mubr.bf16.mxu0 0
      %2735 = vmatmul.mubr.bf16.gmra.mrb[0].mxu0 %v2614
      %v2736 = vpop.f32.mrb[0].mxu0
      %v2737 = vadd.f32 0.0, %v2736
      %v2738 = vpop.f32.mrb[0].mxu0
      %v2739 = vpop.f32.mrb[0].mxu0
      %v2740 = vadd.f32 0.0, %v2739
      %v2741 = vpop.f32.mrb[0].mxu0
      %2742 = vmatprep.mubr.bf16.mxu0 0
      %2743 = vmatmul.mubr.bf16.gmra.mrb[0].mxu0 %v2615
      %v2744 = vpop.f32.mrb[0].mxu0
      %v2745 = vadd.f32 0.0, %v2744
      %v2746 = vpop.f32.mrb[0].mxu0
      %v2747 = vpop.f32.mrb[0].mxu0
      %v2748 = vadd.f32 0.0, %v2747
      %v2749 = vpop.f32.mrb[0].mxu0
      %2750 = vmatprep.mubr.bf16.mxu0 0
      %2751 = vmatmul.mubr.bf16.gmra.mrb[0].mxu0 %v2616
      %v2752 = vpop.f32.mrb[0].mxu0
      %v2753 = vadd.f32 0.0, %v2752
      %v2754 = vpop.f32.mrb[0].mxu0
      %v2755 = vpop.f32.mrb[0].mxu0
      %v2756 = vadd.f32 0.0, %v2755
      %v2757 = vpop.f32.mrb[0].mxu0
      %2758 = vmatprep.mubr.bf16.mxu0 0
      %2759 = vmatmul.mubr.bf16.gmra.mrb[0].mxu0 %v2617
      %v2760 = vpop.f32.mrb[0].mxu0
      %v2761 = vadd.f32 0.0, %v2760
      %v2762 = vpop.f32.mrb[0].mxu0
      %v2763 = vpop.f32.mrb[0].mxu0
      %v2764 = vadd.f32 0.0, %v2763
      %v2765 = vpop.f32.mrb[0].mxu0
      %2766 = vmatprep.mubr.bf16.mxu0 0
      %2767 = vmatmul.mubr.bf16.gmra.mrb[0].mxu0 %v2618
      %v2768 = vpop.f32.mrb[0].mxu0
      %v2769 = vadd.f32 0.0, %v2768
      %v2770 = vpop.f32.mrb[0].mxu0
      %v2771 = vpop.f32.mrb[0].mxu0
      %v2772 = vadd.f32 0.0, %v2771
      %v2773 = vpop.f32.mrb[0].mxu0
      %2774 = vmatprep.mubr.bf16.mxu0 0
      %2775 = vmatmul.mubr.bf16.gmra.mrb[0].mxu0 %v2619
      %v2776 = vpop.f32.mrb[0].mxu0
      %v2777 = vadd.f32 0.0, %v2776
      %v2778 = vpop.f32.mrb[0].mxu0
      %v2779 = vpop.f32.mrb[0].mxu0
      %v2780 = vadd.f32 0.0, %v2779
      %v2781 = vpop.f32.mrb[0].mxu0
      %2782 = vmatprep.mubr.bf16.mxu0 0
      %2783 = vmatmul.mubr.bf16.gmra.mrb[0].mxu0 %v2620
      %v2784 = vpop.f32.mrb[0].mxu0
      %v2785 = vadd.f32 0.0, %v2784
      %v2786 = vpop.f32.mrb[0].mxu0
      %v2787 = vpop.f32.mrb[0].mxu0
      %v2788 = vadd.f32 0.0, %v2787
      %v2789 = vpop.f32.mrb[0].mxu0
      %2790 = vmatprep.mubr.bf16.mxu0 0
      %2791 = vmatmul.mubr.bf16.gmra.mrb[0].mxu0 %v2621
      %v2792 = vpop.f32.mrb[0].mxu0
      %v2793 = vadd.f32 0.0, %v2792
      %v2794 = vpop.f32.mrb[0].mxu0
      %v2795 = vpop.f32.mrb[0].mxu0
      %v2796 = vadd.f32 0.0, %v2795
      %v2797 = vpop.f32.mrb[0].mxu0
      %2798 = vmatprep.mubr.bf16.mxu0 0
      %2799 = vmatmul.mubr.bf16.gmra.mrb[0].mxu0 %v2622
      %v2800 = vpop.f32.mrb[0].mxu0
      %v2801 = vadd.f32 0.0, %v2800
      %v2802 = vpop.f32.mrb[0].mxu0
      %v2803 = vpop.f32.mrb[0].mxu0
      %v2804 = vadd.f32 0.0, %v2803
      %v2805 = vpop.f32.mrb[0].mxu0
      %2806 = vmatprep.mubr.bf16.mxu0 0
      %2807 = vmatmul.mubr.bf16.gmra.mrb[0].mxu0 %v2623
      %v2808 = vpop.f32.mrb[0].mxu0
      %v2809 = vadd.f32 0.0, %v2808
      %v2810 = vpop.f32.mrb[0].mxu0
      %v2811 = vpop.f32.mrb[0].mxu0
      %v2812 = vadd.f32 0.0, %v2811
      %v2813 = vpop.f32.mrb[0].mxu0
      %2814 = vmatprep.mubr.bf16.mxu0 0
      %2815 = vmatmul.mubr.bf16.gmra.mrb[0].mxu0 %v2624
      %v2816 = vpop.f32.mrb[0].mxu0
      %v2817 = vadd.f32 0.0, %v2816
      %v2818 = vpop.f32.mrb[0].mxu0
      %v2819 = vpop.f32.mrb[0].mxu0
      %v2820 = vadd.f32 0.0, %v2819
      %v2821 = vpop.f32.mrb[0].mxu0
      %2822 = vmatprep.mubr.bf16.mxu0 0
      %2823 = vmatmul.mubr.bf16.gmra.mrb[0].mxu0 %v2625
      %v2824 = vpop.f32.mrb[0].mxu0
      %v2825 = vadd.f32 0.0, %v2824
      %v2826 = vpop.f32.mrb[0].mxu0
      %v2827 = vpop.f32.mrb[0].mxu0
      %v2828 = vadd.f32 0.0, %v2827
      %v2829 = vpop.f32.mrb[0].mxu0
      %2830 = vmatprep.mubr.bf16.mxu0 0
      %2831 = vmatmul.mubr.bf16.gmra.mrb[0].mxu0 %v2626
      %v2832 = vpop.f32.mrb[0].mxu0
      %v2833 = vadd.f32 0.0, %v2832
      %v2834 = vpop.f32.mrb[0].mxu0
      %v2835 = vpop.f32.mrb[0].mxu0
      %v2836 = vadd.f32 0.0, %v2835
      %v2837 = vpop.f32.mrb[0].mxu0
      %2838 = vmatprep.mubr.bf16.mxu0 0
      %2839 = vmatmul.mubr.bf16.gmra.mrb[0].mxu0 %v2627
      %v2840 = vpop.f32.mrb[0].mxu0
      %v2841 = vadd.f32 0.0, %v2840
      %v2842 = vpop.f32.mrb[0].mxu0
      %v2843 = vpop.f32.mrb[0].mxu0
      %v2844 = vadd.f32 0.0, %v2843
      %v2845 = vpop.f32.mrb[0].mxu0
      %2846 = vmatprep.mubr.bf16.mxu0 0
      %2847 = vmatmul.mubr.bf16.gmra.mrb[0].mxu0 %v2628
      %v2848 = vpop.f32.mrb[0].mxu0
      %v2849 = vadd.f32 0.0, %v2848
      %v2850 = vpop.f32.mrb[0].mxu0
      %v2851 = vpop.f32.mrb[0].mxu0
      %v2852 = vadd.f32 0.0, %v2851
      %v2853 = vpop.f32.mrb[0].mxu0
      %2854 = vdwg.mxu0
      %v2855 = vadd.f32 %v2549, %v2729
      %v2856 = vadd.f32 %v2550, %v2732
      %v2857 = vadd.f32 %v2551, %v2737
      %v2858 = vadd.f32 %v2552, %v2740
      %v2859 = vadd.f32 %v2553, %v2745
      %v2860 = vadd.f32 %v2554, %v2748
      %v2861 = vadd.f32 %v2555, %v2753
      %v2862 = vadd.f32 %v2556, %v2756
      %v2863 = vadd.f32 %v2557, %v2761
      %v2864 = vadd.f32 %v2558, %v2764
      %v2865 = vadd.f32 %v2559, %v2769
      %v2866 = vadd.f32 %v2560, %v2772
      %v2867 = vadd.f32 %v2561, %v2777
      %v2868 = vadd.f32 %v2562, %v2780
      %v2869 = vadd.f32 %v2563, %v2785
      %v2870 = vadd.f32 %v2564, %v2788
      %v2871 = vadd.f32 %v2565, %v2793
      %v2872 = vadd.f32 %v2566, %v2796
      %v2873 = vadd.f32 %v2567, %v2801
      %v2874 = vadd.f32 %v2568, %v2804
      %v2875 = vadd.f32 %v2569, %v2809
      %v2876 = vadd.f32 %v2570, %v2812
      %v2877 = vadd.f32 %v2571, %v2817
      %v2878 = vadd.f32 %v2572, %v2820
      %v2879 = vadd.f32 %v2573, %v2825
      %v2880 = vadd.f32 %v2574, %v2828
      %v2881 = vadd.f32 %v2575, %v2833
      %v2882 = vadd.f32 %v2576, %v2836
      %v2883 = vadd.f32 %v2577, %v2841
      %v2884 = vadd.f32 %v2578, %v2844
      %v2885 = vadd.f32 %v2579, %v2849
      %v2886 = vadd.f32 %v2580, %v2852
      %v2887 = vld [vmem:[%s2274 + $0x2] sm:$0xff]
      %v2888 = vld [vmem:[%s2274 + $0xa] sm:$0xff]
      %v2889 = vld [vmem:[%s2274 + $0x1a] sm:$0xff]
      %v2890 = vld [vmem:[%s2274 + $0x22] sm:$0xff]
      %v2891 = vld [vmem:[%s2274 + $0x32] sm:$0xff]
      %v2892 = vld [vmem:[%s2274 + $0x3a] sm:$0xff]
      %v2893 = vld [vmem:[%s2274 + $0x4a] sm:$0xff]
      %v2894 = vld [vmem:[%s2274 + $0x52] sm:$0xff]
      %v2895 = vld [vmem:[%s2274 + $0x62] sm:$0xff]
      %v2896 = vld [vmem:[%s2274 + $0x6a] sm:$0xff]
      %v2897 = vld [vmem:[%s2274 + $0x7a] sm:$0xff]
      %v2898 = vld [vmem:[%s2274 + $0x82] sm:$0xff]
      %v2899 = vld [vmem:[%s2274 + $0x92] sm:$0xff]
      %v2900 = vld [vmem:[%s2274 + $0x9a] sm:$0xff]
      %v2901 = vld [vmem:[%s2274 + $0xaa] sm:$0xff]
      %v2902 = vld [vmem:[%s2274 + $0xb2] sm:$0xff]
      %v2903 = vld [vmem:[%s2274 + $0xc2] sm:$0xff]
      %v2904 = vld [vmem:[%s2274 + $0xca] sm:$0xff]
      %v2905 = vld [vmem:[%s2274 + $0xda] sm:$0xff]
      %v2906 = vld [vmem:[%s2274 + $0xe2] sm:$0xff]
      %v2907 = vld [vmem:[%s2274 + $0xf2] sm:$0xff]
      %v2908 = vld [vmem:[%s2274 + $0xfa] sm:$0xff]
      %v2909 = vld [vmem:[%s2274 + $0x10a] sm:$0xff]
      %v2910 = vld [vmem:[%s2274 + $0x112] sm:$0xff]
      %v2911 = vld [vmem:[%s2274 + $0x122] sm:$0xff]
      %v2912 = vld [vmem:[%s2274 + $0x12a] sm:$0xff]
      %v2913 = vld [vmem:[%s2274 + $0x13a] sm:$0xff]
      %v2914 = vld [vmem:[%s2274 + $0x142] sm:$0xff]
      %v2915 = vld [vmem:[%s2274 + $0x152] sm:$0xff]
      %v2916 = vld [vmem:[%s2274 + $0x15a] sm:$0xff]
      %v2917 = vld [vmem:[%s2274 + $0x16a] sm:$0xff]
      %v2918 = vld [vmem:[%s2274 + $0x172] sm:$0xff]
      %v2919 = vpack.c.bf16 %v2888, %v2887
      %v2920 = vpack.c.bf16 %v2890, %v2889
      %v2921 = vpack.c.bf16 %v2892, %v2891
      %v2922 = vpack.c.bf16 %v2894, %v2893
      %v2923 = vpack.c.bf16 %v2896, %v2895
      %v2924 = vpack.c.bf16 %v2898, %v2897
      %v2925 = vpack.c.bf16 %v2900, %v2899
      %v2926 = vpack.c.bf16 %v2902, %v2901
      %v2927 = vpack.c.bf16 %v2904, %v2903
      %v2928 = vpack.c.bf16 %v2906, %v2905
      %v2929 = vpack.c.bf16 %v2908, %v2907
      %v2930 = vpack.c.bf16 %v2910, %v2909
      %v2931 = vpack.c.bf16 %v2912, %v2911
      %v2932 = vpack.c.bf16 %v2914, %v2913
      %v2933 = vpack.c.bf16 %v2916, %v2915
      %v2934 = vpack.c.bf16 %v2918, %v2917
      %s2935 = scalar_lea.vmem %s3, 512
      %v2936 = vld [vmem:[%s2935] sm:$0xf]
      %v2937 = vld [vmem:[%s2935 + $0x4] sm:$0xf]
      %v2938 = vld [vmem:[%s2935 + $0x8] sm:$0xf]
      %v2939 = vld [vmem:[%s2935 + $0xc] sm:$0xf]
      %v2940 = vld [vmem:[%s2935 + $0x10] sm:$0xf]
      %v2941 = vld [vmem:[%s2935 + $0x14] sm:$0xf]
      %v2942 = vld [vmem:[%s2935 + $0x18] sm:$0xf]
      %v2943 = vld [vmem:[%s2935 + $0x1c] sm:$0xf]
      %v2944 = vld [vmem:[%s2935 + $0x20] sm:$0xf]
      %v2945 = vld [vmem:[%s2935 + $0x24] sm:$0xf]
      %v2946 = vld [vmem:[%s2935 + $0x28] sm:$0xf]
      %v2947 = vld [vmem:[%s2935 + $0x2c] sm:$0xf]
      %v2948 = vld [vmem:[%s2935 + $0x30] sm:$0xf]
      %v2949 = vld [vmem:[%s2935 + $0x34] sm:$0xf]
      %v2950 = vld [vmem:[%s2935 + $0x38] sm:$0xf]
      %v2951 = vld [vmem:[%s2935 + $0x3c] sm:$0xf]
      %v2968 = vunpack.c.l.b16 %v2936
      %v2969 = vunpack.c.l.b16 %v2937
      %v2970 = vunpack.c.l.b16 %v2938
      %v2971 = vunpack.c.l.b16 %v2939
      %v2972 = vunpack.c.l.b16 %v2940
      %v2973 = vunpack.c.l.b16 %v2941
      %v2974 = vunpack.c.l.b16 %v2942
      %v2975 = vunpack.c.l.b16 %v2943
      %v2976 = vunpack.c.l.b16 %v2944
      %v2977 = vunpack.c.l.b16 %v2945
      %v2978 = vunpack.c.l.b16 %v2946
      %v2979 = vunpack.c.l.b16 %v2947
      %v2980 = vunpack.c.l.b16 %v2948
      %v2981 = vunpack.c.l.b16 %v2949
      %v2982 = vunpack.c.l.b16 %v2950
      %v2983 = vunpack.c.l.b16 %v2951
      %v2984 = vpack.c.b16 %v2969, %v2968
      %v2985 = vpack.c.b16 %v2971, %v2970
      %v2986 = vpack.c.b16 %v2973, %v2972
      %v2987 = vpack.c.b16 %v2975, %v2974
      %v2988 = vpack.c.b16 %v2977, %v2976
      %v2989 = vpack.c.b16 %v2979, %v2978
      %v2990 = vpack.c.b16 %v2981, %v2980
      %v2991 = vpack.c.b16 %v2983, %v2982
      %3000 = vmatprep.subr.bf16.mxu0 0
      %3001 = vmatpush1.bf16.msra.mxu0 %v2984
      %3002 = vmatprep.subr.bf16.mxu0 0
      %3003 = vmatpush1.bf16.msra.mxu0 %v2985
      %3004 = vmatprep.subr.bf16.mxu0 0
      %3005 = vmatpush1.bf16.msra.mxu0 %v2986
      %3006 = vmatprep.subr.bf16.mxu0 0
      %3007 = vmatpush1.bf16.msra.mxu0 %v2987
      %3008 = vmatprep.subr.bf16.mxu0 0
      %3009 = vmatpush1.bf16.msra.mxu0 %v2988
      %3010 = vmatprep.subr.bf16.mxu0 0
      %3011 = vmatpush1.bf16.msra.mxu0 %v2989
      %3012 = vmatprep.subr.bf16.mxu0 0
      %3013 = vmatpush1.bf16.msra.mxu0 %v2990
      %3014 = vmatprep.subr.bf16.mxu0 0
      %3015 = vmatpush1.bf16.msra.mxu0 %v2991
      %3016 = vmatprep.subr.bf16.mxu0 0
      %3017 = vmatpush1.bf16.msra.mxu0 0
      %3018 = vmatprep.subr.bf16.mxu0 0
      %3019 = vmatpush1.bf16.msra.mxu0 0
      %3020 = vmatprep.subr.bf16.mxu0 0
      %3021 = vmatpush1.bf16.msra.mxu0 0
      %3022 = vmatprep.subr.bf16.mxu0 0
      %3023 = vmatpush1.bf16.msra.mxu0 0
      %3024 = vmatprep.subr.bf16.mxu0 0
      %3025 = vmatpush1.bf16.msra.mxu0 0
      %3026 = vmatprep.subr.bf16.mxu0 0
      %3027 = vmatpush1.bf16.msra.mxu0 0
      %3028 = vmatprep.subr.bf16.mxu0 0
      %3029 = vmatpush1.bf16.msra.mxu0 0
      %3030 = vmatprep.subr.bf16.mxu0 0
      %3031 = vmatpush1.bf16.msra.mxu0 0
      %3032 = vmatprep.mubr.bf16.mxu0 0
      %3033 = vmatmul.mubr.bf16.gmra.mrb[0].mxu0 %v2919
      %v3034 = vpop.f32.mrb[0].mxu0
      %v3035 = vadd.f32 0.0, %v3034
      %v3036 = vpop.f32.mrb[0].mxu0
      %v3037 = vpop.f32.mrb[0].mxu0
      %v3038 = vadd.f32 0.0, %v3037
      %v3039 = vpop.f32.mrb[0].mxu0
      %3040 = vmatprep.mubr.bf16.mxu0 0
      %3041 = vmatmul.mubr.bf16.gmra.mrb[0].mxu0 %v2920
      %v3042 = vpop.f32.mrb[0].mxu0
      %v3043 = vadd.f32 0.0, %v3042
      %v3044 = vpop.f32.mrb[0].mxu0
      %v3045 = vpop.f32.mrb[0].mxu0
      %v3046 = vadd.f32 0.0, %v3045
      %v3047 = vpop.f32.mrb[0].mxu0
      %3048 = vmatprep.mubr.bf16.mxu0 0
      %3049 = vmatmul.mubr.bf16.gmra.mrb[0].mxu0 %v2921
      %v3050 = vpop.f32.mrb[0].mxu0
      %v3051 = vadd.f32 0.0, %v3050
      %v3052 = vpop.f32.mrb[0].mxu0
      %v3053 = vpop.f32.mrb[0].mxu0
      %v3054 = vadd.f32 0.0, %v3053
      %v3055 = vpop.f32.mrb[0].mxu0
      %3056 = vmatprep.mubr.bf16.mxu0 0
      %3057 = vmatmul.mubr.bf16.gmra.mrb[0].mxu0 %v2922
      %v3058 = vpop.f32.mrb[0].mxu0
      %v3059 = vadd.f32 0.0, %v3058
      %v3060 = vpop.f32.mrb[0].mxu0
      %v3061 = vpop.f32.mrb[0].mxu0
      %v3062 = vadd.f32 0.0, %v3061
      %v3063 = vpop.f32.mrb[0].mxu0
      %3064 = vmatprep.mubr.bf16.mxu0 0
      %3065 = vmatmul.mubr.bf16.gmra.mrb[0].mxu0 %v2923
      %v3066 = vpop.f32.mrb[0].mxu0
      %v3067 = vadd.f32 0.0, %v3066
      %v3068 = vpop.f32.mrb[0].mxu0
      %v3069 = vpop.f32.mrb[0].mxu0
      %v3070 = vadd.f32 0.0, %v3069
      %v3071 = vpop.f32.mrb[0].mxu0
      %3072 = vmatprep.mubr.bf16.mxu0 0
      %3073 = vmatmul.mubr.bf16.gmra.mrb[0].mxu0 %v2924
      %v3074 = vpop.f32.mrb[0].mxu0
      %v3075 = vadd.f32 0.0, %v3074
      %v3076 = vpop.f32.mrb[0].mxu0
      %v3077 = vpop.f32.mrb[0].mxu0
      %v3078 = vadd.f32 0.0, %v3077
      %v3079 = vpop.f32.mrb[0].mxu0
      %3080 = vmatprep.mubr.bf16.mxu0 0
      %3081 = vmatmul.mubr.bf16.gmra.mrb[0].mxu0 %v2925
      %v3082 = vpop.f32.mrb[0].mxu0
      %v3083 = vadd.f32 0.0, %v3082
      %v3084 = vpop.f32.mrb[0].mxu0
      %v3085 = vpop.f32.mrb[0].mxu0
      %v3086 = vadd.f32 0.0, %v3085
      %v3087 = vpop.f32.mrb[0].mxu0
      %3088 = vmatprep.mubr.bf16.mxu0 0
      %3089 = vmatmul.mubr.bf16.gmra.mrb[0].mxu0 %v2926
      %v3090 = vpop.f32.mrb[0].mxu0
      %v3091 = vadd.f32 0.0, %v3090
      %v3092 = vpop.f32.mrb[0].mxu0
      %v3093 = vpop.f32.mrb[0].mxu0
      %v3094 = vadd.f32 0.0, %v3093
      %v3095 = vpop.f32.mrb[0].mxu0
      %3096 = vmatprep.mubr.bf16.mxu0 0
      %3097 = vmatmul.mubr.bf16.gmra.mrb[0].mxu0 %v2927
      %v3098 = vpop.f32.mrb[0].mxu0
      %v3099 = vadd.f32 0.0, %v3098
      %v3100 = vpop.f32.mrb[0].mxu0
      %v3101 = vpop.f32.mrb[0].mxu0
      %v3102 = vadd.f32 0.0, %v3101
      %v3103 = vpop.f32.mrb[0].mxu0
      %3104 = vmatprep.mubr.bf16.mxu0 0
      %3105 = vmatmul.mubr.bf16.gmra.mrb[0].mxu0 %v2928
      %v3106 = vpop.f32.mrb[0].mxu0
      %v3107 = vadd.f32 0.0, %v3106
      %v3108 = vpop.f32.mrb[0].mxu0
      %v3109 = vpop.f32.mrb[0].mxu0
      %v3110 = vadd.f32 0.0, %v3109
      %v3111 = vpop.f32.mrb[0].mxu0
      %3112 = vmatprep.mubr.bf16.mxu0 0
      %3113 = vmatmul.mubr.bf16.gmra.mrb[0].mxu0 %v2929
      %v3114 = vpop.f32.mrb[0].mxu0
      %v3115 = vadd.f32 0.0, %v3114
      %v3116 = vpop.f32.mrb[0].mxu0
      %v3117 = vpop.f32.mrb[0].mxu0
      %v3118 = vadd.f32 0.0, %v3117
      %v3119 = vpop.f32.mrb[0].mxu0
      %3120 = vmatprep.mubr.bf16.mxu0 0
      %3121 = vmatmul.mubr.bf16.gmra.mrb[0].mxu0 %v2930
      %v3122 = vpop.f32.mrb[0].mxu0
      %v3123 = vadd.f32 0.0, %v3122
      %v3124 = vpop.f32.mrb[0].mxu0
      %v3125 = vpop.f32.mrb[0].mxu0
      %v3126 = vadd.f32 0.0, %v3125
      %v3127 = vpop.f32.mrb[0].mxu0
      %3128 = vmatprep.mubr.bf16.mxu0 0
      %3129 = vmatmul.mubr.bf16.gmra.mrb[0].mxu0 %v2931
      %v3130 = vpop.f32.mrb[0].mxu0
      %v3131 = vadd.f32 0.0, %v3130
      %v3132 = vpop.f32.mrb[0].mxu0
      %v3133 = vpop.f32.mrb[0].mxu0
      %v3134 = vadd.f32 0.0, %v3133
      %v3135 = vpop.f32.mrb[0].mxu0
      %3136 = vmatprep.mubr.bf16.mxu0 0
      %3137 = vmatmul.mubr.bf16.gmra.mrb[0].mxu0 %v2932
      %v3138 = vpop.f32.mrb[0].mxu0
      %v3139 = vadd.f32 0.0, %v3138
      %v3140 = vpop.f32.mrb[0].mxu0
      %v3141 = vpop.f32.mrb[0].mxu0
      %v3142 = vadd.f32 0.0, %v3141
      %v3143 = vpop.f32.mrb[0].mxu0
      %3144 = vmatprep.mubr.bf16.mxu0 0
      %3145 = vmatmul.mubr.bf16.gmra.mrb[0].mxu0 %v2933
      %v3146 = vpop.f32.mrb[0].mxu0
      %v3147 = vadd.f32 0.0, %v3146
      %v3148 = vpop.f32.mrb[0].mxu0
      %v3149 = vpop.f32.mrb[0].mxu0
      %v3150 = vadd.f32 0.0, %v3149
      %v3151 = vpop.f32.mrb[0].mxu0
      %3152 = vmatprep.mubr.bf16.mxu0 0
      %3153 = vmatmul.mubr.bf16.gmra.mrb[0].mxu0 %v2934
      %v3154 = vpop.f32.mrb[0].mxu0
      %v3155 = vadd.f32 0.0, %v3154
      %v3156 = vpop.f32.mrb[0].mxu0
      %v3157 = vpop.f32.mrb[0].mxu0
      %v3158 = vadd.f32 0.0, %v3157
      %v3159 = vpop.f32.mrb[0].mxu0
      %3160 = vdwg.mxu0
      %v3161 = vadd.f32 %v2855, %v3035
      %v3162 = vadd.f32 %v2856, %v3038
      %v3163 = vadd.f32 %v2857, %v3043
      %v3164 = vadd.f32 %v2858, %v3046
      %v3165 = vadd.f32 %v2859, %v3051
      %v3166 = vadd.f32 %v2860, %v3054
      %v3167 = vadd.f32 %v2861, %v3059
      %v3168 = vadd.f32 %v2862, %v3062
      %v3169 = vadd.f32 %v2863, %v3067
      %v3170 = vadd.f32 %v2864, %v3070
      %v3171 = vadd.f32 %v2865, %v3075
      %v3172 = vadd.f32 %v2866, %v3078
      %v3173 = vadd.f32 %v2867, %v3083
      %v3174 = vadd.f32 %v2868, %v3086
      %v3175 = vadd.f32 %v2869, %v3091
      %v3176 = vadd.f32 %v2870, %v3094
      %v3177 = vadd.f32 %v2871, %v3099
      %v3178 = vadd.f32 %v2872, %v3102
      %v3179 = vadd.f32 %v2873, %v3107
      %v3180 = vadd.f32 %v2874, %v3110
      %v3181 = vadd.f32 %v2875, %v3115
      %v3182 = vadd.f32 %v2876, %v3118
      %v3183 = vadd.f32 %v2877, %v3123
      %v3184 = vadd.f32 %v2878, %v3126
      %v3185 = vadd.f32 %v2879, %v3131
      %v3186 = vadd.f32 %v2880, %v3134
      %v3187 = vadd.f32 %v2881, %v3139
      %v3188 = vadd.f32 %v2882, %v3142
      %v3189 = vadd.f32 %v2883, %v3147
      %v3190 = vadd.f32 %v2884, %v3150
      %v3191 = vadd.f32 %v2885, %v3155
      %v3192 = vadd.f32 %v2886, %v3158
      %3193 = vst [vmem:[%s264] sm:$0xff] %v3161
      %3194 = vst [vmem:[%s264 + $0x8] sm:$0xff] %v3162
      %3195 = vst [vmem:[%s264 + $0x10] sm:$0xff] %v3163
      %3196 = vst [vmem:[%s264 + $0x18] sm:$0xff] %v3164
      %3197 = vst [vmem:[%s264 + $0x20] sm:$0xff] %v3165
      %3198 = vst [vmem:[%s264 + $0x28] sm:$0xff] %v3166
      %3199 = vst [vmem:[%s264 + $0x30] sm:$0xff] %v3167
      %3200 = vst [vmem:[%s264 + $0x38] sm:$0xff] %v3168
      %3201 = vst [vmem:[%s264 + $0x40] sm:$0xff] %v3169
      %3202 = vst [vmem:[%s264 + $0x48] sm:$0xff] %v3170
      %3203 = vst [vmem:[%s264 + $0x50] sm:$0xff] %v3171
      %3204 = vst [vmem:[%s264 + $0x58] sm:$0xff] %v3172
      %3205 = vst [vmem:[%s264 + $0x60] sm:$0xff] %v3173
      %3206 = vst [vmem:[%s264 + $0x68] sm:$0xff] %v3174
      %3207 = vst [vmem:[%s264 + $0x70] sm:$0xff] %v3175
      %3208 = vst [vmem:[%s264 + $0x78] sm:$0xff] %v3176
      %3209 = vst [vmem:[%s264 + $0x80] sm:$0xff] %v3177
      %3210 = vst [vmem:[%s264 + $0x88] sm:$0xff] %v3178
      %3211 = vst [vmem:[%s264 + $0x90] sm:$0xff] %v3179
      %3212 = vst [vmem:[%s264 + $0x98] sm:$0xff] %v3180
      %3213 = vst [vmem:[%s264 + $0xa0] sm:$0xff] %v3181
      %3214 = vst [vmem:[%s264 + $0xa8] sm:$0xff] %v3182
      %3215 = vst [vmem:[%s264 + $0xb0] sm:$0xff] %v3183
      %3216 = vst [vmem:[%s264 + $0xb8] sm:$0xff] %v3184
      %3217 = vst [vmem:[%s264 + $0xc0] sm:$0xff] %v3185
      %3218 = vst [vmem:[%s264 + $0xc8] sm:$0xff] %v3186
      %3219 = vst [vmem:[%s264 + $0xd0] sm:$0xff] %v3187
      %3220 = vst [vmem:[%s264 + $0xd8] sm:$0xff] %v3188
      %3221 = vst [vmem:[%s264 + $0xe0] sm:$0xff] %v3189
      %3222 = vst [vmem:[%s264 + $0xe8] sm:$0xff] %v3190
      %3223 = vst [vmem:[%s264 + $0xf0] sm:$0xff] %v3191
      %3224 = vst [vmem:[%s264 + $0xf8] sm:$0xff] %v3192
      %v3225 = vadd.f32 %v3161, %v3162
      %v3226 = vadd.f32 %v3225, %v3163
      %v3227 = vadd.f32 %v3226, %v3164
      %v3228 = vadd.f32 %v3227, %v3165
      %v3229 = vadd.f32 %v3228, %v3166
      %v3230 = vadd.f32 %v3229, %v3167
      %v3231 = vadd.f32 %v3230, %v3168
      %v3232 = vadd.f32 %v3231, %v3169
      %v3233 = vadd.f32 %v3232, %v3170
      %v3234 = vadd.f32 %v3233, %v3171
      %v3235 = vadd.f32 %v3234, %v3172
      %v3236 = vadd.f32 %v3235, %v3173
      %v3237 = vadd.f32 %v3236, %v3174
      %v3238 = vadd.f32 %v3237, %v3175
      %v3239 = vadd.f32 %v3238, %v3176
      %v3240 = vadd.f32 %v3239, %v3177
      %v3241 = vadd.f32 %v3240, %v3178
      %v3242 = vadd.f32 %v3241, %v3179
      %v3243 = vadd.f32 %v3242, %v3180
      %v3244 = vadd.f32 %v3243, %v3181
      %v3245 = vadd.f32 %v3244, %v3182
      %v3246 = vadd.f32 %v3245, %v3183
      %v3247 = vadd.f32 %v3246, %v3184
      %v3248 = vadd.f32 %v3247, %v3185
      %v3249 = vadd.f32 %v3248, %v3186
      %v3250 = vadd.f32 %v3249, %v3187
      %v3251 = vadd.f32 %v3250, %v3188
      %v3252 = vadd.f32 %v3251, %v3189
      %v3253 = vadd.f32 %v3252, %v3190
      %v3254 = vadd.f32 %v3253, %v3191
      %v3255 = vadd.f32 %v3254, %v3192
      %v3256 = vrot.slane %v3255, 4
      %v3257 = vadd.f32 %v3255, %v3256
      %v3258 = vrot.slane %v3257, 2
      %v3259 = vadd.f32 %v3257, %v3258
      %v3260 = vrot.slane %v3259, 1
      %v3261 = vadd.f32 %v3259, %v3260
      %v3262 = vmul.f32 %v3161, %v3161
      %v3263 = vmul.f32 %v3162, %v3162
      %v3264 = vmul.f32 %v3163, %v3163
      %v3265 = vmul.f32 %v3164, %v3164
      %v3266 = vmul.f32 %v3165, %v3165
      %v3267 = vmul.f32 %v3166, %v3166
      %v3268 = vmul.f32 %v3167, %v3167
      %v3269 = vmul.f32 %v3168, %v3168
      %v3270 = vmul.f32 %v3169, %v3169
      %v3271 = vmul.f32 %v3170, %v3170
      %v3272 = vmul.f32 %v3171, %v3171
      %v3273 = vmul.f32 %v3172, %v3172
      %v3274 = vmul.f32 %v3173, %v3173
      %v3275 = vmul.f32 %v3174, %v3174
      %v3276 = vmul.f32 %v3175, %v3175
      %v3277 = vmul.f32 %v3176, %v3176
      %v3278 = vmul.f32 %v3177, %v3177
      %v3279 = vmul.f32 %v3178, %v3178
      %v3280 = vmul.f32 %v3179, %v3179
      %v3281 = vmul.f32 %v3180, %v3180
      %v3282 = vmul.f32 %v3181, %v3181
      %v3283 = vmul.f32 %v3182, %v3182
      %v3284 = vmul.f32 %v3183, %v3183
      %v3285 = vmul.f32 %v3184, %v3184
      %v3286 = vmul.f32 %v3185, %v3185
      %v3287 = vmul.f32 %v3186, %v3186
      %v3288 = vmul.f32 %v3187, %v3187
      %v3289 = vmul.f32 %v3188, %v3188
      %v3290 = vmul.f32 %v3189, %v3189
      %v3291 = vmul.f32 %v3190, %v3190
      %v3292 = vmul.f32 %v3191, %v3191
      %v3293 = vmul.f32 %v3192, %v3192
      %v3294 = vadd.f32 %v3262, %v3263
      %v3295 = vadd.f32 %v3294, %v3264
      %v3296 = vadd.f32 %v3295, %v3265
      %v3297 = vadd.f32 %v3296, %v3266
      %v3298 = vadd.f32 %v3297, %v3267
      %v3299 = vadd.f32 %v3298, %v3268
      %v3300 = vadd.f32 %v3299, %v3269
      %v3301 = vadd.f32 %v3300, %v3270
      %v3302 = vadd.f32 %v3301, %v3271
      %v3303 = vadd.f32 %v3302, %v3272
      %v3304 = vadd.f32 %v3303, %v3273
      %v3305 = vadd.f32 %v3304, %v3274
      %v3306 = vadd.f32 %v3305, %v3275
      %v3307 = vadd.f32 %v3306, %v3276
      %v3308 = vadd.f32 %v3307, %v3277
      %v3309 = vadd.f32 %v3308, %v3278
      %v3310 = vadd.f32 %v3309, %v3279
      %v3311 = vadd.f32 %v3310, %v3280
      %v3312 = vadd.f32 %v3311, %v3281
      %v3313 = vadd.f32 %v3312, %v3282
      %v3314 = vadd.f32 %v3313, %v3283
      %v3315 = vadd.f32 %v3314, %v3284
      %v3316 = vadd.f32 %v3315, %v3285
      %v3317 = vadd.f32 %v3316, %v3286
      %v3318 = vadd.f32 %v3317, %v3287
      %v3319 = vadd.f32 %v3318, %v3288
      %v3320 = vadd.f32 %v3319, %v3289
      %v3321 = vadd.f32 %v3320, %v3290
      %v3322 = vadd.f32 %v3321, %v3291
      %v3323 = vadd.f32 %v3322, %v3292
      %v3324 = vadd.f32 %v3323, %v3293
      %v3325 = vrot.slane %v3324, 4
      %v3326 = vadd.f32 %v3324, %v3325
      %v3327 = vrot.slane %v3326, 2
      %v3328 = vadd.f32 %v3326, %v3327
      %v3329 = vrot.slane %v3328, 1
      %v3330 = vadd.f32 %v3328, %v3329
      %3331 = vst [vmem:[%s268] sm:$0xff] %v3261
      %3332 = vst [vmem:[%s272] sm:$0xff] %v3330
      %p3333 = scmp.lt.s32.totalorder %s18, 1
      %s3334 = scalar_select %p3333, %s18, 1
      %s3335 = smul.addr %s3334, 32
      %s3336 = smul.addr %s3335, 8
      %s3337 = scalar_lea.vmem %s4, %s3336
      %p3338 = scmp.lt.s32.totalorder %s18, 1
      %s3339 = scalar_select %p3338, %s18, 1
      %s3340 = smul.addr %s3339, 8
      %s3341 = scalar_lea.vmem %s5, %s3340
      %p3342 = scmp.lt.s32.totalorder %s18, 1
      %s3343 = scalar_select %p3342, %s18, 1
      %s3344 = smul.addr %s3343, 8
      %s3345 = scalar_lea.vmem %s6, %s3344
      // Predicated region
      $region37: #{conv_block_forward.4} parent=35 // pred_check
        %p3346 = pneg %p125
      $region38: #{conv_block_forward.4} parent=35 // pred_check_branch
        %3348 = sbr.rel (%p3346) target = $region40
      $region39: #{conv_block_forward.4} parent=35 // pred_region
        _
      $region40: #{conv_block_forward.4} parent=35 // pred_fallthru
        _
      // Predicated region
      $region41: #{conv_block_forward.4} parent=35 // pred_check
        %p3349 = pneg %p151
      $region42: #{conv_block_forward.4} parent=35 // pred_check_branch
        %3351 = sbr.rel (%p3349) target = $region44
      $region43: #{conv_block_forward.4} parent=35 // pred_region
        _
      $region44: #{conv_block_forward.4} parent=35 // pred_fallthru
        _
      // Predicated region
      $region45: #{conv_block_forward.4} parent=35 // pred_check
        %p3352 = pneg %p177
      $region46: #{conv_block_forward.4} parent=35 // pred_check_branch
        %3354 = sbr.rel (%p3352) target = $region48
      $region47: #{conv_block_forward.4} parent=35 // pred_region
        _
      $region48: #{conv_block_forward.4} parent=35 // pred_fallthru
        _
    $region36: #{conv_block_forward.4} parent=5 // pred_fallthru
      _
    %p3355 = scmp.le.s32.totalorder 2, %s13
    // Predicated region
    $region49: #{conv_block_forward.4} parent=5 // pred_check
      %p3356 = pneg %p3355
    $region50: #{conv_block_forward.4} parent=5 // pred_check_branch
      %3358 = sbr.rel (%p3356) target = $region52
    $region51: #{conv_block_forward.4} parent=5 // pred_region
      %s3359 = ssub.s32 %s13, 2
      // Predicated region
      $region53: #{conv_block_forward.4} parent=51 // pred_check
        %p3360 = pneg %p131
      $region54: #{conv_block_forward.4} parent=51 // pred_check_branch
        %3362 = sbr.rel (%p3360) target = $region56
      $region55: #{conv_block_forward.4} parent=51 // pred_region
        %p3363 = scmp.lt.s32.totalorder %s19, 1
        %s3364 = scalar_select %p3363, %s19, 1
        %s3365 = smul.addr %s3364, 32
        %s3366 = smul.addr %s3365, 8
        %s3367 = scalar_lea.vmem %s4, %s3366
      $region56: #{conv_block_forward.4} parent=51 // pred_fallthru
        _
      // Predicated region
      $region57: #{conv_block_forward.4} parent=51 // pred_check
        %p3368 = pneg %p157
      $region58: #{conv_block_forward.4} parent=51 // pred_check_branch
        %3370 = sbr.rel (%p3368) target = $region60
      $region59: #{conv_block_forward.4} parent=51 // pred_region
        %p3371 = scmp.lt.s32.totalorder %s19, 1
        %s3372 = scalar_select %p3371, %s19, 1
        %s3373 = smul.addr %s3372, 8
        %s3374 = scalar_lea.vmem %s5, %s3373
      $region60: #{conv_block_forward.4} parent=51 // pred_fallthru
        _
      // Predicated region
      $region61: #{conv_block_forward.4} parent=51 // pred_check
        %p3375 = pneg %p183
      $region62: #{conv_block_forward.4} parent=51 // pred_check_branch
        %3377 = sbr.rel (%p3375) target = $region64
      $region63: #{conv_block_forward.4} parent=51 // pred_region
        %p3378 = scmp.lt.s32.totalorder %s19, 1
        %s3379 = scalar_select %p3378, %s19, 1
        %s3380 = smul.addr %s3379, 8
        %s3381 = scalar_lea.vmem %s6, %s3380
      $region64: #{conv_block_forward.4} parent=51 // pred_fallthru
        _
    $region52: #{conv_block_forward.4} parent=5 // pred_fallthru
      _
  $region6: #{conv_block_forward.4} parent=0 // loop_footer
    %s17 = sadd.s32 1, %s13
  $region7: #{conv_block_forward.4} parent=0 // loop_footer_branch
    %12 = sbr.rel target = $region3
  $region8: #{conv_block_forward.4} parent=0 // loop_exit
    _

// kernel: conv_block_forward.3
$region0: #{conv_block_forward.3}
  #allocation0 [shape = 'u32[]', space=smem, size = 0x4, offset = 0x4, fixed_abs, tag = 'smem constant byte address 0x4 - core index']
  #allocation1 [shape = 'u32[144,128]{1,0:T(1,128)}', space=vmem, size = 0x12000, scoped, tag = 'internal scratch']
  #allocation2 [shape = 'f32[18,18,4]{2,1,0:T(8,128)}', space=vmem, size = 0x36000, scoped, tag = 'scratch operand']
  %s0 = inlined_call_operand.vmem [shape: bf16[2,16,16,4], index: 0, kind: input, shape index: {}]
  %s1 = inlined_call_operand.vmem [shape: bf16[9,4,128], index: 1, kind: input, shape index: {}]
  %s2 = inlined_call_operand.vmem [shape: f32[2,256,128], index: 2, kind: output, shape index: {0}]
  %s3 = inlined_call_operand.vmem [shape: f32[2,8,128], index: 3, kind: output, shape index: {1}]
  %s4 = inlined_call_operand.vmem [shape: f32[2,8,128], index: 4, kind: output, shape index: {2}]
  %5 = xla_tuple %s2, %s3, %s4
  %s6 = sld [smem:[#allocation0]]
  $region57: #{conv_block_forward.3} parent=0
    _
  %s8 = ssub.s32 1, %s6
  %s9 = scalar_select 0, %s8, %s6
  loop: start=0, step=1, limit=4
  $region2: #{conv_block_forward.3} parent=0 // loop_pre_header
    _
  $region3: #{conv_block_forward.3} parent=0 // loop_header
    %s11 = sphi 0, %s15
    %p12 = scmp.ge.s32.totalorder %s11, 4
    %s21 = sphi 0, %s23
    %s24 = sphi 0, %s21
    %s25 = sphi 0, %s24
    %s41 = sphi 0, %s25
    %s45 = sphi 0, %s45
    %s47 = sphi 0, %s45
    %s48 = sphi 0, %s47
    %s62 = sphi 0, %s48
    %s68 = sphi 0, %s70
    %s71 = sphi 0, %s68
    %s72 = sphi 0, %s71
    %s88 = sphi 0, %s72
    %s94 = sphi 0, %s96
    %s97 = sphi 0, %s94
    %s98 = sphi 0, %s97
    %s114 = sphi 0, %s98
    %s120 = sphi 0, %s122
    %s123 = sphi 0, %s120
    %s124 = sphi 0, %s123
    %s140 = sphi 0, %s124
  $region4: #{conv_block_forward.3} parent=0 // loop_header_branch
    %14 = sbr.rel (%p12) target = $region8
  $region5: #{conv_block_forward.3} parent=0 // loop_body
    %s16 = ssub.s32 %s11, 1
    %s17 = ssub.s32 %s11, 2
    %s18 = sadd.s32 %s11, 1
    %s19 = ssub.s32 %s11, %s18
    %p20 = scmp.eq.s32.totalorder %s19, 0
    %s22 = sadd.s32 %s21, 1
    %s23 = scalar_select %p20, %s21, %s22
    %p26 = pneg %p20
    %p27 = scmp.eq.s32.totalorder %s11, 1
    %p28 = por %p26, %p27
    %p29 = scmp.ne.s32.totalorder %s21, %s24
    %p30 = scmp.eq.s32.totalorder %s11, 0
    %p31 = por %p29, %p30
    %p32 = scmp.ne.s32.totalorder %s21, %s24
    %p33 = scmp.eq.s32.totalorder %s16, 1
    %p34 = por %p32, %p33
    %p35 = scmp.ne.s32.totalorder %s24, %s25
    %p36 = scmp.eq.s32.totalorder %s16, 0
    %p37 = por %p35, %p36
    %p38 = scmp.ne.s32.totalorder %s24, %s25
    %p39 = scmp.eq.s32.totalorder %s17, 1
    %p40 = por %p38, %p39
    %p42 = scmp.ne.s32.totalorder %s25, %s41
    %p43 = scmp.eq.s32.totalorder %s17, 0
    %p44 = por %p42, %p43
    %s46 = sadd.s32 %s45, 1
    %p49 = scmp.eq.s32.totalorder %s11, 1
    %p50 = scmp.ne.s32.totalorder %s45, %s47
    %p51 = scmp.eq.s32.totalorder %s11, 0
    %p52 = por %p50, %p51
    %p53 = scmp.ne.s32.totalorder %s45, %s47
    %p54 = scmp.eq.s32.totalorder %s16, 1
    %p55 = por %p53, %p54
    %p56 = scmp.ne.s32.totalorder %s47, %s48
    %p57 = scmp.eq.s32.totalorder %s16, 0
    %p58 = por %p56, %p57
    %p59 = scmp.ne.s32.totalorder %s47, %s48
    %p60 = scmp.eq.s32.totalorder %s17, 1
    %p61 = por %p59, %p60
    %p63 = scmp.ne.s32.totalorder %s48, %s62
    %p64 = scmp.eq.s32.totalorder %s17, 0
    %p65 = por %p63, %p64
    %s66 = ssub.s32 %s11, %s18
    %p67 = scmp.eq.s32.totalorder %s66, 0
    %s69 = sadd.s32 %s68, 1
    %s70 = scalar_select %p67, %s68, %s69
    %p73 = pneg %p67
    %p74 = scmp.eq.s32.totalorder %s11, 1
    %p75 = por %p73, %p74
    %p76 = scmp.ne.s32.totalorder %s68, %s71
    %p77 = scmp.eq.s32.totalorder %s11, 0
    %p78 = por %p76, %p77
    %p79 = scmp.ne.s32.totalorder %s68, %s71
    %p80 = scmp.eq.s32.totalorder %s16, 1
    %p81 = por %p79, %p80
    %p82 = scmp.ne.s32.totalorder %s71, %s72
    %p83 = scmp.eq.s32.totalorder %s16, 0
    %p84 = por %p82, %p83
    %p85 = scmp.ne.s32.totalorder %s71, %s72
    %p86 = scmp.eq.s32.totalorder %s17, 1
    %p87 = por %p85, %p86
    %p89 = scmp.ne.s32.totalorder %s72, %s88
    %p90 = scmp.eq.s32.totalorder %s17, 0
    %p91 = por %p89, %p90
    %s92 = ssub.s32 %s11, %s18
    %p93 = scmp.eq.s32.totalorder %s92, 0
    %s95 = sadd.s32 %s94, 1
    %s96 = scalar_select %p93, %s94, %s95
    %p99 = pneg %p93
    %p100 = scmp.eq.s32.totalorder %s11, 1
    %p101 = por %p99, %p100
    %p102 = scmp.ne.s32.totalorder %s94, %s97
    %p103 = scmp.eq.s32.totalorder %s11, 0
    %p104 = por %p102, %p103
    %p105 = scmp.ne.s32.totalorder %s94, %s97
    %p106 = scmp.eq.s32.totalorder %s16, 1
    %p107 = por %p105, %p106
    %p108 = scmp.ne.s32.totalorder %s97, %s98
    %p109 = scmp.eq.s32.totalorder %s16, 0
    %p110 = por %p108, %p109
    %p111 = scmp.ne.s32.totalorder %s97, %s98
    %p112 = scmp.eq.s32.totalorder %s17, 1
    %p113 = por %p111, %p112
    %p115 = scmp.ne.s32.totalorder %s98, %s114
    %p116 = scmp.eq.s32.totalorder %s17, 0
    %p117 = por %p115, %p116
    %s118 = ssub.s32 %s11, %s18
    %p119 = scmp.eq.s32.totalorder %s118, 0
    %s121 = sadd.s32 %s120, 1
    %s122 = scalar_select %p119, %s120, %s121
    %p125 = pneg %p119
    %p126 = scmp.eq.s32.totalorder %s11, 1
    %p127 = por %p125, %p126
    %p128 = scmp.ne.s32.totalorder %s120, %s123
    %p129 = scmp.eq.s32.totalorder %s11, 0
    %p130 = por %p128, %p129
    %p131 = scmp.ne.s32.totalorder %s120, %s123
    %p132 = scmp.eq.s32.totalorder %s16, 1
    %p133 = por %p131, %p132
    %p134 = scmp.ne.s32.totalorder %s123, %s124
    %p135 = scmp.eq.s32.totalorder %s16, 0
    %p136 = por %p134, %p135
    %p137 = scmp.ne.s32.totalorder %s123, %s124
    %p138 = scmp.eq.s32.totalorder %s17, 1
    %p139 = por %p137, %p138
    %p141 = scmp.ne.s32.totalorder %s124, %s140
    %p142 = scmp.eq.s32.totalorder %s17, 0
    %p143 = por %p141, %p142
    %p144 = scmp.le.s32.totalorder 1, %s11
    %p145 = scmp.lt.s32.totalorder %s11, 3
    %p146 = pnand %p144, %p145
    %p147 = pneg %p146
    // Predicated region
    $region9: #{conv_block_forward.3} parent=5 // pred_check
      _
    $region10: #{conv_block_forward.3} parent=5 // pred_check_branch
      %149 = sbr.rel (%p146) target = $region12
    $region11: #{conv_block_forward.3} parent=5 // pred_region
      %s150 = ssub.s32 %s11, 1
      // Predicated region
      $region13: #{conv_block_forward.3} parent=11 // pred_check
        %p151 = pneg %p58
      $region14: #{conv_block_forward.3} parent=11 // pred_check_branch
        %153 = sbr.rel (%p151) target = $region16
      $region15: #{conv_block_forward.3} parent=11 // pred_region
        _
      $region16: #{conv_block_forward.3} parent=11 // pred_fallthru
        _
    $region12: #{conv_block_forward.3} parent=5 // pred_fallthru
      _
    %p154 = scmp.lt.s32.totalorder %s11, 2
    // Predicated region
    $region17: #{conv_block_forward.3} parent=5 // pred_check
      %p155 = pneg %p154
    $region18: #{conv_block_forward.3} parent=5 // pred_check_branch
      %157 = sbr.rel (%p155) target = $region20
    $region19: #{conv_block_forward.3} parent=5 // pred_region
      // Predicated region
      $region21: #{conv_block_forward.3} parent=19 // pred_check
        %p158 = pneg %p31
      $region22: #{conv_block_forward.3} parent=19 // pred_check_branch
        %160 = sbr.rel (%p158) target = $region24
      $region23: #{conv_block_forward.3} parent=19 // pred_region
        %p161 = scmp.lt.s32.totalorder %s11, 1
        %s162 = scalar_select %p161, %s11, 1
        %s163 = smul.addr %s162, 32
        %s164 = smul.addr %s163, 4
        %s165 = scalar_lea.vmem %s0, %s164
      $region24: #{conv_block_forward.3} parent=19 // pred_fallthru
        _
    $region20: #{conv_block_forward.3} parent=5 // pred_fallthru
      _
    %p166 = scmp.le.s32.totalorder 1, %s11
    %p167 = scmp.lt.s32.totalorder %s11, 3
    %p168 = pnand %p166, %p167
    %p169 = pneg %p168
    // Predicated region
    $region25: #{conv_block_forward.3} parent=5 // pred_check
      _
    $region26: #{conv_block_forward.3} parent=5 // pred_check_branch
      %171 = sbr.rel (%p168) target = $region28
    $region27: #{conv_block_forward.3} parent=5 // pred_region
      %s172 = ssub.s32 %s11, 1
      %p173 = scmp.lt.s32.totalorder %s16, 1
      %s174 = scalar_select %p173, %s16, 1
      %s175 = smul.addr %s174, 32
      %s176 = smul.addr %s175, 4
      %s177 = scalar_lea.vmem %s0, %s176
      %p178 = pneg %p37
      %p179 = pneg %p34
      %p180 = pneg %p58
      %p181 = pneg %p55
      %p182 = pneg %p84
      %p183 = pneg %p81
      %p184 = scmp.lt.s32.totalorder %s16, 1
      %s185 = scalar_select %p184, %s16, 1
      %s186 = smul.addr %s185, 32
      %s187 = smul.addr %s186, 8
      %s188 = scalar_lea.vmem %s2, %s187
      %p189 = pneg %p110
      %p190 = pneg %p107
      %p191 = scmp.lt.s32.totalorder %s16, 1
      %s192 = scalar_select %p191, %s16, 1
      %s193 = smul.addr %s192, 8
      %s194 = scalar_lea.vmem %s3, %s193
      %p195 = pneg %p136
      %p196 = pneg %p133
      %p197 = scmp.lt.s32.totalorder %s16, 1
      %s198 = scalar_select %p197, %s16, 1
      %s199 = smul.addr %s198, 8
      %s200 = scalar_lea.vmem %s4, %s199
      %p201 = scmp.lt.s32.totalorder %s16, 1
      %s202 = scalar_select %p201, %s16, 1
      %s203 = smul.addr %s202, 32
      %s204 = smul.addr %s203, 4
      %s205 = scalar_lea.vmem %s0, %s204
      %p206 = scmp.lt.s32.totalorder %s16, 1
      %s207 = scalar_select %p206, %s16, 1
      %s208 = smul.addr %s207, 32
      %s209 = smul.addr %s208, 8
      %s210 = scalar_lea.vmem %s2, %s209
      %p211 = scmp.lt.s32.totalorder %s16, 1
      %s212 = scalar_select %p211, %s16, 1
      %s213 = smul.addr %s212, 8
      %s214 = scalar_lea.vmem %s3, %s213
      %p215 = scmp.lt.s32.totalorder %s16, 1
      %s216 = scalar_select %p215, %s16, 1
      %s217 = smul.addr %s216, 8
      %s218 = scalar_lea.vmem %s4, %s217
      %vm220 = vcmask 31744
      %221 = vst.msk [vmem:[#allocation2] sm:$0xff] %vm220, 0.0
      %222 = vst.msk [vmem:[#allocation2 + $0x8] sm:$0xff] %vm220, 0.0
      %vm223 = vcmask 25600
      %224 = vst.msk [vmem:[#allocation2 + $0x10] sm:$0x3] %vm223, 0.0
      %225 = vst.msk [vmem:[#allocation2 + $0x18] sm:$0xff] %vm220, 0.0
      %226 = vst.msk [vmem:[#allocation2 + $0x20] sm:$0xff] %vm220, 0.0
      %227 = vst.msk [vmem:[#allocation2 + $0x28] sm:$0x3] %vm223, 0.0
      %228 = vst.msk [vmem:[#allocation2 + $0x30] sm:$0xff] %vm220, 0.0
      %229 = vst.msk [vmem:[#allocation2 + $0x38] sm:$0xff] %vm220, 0.0
      %230 = vst.msk [vmem:[#allocation2 + $0x40] sm:$0x3] %vm223, 0.0
      %231 = vst.msk [vmem:[#allocation2 + $0x48] sm:$0xff] %vm220, 0.0
      %232 = vst.msk [vmem:[#allocation2 + $0x50] sm:$0xff] %vm220, 0.0
      %233 = vst.msk [vmem:[#allocation2 + $0x58] sm:$0x3] %vm223, 0.0
      %234 = vst.msk [vmem:[#allocation2 + $0x60] sm:$0xff] %vm220, 0.0
      %235 = vst.msk [vmem:[#allocation2 + $0x68] sm:$0xff] %vm220, 0.0
      %236 = vst.msk [vmem:[#allocation2 + $0x70] sm:$0x3] %vm223, 0.0
      %237 = vst.msk [vmem:[#allocation2 + $0x78] sm:$0xff] %vm220, 0.0
      %238 = vst.msk [vmem:[#allocation2 + $0x80] sm:$0xff] %vm220, 0.0
      %239 = vst.msk [vmem:[#allocation2 + $0x88] sm:$0x3] %vm223, 0.0
      %240 = vst.msk [vmem:[#allocation2 + $0x90] sm:$0xff] %vm220, 0.0
      %241 = vst.msk [vmem:[#allocation2 + $0x98] sm:$0xff] %vm220, 0.0
      %242 = vst.msk [vmem:[#allocation2 + $0xa0] sm:$0x3] %vm223, 0.0
      %243 = vst.msk [vmem:[#allocation2 + $0xa8] sm:$0xff] %vm220, 0.0
      %244 = vst.msk [vmem:[#allocation2 + $0xb0] sm:$0xff] %vm220, 0.0
      %245 = vst.msk [vmem:[#allocation2 + $0xb8] sm:$0x3] %vm223, 0.0
      %246 = vst.msk [vmem:[#allocation2 + $0xc0] sm:$0xff] %vm220, 0.0
      %247 = vst.msk [vmem:[#allocation2 + $0xc8] sm:$0xff] %vm220, 0.0
      %248 = vst.msk [vmem:[#allocation2 + $0xd0] sm:$0x3] %vm223, 0.0
      %249 = vst.msk [vmem:[#allocation2 + $0xd8] sm:$0xff] %vm220, 0.0
      %250 = vst.msk [vmem:[#allocation2 + $0xe0] sm:$0xff] %vm220, 0.0
      %251 = vst.msk [vmem:[#allocation2 + $0xe8] sm:$0x3] %vm223, 0.0
      %252 = vst.msk [vmem:[#allocation2 + $0xf0] sm:$0xff] %vm220, 0.0
      %253 = vst.msk [vmem:[#allocation2 + $0xf8] sm:$0xff] %vm220, 0.0
      %254 = vst.msk [vmem:[#allocation2 + $0x100] sm:$0x3] %vm223, 0.0
      %255 = vst.msk [vmem:[#allocation2 + $0x108] sm:$0xff] %vm220, 0.0
      %256 = vst.msk [vmem:[#allocation2 + $0x110] sm:$0xff] %vm220, 0.0
      %257 = vst.msk [vmem:[#allocation2 + $0x118] sm:$0x3] %vm223, 0.0
      %258 = vst.msk [vmem:[#allocation2 + $0x120] sm:$0xff] %vm220, 0.0
      %259 = vst.msk [vmem:[#allocation2 + $0x128] sm:$0xff] %vm220, 0.0
      %260 = vst.msk [vmem:[#allocation2 + $0x130] sm:$0x3] %vm223, 0.0
      %261 = vst.msk [vmem:[#allocation2 + $0x138] sm:$0xff] %vm220, 0.0
      %262 = vst.msk [vmem:[#allocation2 + $0x140] sm:$0xff] %vm220, 0.0
      %263 = vst.msk [vmem:[#allocation2 + $0x148] sm:$0x3] %vm223, 0.0
      %264 = vst.msk [vmem:[#allocation2 + $0x150] sm:$0xff] %vm220, 0.0
      %265 = vst.msk [vmem:[#allocation2 + $0x158] sm:$0xff] %vm220, 0.0
      %266 = vst.msk [vmem:[#allocation2 + $0x160] sm:$0x3] %vm223, 0.0
      %267 = vst.msk [vmem:[#allocation2 + $0x168] sm:$0xff] %vm220, 0.0
      %268 = vst.msk [vmem:[#allocation2 + $0x170] sm:$0xff] %vm220, 0.0
      %269 = vst.msk [vmem:[#allocation2 + $0x178] sm:$0x3] %vm223, 0.0
      %270 = vst.msk [vmem:[#allocation2 + $0x180] sm:$0xff] %vm220, 0.0
      %271 = vst.msk [vmem:[#allocation2 + $0x188] sm:$0xff] %vm220, 0.0
      %272 = vst.msk [vmem:[#allocation2 + $0x190] sm:$0x3] %vm223, 0.0
      %273 = vst.msk [vmem:[#allocation2 + $0x198] sm:$0xff] %vm220, 0.0
      %274 = vst.msk [vmem:[#allocation2 + $0x1a0] sm:$0xff] %vm220, 0.0
      %275 = vst.msk [vmem:[#allocation2 + $0x1a8] sm:$0x3] %vm223, 0.0
      %v276 = vld [vmem:[%s205] sm:$0xf]
      %v277 = vld [vmem:[%s205 + $0x4] sm:$0xf]
      %v278 = vld [vmem:[%s205 + $0x8] sm:$0xf]
      %v279 = vld [vmem:[%s205 + $0xc] sm:$0xf]
      %v280 = vld [vmem:[%s205 + $0x10] sm:$0xf]
      %v281 = vld [vmem:[%s205 + $0x14] sm:$0xf]
      %v282 = vld [vmem:[%s205 + $0x18] sm:$0xf]
      %v283 = vld [vmem:[%s205 + $0x1c] sm:$0xf]
      %v284 = vld [vmem:[%s205 + $0x20] sm:$0xf]
      %v285 = vld [vmem:[%s205 + $0x24] sm:$0xf]
      %v286 = vld [vmem:[%s205 + $0x28] sm:$0xf]
      %v287 = vld [vmem:[%s205 + $0x2c] sm:$0xf]
      %v288 = vld [vmem:[%s205 + $0x30] sm:$0xf]
      %v289 = vld [vmem:[%s205 + $0x34] sm:$0xf]
      %v290 = vld [vmem:[%s205 + $0x38] sm:$0xf]
      %v291 = vld [vmem:[%s205 + $0x3c] sm:$0xf]
      %v292 = vld [vmem:[%s205 + $0x40] sm:$0xf]
      %v293 = vld [vmem:[%s205 + $0x44] sm:$0xf]
      %v294 = vld [vmem:[%s205 + $0x48] sm:$0xf]
      %v295 = vld [vmem:[%s205 + $0x4c] sm:$0xf]
      %v296 = vld [vmem:[%s205 + $0x50] sm:$0xf]
      %v297 = vld [vmem:[%s205 + $0x54] sm:$0xf]
      %v298 = vld [vmem:[%s205 + $0x58] sm:$0xf]
      %v299 = vld [vmem:[%s205 + $0x5c] sm:$0xf]
      %v300 = vld [vmem:[%s205 + $0x60] sm:$0xf]
      %v301 = vld [vmem:[%s205 + $0x64] sm:$0xf]
      %v302 = vld [vmem:[%s205 + $0x68] sm:$0xf]
      %v303 = vld [vmem:[%s205 + $0x6c] sm:$0xf]
      %v304 = vld [vmem:[%s205 + $0x70] sm:$0xf]
      %v305 = vld [vmem:[%s205 + $0x74] sm:$0xf]
      %v306 = vld [vmem:[%s205 + $0x78] sm:$0xf]
      %v307 = vld [vmem:[%s205 + $0x7c] sm:$0xf]
      %v308 = vunpack.c.l.bf16 %v276
      %v309 = vunpack.c.l.bf16 %v277
      %v310 = vunpack.c.l.bf16 %v278
      %v311 = vunpack.c.l.bf16 %v279
      %v312 = vunpack.c.l.bf16 %v280
      %v313 = vunpack.c.l.bf16 %v281
      %v314 = vunpack.c.l.bf16 %v282
      %v315 = vunpack.c.l.bf16 %v283
      %v316 = vunpack.c.l.bf16 %v284
      %v317 = vunpack.c.l.bf16 %v285
      %v318 = vunpack.c.l.bf16 %v286
      %v319 = vunpack.c.l.bf16 %v287
      %v320 = vunpack.c.l.bf16 %v288
      %v321 = vunpack.c.l.bf16 %v289
      %v322 = vunpack.c.l.bf16 %v290
      %v323 = vunpack.c.l.bf16 %v291
      %v324 = vunpack.c.l.bf16 %v292
      %v325 = vunpack.c.l.bf16 %v293
      %v326 = vunpack.c.l.bf16 %v294
      %v327 = vunpack.c.l.bf16 %v295
      %v328 = vunpack.c.l.bf16 %v296
      %v329 = vunpack.c.l.bf16 %v297
      %v330 = vunpack.c.l.bf16 %v298
      %v331 = vunpack.c.l.bf16 %v299
      %v332 = vunpack.c.l.bf16 %v300
      %v333 = vunpack.c.l.bf16 %v301
      %v334 = vunpack.c.l.bf16 %v302
      %v335 = vunpack.c.l.bf16 %v303
      %v336 = vunpack.c.l.bf16 %v304
      %v337 = vunpack.c.l.bf16 %v305
      %v338 = vunpack.c.l.bf16 %v306
      %v339 = vunpack.c.l.bf16 %v307
      %s340 = scalar_lea.vmem [#allocation2], 24
      %341 = vst.msk [vmem:[%s340 + $0x1] sm:$0xff] %vm220, %v308
      %342 = vst.msk [vmem:[%s340 + $0x9] sm:$0xff] %vm220, %v309
      %343 = vst.msk [vmem:[%s340 + $0x19] sm:$0xff] %vm220, %v310
      %344 = vst.msk [vmem:[%s340 + $0x21] sm:$0xff] %vm220, %v311
      %345 = vst.msk [vmem:[%s340 + $0x31] sm:$0xff] %vm220, %v312
      %346 = vst.msk [vmem:[%s340 + $0x39] sm:$0xff] %vm220, %v313
      %347 = vst.msk [vmem:[%s340 + $0x49] sm:$0xff] %vm220, %v314
      %348 = vst.msk [vmem:[%s340 + $0x51] sm:$0xff] %vm220, %v315
      %349 = vst.msk [vmem:[%s340 + $0x61] sm:$0xff] %vm220, %v316
      %350 = vst.msk [vmem:[%s340 + $0x69] sm:$0xff] %vm220, %v317
      %351 = vst.msk [vmem:[%s340 + $0x79] sm:$0xff] %vm220, %v318
      %352 = vst.msk [vmem:[%s340 + $0x81] sm:$0xff] %vm220, %v319
      %353 = vst.msk [vmem:[%s340 + $0x91] sm:$0xff] %vm220, %v320
      %354 = vst.msk [vmem:[%s340 + $0x99] sm:$0xff] %vm220, %v321
      %355 = vst.msk [vmem:[%s340 + $0xa9] sm:$0xff] %vm220, %v322
      %356 = vst.msk [vmem:[%s340 + $0xb1] sm:$0xff] %vm220, %v323
      %357 = vst.msk [vmem:[%s340 + $0xc1] sm:$0xff] %vm220, %v324
      %358 = vst.msk [vmem:[%s340 + $0xc9] sm:$0xff] %vm220, %v325
      %359 = vst.msk [vmem:[%s340 + $0xd9] sm:$0xff] %vm220, %v326
      %360 = vst.msk [vmem:[%s340 + $0xe1] sm:$0xff] %vm220, %v327
      %361 = vst.msk [vmem:[%s340 + $0xf1] sm:$0xff] %vm220, %v328
      %362 = vst.msk [vmem:[%s340 + $0xf9] sm:$0xff] %vm220, %v329
      %363 = vst.msk [vmem:[%s340 + $0x109] sm:$0xff] %vm220, %v330
      %364 = vst.msk [vmem:[%s340 + $0x111] sm:$0xff] %vm220, %v331
      %365 = vst.msk [vmem:[%s340 + $0x121] sm:$0xff] %vm220, %v332
      %366 = vst.msk [vmem:[%s340 + $0x129] sm:$0xff] %vm220, %v333
      %367 = vst.msk [vmem:[%s340 + $0x139] sm:$0xff] %vm220, %v334
      %368 = vst.msk [vmem:[%s340 + $0x141] sm:$0xff] %vm220, %v335
      %369 = vst.msk [vmem:[%s340 + $0x151] sm:$0xff] %vm220, %v336
      %370 = vst.msk [vmem:[%s340 + $0x159] sm:$0xff] %vm220, %v337
      %371 = vst.msk [vmem:[%s340 + $0x169] sm:$0xff] %vm220, %v338
      %372 = vst.msk [vmem:[%s340 + $0x171] sm:$0xff] %vm220, %v339
      %v373 = vld [vmem:[#allocation2] sm:$0xff]
      %v374 = vld [vmem:[#allocation2 + $0x8] sm:$0xff]
      %v375 = vld [vmem:[#allocation2 + $0x18] sm:$0xff]
      %v376 = vld [vmem:[#allocation2 + $0x20] sm:$0xff]
      %v377 = vld [vmem:[#allocation2 + $0x30] sm:$0xff]
      %v378 = vld [vmem:[#allocation2 + $0x38] sm:$0xff]
      %v379 = vld [vmem:[#allocation2 + $0x48] sm:$0xff]
      %v380 = vld [vmem:[#allocation2 + $0x50] sm:$0xff]
      %v381 = vld [vmem:[#allocation2 + $0x60] sm:$0xff]
      %v382 = vld [vmem:[#allocation2 + $0x68] sm:$0xff]
      %v383 = vld [vmem:[#allocation2 + $0x78] sm:$0xff]
      %v384 = vld [vmem:[#allocation2 + $0x80] sm:$0xff]
      %v385 = vld [vmem:[#allocation2 + $0x90] sm:$0xff]
      %v386 = vld [vmem:[#allocation2 + $0x98] sm:$0xff]
      %v387 = vld [vmem:[#allocation2 + $0xa8] sm:$0xff]
      %v388 = vld [vmem:[#allocation2 + $0xb0] sm:$0xff]
      %v389 = vld [vmem:[#allocation2 + $0xc0] sm:$0xff]
      %v390 = vld [vmem:[#allocation2 + $0xc8] sm:$0xff]
      %v391 = vld [vmem:[#allocation2 + $0xd8] sm:$0xff]
      %v392 = vld [vmem:[#allocation2 + $0xe0] sm:$0xff]
      %v393 = vld [vmem:[#allocation2 + $0xf0] sm:$0xff]
      %v394 = vld [vmem:[#allocation2 + $0xf8] sm:$0xff]
      %v395 = vld [vmem:[#allocation2 + $0x108] sm:$0xff]
      %v396 = vld [vmem:[#allocation2 + $0x110] sm:$0xff]
      %v397 = vld [vmem:[#allocation2 + $0x120] sm:$0xff]
      %v398 = vld [vmem:[#allocation2 + $0x128] sm:$0xff]
      %v399 = vld [vmem:[#allocation2 + $0x138] sm:$0xff]
      %v400 = vld [vmem:[#allocation2 + $0x140] sm:$0xff]
      %v401 = vld [vmem:[#allocation2 + $0x150] sm:$0xff]
      %v402 = vld [vmem:[#allocation2 + $0x158] sm:$0xff]
      %v403 = vld [vmem:[#allocation2 + $0x168] sm:$0xff]
      %v404 = vld [vmem:[#allocation2 + $0x170] sm:$0xff]
      %v405 = vpack.c.bf16 %v374, %v373
      %v406 = vpack.c.bf16 %v376, %v375
      %v407 = vpack.c.bf16 %v378, %v377
      %v408 = vpack.c.bf16 %v380, %v379
      %v409 = vpack.c.bf16 %v382, %v381
      %v410 = vpack.c.bf16 %v384, %v383
      %v411 = vpack.c.bf16 %v386, %v385
      %v412 = vpack.c.bf16 %v388, %v387
      %v413 = vpack.c.bf16 %v390, %v389
      %v414 = vpack.c.bf16 %v392, %v391
      %v415 = vpack.c.bf16 %v394, %v393
      %v416 = vpack.c.bf16 %v396, %v395
      %v417 = vpack.c.bf16 %v398, %v397
      %v418 = vpack.c.bf16 %v400, %v399
      %v419 = vpack.c.bf16 %v402, %v401
      %v420 = vpack.c.bf16 %v404, %v403
      %v421 = vld [vmem:[%s1] sm:$0x3]
      %v422 = vld [vmem:[#allocation2 + $0x1] sm:$0xff]
      %v423 = vld [vmem:[#allocation2 + $0x9] sm:$0xff]
      %v424 = vld [vmem:[#allocation2 + $0x19] sm:$0xff]
      %v425 = vld [vmem:[#allocation2 + $0x21] sm:$0xff]
      %v426 = vld [vmem:[#allocation2 + $0x31] sm:$0xff]
      %v427 = vld [vmem:[#allocation2 + $0x39] sm:$0xff]
      %v428 = vld [vmem:[#allocation2 + $0x49] sm:$0xff]
      %v429 = vld [vmem:[#allocation2 + $0x51] sm:$0xff]
      %v430 = vld [vmem:[#allocation2 + $0x61] sm:$0xff]
      %v431 = vld [vmem:[#allocation2 + $0x69] sm:$0xff]
      %v432 = vld [vmem:[#allocation2 + $0x79] sm:$0xff]
      %v433 = vld [vmem:[#allocation2 + $0x81] sm:$0xff]
      %v434 = vld [vmem:[#allocation2 + $0x91] sm:$0xff]
      %v435 = vld [vmem:[#allocation2 + $0x99] sm:$0xff]
      %v436 = vld [vmem:[#allocation2 + $0xa9] sm:$0xff]
      %v437 = vld [vmem:[#allocation2 + $0xb1] sm:$0xff]
      %v438 = vld [vmem:[#allocation2 + $0xc1] sm:$0xff]
      %v439 = vld [vmem:[#allocation2 + $0xc9] sm:$0xff]
      %v440 = vld [vmem:[#allocation2 + $0xd9] sm:$0xff]
      %v441 = vld [vmem:[#allocation2 + $0xe1] sm:$0xff]
      %v442 = vld [vmem:[#allocation2 + $0xf1] sm:$0xff]
      %v443 = vld [vmem:[#allocation2 + $0xf9] sm:$0xff]
      %v444 = vld [vmem:[#allocation2 + $0x109] sm:$0xff]
      %v445 = vld [vmem:[#allocation2 + $0x111] sm:$0xff]
      %v446 = vld [vmem:[#allocation2 + $0x121] sm:$0xff]
      %v447 = vld [vmem:[#allocation2 + $0x129] sm:$0xff]
      %v448 = vld [vmem:[#allocation2 + $0x139] sm:$0xff]
      %v449 = vld [vmem:[#allocation2 + $0x141] sm:$0xff]
      %v450 = vld [vmem:[#allocation2 + $0x151] sm:$0xff]
      %v451 = vld [vmem:[#allocation2 + $0x159] sm:$0xff]
      %v452 = vld [vmem:[#allocation2 + $0x169] sm:$0xff]
      %v453 = vld [vmem:[#allocation2 + $0x171] sm:$0xff]
      %v454 = vpack.c.bf16 %v423, %v422
      %v455 = vpack.c.bf16 %v425, %v424
      %v456 = vpack.c.bf16 %v427, %v426
      %v457 = vpack.c.bf16 %v429, %v428
      %v458 = vpack.c.bf16 %v431, %v430
      %v459 = vpack.c.bf16 %v433, %v432
      %v460 = vpack.c.bf16 %v435, %v434
      %v461 = vpack.c.bf16 %v437, %v436
      %v462 = vpack.c.bf16 %v439, %v438
      %v463 = vpack.c.bf16 %v441, %v440
      %v464 = vpack.c.bf16 %v443, %v442
      %v465 = vpack.c.bf16 %v445, %v444
      %v466 = vpack.c.bf16 %v447, %v446
      %v467 = vpack.c.bf16 %v449, %v448
      %v468 = vpack.c.bf16 %v451, %v450
      %v469 = vpack.c.bf16 %v453, %v452
      %s470 = scalar_lea.vmem %s1, 2
      %v471 = vld [vmem:[%s470] sm:$0x3]
      %v473 = vsel %vm220, %v454, 0
      %v476 = vsel %vm220, %v455, 0
      %v479 = vsel %vm220, %v456, 0
      %v482 = vsel %vm220, %v457, 0
      %v485 = vsel %vm220, %v458, 0
      %v488 = vsel %vm220, %v459, 0
      %v491 = vsel %vm220, %v460, 0
      %v494 = vsel %vm220, %v461, 0
      %v497 = vsel %vm220, %v462, 0
      %v500 = vsel %vm220, %v463, 0
      %v503 = vsel %vm220, %v464, 0
      %v506 = vsel %vm220, %v465, 0
      %v509 = vsel %vm220, %v466, 0
      %v512 = vsel %vm220, %v467, 0
      %v515 = vsel %vm220, %v468, 0
      %v518 = vsel %vm220, %v469, 0
      %vm520 = vcmask 1041408
      %v522 = vsel %vm520, %v471, 0
      %524 = vmatprep.subr.bf16.mxu0 0
      %525 = vmatpush1.bf16.msra.mxu0 %v522
      %526 = vmatprep.subr.bf16.mxu0 0
      %527 = vmatpush1.bf16.msra.mxu0 0
      %528 = vmatprep.subr.bf16.mxu0 0
      %529 = vmatpush1.bf16.msra.mxu0 0
      %530 = vmatprep.subr.bf16.mxu0 0
      %531 = vmatpush1.bf16.msra.mxu0 0
      %532 = vmatprep.subr.bf16.mxu0 0
      %533 = vmatpush1.bf16.msra.mxu0 0
      %534 = vmatprep.subr.bf16.mxu0 0
      %535 = vmatpush1.bf16.msra.mxu0 0
      %536 = vmatprep.subr.bf16.mxu0 0
      %537 = vmatpush1.bf16.msra.mxu0 0
      %538 = vmatprep.subr.bf16.mxu0 0
      %539 = vmatpush1.bf16.msra.mxu0 0
      %540 = vmatprep.subr.bf16.mxu0 0
      %541 = vmatpush1.bf16.msra.mxu0 0
      %542 = vmatprep.subr.bf16.mxu0 0
      %543 = vmatpush1.bf16.msra.mxu0 0
      %544 = vmatprep.subr.bf16.mxu0 0
      %545 = vmatpush1.bf16.msra.mxu0 0
      %546 = vmatprep.subr.bf16.mxu0 0
      %547 = vmatpush1.bf16.msra.mxu0 0
      %548 = vmatprep.subr.bf16.mxu0 0
      %549 = vmatpush1.bf16.msra.mxu0 0
      %550 = vmatprep.subr.bf16.mxu0 0
      %551 = vmatpush1.bf16.msra.mxu0 0
      %552 = vmatprep.subr.bf16.mxu0 0
      %553 = vmatpush1.bf16.msra.mxu0 0
      %554 = vmatprep.subr.bf16.mxu0 0
      %555 = vmatpush1.bf16.msra.mxu0 0
      %556 = vmatprep.mubr.bf16.mxu0 0
      %557 = vmatmul.mubr.bf16.gmra.mrb[0].mxu0 %v473
      %v558 = vpop.f32.mrb[0].mxu0
      %v559 = vadd.f32 0.0, %v558
      %v560 = vpop.f32.mrb[0].mxu0
      %v561 = vpop.f32.mrb[0].mxu0
      %v562 = vadd.f32 0.0, %v561
      %v563 = vpop.f32.mrb[0].mxu0
      %564 = vmatprep.mubr.bf16.mxu0 0
      %565 = vmatmul.mubr.bf16.gmra.mrb[0].mxu0 %v476
      %v566 = vpop.f32.mrb[0].mxu0
      %v567 = vadd.f32 0.0, %v566
      %v568 = vpop.f32.mrb[0].mxu0
      %v569 = vpop.f32.mrb[0].mxu0
      %v570 = vadd.f32 0.0, %v569
      %v571 = vpop.f32.mrb[0].mxu0
      %572 = vmatprep.mubr.bf16.mxu0 0
      %573 = vmatmul.mubr.bf16.gmra.mrb[0].mxu0 %v479
      %v574 = vpop.f32.mrb[0].mxu0
      %v575 = vadd.f32 0.0, %v574
      %v576 = vpop.f32.mrb[0].mxu0
      %v577 = vpop.f32.mrb[0].mxu0
      %v578 = vadd.f32 0.0, %v577
      %v579 = vpop.f32.mrb[0].mxu0
      %580 = vmatprep.mubr.bf16.mxu0 0
      %581 = vmatmul.mubr.bf16.gmra.mrb[0].mxu0 %v482
      %v582 = vpop.f32.mrb[0].mxu0
      %v583 = vadd.f32 0.0, %v582
      %v584 = vpop.f32.mrb[0].mxu0
      %v585 = vpop.f32.mrb[0].mxu0
      %v586 = vadd.f32 0.0, %v585
      %v587 = vpop.f32.mrb[0].mxu0
      %588 = vmatprep.mubr.bf16.mxu0 0
      %589 = vmatmul.mubr.bf16.gmra.mrb[0].mxu0 %v485
      %v590 = vpop.f32.mrb[0].mxu0
      %v591 = vadd.f32 0.0, %v590
      %v592 = vpop.f32.mrb[0].mxu0
      %v593 = vpop.f32.mrb[0].mxu0
      %v594 = vadd.f32 0.0, %v593
      %v595 = vpop.f32.mrb[0].mxu0
      %596 = vmatprep.mubr.bf16.mxu0 0
      %597 = vmatmul.mubr.bf16.gmra.mrb[0].mxu0 %v488
      %v598 = vpop.f32.mrb[0].mxu0
      %v599 = vadd.f32 0.0, %v598
      %v600 = vpop.f32.mrb[0].mxu0
      %v601 = vpop.f32.mrb[0].mxu0
      %v602 = vadd.f32 0.0, %v601
      %v603 = vpop.f32.mrb[0].mxu0
      %604 = vmatprep.mubr.bf16.mxu0 0
      %605 = vmatmul.mubr.bf16.gmra.mrb[0].mxu0 %v491
      %v606 = vpop.f32.mrb[0].mxu0
      %v607 = vadd.f32 0.0, %v606
      %v608 = vpop.f32.mrb[0].mxu0
      %v609 = vpop.f32.mrb[0].mxu0
      %v610 = vadd.f32 0.0, %v609
      %v611 = vpop.f32.mrb[0].mxu0
      %612 = vmatprep.mubr.bf16.mxu0 0
      %613 = vmatmul.mubr.bf16.gmra.mrb[0].mxu0 %v494
      %v614 = vpop.f32.mrb[0].mxu0
      %v615 = vadd.f32 0.0, %v614
      %v616 = vpop.f32.mrb[0].mxu0
      %v617 = vpop.f32.mrb[0].mxu0
      %v618 = vadd.f32 0.0, %v617
      %v619 = vpop.f32.mrb[0].mxu0
      %620 = vmatprep.mubr.bf16.mxu0 0
      %621 = vmatmul.mubr.bf16.gmra.mrb[0].mxu0 %v497
      %v622 = vpop.f32.mrb[0].mxu0
      %v623 = vadd.f32 0.0, %v622
      %v624 = vpop.f32.mrb[0].mxu0
      %v625 = vpop.f32.mrb[0].mxu0
      %v626 = vadd.f32 0.0, %v625
      %v627 = vpop.f32.mrb[0].mxu0
      %628 = vmatprep.mubr.bf16.mxu0 0
      %629 = vmatmul.mubr.bf16.gmra.mrb[0].mxu0 %v500
      %v630 = vpop.f32.mrb[0].mxu0
      %v631 = vadd.f32 0.0, %v630
      %v632 = vpop.f32.mrb[0].mxu0
      %v633 = vpop.f32.mrb[0].mxu0
      %v634 = vadd.f32 0.0, %v633
      %v635 = vpop.f32.mrb[0].mxu0
      %636 = vmatprep.mubr.bf16.mxu0 0
      %637 = vmatmul.mubr.bf16.gmra.mrb[0].mxu0 %v503
      %v638 = vpop.f32.mrb[0].mxu0
      %v639 = vadd.f32 0.0, %v638
      %v640 = vpop.f32.mrb[0].mxu0
      %v641 = vpop.f32.mrb[0].mxu0
      %v642 = vadd.f32 0.0, %v641
      %v643 = vpop.f32.mrb[0].mxu0
      %644 = vmatprep.mubr.bf16.mxu0 0
      %645 = vmatmul.mubr.bf16.gmra.mrb[0].mxu0 %v506
      %v646 = vpop.f32.mrb[0].mxu0
      %v647 = vadd.f32 0.0, %v646
      %v648 = vpop.f32.mrb[0].mxu0
      %v649 = vpop.f32.mrb[0].mxu0
      %v650 = vadd.f32 0.0, %v649
      %v651 = vpop.f32.mrb[0].mxu0
      %652 = vmatprep.mubr.bf16.mxu0 0
      %653 = vmatmul.mubr.bf16.gmra.mrb[0].mxu0 %v509
      %v654 = vpop.f32.mrb[0].mxu0
      %v655 = vadd.f32 0.0, %v654
      %v656 = vpop.f32.mrb[0].mxu0
      %v657 = vpop.f32.mrb[0].mxu0
      %v658 = vadd.f32 0.0, %v657
      %v659 = vpop.f32.mrb[0].mxu0
      %660 = vmatprep.mubr.bf16.mxu0 0
      %661 = vmatmul.mubr.bf16.gmra.mrb[0].mxu0 %v512
      %v662 = vpop.f32.mrb[0].mxu0
      %v663 = vadd.f32 0.0, %v662
      %v664 = vpop.f32.mrb[0].mxu0
      %v665 = vpop.f32.mrb[0].mxu0
      %v666 = vadd.f32 0.0, %v665
      %v667 = vpop.f32.mrb[0].mxu0
      %668 = vmatprep.mubr.bf16.mxu0 0
      %669 = vmatmul.mubr.bf16.gmra.mrb[0].mxu0 %v515
      %v670 = vpop.f32.mrb[0].mxu0
      %v671 = vadd.f32 0.0, %v670
      %v672 = vpop.f32.mrb[0].mxu0
      %v673 = vpop.f32.mrb[0].mxu0
      %v674 = vadd.f32 0.0, %v673
      %v675 = vpop.f32.mrb[0].mxu0
      %676 = vmatprep.mubr.bf16.mxu0 0
      %677 = vmatmul.mubr.bf16.gmra.mrb[0].mxu0 %v518
      %v678 = vpop.f32.mrb[0].mxu0
      %v679 = vadd.f32 0.0, %v678
      %v680 = vpop.f32.mrb[0].mxu0
      %v681 = vpop.f32.mrb[0].mxu0
      %v682 = vadd.f32 0.0, %v681
      %v683 = vpop.f32.mrb[0].mxu0
      %684 = vdwg.mxu0
      %v686 = vsel %vm220, %v405, 0
      %v689 = vsel %vm220, %v406, 0
      %v692 = vsel %vm220, %v407, 0
      %v695 = vsel %vm220, %v408, 0
      %v698 = vsel %vm220, %v409, 0
      %v701 = vsel %vm220, %v410, 0
      %v704 = vsel %vm220, %v411, 0
      %v707 = vsel %vm220, %v412, 0
      %v710 = vsel %vm220, %v413, 0
      %v713 = vsel %vm220, %v414, 0
      %v716 = vsel %vm220, %v415, 0
      %v719 = vsel %vm220, %v416, 0
      %v722 = vsel %vm220, %v417, 0
      %v725 = vsel %vm220, %v418, 0
      %v728 = vsel %vm220, %v419, 0
      %v731 = vsel %vm220, %v420, 0
      %v734 = vsel %vm520, %v421, 0
      %736 = vmatprep.subr.bf16.mxu0 0
      %737 = vmatpush1.bf16.msra.mxu0 %v734
      %738 = vmatprep.subr.bf16.mxu0 0
      %739 = vmatpush1.bf16.msra.mxu0 0
      %740 = vmatprep.subr.bf16.mxu0 0
      %741 = vmatpush1.bf16.msra.mxu0 0
      %742 = vmatprep.subr.bf16.mxu0 0
      %743 = vmatpush1.bf16.msra.mxu0 0
      %744 = vmatprep.subr.bf16.mxu0 0
      %745 = vmatpush1.bf16.msra.mxu0 0
      %746 = vmatprep.subr.bf16.mxu0 0
      %747 = vmatpush1.bf16.msra.mxu0 0
      %748 = vmatprep.subr.bf16.mxu0 0
      %749 = vmatpush1.bf16.msra.mxu0 0
      %750 = vmatprep.subr.bf16.mxu0 0
      %751 = vmatpush1.bf16.msra.mxu0 0
      %752 = vmatprep.subr.bf16.mxu0 0
      %753 = vmatpush1.bf16.msra.mxu0 0
      %754 = vmatprep.subr.bf16.mxu0 0
      %755 = vmatpush1.bf16.msra.mxu0 0
      %756 = vmatprep.subr.bf16.mxu0 0
      %757 = vmatpush1.bf16.msra.mxu0 0
      %758 = vmatprep.subr.bf16.mxu0 0
      %759 = vmatpush1.bf16.msra.mxu0 0
      %760 = vmatprep.subr.bf16.mxu0 0
      %761 = vmatpush1.bf16.msra.mxu0 0
      %762 = vmatprep.subr.bf16.mxu0 0
      %763 = vmatpush1.bf16.msra.mxu0 0
      %764 = vmatprep.subr.bf16.mxu0 0
      %765 = vmatpush1.bf16.msra.mxu0 0
      %766 = vmatprep.subr.bf16.mxu0 0
      %767 = vmatpush1.bf16.msra.mxu0 0
      %768 = vmatprep.mubr.bf16.mxu0 0
      %769 = vmatmul.mubr.bf16.gmra.mrb[0].mxu0 %v686
      %v770 = vpop.f32.mrb[0].mxu0
      %v771 = vadd.f32 %v559, %v770
      %v772 = vpop.f32.mrb[0].mxu0
      %v773 = vpop.f32.mrb[0].mxu0
      %v774 = vadd.f32 %v562, %v773
      %v775 = vpop.f32.mrb[0].mxu0
      %776 = vmatprep.mubr.bf16.mxu0 0
      %777 = vmatmul.mubr.bf16.gmra.mrb[0].mxu0 %v689
      %v778 = vpop.f32.mrb[0].mxu0
      %v779 = vadd.f32 %v567, %v778
      %v780 = vpop.f32.mrb[0].mxu0
      %v781 = vpop.f32.mrb[0].mxu0
      %v782 = vadd.f32 %v570, %v781
      %v783 = vpop.f32.mrb[0].mxu0
      %784 = vmatprep.mubr.bf16.mxu0 0
      %785 = vmatmul.mubr.bf16.gmra.mrb[0].mxu0 %v692
      %v786 = vpop.f32.mrb[0].mxu0
      %v787 = vadd.f32 %v575, %v786
      %v788 = vpop.f32.mrb[0].mxu0
      %v789 = vpop.f32.mrb[0].mxu0
      %v790 = vadd.f32 %v578, %v789
      %v791 = vpop.f32.mrb[0].mxu0
      %792 = vmatprep.mubr.bf16.mxu0 0
      %793 = vmatmul.mubr.bf16.gmra.mrb[0].mxu0 %v695
      %v794 = vpop.f32.mrb[0].mxu0
      %v795 = vadd.f32 %v583, %v794
      %v796 = vpop.f32.mrb[0].mxu0
      %v797 = vpop.f32.mrb[0].mxu0
      %v798 = vadd.f32 %v586, %v797
      %v799 = vpop.f32.mrb[0].mxu0
      %800 = vmatprep.mubr.bf16.mxu0 0
      %801 = vmatmul.mubr.bf16.gmra.mrb[0].mxu0 %v698
      %v802 = vpop.f32.mrb[0].mxu0
      %v803 = vadd.f32 %v591, %v802
      %v804 = vpop.f32.mrb[0].mxu0
      %v805 = vpop.f32.mrb[0].mxu0
      %v806 = vadd.f32 %v594, %v805
      %v807 = vpop.f32.mrb[0].mxu0
      %808 = vmatprep.mubr.bf16.mxu0 0
      %809 = vmatmul.mubr.bf16.gmra.mrb[0].mxu0 %v701
      %v810 = vpop.f32.mrb[0].mxu0
      %v811 = vadd.f32 %v599, %v810
      %v812 = vpop.f32.mrb[0].mxu0
      %v813 = vpop.f32.mrb[0].mxu0
      %v814 = vadd.f32 %v602, %v813
      %v815 = vpop.f32.mrb[0].mxu0
      %816 = vmatprep.mubr.bf16.mxu0 0
      %817 = vmatmul.mubr.bf16.gmra.mrb[0].mxu0 %v704
      %v818 = vpop.f32.mrb[0].mxu0
      %v819 = vadd.f32 %v607, %v818
      %v820 = vpop.f32.mrb[0].mxu0
      %v821 = vpop.f32.mrb[0].mxu0
      %v822 = vadd.f32 %v610, %v821
      %v823 = vpop.f32.mrb[0].mxu0
      %824 = vmatprep.mubr.bf16.mxu0 0
      %825 = vmatmul.mubr.bf16.gmra.mrb[0].mxu0 %v707
      %v826 = vpop.f32.mrb[0].mxu0
      %v827 = vadd.f32 %v615, %v826
      %v828 = vpop.f32.mrb[0].mxu0
      %v829 = vpop.f32.mrb[0].mxu0
      %v830 = vadd.f32 %v618, %v829
      %v831 = vpop.f32.mrb[0].mxu0
      %832 = vmatprep.mubr.bf16.mxu0 0
      %833 = vmatmul.mubr.bf16.gmra.mrb[0].mxu0 %v710
      %v834 = vpop.f32.mrb[0].mxu0
      %v835 = vadd.f32 %v623, %v834
      %v836 = vpop.f32.mrb[0].mxu0
      %v837 = vpop.f32.mrb[0].mxu0
      %v838 = vadd.f32 %v626, %v837
      %v839 = vpop.f32.mrb[0].mxu0
      %840 = vmatprep.mubr.bf16.mxu0 0
      %841 = vmatmul.mubr.bf16.gmra.mrb[0].mxu0 %v713
      %v842 = vpop.f32.mrb[0].mxu0
      %v843 = vadd.f32 %v631, %v842
      %v844 = vpop.f32.mrb[0].mxu0
      %v845 = vpop.f32.mrb[0].mxu0
      %v846 = vadd.f32 %v634, %v845
      %v847 = vpop.f32.mrb[0].mxu0
      %848 = vmatprep.mubr.bf16.mxu0 0
      %849 = vmatmul.mubr.bf16.gmra.mrb[0].mxu0 %v716
      %v850 = vpop.f32.mrb[0].mxu0
      %v851 = vadd.f32 %v639, %v850
      %v852 = vpop.f32.mrb[0].mxu0
      %v853 = vpop.f32.mrb[0].mxu0
      %v854 = vadd.f32 %v642, %v853
      %v855 = vpop.f32.mrb[0].mxu0
      %856 = vmatprep.mubr.bf16.mxu0 0
      %857 = vmatmul.mubr.bf16.gmra.mrb[0].mxu0 %v719
      %v858 = vpop.f32.mrb[0].mxu0
      %v859 = vadd.f32 %v647, %v858
      %v860 = vpop.f32.mrb[0].mxu0
      %v861 = vpop.f32.mrb[0].mxu0
      %v862 = vadd.f32 %v650, %v861
      %v863 = vpop.f32.mrb[0].mxu0
      %864 = vmatprep.mubr.bf16.mxu0 0
      %865 = vmatmul.mubr.bf16.gmra.mrb[0].mxu0 %v722
      %v866 = vpop.f32.mrb[0].mxu0
      %v867 = vadd.f32 %v655, %v866
      %v868 = vpop.f32.mrb[0].mxu0
      %v869 = vpop.f32.mrb[0].mxu0
      %v870 = vadd.f32 %v658, %v869
      %v871 = vpop.f32.mrb[0].mxu0
      %872 = vmatprep.mubr.bf16.mxu0 0
      %873 = vmatmul.mubr.bf16.gmra.mrb[0].mxu0 %v725
      %v874 = vpop.f32.mrb[0].mxu0
      %v875 = vadd.f32 %v663, %v874
      %v876 = vpop.f32.mrb[0].mxu0
      %v877 = vpop.f32.mrb[0].mxu0
      %v878 = vadd.f32 %v666, %v877
      %v879 = vpop.f32.mrb[0].mxu0
      %880 = vmatprep.mubr.bf16.mxu0 0
      %881 = vmatmul.mubr.bf16.gmra.mrb[0].mxu0 %v728
      %v882 = vpop.f32.mrb[0].mxu0
      %v883 = vadd.f32 %v671, %v882
      %v884 = vpop.f32.mrb[0].mxu0
      %v885 = vpop.f32.mrb[0].mxu0
      %v886 = vadd.f32 %v674, %v885
      %v887 = vpop.f32.mrb[0].mxu0
      %888 = vmatprep.mubr.bf16.mxu0 0
      %889 = vmatmul.mubr.bf16.gmra.mrb[0].mxu0 %v731
      %v890 = vpop.f32.mrb[0].mxu0
      %v891 = vadd.f32 %v679, %v890
      %v892 = vpop.f32.mrb[0].mxu0
      %v893 = vpop.f32.mrb[0].mxu0
      %v894 = vadd.f32 %v682, %v893
      %v895 = vpop.f32.mrb[0].mxu0
      %896 = vdwg.mxu0
      %v897 = vld [vmem:[#allocation2 + $0x2] sm:$0xff]
      %v898 = vld [vmem:[#allocation2 + $0xa] sm:$0xff]
      %v899 = vld [vmem:[#allocation2 + $0x1a] sm:$0xff]
      %v900 = vld [vmem:[#allocation2 + $0x22] sm:$0xff]
      %v901 = vld [vmem:[#allocation2 + $0x32] sm:$0xff]
      %v902 = vld [vmem:[#allocation2 + $0x3a] sm:$0xff]
      %v903 = vld [vmem:[#allocation2 + $0x4a] sm:$0xff]
      %v904 = vld [vmem:[#allocation2 + $0x52] sm:$0xff]
      %v905 = vld [vmem:[#allocation2 + $0x62] sm:$0xff]
      %v906 = vld [vmem:[#allocation2 + $0x6a] sm:$0xff]
      %v907 = vld [vmem:[#allocation2 + $0x7a] sm:$0xff]
      %v908 = vld [vmem:[#allocation2 + $0x82] sm:$0xff]
      %v909 = vld [vmem:[#allocation2 + $0x92] sm:$0xff]
      %v910 = vld [vmem:[#allocation2 + $0x9a] sm:$0xff]
      %v911 = vld [vmem:[#allocation2 + $0xaa] sm:$0xff]
      %v912 = vld [vmem:[#allocation2 + $0xb2] sm:$0xff]
      %v913 = vld [vmem:[#allocation2 + $0xc2] sm:$0xff]
      %v914 = vld [vmem:[#allocation2 + $0xca] sm:$0xff]
      %v915 = vld [vmem:[#allocation2 + $0xda] sm:$0xff]
      %v916 = vld [vmem:[#allocation2 + $0xe2] sm:$0xff]
      %v917 = vld [vmem:[#allocation2 + $0xf2] sm:$0xff]
      %v918 = vld [vmem:[#allocation2 + $0xfa] sm:$0xff]
      %v919 = vld [vmem:[#allocation2 + $0x10a] sm:$0xff]
      %v920 = vld [vmem:[#allocation2 + $0x112] sm:$0xff]
      %v921 = vld [vmem:[#allocation2 + $0x122] sm:$0xff]
      %v922 = vld [vmem:[#allocation2 + $0x12a] sm:$0xff]
      %v923 = vld [vmem:[#allocation2 + $0x13a] sm:$0xff]
      %v924 = vld [vmem:[#allocation2 + $0x142] sm:$0xff]
      %v925 = vld [vmem:[#allocation2 + $0x152] sm:$0xff]
      %v926 = vld [vmem:[#allocation2 + $0x15a] sm:$0xff]
      %v927 = vld [vmem:[#allocation2 + $0x16a] sm:$0xff]
      %v928 = vld [vmem:[#allocation2 + $0x172] sm:$0xff]
      %v929 = vpack.c.bf16 %v898, %v897
      %v930 = vpack.c.bf16 %v900, %v899
      %v931 = vpack.c.bf16 %v902, %v901
      %v932 = vpack.c.bf16 %v904, %v903
      %v933 = vpack.c.bf16 %v906, %v905
      %v934 = vpack.c.bf16 %v908, %v907
      %v935 = vpack.c.bf16 %v910, %v909
      %v936 = vpack.c.bf16 %v912, %v911
      %v937 = vpack.c.bf16 %v914, %v913
      %v938 = vpack.c.bf16 %v916, %v915
      %v939 = vpack.c.bf16 %v918, %v917
      %v940 = vpack.c.bf16 %v920, %v919
      %v941 = vpack.c.bf16 %v922, %v921
      %v942 = vpack.c.bf16 %v924, %v923
      %v943 = vpack.c.bf16 %v926, %v925
      %v944 = vpack.c.bf16 %v928, %v927
      %s945 = scalar_lea.vmem %s1, 4
      %v946 = vld [vmem:[%s945] sm:$0x3]
      %v948 = vsel %vm220, %v929, 0
      %v951 = vsel %vm220, %v930, 0
      %v954 = vsel %vm220, %v931, 0
      %v957 = vsel %vm220, %v932, 0
      %v960 = vsel %vm220, %v933, 0
      %v963 = vsel %vm220, %v934, 0
      %v966 = vsel %vm220, %v935, 0
      %v969 = vsel %vm220, %v936, 0
      %v972 = vsel %vm220, %v937, 0
      %v975 = vsel %vm220, %v938, 0
      %v978 = vsel %vm220, %v939, 0
      %v981 = vsel %vm220, %v940, 0
      %v984 = vsel %vm220, %v941, 0
      %v987 = vsel %vm220, %v942, 0
      %v990 = vsel %vm220, %v943, 0
      %v993 = vsel %vm220, %v944, 0
      %v996 = vsel %vm520, %v946, 0
      %998 = vmatprep.subr.bf16.mxu0 0
      %999 = vmatpush1.bf16.msra.mxu0 %v996
      %1000 = vmatprep.subr.bf16.mxu0 0
      %1001 = vmatpush1.bf16.msra.mxu0 0
      %1002 = vmatprep.subr.bf16.mxu0 0
      %1003 = vmatpush1.bf16.msra.mxu0 0
      %1004 = vmatprep.subr.bf16.mxu0 0
      %1005 = vmatpush1.bf16.msra.mxu0 0
      %1006 = vmatprep.subr.bf16.mxu0 0
      %1007 = vmatpush1.bf16.msra.mxu0 0
      %1008 = vmatprep.subr.bf16.mxu0 0
      %1009 = vmatpush1.bf16.msra.mxu0 0
      %1010 = vmatprep.subr.bf16.mxu0 0
      %1011 = vmatpush1.bf16.msra.mxu0 0
      %1012 = vmatprep.subr.bf16.mxu0 0
      %1013 = vmatpush1.bf16.msra.mxu0 0
      %1014 = vmatprep.subr.bf16.mxu0 0
      %1015 = vmatpush1.bf16.msra.mxu0 0
      %1016 = vmatprep.subr.bf16.mxu0 0
      %1017 = vmatpush1.bf16.msra.mxu0 0
      %1018 = vmatprep.subr.bf16.mxu0 0
      %1019 = vmatpush1.bf16.msra.mxu0 0
      %1020 = vmatprep.subr.bf16.mxu0 0
      %1021 = vmatpush1.bf16.msra.mxu0 0
      %1022 = vmatprep.subr.bf16.mxu0 0
      %1023 = vmatpush1.bf16.msra.mxu0 0
      %1024 = vmatprep.subr.bf16.mxu0 0
      %1025 = vmatpush1.bf16.msra.mxu0 0
      %1026 = vmatprep.subr.bf16.mxu0 0
      %1027 = vmatpush1.bf16.msra.mxu0 0
      %1028 = vmatprep.subr.bf16.mxu0 0
      %1029 = vmatpush1.bf16.msra.mxu0 0
      %1030 = vmatprep.mubr.bf16.mxu0 0
      %1031 = vmatmul.mubr.bf16.gmra.mrb[0].mxu0 %v948
      %v1032 = vpop.f32.mrb[0].mxu0
      %v1033 = vadd.f32 0.0, %v1032
      %v1034 = vpop.f32.mrb[0].mxu0
      %v1035 = vpop.f32.mrb[0].mxu0
      %v1036 = vadd.f32 0.0, %v1035
      %v1037 = vpop.f32.mrb[0].mxu0
      %1038 = vmatprep.mubr.bf16.mxu0 0
      %1039 = vmatmul.mubr.bf16.gmra.mrb[0].mxu0 %v951
      %v1040 = vpop.f32.mrb[0].mxu0
      %v1041 = vadd.f32 0.0, %v1040
      %v1042 = vpop.f32.mrb[0].mxu0
      %v1043 = vpop.f32.mrb[0].mxu0
      %v1044 = vadd.f32 0.0, %v1043
      %v1045 = vpop.f32.mrb[0].mxu0
      %1046 = vmatprep.mubr.bf16.mxu0 0
      %1047 = vmatmul.mubr.bf16.gmra.mrb[0].mxu0 %v954
      %v1048 = vpop.f32.mrb[0].mxu0
      %v1049 = vadd.f32 0.0, %v1048
      %v1050 = vpop.f32.mrb[0].mxu0
      %v1051 = vpop.f32.mrb[0].mxu0
      %v1052 = vadd.f32 0.0, %v1051
      %v1053 = vpop.f32.mrb[0].mxu0
      %1054 = vmatprep.mubr.bf16.mxu0 0
      %1055 = vmatmul.mubr.bf16.gmra.mrb[0].mxu0 %v957
      %v1056 = vpop.f32.mrb[0].mxu0
      %v1057 = vadd.f32 0.0, %v1056
      %v1058 = vpop.f32.mrb[0].mxu0
      %v1059 = vpop.f32.mrb[0].mxu0
      %v1060 = vadd.f32 0.0, %v1059
      %v1061 = vpop.f32.mrb[0].mxu0
      %1062 = vmatprep.mubr.bf16.mxu0 0
      %1063 = vmatmul.mubr.bf16.gmra.mrb[0].mxu0 %v960
      %v1064 = vpop.f32.mrb[0].mxu0
      %v1065 = vadd.f32 0.0, %v1064
      %v1066 = vpop.f32.mrb[0].mxu0
      %v1067 = vpop.f32.mrb[0].mxu0
      %v1068 = vadd.f32 0.0, %v1067
      %v1069 = vpop.f32.mrb[0].mxu0
      %1070 = vmatprep.mubr.bf16.mxu0 0
      %1071 = vmatmul.mubr.bf16.gmra.mrb[0].mxu0 %v963
      %v1072 = vpop.f32.mrb[0].mxu0
      %v1073 = vadd.f32 0.0, %v1072
      %v1074 = vpop.f32.mrb[0].mxu0
      %v1075 = vpop.f32.mrb[0].mxu0
      %v1076 = vadd.f32 0.0, %v1075
      %v1077 = vpop.f32.mrb[0].mxu0
      %1078 = vmatprep.mubr.bf16.mxu0 0
      %1079 = vmatmul.mubr.bf16.gmra.mrb[0].mxu0 %v966
      %v1080 = vpop.f32.mrb[0].mxu0
      %v1081 = vadd.f32 0.0, %v1080
      %v1082 = vpop.f32.mrb[0].mxu0
      %v1083 = vpop.f32.mrb[0].mxu0
      %v1084 = vadd.f32 0.0, %v1083
      %v1085 = vpop.f32.mrb[0].mxu0
      %1086 = vmatprep.mubr.bf16.mxu0 0
      %1087 = vmatmul.mubr.bf16.gmra.mrb[0].mxu0 %v969
      %v1088 = vpop.f32.mrb[0].mxu0
      %v1089 = vadd.f32 0.0, %v1088
      %v1090 = vpop.f32.mrb[0].mxu0
      %v1091 = vpop.f32.mrb[0].mxu0
      %v1092 = vadd.f32 0.0, %v1091
      %v1093 = vpop.f32.mrb[0].mxu0
      %1094 = vmatprep.mubr.bf16.mxu0 0
      %1095 = vmatmul.mubr.bf16.gmra.mrb[0].mxu0 %v972
      %v1096 = vpop.f32.mrb[0].mxu0
      %v1097 = vadd.f32 0.0, %v1096
      %v1098 = vpop.f32.mrb[0].mxu0
      %v1099 = vpop.f32.mrb[0].mxu0
      %v1100 = vadd.f32 0.0, %v1099
      %v1101 = vpop.f32.mrb[0].mxu0
      %1102 = vmatprep.mubr.bf16.mxu0 0
      %1103 = vmatmul.mubr.bf16.gmra.mrb[0].mxu0 %v975
      %v1104 = vpop.f32.mrb[0].mxu0
      %v1105 = vadd.f32 0.0, %v1104
      %v1106 = vpop.f32.mrb[0].mxu0
      %v1107 = vpop.f32.mrb[0].mxu0
      %v1108 = vadd.f32 0.0, %v1107
      %v1109 = vpop.f32.mrb[0].mxu0
      %1110 = vmatprep.mubr.bf16.mxu0 0
      %1111 = vmatmul.mubr.bf16.gmra.mrb[0].mxu0 %v978
      %v1112 = vpop.f32.mrb[0].mxu0
      %v1113 = vadd.f32 0.0, %v1112
      %v1114 = vpop.f32.mrb[0].mxu0
      %v1115 = vpop.f32.mrb[0].mxu0
      %v1116 = vadd.f32 0.0, %v1115
      %v1117 = vpop.f32.mrb[0].mxu0
      %1118 = vmatprep.mubr.bf16.mxu0 0
      %1119 = vmatmul.mubr.bf16.gmra.mrb[0].mxu0 %v981
      %v1120 = vpop.f32.mrb[0].mxu0
      %v1121 = vadd.f32 0.0, %v1120
      %v1122 = vpop.f32.mrb[0].mxu0
      %v1123 = vpop.f32.mrb[0].mxu0
      %v1124 = vadd.f32 0.0, %v1123
      %v1125 = vpop.f32.mrb[0].mxu0
      %1126 = vmatprep.mubr.bf16.mxu0 0
      %1127 = vmatmul.mubr.bf16.gmra.mrb[0].mxu0 %v984
      %v1128 = vpop.f32.mrb[0].mxu0
      %v1129 = vadd.f32 0.0, %v1128
      %v1130 = vpop.f32.mrb[0].mxu0
      %v1131 = vpop.f32.mrb[0].mxu0
      %v1132 = vadd.f32 0.0, %v1131
      %v1133 = vpop.f32.mrb[0].mxu0
      %1134 = vmatprep.mubr.bf16.mxu0 0
      %1135 = vmatmul.mubr.bf16.gmra.mrb[0].mxu0 %v987
      %v1136 = vpop.f32.mrb[0].mxu0
      %v1137 = vadd.f32 0.0, %v1136
      %v1138 = vpop.f32.mrb[0].mxu0
      %v1139 = vpop.f32.mrb[0].mxu0
      %v1140 = vadd.f32 0.0, %v1139
      %v1141 = vpop.f32.mrb[0].mxu0
      %1142 = vmatprep.mubr.bf16.mxu0 0
      %1143 = vmatmul.mubr.bf16.gmra.mrb[0].mxu0 %v990
      %v1144 = vpop.f32.mrb[0].mxu0
      %v1145 = vadd.f32 0.0, %v1144
      %v1146 = vpop.f32.mrb[0].mxu0
      %v1147 = vpop.f32.mrb[0].mxu0
      %v1148 = vadd.f32 0.0, %v1147
      %v1149 = vpop.f32.mrb[0].mxu0
      %1150 = vmatprep.mubr.bf16.mxu0 0
      %1151 = vmatmul.mubr.bf16.gmra.mrb[0].mxu0 %v993
      %v1152 = vpop.f32.mrb[0].mxu0
      %v1153 = vadd.f32 0.0, %v1152
      %v1154 = vpop.f32.mrb[0].mxu0
      %v1155 = vpop.f32.mrb[0].mxu0
      %v1156 = vadd.f32 0.0, %v1155
      %v1157 = vpop.f32.mrb[0].mxu0
      %1158 = vdwg.mxu0
      %v1159 = vadd.f32 %v771, %v1033
      %v1160 = vadd.f32 %v774, %v1036
      %v1161 = vadd.f32 %v779, %v1041
      %v1162 = vadd.f32 %v782, %v1044
      %v1163 = vadd.f32 %v787, %v1049
      %v1164 = vadd.f32 %v790, %v1052
      %v1165 = vadd.f32 %v795, %v1057
      %v1166 = vadd.f32 %v798, %v1060
      %v1167 = vadd.f32 %v803, %v1065
      %v1168 = vadd.f32 %v806, %v1068
      %v1169 = vadd.f32 %v811, %v1073
      %v1170 = vadd.f32 %v814, %v1076
      %v1171 = vadd.f32 %v819, %v1081
      %v1172 = vadd.f32 %v822, %v1084
      %v1173 = vadd.f32 %v827, %v1089
      %v1174 = vadd.f32 %v830, %v1092
      %v1175 = vadd.f32 %v835, %v1097
      %v1176 = vadd.f32 %v838, %v1100
      %v1177 = vadd.f32 %v843, %v1105
      %v1178 = vadd.f32 %v846, %v1108
      %v1179 = vadd.f32 %v851, %v1113
      %v1180 = vadd.f32 %v854, %v1116
      %v1181 = vadd.f32 %v859, %v1121
      %v1182 = vadd.f32 %v862, %v1124
      %v1183 = vadd.f32 %v867, %v1129
      %v1184 = vadd.f32 %v870, %v1132
      %v1185 = vadd.f32 %v875, %v1137
      %v1186 = vadd.f32 %v878, %v1140
      %v1187 = vadd.f32 %v883, %v1145
      %v1188 = vadd.f32 %v886, %v1148
      %v1189 = vadd.f32 %v891, %v1153
      %v1190 = vadd.f32 %v894, %v1156
      %v1191 = vld [vmem:[%s340] sm:$0xff]
      %v1192 = vld [vmem:[%s340 + $0x8] sm:$0xff]
      %v1193 = vld [vmem:[%s340 + $0x18] sm:$0xff]
      %v1194 = vld [vmem:[%s340 + $0x20] sm:$0xff]
      %v1195 = vld [vmem:[%s340 + $0x30] sm:$0xff]
      %v1196 = vld [vmem:[%s340 + $0x38] sm:$0xff]
      %v1197 = vld [vmem:[%s340 + $0x48] sm:$0xff]
      %v1198 = vld [vmem:[%s340 + $0x50] sm:$0xff]
      %v1199 = vld [vmem:[%s340 + $0x60] sm:$0xff]
      %v1200 = vld [vmem:[%s340 + $0x68] sm:$0xff]
      %v1201 = vld [vmem:[%s340 + $0x78] sm:$0xff]
      %v1202 = vld [vmem:[%s340 + $0x80] sm:$0xff]
      %v1203 = vld [vmem:[%s340 + $0x90] sm:$0xff]
      %v1204 = vld [vmem:[%s340 + $0x98] sm:$0xff]
      %v1205 = vld [vmem:[%s340 + $0xa8] sm:$0xff]
      %v1206 = vld [vmem:[%s340 + $0xb0] sm:$0xff]
      %v1207 = vld [vmem:[%s340 + $0xc0] sm:$0xff]
      %v1208 = vld [vmem:[%s340 + $0xc8] sm:$0xff]
      %v1209 = vld [vmem:[%s340 + $0xd8] sm:$0xff]
      %v1210 = vld [vmem:[%s340 + $0xe0] sm:$0xff]
      %v1211 = vld [vmem:[%s340 + $0xf0] sm:$0xff]
      %v1212 = vld [vmem:[%s340 + $0xf8] sm:$0xff]
      %v1213 = vld [vmem:[%s340 + $0x108] sm:$0xff]
      %v1214 = vld [vmem:[%s340 + $0x110] sm:$0xff]
      %v1215 = vld [vmem:[%s340 + $0x120] sm:$0xff]
      %v1216 = vld [vmem:[%s340 + $0x128] sm:$0xff]
      %v1217 = vld [vmem:[%s340 + $0x138] sm:$0xff]
      %v1218 = vld [vmem:[%s340 + $0x140] sm:$0xff]
      %v1219 = vld [vmem:[%s340 + $0x150] sm:$0xff]
      %v1220 = vld [vmem:[%s340 + $0x158] sm:$0xff]
      %v1221 = vld [vmem:[%s340 + $0x168] sm:$0xff]
      %v1222 = vld [vmem:[%s340 + $0x170] sm:$0xff]
      %v1223 = vpack.c.bf16 %v1192, %v1191
      %v1224 = vpack.c.bf16 %v1194, %v1193
      %v1225 = vpack.c.bf16 %v1196, %v1195
      %v1226 = vpack.c.bf16 %v1198, %v1197
      %v1227 = vpack.c.bf16 %v1200, %v1199
      %v1228 = vpack.c.bf16 %v1202, %v1201
      %v1229 = vpack.c.bf16 %v1204, %v1203
      %v1230 = vpack.c.bf16 %v1206, %v1205
      %v1231 = vpack.c.bf16 %v1208, %v1207
      %v1232 = vpack.c.bf16 %v1210, %v1209
      %v1233 = vpack.c.bf16 %v1212, %v1211
      %v1234 = vpack.c.bf16 %v1214, %v1213
      %v1235 = vpack.c.bf16 %v1216, %v1215
      %v1236 = vpack.c.bf16 %v1218, %v1217
      %v1237 = vpack.c.bf16 %v1220, %v1219
      %v1238 = vpack.c.bf16 %v1222, %v1221
      %s1239 = scalar_lea.vmem %s1, 6
      %v1240 = vld [vmem:[%s1239] sm:$0x3]
      %v1242 = vsel %vm220, %v1223, 0
      %v1245 = vsel %vm220, %v1224, 0
      %v1248 = vsel %vm220, %v1225, 0
      %v1251 = vsel %vm220, %v1226, 0
      %v1254 = vsel %vm220, %v1227, 0
      %v1257 = vsel %vm220, %v1228, 0
      %v1260 = vsel %vm220, %v1229, 0
      %v1263 = vsel %vm220, %v1230, 0
      %v1266 = vsel %vm220, %v1231, 0
      %v1269 = vsel %vm220, %v1232, 0
      %v1272 = vsel %vm220, %v1233, 0
      %v1275 = vsel %vm220, %v1234, 0
      %v1278 = vsel %vm220, %v1235, 0
      %v1281 = vsel %vm220, %v1236, 0
      %v1284 = vsel %vm220, %v1237, 0
      %v1287 = vsel %vm220, %v1238, 0
      %v1290 = vsel %vm520, %v1240, 0
      %1292 = vmatprep.subr.bf16.mxu0 0
      %1293 = vmatpush1.bf16.msra.mxu0 %v1290
      %1294 = vmatprep.subr.bf16.mxu0 0
      %1295 = vmatpush1.bf16.msra.mxu0 0
      %1296 = vmatprep.subr.bf16.mxu0 0
      %1297 = vmatpush1.bf16.msra.mxu0 0
      %1298 = vmatprep.subr.bf16.mxu0 0
      %1299 = vmatpush1.bf16.msra.mxu0 0
      %1300 = vmatprep.subr.bf16.mxu0 0
      %1301 = vmatpush1.bf16.msra.mxu0 0
      %1302 = vmatprep.subr.bf16.mxu0 0
      %1303 = vmatpush1.bf16.msra.mxu0 0
      %1304 = vmatprep.subr.bf16.mxu0 0
      %1305 = vmatpush1.bf16.msra.mxu0 0
      %1306 = vmatprep.subr.bf16.mxu0 0
      %1307 = vmatpush1.bf16.msra.mxu0 0
      %1308 = vmatprep.subr.bf16.mxu0 0
      %1309 = vmatpush1.bf16.msra.mxu0 0
      %1310 = vmatprep.subr.bf16.mxu0 0
      %1311 = vmatpush1.bf16.msra.mxu0 0
      %1312 = vmatprep.subr.bf16.mxu0 0
      %1313 = vmatpush1.bf16.msra.mxu0 0
      %1314 = vmatprep.subr.bf16.mxu0 0
      %1315 = vmatpush1.bf16.msra.mxu0 0
      %1316 = vmatprep.subr.bf16.mxu0 0
      %1317 = vmatpush1.bf16.msra.mxu0 0
      %1318 = vmatprep.subr.bf16.mxu0 0
      %1319 = vmatpush1.bf16.msra.mxu0 0
      %1320 = vmatprep.subr.bf16.mxu0 0
      %1321 = vmatpush1.bf16.msra.mxu0 0
      %1322 = vmatprep.subr.bf16.mxu0 0
      %1323 = vmatpush1.bf16.msra.mxu0 0
      %1324 = vmatprep.mubr.bf16.mxu0 0
      %1325 = vmatmul.mubr.bf16.gmra.mrb[0].mxu0 %v1242
      %v1326 = vpop.f32.mrb[0].mxu0
      %v1327 = vadd.f32 0.0, %v1326
      %v1328 = vpop.f32.mrb[0].mxu0
      %v1329 = vpop.f32.mrb[0].mxu0
      %v1330 = vadd.f32 0.0, %v1329
      %v1331 = vpop.f32.mrb[0].mxu0
      %1332 = vmatprep.mubr.bf16.mxu0 0
      %1333 = vmatmul.mubr.bf16.gmra.mrb[0].mxu0 %v1245
      %v1334 = vpop.f32.mrb[0].mxu0
      %v1335 = vadd.f32 0.0, %v1334
      %v1336 = vpop.f32.mrb[0].mxu0
      %v1337 = vpop.f32.mrb[0].mxu0
      %v1338 = vadd.f32 0.0, %v1337
      %v1339 = vpop.f32.mrb[0].mxu0
      %1340 = vmatprep.mubr.bf16.mxu0 0
      %1341 = vmatmul.mubr.bf16.gmra.mrb[0].mxu0 %v1248
      %v1342 = vpop.f32.mrb[0].mxu0
      %v1343 = vadd.f32 0.0, %v1342
      %v1344 = vpop.f32.mrb[0].mxu0
      %v1345 = vpop.f32.mrb[0].mxu0
      %v1346 = vadd.f32 0.0, %v1345
      %v1347 = vpop.f32.mrb[0].mxu0
      %1348 = vmatprep.mubr.bf16.mxu0 0
      %1349 = vmatmul.mubr.bf16.gmra.mrb[0].mxu0 %v1251
      %v1350 = vpop.f32.mrb[0].mxu0
      %v1351 = vadd.f32 0.0, %v1350
      %v1352 = vpop.f32.mrb[0].mxu0
      %v1353 = vpop.f32.mrb[0].mxu0
      %v1354 = vadd.f32 0.0, %v1353
      %v1355 = vpop.f32.mrb[0].mxu0
      %1356 = vmatprep.mubr.bf16.mxu0 0
      %1357 = vmatmul.mubr.bf16.gmra.mrb[0].mxu0 %v1254
      %v1358 = vpop.f32.mrb[0].mxu0
      %v1359 = vadd.f32 0.0, %v1358
      %v1360 = vpop.f32.mrb[0].mxu0
      %v1361 = vpop.f32.mrb[0].mxu0
      %v1362 = vadd.f32 0.0, %v1361
      %v1363 = vpop.f32.mrb[0].mxu0
      %1364 = vmatprep.mubr.bf16.mxu0 0
      %1365 = vmatmul.mubr.bf16.gmra.mrb[0].mxu0 %v1257
      %v1366 = vpop.f32.mrb[0].mxu0
      %v1367 = vadd.f32 0.0, %v1366
      %v1368 = vpop.f32.mrb[0].mxu0
      %v1369 = vpop.f32.mrb[0].mxu0
      %v1370 = vadd.f32 0.0, %v1369
      %v1371 = vpop.f32.mrb[0].mxu0
      %1372 = vmatprep.mubr.bf16.mxu0 0
      %1373 = vmatmul.mubr.bf16.gmra.mrb[0].mxu0 %v1260
      %v1374 = vpop.f32.mrb[0].mxu0
      %v1375 = vadd.f32 0.0, %v1374
      %v1376 = vpop.f32.mrb[0].mxu0
      %v1377 = vpop.f32.mrb[0].mxu0
      %v1378 = vadd.f32 0.0, %v1377
      %v1379 = vpop.f32.mrb[0].mxu0
      %1380 = vmatprep.mubr.bf16.mxu0 0
      %1381 = vmatmul.mubr.bf16.gmra.mrb[0].mxu0 %v1263
      %v1382 = vpop.f32.mrb[0].mxu0
      %v1383 = vadd.f32 0.0, %v1382
      %v1384 = vpop.f32.mrb[0].mxu0
      %v1385 = vpop.f32.mrb[0].mxu0
      %v1386 = vadd.f32 0.0, %v1385
      %v1387 = vpop.f32.mrb[0].mxu0
      %1388 = vmatprep.mubr.bf16.mxu0 0
      %1389 = vmatmul.mubr.bf16.gmra.mrb[0].mxu0 %v1266
      %v1390 = vpop.f32.mrb[0].mxu0
      %v1391 = vadd.f32 0.0, %v1390
      %v1392 = vpop.f32.mrb[0].mxu0
      %v1393 = vpop.f32.mrb[0].mxu0
      %v1394 = vadd.f32 0.0, %v1393
      %v1395 = vpop.f32.mrb[0].mxu0
      %1396 = vmatprep.mubr.bf16.mxu0 0
      %1397 = vmatmul.mubr.bf16.gmra.mrb[0].mxu0 %v1269
      %v1398 = vpop.f32.mrb[0].mxu0
      %v1399 = vadd.f32 0.0, %v1398
      %v1400 = vpop.f32.mrb[0].mxu0
      %v1401 = vpop.f32.mrb[0].mxu0
      %v1402 = vadd.f32 0.0, %v1401
      %v1403 = vpop.f32.mrb[0].mxu0
      %1404 = vmatprep.mubr.bf16.mxu0 0
      %1405 = vmatmul.mubr.bf16.gmra.mrb[0].mxu0 %v1272
      %v1406 = vpop.f32.mrb[0].mxu0
      %v1407 = vadd.f32 0.0, %v1406
      %v1408 = vpop.f32.mrb[0].mxu0
      %v1409 = vpop.f32.mrb[0].mxu0
      %v1410 = vadd.f32 0.0, %v1409
      %v1411 = vpop.f32.mrb[0].mxu0
      %1412 = vmatprep.mubr.bf16.mxu0 0
      %1413 = vmatmul.mubr.bf16.gmra.mrb[0].mxu0 %v1275
      %v1414 = vpop.f32.mrb[0].mxu0
      %v1415 = vadd.f32 0.0, %v1414
      %v1416 = vpop.f32.mrb[0].mxu0
      %v1417 = vpop.f32.mrb[0].mxu0
      %v1418 = vadd.f32 0.0, %v1417
      %v1419 = vpop.f32.mrb[0].mxu0
      %1420 = vmatprep.mubr.bf16.mxu0 0
      %1421 = vmatmul.mubr.bf16.gmra.mrb[0].mxu0 %v1278
      %v1422 = vpop.f32.mrb[0].mxu0
      %v1423 = vadd.f32 0.0, %v1422
      %v1424 = vpop.f32.mrb[0].mxu0
      %v1425 = vpop.f32.mrb[0].mxu0
      %v1426 = vadd.f32 0.0, %v1425
      %v1427 = vpop.f32.mrb[0].mxu0
      %1428 = vmatprep.mubr.bf16.mxu0 0
      %1429 = vmatmul.mubr.bf16.gmra.mrb[0].mxu0 %v1281
      %v1430 = vpop.f32.mrb[0].mxu0
      %v1431 = vadd.f32 0.0, %v1430
      %v1432 = vpop.f32.mrb[0].mxu0
      %v1433 = vpop.f32.mrb[0].mxu0
      %v1434 = vadd.f32 0.0, %v1433
      %v1435 = vpop.f32.mrb[0].mxu0
      %1436 = vmatprep.mubr.bf16.mxu0 0
      %1437 = vmatmul.mubr.bf16.gmra.mrb[0].mxu0 %v1284
      %v1438 = vpop.f32.mrb[0].mxu0
      %v1439 = vadd.f32 0.0, %v1438
      %v1440 = vpop.f32.mrb[0].mxu0
      %v1441 = vpop.f32.mrb[0].mxu0
      %v1442 = vadd.f32 0.0, %v1441
      %v1443 = vpop.f32.mrb[0].mxu0
      %1444 = vmatprep.mubr.bf16.mxu0 0
      %1445 = vmatmul.mubr.bf16.gmra.mrb[0].mxu0 %v1287
      %v1446 = vpop.f32.mrb[0].mxu0
      %v1447 = vadd.f32 0.0, %v1446
      %v1448 = vpop.f32.mrb[0].mxu0
      %v1449 = vpop.f32.mrb[0].mxu0
      %v1450 = vadd.f32 0.0, %v1449
      %v1451 = vpop.f32.mrb[0].mxu0
      %1452 = vdwg.mxu0
      %v1453 = vadd.f32 %v1159, %v1327
      %v1454 = vadd.f32 %v1160, %v1330
      %v1455 = vadd.f32 %v1161, %v1335
      %v1456 = vadd.f32 %v1162, %v1338
      %v1457 = vadd.f32 %v1163, %v1343
      %v1458 = vadd.f32 %v1164, %v1346
      %v1459 = vadd.f32 %v1165, %v1351
      %v1460 = vadd.f32 %v1166, %v1354
      %v1461 = vadd.f32 %v1167, %v1359
      %v1462 = vadd.f32 %v1168, %v1362
      %v1463 = vadd.f32 %v1169, %v1367
      %v1464 = vadd.f32 %v1170, %v1370
      %v1465 = vadd.f32 %v1171, %v1375
      %v1466 = vadd.f32 %v1172, %v1378
      %v1467 = vadd.f32 %v1173, %v1383
      %v1468 = vadd.f32 %v1174, %v1386
      %v1469 = vadd.f32 %v1175, %v1391
      %v1470 = vadd.f32 %v1176, %v1394
      %v1471 = vadd.f32 %v1177, %v1399
      %v1472 = vadd.f32 %v1178, %v1402
      %v1473 = vadd.f32 %v1179, %v1407
      %v1474 = vadd.f32 %v1180, %v1410
      %v1475 = vadd.f32 %v1181, %v1415
      %v1476 = vadd.f32 %v1182, %v1418
      %v1477 = vadd.f32 %v1183, %v1423
      %v1478 = vadd.f32 %v1184, %v1426
      %v1479 = vadd.f32 %v1185, %v1431
      %v1480 = vadd.f32 %v1186, %v1434
      %v1481 = vadd.f32 %v1187, %v1439
      %v1482 = vadd.f32 %v1188, %v1442
      %v1483 = vadd.f32 %v1189, %v1447
      %v1484 = vadd.f32 %v1190, %v1450
      %v1485 = vld [vmem:[%s340 + $0x1] sm:$0xff]
      %v1486 = vld [vmem:[%s340 + $0x9] sm:$0xff]
      %v1487 = vld [vmem:[%s340 + $0x19] sm:$0xff]
      %v1488 = vld [vmem:[%s340 + $0x21] sm:$0xff]
      %v1489 = vld [vmem:[%s340 + $0x31] sm:$0xff]
      %v1490 = vld [vmem:[%s340 + $0x39] sm:$0xff]
      %v1491 = vld [vmem:[%s340 + $0x49] sm:$0xff]
      %v1492 = vld [vmem:[%s340 + $0x51] sm:$0xff]
      %v1493 = vld [vmem:[%s340 + $0x61] sm:$0xff]
      %v1494 = vld [vmem:[%s340 + $0x69] sm:$0xff]
      %v1495 = vld [vmem:[%s340 + $0x79] sm:$0xff]
      %v1496 = vld [vmem:[%s340 + $0x81] sm:$0xff]
      %v1497 = vld [vmem:[%s340 + $0x91] sm:$0xff]
      %v1498 = vld [vmem:[%s340 + $0x99] sm:$0xff]
      %v1499 = vld [vmem:[%s340 + $0xa9] sm:$0xff]
      %v1500 = vld [vmem:[%s340 + $0xb1] sm:$0xff]
      %v1501 = vld [vmem:[%s340 + $0xc1] sm:$0xff]
      %v1502 = vld [vmem:[%s340 + $0xc9] sm:$0xff]
      %v1503 = vld [vmem:[%s340 + $0xd9] sm:$0xff]
      %v1504 = vld [vmem:[%s340 + $0xe1] sm:$0xff]
      %v1505 = vld [vmem:[%s340 + $0xf1] sm:$0xff]
      %v1506 = vld [vmem:[%s340 + $0xf9] sm:$0xff]
      %v1507 = vld [vmem:[%s340 + $0x109] sm:$0xff]
      %v1508 = vld [vmem:[%s340 + $0x111] sm:$0xff]
      %v1509 = vld [vmem:[%s340 + $0x121] sm:$0xff]
      %v1510 = vld [vmem:[%s340 + $0x129] sm:$0xff]
      %v1511 = vld [vmem:[%s340 + $0x139] sm:$0xff]
      %v1512 = vld [vmem:[%s340 + $0x141] sm:$0xff]
      %v1513 = vld [vmem:[%s340 + $0x151] sm:$0xff]
      %v1514 = vld [vmem:[%s340 + $0x159] sm:$0xff]
      %v1515 = vld [vmem:[%s340 + $0x169] sm:$0xff]
      %v1516 = vld [vmem:[%s340 + $0x171] sm:$0xff]
      %v1517 = vpack.c.bf16 %v1486, %v1485
      %v1518 = vpack.c.bf16 %v1488, %v1487
      %v1519 = vpack.c.bf16 %v1490, %v1489
      %v1520 = vpack.c.bf16 %v1492, %v1491
      %v1521 = vpack.c.bf16 %v1494, %v1493
      %v1522 = vpack.c.bf16 %v1496, %v1495
      %v1523 = vpack.c.bf16 %v1498, %v1497
      %v1524 = vpack.c.bf16 %v1500, %v1499
      %v1525 = vpack.c.bf16 %v1502, %v1501
      %v1526 = vpack.c.bf16 %v1504, %v1503
      %v1527 = vpack.c.bf16 %v1506, %v1505
      %v1528 = vpack.c.bf16 %v1508, %v1507
      %v1529 = vpack.c.bf16 %v1510, %v1509
      %v1530 = vpack.c.bf16 %v1512, %v1511
      %v1531 = vpack.c.bf16 %v1514, %v1513
      %v1532 = vpack.c.bf16 %v1516, %v1515
      %s1533 = scalar_lea.vmem %s1, 8
      %v1534 = vld [vmem:[%s1533] sm:$0x3]
      %v1536 = vsel %vm220, %v1517, 0
      %v1539 = vsel %vm220, %v1518, 0
      %v1542 = vsel %vm220, %v1519, 0
      %v1545 = vsel %vm220, %v1520, 0
      %v1548 = vsel %vm220, %v1521, 0
      %v1551 = vsel %vm220, %v1522, 0
      %v1554 = vsel %vm220, %v1523, 0
      %v1557 = vsel %vm220, %v1524, 0
      %v1560 = vsel %vm220, %v1525, 0
      %v1563 = vsel %vm220, %v1526, 0
      %v1566 = vsel %vm220, %v1527, 0
      %v1569 = vsel %vm220, %v1528, 0
      %v1572 = vsel %vm220, %v1529, 0
      %v1575 = vsel %vm220, %v1530, 0
      %v1578 = vsel %vm220, %v1531, 0
      %v1581 = vsel %vm220, %v1532, 0
      %v1584 = vsel %vm520, %v1534, 0
      %1586 = vmatprep.subr.bf16.mxu0 0
      %1587 = vmatpush1.bf16.msra.mxu0 %v1584
      %1588 = vmatprep.subr.bf16.mxu0 0
      %1589 = vmatpush1.bf16.msra.mxu0 0
      %1590 = vmatprep.subr.bf16.mxu0 0
      %1591 = vmatpush1.bf16.msra.mxu0 0
      %1592 = vmatprep.subr.bf16.mxu0 0
      %1593 = vmatpush1.bf16.msra.mxu0 0
      %1594 = vmatprep.subr.bf16.mxu0 0
      %1595 = vmatpush1.bf16.msra.mxu0 0
      %1596 = vmatprep.subr.bf16.mxu0 0
      %1597 = vmatpush1.bf16.msra.mxu0 0
      %1598 = vmatprep.subr.bf16.mxu0 0
      %1599 = vmatpush1.bf16.msra.mxu0 0
      %1600 = vmatprep.subr.bf16.mxu0 0
      %1601 = vmatpush1.bf16.msra.mxu0 0
      %1602 = vmatprep.subr.bf16.mxu0 0
      %1603 = vmatpush1.bf16.msra.mxu0 0
      %1604 = vmatprep.subr.bf16.mxu0 0
      %1605 = vmatpush1.bf16.msra.mxu0 0
      %1606 = vmatprep.subr.bf16.mxu0 0
      %1607 = vmatpush1.bf16.msra.mxu0 0
      %1608 = vmatprep.subr.bf16.mxu0 0
      %1609 = vmatpush1.bf16.msra.mxu0 0
      %1610 = vmatprep.subr.bf16.mxu0 0
      %1611 = vmatpush1.bf16.msra.mxu0 0
      %1612 = vmatprep.subr.bf16.mxu0 0
      %1613 = vmatpush1.bf16.msra.mxu0 0
      %1614 = vmatprep.subr.bf16.mxu0 0
      %1615 = vmatpush1.bf16.msra.mxu0 0
      %1616 = vmatprep.subr.bf16.mxu0 0
      %1617 = vmatpush1.bf16.msra.mxu0 0
      %1618 = vmatprep.mubr.bf16.mxu0 0
      %1619 = vmatmul.mubr.bf16.gmra.mrb[0].mxu0 %v1536
      %v1620 = vpop.f32.mrb[0].mxu0
      %v1621 = vadd.f32 0.0, %v1620
      %v1622 = vpop.f32.mrb[0].mxu0
      %v1623 = vpop.f32.mrb[0].mxu0
      %v1624 = vadd.f32 0.0, %v1623
      %v1625 = vpop.f32.mrb[0].mxu0
      %1626 = vmatprep.mubr.bf16.mxu0 0
      %1627 = vmatmul.mubr.bf16.gmra.mrb[0].mxu0 %v1539
      %v1628 = vpop.f32.mrb[0].mxu0
      %v1629 = vadd.f32 0.0, %v1628
      %v1630 = vpop.f32.mrb[0].mxu0
      %v1631 = vpop.f32.mrb[0].mxu0
      %v1632 = vadd.f32 0.0, %v1631
      %v1633 = vpop.f32.mrb[0].mxu0
      %1634 = vmatprep.mubr.bf16.mxu0 0
      %1635 = vmatmul.mubr.bf16.gmra.mrb[0].mxu0 %v1542
      %v1636 = vpop.f32.mrb[0].mxu0
      %v1637 = vadd.f32 0.0, %v1636
      %v1638 = vpop.f32.mrb[0].mxu0
      %v1639 = vpop.f32.mrb[0].mxu0
      %v1640 = vadd.f32 0.0, %v1639
      %v1641 = vpop.f32.mrb[0].mxu0
      %1642 = vmatprep.mubr.bf16.mxu0 0
      %1643 = vmatmul.mubr.bf16.gmra.mrb[0].mxu0 %v1545
      %v1644 = vpop.f32.mrb[0].mxu0
      %v1645 = vadd.f32 0.0, %v1644
      %v1646 = vpop.f32.mrb[0].mxu0
      %v1647 = vpop.f32.mrb[0].mxu0
      %v1648 = vadd.f32 0.0, %v1647
      %v1649 = vpop.f32.mrb[0].mxu0
      %1650 = vmatprep.mubr.bf16.mxu0 0
      %1651 = vmatmul.mubr.bf16.gmra.mrb[0].mxu0 %v1548
      %v1652 = vpop.f32.mrb[0].mxu0
      %v1653 = vadd.f32 0.0, %v1652
      %v1654 = vpop.f32.mrb[0].mxu0
      %v1655 = vpop.f32.mrb[0].mxu0
      %v1656 = vadd.f32 0.0, %v1655
      %v1657 = vpop.f32.mrb[0].mxu0
      %1658 = vmatprep.mubr.bf16.mxu0 0
      %1659 = vmatmul.mubr.bf16.gmra.mrb[0].mxu0 %v1551
      %v1660 = vpop.f32.mrb[0].mxu0
      %v1661 = vadd.f32 0.0, %v1660
      %v1662 = vpop.f32.mrb[0].mxu0
      %v1663 = vpop.f32.mrb[0].mxu0
      %v1664 = vadd.f32 0.0, %v1663
      %v1665 = vpop.f32.mrb[0].mxu0
      %1666 = vmatprep.mubr.bf16.mxu0 0
      %1667 = vmatmul.mubr.bf16.gmra.mrb[0].mxu0 %v1554
      %v1668 = vpop.f32.mrb[0].mxu0
      %v1669 = vadd.f32 0.0, %v1668
      %v1670 = vpop.f32.mrb[0].mxu0
      %v1671 = vpop.f32.mrb[0].mxu0
      %v1672 = vadd.f32 0.0, %v1671
      %v1673 = vpop.f32.mrb[0].mxu0
      %1674 = vmatprep.mubr.bf16.mxu0 0
      %1675 = vmatmul.mubr.bf16.gmra.mrb[0].mxu0 %v1557
      %v1676 = vpop.f32.mrb[0].mxu0
      %v1677 = vadd.f32 0.0, %v1676
      %v1678 = vpop.f32.mrb[0].mxu0
      %v1679 = vpop.f32.mrb[0].mxu0
      %v1680 = vadd.f32 0.0, %v1679
      %v1681 = vpop.f32.mrb[0].mxu0
      %1682 = vmatprep.mubr.bf16.mxu0 0
      %1683 = vmatmul.mubr.bf16.gmra.mrb[0].mxu0 %v1560
      %v1684 = vpop.f32.mrb[0].mxu0
      %v1685 = vadd.f32 0.0, %v1684
      %v1686 = vpop.f32.mrb[0].mxu0
      %v1687 = vpop.f32.mrb[0].mxu0
      %v1688 = vadd.f32 0.0, %v1687
      %v1689 = vpop.f32.mrb[0].mxu0
      %1690 = vmatprep.mubr.bf16.mxu0 0
      %1691 = vmatmul.mubr.bf16.gmra.mrb[0].mxu0 %v1563
      %v1692 = vpop.f32.mrb[0].mxu0
      %v1693 = vadd.f32 0.0, %v1692
      %v1694 = vpop.f32.mrb[0].mxu0
      %v1695 = vpop.f32.mrb[0].mxu0
      %v1696 = vadd.f32 0.0, %v1695
      %v1697 = vpop.f32.mrb[0].mxu0
      %1698 = vmatprep.mubr.bf16.mxu0 0
      %1699 = vmatmul.mubr.bf16.gmra.mrb[0].mxu0 %v1566
      %v1700 = vpop.f32.mrb[0].mxu0
      %v1701 = vadd.f32 0.0, %v1700
      %v1702 = vpop.f32.mrb[0].mxu0
      %v1703 = vpop.f32.mrb[0].mxu0
      %v1704 = vadd.f32 0.0, %v1703
      %v1705 = vpop.f32.mrb[0].mxu0
      %1706 = vmatprep.mubr.bf16.mxu0 0
      %1707 = vmatmul.mubr.bf16.gmra.mrb[0].mxu0 %v1569
      %v1708 = vpop.f32.mrb[0].mxu0
      %v1709 = vadd.f32 0.0, %v1708
      %v1710 = vpop.f32.mrb[0].mxu0
      %v1711 = vpop.f32.mrb[0].mxu0
      %v1712 = vadd.f32 0.0, %v1711
      %v1713 = vpop.f32.mrb[0].mxu0
      %1714 = vmatprep.mubr.bf16.mxu0 0
      %1715 = vmatmul.mubr.bf16.gmra.mrb[0].mxu0 %v1572
      %v1716 = vpop.f32.mrb[0].mxu0
      %v1717 = vadd.f32 0.0, %v1716
      %v1718 = vpop.f32.mrb[0].mxu0
      %v1719 = vpop.f32.mrb[0].mxu0
      %v1720 = vadd.f32 0.0, %v1719
      %v1721 = vpop.f32.mrb[0].mxu0
      %1722 = vmatprep.mubr.bf16.mxu0 0
      %1723 = vmatmul.mubr.bf16.gmra.mrb[0].mxu0 %v1575
      %v1724 = vpop.f32.mrb[0].mxu0
      %v1725 = vadd.f32 0.0, %v1724
      %v1726 = vpop.f32.mrb[0].mxu0
      %v1727 = vpop.f32.mrb[0].mxu0
      %v1728 = vadd.f32 0.0, %v1727
      %v1729 = vpop.f32.mrb[0].mxu0
      %1730 = vmatprep.mubr.bf16.mxu0 0
      %1731 = vmatmul.mubr.bf16.gmra.mrb[0].mxu0 %v1578
      %v1732 = vpop.f32.mrb[0].mxu0
      %v1733 = vadd.f32 0.0, %v1732
      %v1734 = vpop.f32.mrb[0].mxu0
      %v1735 = vpop.f32.mrb[0].mxu0
      %v1736 = vadd.f32 0.0, %v1735
      %v1737 = vpop.f32.mrb[0].mxu0
      %1738 = vmatprep.mubr.bf16.mxu0 0
      %1739 = vmatmul.mubr.bf16.gmra.mrb[0].mxu0 %v1581
      %v1740 = vpop.f32.mrb[0].mxu0
      %v1741 = vadd.f32 0.0, %v1740
      %v1742 = vpop.f32.mrb[0].mxu0
      %v1743 = vpop.f32.mrb[0].mxu0
      %v1744 = vadd.f32 0.0, %v1743
      %v1745 = vpop.f32.mrb[0].mxu0
      %1746 = vdwg.mxu0
      %v1747 = vadd.f32 %v1453, %v1621
      %v1748 = vadd.f32 %v1454, %v1624
      %v1749 = vadd.f32 %v1455, %v1629
      %v1750 = vadd.f32 %v1456, %v1632
      %v1751 = vadd.f32 %v1457, %v1637
      %v1752 = vadd.f32 %v1458, %v1640
      %v1753 = vadd.f32 %v1459, %v1645
      %v1754 = vadd.f32 %v1460, %v1648
      %v1755 = vadd.f32 %v1461, %v1653
      %v1756 = vadd.f32 %v1462, %v1656
      %v1757 = vadd.f32 %v1463, %v1661
      %v1758 = vadd.f32 %v1464, %v1664
      %v1759 = vadd.f32 %v1465, %v1669
      %v1760 = vadd.f32 %v1466, %v1672
      %v1761 = vadd.f32 %v1467, %v1677
      %v1762 = vadd.f32 %v1468, %v1680
      %v1763 = vadd.f32 %v1469, %v1685
      %v1764 = vadd.f32 %v1470, %v1688
      %v1765 = vadd.f32 %v1471, %v1693
      %v1766 = vadd.f32 %v1472, %v1696
      %v1767 = vadd.f32 %v1473, %v1701
      %v1768 = vadd.f32 %v1474, %v1704
      %v1769 = vadd.f32 %v1475, %v1709
      %v1770 = vadd.f32 %v1476, %v1712
      %v1771 = vadd.f32 %v1477, %v1717
      %v1772 = vadd.f32 %v1478, %v1720
      %v1773 = vadd.f32 %v1479, %v1725
      %v1774 = vadd.f32 %v1480, %v1728
      %v1775 = vadd.f32 %v1481, %v1733
      %v1776 = vadd.f32 %v1482, %v1736
      %v1777 = vadd.f32 %v1483, %v1741
      %v1778 = vadd.f32 %v1484, %v1744
      %v1779 = vld [vmem:[%s340 + $0x2] sm:$0xff]
      %v1780 = vld [vmem:[%s340 + $0xa] sm:$0xff]
      %v1781 = vld [vmem:[%s340 + $0x1a] sm:$0xff]
      %v1782 = vld [vmem:[%s340 + $0x22] sm:$0xff]
      %v1783 = vld [vmem:[%s340 + $0x32] sm:$0xff]
      %v1784 = vld [vmem:[%s340 + $0x3a] sm:$0xff]
      %v1785 = vld [vmem:[%s340 + $0x4a] sm:$0xff]
      %v1786 = vld [vmem:[%s340 + $0x52] sm:$0xff]
      %v1787 = vld [vmem:[%s340 + $0x62] sm:$0xff]
      %v1788 = vld [vmem:[%s340 + $0x6a] sm:$0xff]
      %v1789 = vld [vmem:[%s340 + $0x7a] sm:$0xff]
      %v1790 = vld [vmem:[%s340 + $0x82] sm:$0xff]
      %v1791 = vld [vmem:[%s340 + $0x92] sm:$0xff]
      %v1792 = vld [vmem:[%s340 + $0x9a] sm:$0xff]
      %v1793 = vld [vmem:[%s340 + $0xaa] sm:$0xff]
      %v1794 = vld [vmem:[%s340 + $0xb2] sm:$0xff]
      %v1795 = vld [vmem:[%s340 + $0xc2] sm:$0xff]
      %v1796 = vld [vmem:[%s340 + $0xca] sm:$0xff]
      %v1797 = vld [vmem:[%s340 + $0xda] sm:$0xff]
      %v1798 = vld [vmem:[%s340 + $0xe2] sm:$0xff]
      %v1799 = vld [vmem:[%s340 + $0xf2] sm:$0xff]
      %v1800 = vld [vmem:[%s340 + $0xfa] sm:$0xff]
      %v1801 = vld [vmem:[%s340 + $0x10a] sm:$0xff]
      %v1802 = vld [vmem:[%s340 + $0x112] sm:$0xff]
      %v1803 = vld [vmem:[%s340 + $0x122] sm:$0xff]
      %v1804 = vld [vmem:[%s340 + $0x12a] sm:$0xff]
      %v1805 = vld [vmem:[%s340 + $0x13a] sm:$0xff]
      %v1806 = vld [vmem:[%s340 + $0x142] sm:$0xff]
      %v1807 = vld [vmem:[%s340 + $0x152] sm:$0xff]
      %v1808 = vld [vmem:[%s340 + $0x15a] sm:$0xff]
      %v1809 = vld [vmem:[%s340 + $0x16a] sm:$0xff]
      %v1810 = vld [vmem:[%s340 + $0x172] sm:$0xff]
      %v1811 = vpack.c.bf16 %v1780, %v1779
      %v1812 = vpack.c.bf16 %v1782, %v1781
      %v1813 = vpack.c.bf16 %v1784, %v1783
      %v1814 = vpack.c.bf16 %v1786, %v1785
      %v1815 = vpack.c.bf16 %v1788, %v1787
      %v1816 = vpack.c.bf16 %v1790, %v1789
      %v1817 = vpack.c.bf16 %v1792, %v1791
      %v1818 = vpack.c.bf16 %v1794, %v1793
      %v1819 = vpack.c.bf16 %v1796, %v1795
      %v1820 = vpack.c.bf16 %v1798, %v1797
      %v1821 = vpack.c.bf16 %v1800, %v1799
      %v1822 = vpack.c.bf16 %v1802, %v1801
      %v1823 = vpack.c.bf16 %v1804, %v1803
      %v1824 = vpack.c.bf16 %v1806, %v1805
      %v1825 = vpack.c.bf16 %v1808, %v1807
      %v1826 = vpack.c.bf16 %v1810, %v1809
      %s1827 = scalar_lea.vmem %s1, 10
      %v1828 = vld [vmem:[%s1827] sm:$0x3]
      %v1830 = vsel %vm220, %v1811, 0
      %v1833 = vsel %vm220, %v1812, 0
      %v1836 = vsel %vm220, %v1813, 0
      %v1839 = vsel %vm220, %v1814, 0
      %v1842 = vsel %vm220, %v1815, 0
      %v1845 = vsel %vm220, %v1816, 0
      %v1848 = vsel %vm220, %v1817, 0
      %v1851 = vsel %vm220, %v1818, 0
      %v1854 = vsel %vm220, %v1819, 0
      %v1857 = vsel %vm220, %v1820, 0
      %v1860 = vsel %vm220, %v1821, 0
      %v1863 = vsel %vm220, %v1822, 0
      %v1866 = vsel %vm220, %v1823, 0
      %v1869 = vsel %vm220, %v1824, 0
      %v1872 = vsel %vm220, %v1825, 0
      %v1875 = vsel %vm220, %v1826, 0
      %v1878 = vsel %vm520, %v1828, 0
      %1880 = vmatprep.subr.bf16.mxu0 0
      %1881 = vmatpush1.bf16.msra.mxu0 %v1878
      %1882 = vmatprep.subr.bf16.mxu0 0
      %1883 = vmatpush1.bf16.msra.mxu0 0
      %1884 = vmatprep.subr.bf16.mxu0 0
      %1885 = vmatpush1.bf16.msra.mxu0 0
      %1886 = vmatprep.subr.bf16.mxu0 0
      %1887 = vmatpush1.bf16.msra.mxu0 0
      %1888 = vmatprep.subr.bf16.mxu0 0
      %1889 = vmatpush1.bf16.msra.mxu0 0
      %1890 = vmatprep.subr.bf16.mxu0 0
      %1891 = vmatpush1.bf16.msra.mxu0 0
      %1892 = vmatprep.subr.bf16.mxu0 0
      %1893 = vmatpush1.bf16.msra.mxu0 0
      %1894 = vmatprep.subr.bf16.mxu0 0
      %1895 = vmatpush1.bf16.msra.mxu0 0
      %1896 = vmatprep.subr.bf16.mxu0 0
      %1897 = vmatpush1.bf16.msra.mxu0 0
      %1898 = vmatprep.subr.bf16.mxu0 0
      %1899 = vmatpush1.bf16.msra.mxu0 0
      %1900 = vmatprep.subr.bf16.mxu0 0
      %1901 = vmatpush1.bf16.msra.mxu0 0
      %1902 = vmatprep.subr.bf16.mxu0 0
      %1903 = vmatpush1.bf16.msra.mxu0 0
      %1904 = vmatprep.subr.bf16.mxu0 0
      %1905 = vmatpush1.bf16.msra.mxu0 0
      %1906 = vmatprep.subr.bf16.mxu0 0
      %1907 = vmatpush1.bf16.msra.mxu0 0
      %1908 = vmatprep.subr.bf16.mxu0 0
      %1909 = vmatpush1.bf16.msra.mxu0 0
      %1910 = vmatprep.subr.bf16.mxu0 0
      %1911 = vmatpush1.bf16.msra.mxu0 0
      %1912 = vmatprep.mubr.bf16.mxu0 0
      %1913 = vmatmul.mubr.bf16.gmra.mrb[0].mxu0 %v1830
      %v1914 = vpop.f32.mrb[0].mxu0
      %v1915 = vadd.f32 0.0, %v1914
      %v1916 = vpop.f32.mrb[0].mxu0
      %v1917 = vpop.f32.mrb[0].mxu0
      %v1918 = vadd.f32 0.0, %v1917
      %v1919 = vpop.f32.mrb[0].mxu0
      %1920 = vmatprep.mubr.bf16.mxu0 0
      %1921 = vmatmul.mubr.bf16.gmra.mrb[0].mxu0 %v1833
      %v1922 = vpop.f32.mrb[0].mxu0
      %v1923 = vadd.f32 0.0, %v1922
      %v1924 = vpop.f32.mrb[0].mxu0
      %v1925 = vpop.f32.mrb[0].mxu0
      %v1926 = vadd.f32 0.0, %v1925
      %v1927 = vpop.f32.mrb[0].mxu0
      %1928 = vmatprep.mubr.bf16.mxu0 0
      %1929 = vmatmul.mubr.bf16.gmra.mrb[0].mxu0 %v1836
      %v1930 = vpop.f32.mrb[0].mxu0
      %v1931 = vadd.f32 0.0, %v1930
      %v1932 = vpop.f32.mrb[0].mxu0
      %v1933 = vpop.f32.mrb[0].mxu0
      %v1934 = vadd.f32 0.0, %v1933
      %v1935 = vpop.f32.mrb[0].mxu0
      %1936 = vmatprep.mubr.bf16.mxu0 0
      %1937 = vmatmul.mubr.bf16.gmra.mrb[0].mxu0 %v1839
      %v1938 = vpop.f32.mrb[0].mxu0
      %v1939 = vadd.f32 0.0, %v1938
      %v1940 = vpop.f32.mrb[0].mxu0
      %v1941 = vpop.f32.mrb[0].mxu0
      %v1942 = vadd.f32 0.0, %v1941
      %v1943 = vpop.f32.mrb[0].mxu0
      %1944 = vmatprep.mubr.bf16.mxu0 0
      %1945 = vmatmul.mubr.bf16.gmra.mrb[0].mxu0 %v1842
      %v1946 = vpop.f32.mrb[0].mxu0
      %v1947 = vadd.f32 0.0, %v1946
      %v1948 = vpop.f32.mrb[0].mxu0
      %v1949 = vpop.f32.mrb[0].mxu0
      %v1950 = vadd.f32 0.0, %v1949
      %v1951 = vpop.f32.mrb[0].mxu0
      %1952 = vmatprep.mubr.bf16.mxu0 0
      %1953 = vmatmul.mubr.bf16.gmra.mrb[0].mxu0 %v1845
      %v1954 = vpop.f32.mrb[0].mxu0
      %v1955 = vadd.f32 0.0, %v1954
      %v1956 = vpop.f32.mrb[0].mxu0
      %v1957 = vpop.f32.mrb[0].mxu0
      %v1958 = vadd.f32 0.0, %v1957
      %v1959 = vpop.f32.mrb[0].mxu0
      %1960 = vmatprep.mubr.bf16.mxu0 0
      %1961 = vmatmul.mubr.bf16.gmra.mrb[0].mxu0 %v1848
      %v1962 = vpop.f32.mrb[0].mxu0
      %v1963 = vadd.f32 0.0, %v1962
      %v1964 = vpop.f32.mrb[0].mxu0
      %v1965 = vpop.f32.mrb[0].mxu0
      %v1966 = vadd.f32 0.0, %v1965
      %v1967 = vpop.f32.mrb[0].mxu0
      %1968 = vmatprep.mubr.bf16.mxu0 0
      %1969 = vmatmul.mubr.bf16.gmra.mrb[0].mxu0 %v1851
      %v1970 = vpop.f32.mrb[0].mxu0
      %v1971 = vadd.f32 0.0, %v1970
      %v1972 = vpop.f32.mrb[0].mxu0
      %v1973 = vpop.f32.mrb[0].mxu0
      %v1974 = vadd.f32 0.0, %v1973
      %v1975 = vpop.f32.mrb[0].mxu0
      %1976 = vmatprep.mubr.bf16.mxu0 0
      %1977 = vmatmul.mubr.bf16.gmra.mrb[0].mxu0 %v1854
      %v1978 = vpop.f32.mrb[0].mxu0
      %v1979 = vadd.f32 0.0, %v1978
      %v1980 = vpop.f32.mrb[0].mxu0
      %v1981 = vpop.f32.mrb[0].mxu0
      %v1982 = vadd.f32 0.0, %v1981
      %v1983 = vpop.f32.mrb[0].mxu0
      %1984 = vmatprep.mubr.bf16.mxu0 0
      %1985 = vmatmul.mubr.bf16.gmra.mrb[0].mxu0 %v1857
      %v1986 = vpop.f32.mrb[0].mxu0
      %v1987 = vadd.f32 0.0, %v1986
      %v1988 = vpop.f32.mrb[0].mxu0
      %v1989 = vpop.f32.mrb[0].mxu0
      %v1990 = vadd.f32 0.0, %v1989
      %v1991 = vpop.f32.mrb[0].mxu0
      %1992 = vmatprep.mubr.bf16.mxu0 0
      %1993 = vmatmul.mubr.bf16.gmra.mrb[0].mxu0 %v1860
      %v1994 = vpop.f32.mrb[0].mxu0
      %v1995 = vadd.f32 0.0, %v1994
      %v1996 = vpop.f32.mrb[0].mxu0
      %v1997 = vpop.f32.mrb[0].mxu0
      %v1998 = vadd.f32 0.0, %v1997
      %v1999 = vpop.f32.mrb[0].mxu0
      %2000 = vmatprep.mubr.bf16.mxu0 0
      %2001 = vmatmul.mubr.bf16.gmra.mrb[0].mxu0 %v1863
      %v2002 = vpop.f32.mrb[0].mxu0
      %v2003 = vadd.f32 0.0, %v2002
      %v2004 = vpop.f32.mrb[0].mxu0
      %v2005 = vpop.f32.mrb[0].mxu0
      %v2006 = vadd.f32 0.0, %v2005
      %v2007 = vpop.f32.mrb[0].mxu0
      %2008 = vmatprep.mubr.bf16.mxu0 0
      %2009 = vmatmul.mubr.bf16.gmra.mrb[0].mxu0 %v1866
      %v2010 = vpop.f32.mrb[0].mxu0
      %v2011 = vadd.f32 0.0, %v2010
      %v2012 = vpop.f32.mrb[0].mxu0
      %v2013 = vpop.f32.mrb[0].mxu0
      %v2014 = vadd.f32 0.0, %v2013
      %v2015 = vpop.f32.mrb[0].mxu0
      %2016 = vmatprep.mubr.bf16.mxu0 0
      %2017 = vmatmul.mubr.bf16.gmra.mrb[0].mxu0 %v1869
      %v2018 = vpop.f32.mrb[0].mxu0
      %v2019 = vadd.f32 0.0, %v2018
      %v2020 = vpop.f32.mrb[0].mxu0
      %v2021 = vpop.f32.mrb[0].mxu0
      %v2022 = vadd.f32 0.0, %v2021
      %v2023 = vpop.f32.mrb[0].mxu0
      %2024 = vmatprep.mubr.bf16.mxu0 0
      %2025 = vmatmul.mubr.bf16.gmra.mrb[0].mxu0 %v1872
      %v2026 = vpop.f32.mrb[0].mxu0
      %v2027 = vadd.f32 0.0, %v2026
      %v2028 = vpop.f32.mrb[0].mxu0
      %v2029 = vpop.f32.mrb[0].mxu0
      %v2030 = vadd.f32 0.0, %v2029
      %v2031 = vpop.f32.mrb[0].mxu0
      %2032 = vmatprep.mubr.bf16.mxu0 0
      %2033 = vmatmul.mubr.bf16.gmra.mrb[0].mxu0 %v1875
      %v2034 = vpop.f32.mrb[0].mxu0
      %v2035 = vadd.f32 0.0, %v2034
      %v2036 = vpop.f32.mrb[0].mxu0
      %v2037 = vpop.f32.mrb[0].mxu0
      %v2038 = vadd.f32 0.0, %v2037
      %v2039 = vpop.f32.mrb[0].mxu0
      %2040 = vdwg.mxu0
      %v2041 = vadd.f32 %v1747, %v1915
      %v2042 = vadd.f32 %v1748, %v1918
      %v2043 = vadd.f32 %v1749, %v1923
      %v2044 = vadd.f32 %v1750, %v1926
      %v2045 = vadd.f32 %v1751, %v1931
      %v2046 = vadd.f32 %v1752, %v1934
      %v2047 = vadd.f32 %v1753, %v1939
      %v2048 = vadd.f32 %v1754, %v1942
      %v2049 = vadd.f32 %v1755, %v1947
      %v2050 = vadd.f32 %v1756, %v1950
      %v2051 = vadd.f32 %v1757, %v1955
      %v2052 = vadd.f32 %v1758, %v1958
      %v2053 = vadd.f32 %v1759, %v1963
      %v2054 = vadd.f32 %v1760, %v1966
      %v2055 = vadd.f32 %v1761, %v1971
      %v2056 = vadd.f32 %v1762, %v1974
      %v2057 = vadd.f32 %v1763, %v1979
      %v2058 = vadd.f32 %v1764, %v1982
      %v2059 = vadd.f32 %v1765, %v1987
      %v2060 = vadd.f32 %v1766, %v1990
      %v2061 = vadd.f32 %v1767, %v1995
      %v2062 = vadd.f32 %v1768, %v1998
      %v2063 = vadd.f32 %v1769, %v2003
      %v2064 = vadd.f32 %v1770, %v2006
      %v2065 = vadd.f32 %v1771, %v2011
      %v2066 = vadd.f32 %v1772, %v2014
      %v2067 = vadd.f32 %v1773, %v2019
      %v2068 = vadd.f32 %v1774, %v2022
      %v2069 = vadd.f32 %v1775, %v2027
      %v2070 = vadd.f32 %v1776, %v2030
      %v2071 = vadd.f32 %v1777, %v2035
      %v2072 = vadd.f32 %v1778, %v2038
      %s2073 = scalar_lea.vmem [#allocation2], 48
      %v2074 = vld [vmem:[%s2073] sm:$0xff]
      %v2075 = vld [vmem:[%s2073 + $0x8] sm:$0xff]
      %v2076 = vld [vmem:[%s2073 + $0x18] sm:$0xff]
      %v2077 = vld [vmem:[%s2073 + $0x20] sm:$0xff]
      %v2078 = vld [vmem:[%s2073 + $0x30] sm:$0xff]
      %v2079 = vld [vmem:[%s2073 + $0x38] sm:$0xff]
      %v2080 = vld [vmem:[%s2073 + $0x48] sm:$0xff]
      %v2081 = vld [vmem:[%s2073 + $0x50] sm:$0xff]
      %v2082 = vld [vmem:[%s2073 + $0x60] sm:$0xff]
      %v2083 = vld [vmem:[%s2073 + $0x68] sm:$0xff]
      %v2084 = vld [vmem:[%s2073 + $0x78] sm:$0xff]
      %v2085 = vld [vmem:[%s2073 + $0x80] sm:$0xff]
      %v2086 = vld [vmem:[%s2073 + $0x90] sm:$0xff]
      %v2087 = vld [vmem:[%s2073 + $0x98] sm:$0xff]
      %v2088 = vld [vmem:[%s2073 + $0xa8] sm:$0xff]
      %v2089 = vld [vmem:[%s2073 + $0xb0] sm:$0xff]
      %v2090 = vld [vmem:[%s2073 + $0xc0] sm:$0xff]
      %v2091 = vld [vmem:[%s2073 + $0xc8] sm:$0xff]
      %v2092 = vld [vmem:[%s2073 + $0xd8] sm:$0xff]
      %v2093 = vld [vmem:[%s2073 + $0xe0] sm:$0xff]
      %v2094 = vld [vmem:[%s2073 + $0xf0] sm:$0xff]
      %v2095 = vld [vmem:[%s2073 + $0xf8] sm:$0xff]
      %v2096 = vld [vmem:[%s2073 + $0x108] sm:$0xff]
      %v2097 = vld [vmem:[%s2073 + $0x110] sm:$0xff]
      %v2098 = vld [vmem:[%s2073 + $0x120] sm:$0xff]
      %v2099 = vld [vmem:[%s2073 + $0x128] sm:$0xff]
      %v2100 = vld [vmem:[%s2073 + $0x138] sm:$0xff]
      %v2101 = vld [vmem:[%s2073 + $0x140] sm:$0xff]
      %v2102 = vld [vmem:[%s2073 + $0x150] sm:$0xff]
      %v2103 = vld [vmem:[%s2073 + $0x158] sm:$0xff]
      %v2104 = vld [vmem:[%s2073 + $0x168] sm:$0xff]
      %v2105 = vld [vmem:[%s2073 + $0x170] sm:$0xff]
      %v2106 = vpack.c.bf16 %v2075, %v2074
      %v2107 = vpack.c.bf16 %v2077, %v2076
      %v2108 = vpack.c.bf16 %v2079, %v2078
      %v2109 = vpack.c.bf16 %v2081, %v2080
      %v2110 = vpack.c.bf16 %v2083, %v2082
      %v2111 = vpack.c.bf16 %v2085, %v2084
      %v2112 = vpack.c.bf16 %v2087, %v2086
      %v2113 = vpack.c.bf16 %v2089, %v2088
      %v2114 = vpack.c.bf16 %v2091, %v2090
      %v2115 = vpack.c.bf16 %v2093, %v2092
      %v2116 = vpack.c.bf16 %v2095, %v2094
      %v2117 = vpack.c.bf16 %v2097, %v2096
      %v2118 = vpack.c.bf16 %v2099, %v2098
      %v2119 = vpack.c.bf16 %v2101, %v2100
      %v2120 = vpack.c.bf16 %v2103, %v2102
      %v2121 = vpack.c.bf16 %v2105, %v2104
      %s2122 = scalar_lea.vmem %s1, 12
      %v2123 = vld [vmem:[%s2122] sm:$0x3]
      %v2125 = vsel %vm220, %v2106, 0
      %v2128 = vsel %vm220, %v2107, 0
      %v2131 = vsel %vm220, %v2108, 0
      %v2134 = vsel %vm220, %v2109, 0
      %v2137 = vsel %vm220, %v2110, 0
      %v2140 = vsel %vm220, %v2111, 0
      %v2143 = vsel %vm220, %v2112, 0
      %v2146 = vsel %vm220, %v2113, 0
      %v2149 = vsel %vm220, %v2114, 0
      %v2152 = vsel %vm220, %v2115, 0
      %v2155 = vsel %vm220, %v2116, 0
      %v2158 = vsel %vm220, %v2117, 0
      %v2161 = vsel %vm220, %v2118, 0
      %v2164 = vsel %vm220, %v2119, 0
      %v2167 = vsel %vm220, %v2120, 0
      %v2170 = vsel %vm220, %v2121, 0
      %v2173 = vsel %vm520, %v2123, 0
      %2175 = vmatprep.subr.bf16.mxu0 0
      %2176 = vmatpush1.bf16.msra.mxu0 %v2173
      %2177 = vmatprep.subr.bf16.mxu0 0
      %2178 = vmatpush1.bf16.msra.mxu0 0
      %2179 = vmatprep.subr.bf16.mxu0 0
      %2180 = vmatpush1.bf16.msra.mxu0 0
      %2181 = vmatprep.subr.bf16.mxu0 0
      %2182 = vmatpush1.bf16.msra.mxu0 0
      %2183 = vmatprep.subr.bf16.mxu0 0
      %2184 = vmatpush1.bf16.msra.mxu0 0
      %2185 = vmatprep.subr.bf16.mxu0 0
      %2186 = vmatpush1.bf16.msra.mxu0 0
      %2187 = vmatprep.subr.bf16.mxu0 0
      %2188 = vmatpush1.bf16.msra.mxu0 0
      %2189 = vmatprep.subr.bf16.mxu0 0
      %2190 = vmatpush1.bf16.msra.mxu0 0
      %2191 = vmatprep.subr.bf16.mxu0 0
      %2192 = vmatpush1.bf16.msra.mxu0 0
      %2193 = vmatprep.subr.bf16.mxu0 0
      %2194 = vmatpush1.bf16.msra.mxu0 0
      %2195 = vmatprep.subr.bf16.mxu0 0
      %2196 = vmatpush1.bf16.msra.mxu0 0
      %2197 = vmatprep.subr.bf16.mxu0 0
      %2198 = vmatpush1.bf16.msra.mxu0 0
      %2199 = vmatprep.subr.bf16.mxu0 0
      %2200 = vmatpush1.bf16.msra.mxu0 0
      %2201 = vmatprep.subr.bf16.mxu0 0
      %2202 = vmatpush1.bf16.msra.mxu0 0
      %2203 = vmatprep.subr.bf16.mxu0 0
      %2204 = vmatpush1.bf16.msra.mxu0 0
      %2205 = vmatprep.subr.bf16.mxu0 0
      %2206 = vmatpush1.bf16.msra.mxu0 0
      %2207 = vmatprep.mubr.bf16.mxu0 0
      %2208 = vmatmul.mubr.bf16.gmra.mrb[0].mxu0 %v2125
      %v2209 = vpop.f32.mrb[0].mxu0
      %v2210 = vadd.f32 0.0, %v2209
      %v2211 = vpop.f32.mrb[0].mxu0
      %v2212 = vpop.f32.mrb[0].mxu0
      %v2213 = vadd.f32 0.0, %v2212
      %v2214 = vpop.f32.mrb[0].mxu0
      %2215 = vmatprep.mubr.bf16.mxu0 0
      %2216 = vmatmul.mubr.bf16.gmra.mrb[0].mxu0 %v2128
      %v2217 = vpop.f32.mrb[0].mxu0
      %v2218 = vadd.f32 0.0, %v2217
      %v2219 = vpop.f32.mrb[0].mxu0
      %v2220 = vpop.f32.mrb[0].mxu0
      %v2221 = vadd.f32 0.0, %v2220
      %v2222 = vpop.f32.mrb[0].mxu0
      %2223 = vmatprep.mubr.bf16.mxu0 0
      %2224 = vmatmul.mubr.bf16.gmra.mrb[0].mxu0 %v2131
      %v2225 = vpop.f32.mrb[0].mxu0
      %v2226 = vadd.f32 0.0, %v2225
      %v2227 = vpop.f32.mrb[0].mxu0
      %v2228 = vpop.f32.mrb[0].mxu0
      %v2229 = vadd.f32 0.0, %v2228
      %v2230 = vpop.f32.mrb[0].mxu0
      %2231 = vmatprep.mubr.bf16.mxu0 0
      %2232 = vmatmul.mubr.bf16.gmra.mrb[0].mxu0 %v2134
      %v2233 = vpop.f32.mrb[0].mxu0
      %v2234 = vadd.f32 0.0, %v2233
      %v2235 = vpop.f32.mrb[0].mxu0
      %v2236 = vpop.f32.mrb[0].mxu0
      %v2237 = vadd.f32 0.0, %v2236
      %v2238 = vpop.f32.mrb[0].mxu0
      %2239 = vmatprep.mubr.bf16.mxu0 0
      %2240 = vmatmul.mubr.bf16.gmra.mrb[0].mxu0 %v2137
      %v2241 = vpop.f32.mrb[0].mxu0
      %v2242 = vadd.f32 0.0, %v2241
      %v2243 = vpop.f32.mrb[0].mxu0
      %v2244 = vpop.f32.mrb[0].mxu0
      %v2245 = vadd.f32 0.0, %v2244
      %v2246 = vpop.f32.mrb[0].mxu0
      %2247 = vmatprep.mubr.bf16.mxu0 0
      %2248 = vmatmul.mubr.bf16.gmra.mrb[0].mxu0 %v2140
      %v2249 = vpop.f32.mrb[0].mxu0
      %v2250 = vadd.f32 0.0, %v2249
      %v2251 = vpop.f32.mrb[0].mxu0
      %v2252 = vpop.f32.mrb[0].mxu0
      %v2253 = vadd.f32 0.0, %v2252
      %v2254 = vpop.f32.mrb[0].mxu0
      %2255 = vmatprep.mubr.bf16.mxu0 0
      %2256 = vmatmul.mubr.bf16.gmra.mrb[0].mxu0 %v2143
      %v2257 = vpop.f32.mrb[0].mxu0
      %v2258 = vadd.f32 0.0, %v2257
      %v2259 = vpop.f32.mrb[0].mxu0
      %v2260 = vpop.f32.mrb[0].mxu0
      %v2261 = vadd.f32 0.0, %v2260
      %v2262 = vpop.f32.mrb[0].mxu0
      %2263 = vmatprep.mubr.bf16.mxu0 0
      %2264 = vmatmul.mubr.bf16.gmra.mrb[0].mxu0 %v2146
      %v2265 = vpop.f32.mrb[0].mxu0
      %v2266 = vadd.f32 0.0, %v2265
      %v2267 = vpop.f32.mrb[0].mxu0
      %v2268 = vpop.f32.mrb[0].mxu0
      %v2269 = vadd.f32 0.0, %v2268
      %v2270 = vpop.f32.mrb[0].mxu0
      %2271 = vmatprep.mubr.bf16.mxu0 0
      %2272 = vmatmul.mubr.bf16.gmra.mrb[0].mxu0 %v2149
      %v2273 = vpop.f32.mrb[0].mxu0
      %v2274 = vadd.f32 0.0, %v2273
      %v2275 = vpop.f32.mrb[0].mxu0
      %v2276 = vpop.f32.mrb[0].mxu0
      %v2277 = vadd.f32 0.0, %v2276
      %v2278 = vpop.f32.mrb[0].mxu0
      %2279 = vmatprep.mubr.bf16.mxu0 0
      %2280 = vmatmul.mubr.bf16.gmra.mrb[0].mxu0 %v2152
      %v2281 = vpop.f32.mrb[0].mxu0
      %v2282 = vadd.f32 0.0, %v2281
      %v2283 = vpop.f32.mrb[0].mxu0
      %v2284 = vpop.f32.mrb[0].mxu0
      %v2285 = vadd.f32 0.0, %v2284
      %v2286 = vpop.f32.mrb[0].mxu0
      %2287 = vmatprep.mubr.bf16.mxu0 0
      %2288 = vmatmul.mubr.bf16.gmra.mrb[0].mxu0 %v2155
      %v2289 = vpop.f32.mrb[0].mxu0
      %v2290 = vadd.f32 0.0, %v2289
      %v2291 = vpop.f32.mrb[0].mxu0
      %v2292 = vpop.f32.mrb[0].mxu0
      %v2293 = vadd.f32 0.0, %v2292
      %v2294 = vpop.f32.mrb[0].mxu0
      %2295 = vmatprep.mubr.bf16.mxu0 0
      %2296 = vmatmul.mubr.bf16.gmra.mrb[0].mxu0 %v2158
      %v2297 = vpop.f32.mrb[0].mxu0
      %v2298 = vadd.f32 0.0, %v2297
      %v2299 = vpop.f32.mrb[0].mxu0
      %v2300 = vpop.f32.mrb[0].mxu0
      %v2301 = vadd.f32 0.0, %v2300
      %v2302 = vpop.f32.mrb[0].mxu0
      %2303 = vmatprep.mubr.bf16.mxu0 0
      %2304 = vmatmul.mubr.bf16.gmra.mrb[0].mxu0 %v2161
      %v2305 = vpop.f32.mrb[0].mxu0
      %v2306 = vadd.f32 0.0, %v2305
      %v2307 = vpop.f32.mrb[0].mxu0
      %v2308 = vpop.f32.mrb[0].mxu0
      %v2309 = vadd.f32 0.0, %v2308
      %v2310 = vpop.f32.mrb[0].mxu0
      %2311 = vmatprep.mubr.bf16.mxu0 0
      %2312 = vmatmul.mubr.bf16.gmra.mrb[0].mxu0 %v2164
      %v2313 = vpop.f32.mrb[0].mxu0
      %v2314 = vadd.f32 0.0, %v2313
      %v2315 = vpop.f32.mrb[0].mxu0
      %v2316 = vpop.f32.mrb[0].mxu0
      %v2317 = vadd.f32 0.0, %v2316
      %v2318 = vpop.f32.mrb[0].mxu0
      %2319 = vmatprep.mubr.bf16.mxu0 0
      %2320 = vmatmul.mubr.bf16.gmra.mrb[0].mxu0 %v2167
      %v2321 = vpop.f32.mrb[0].mxu0
      %v2322 = vadd.f32 0.0, %v2321
      %v2323 = vpop.f32.mrb[0].mxu0
      %v2324 = vpop.f32.mrb[0].mxu0
      %v2325 = vadd.f32 0.0, %v2324
      %v2326 = vpop.f32.mrb[0].mxu0
      %2327 = vmatprep.mubr.bf16.mxu0 0
      %2328 = vmatmul.mubr.bf16.gmra.mrb[0].mxu0 %v2170
      %v2329 = vpop.f32.mrb[0].mxu0
      %v2330 = vadd.f32 0.0, %v2329
      %v2331 = vpop.f32.mrb[0].mxu0
      %v2332 = vpop.f32.mrb[0].mxu0
      %v2333 = vadd.f32 0.0, %v2332
      %v2334 = vpop.f32.mrb[0].mxu0
      %2335 = vdwg.mxu0
      %v2336 = vadd.f32 %v2041, %v2210
      %v2337 = vadd.f32 %v2042, %v2213
      %v2338 = vadd.f32 %v2043, %v2218
      %v2339 = vadd.f32 %v2044, %v2221
      %v2340 = vadd.f32 %v2045, %v2226
      %v2341 = vadd.f32 %v2046, %v2229
      %v2342 = vadd.f32 %v2047, %v2234
      %v2343 = vadd.f32 %v2048, %v2237
      %v2344 = vadd.f32 %v2049, %v2242
      %v2345 = vadd.f32 %v2050, %v2245
      %v2346 = vadd.f32 %v2051, %v2250
      %v2347 = vadd.f32 %v2052, %v2253
      %v2348 = vadd.f32 %v2053, %v2258
      %v2349 = vadd.f32 %v2054, %v2261
      %v2350 = vadd.f32 %v2055, %v2266
      %v2351 = vadd.f32 %v2056, %v2269
      %v2352 = vadd.f32 %v2057, %v2274
      %v2353 = vadd.f32 %v2058, %v2277
      %v2354 = vadd.f32 %v2059, %v2282
      %v2355 = vadd.f32 %v2060, %v2285
      %v2356 = vadd.f32 %v2061, %v2290
      %v2357 = vadd.f32 %v2062, %v2293
      %v2358 = vadd.f32 %v2063, %v2298
      %v2359 = vadd.f32 %v2064, %v2301
      %v2360 = vadd.f32 %v2065, %v2306
      %v2361 = vadd.f32 %v2066, %v2309
      %v2362 = vadd.f32 %v2067, %v2314
      %v2363 = vadd.f32 %v2068, %v2317
      %v2364 = vadd.f32 %v2069, %v2322
      %v2365 = vadd.f32 %v2070, %v2325
      %v2366 = vadd.f32 %v2071, %v2330
      %v2367 = vadd.f32 %v2072, %v2333
      %v2368 = vld [vmem:[%s2073 + $0x1] sm:$0xff]
      %v2369 = vld [vmem:[%s2073 + $0x9] sm:$0xff]
      %v2370 = vld [vmem:[%s2073 + $0x19] sm:$0xff]
      %v2371 = vld [vmem:[%s2073 + $0x21] sm:$0xff]
      %v2372 = vld [vmem:[%s2073 + $0x31] sm:$0xff]
      %v2373 = vld [vmem:[%s2073 + $0x39] sm:$0xff]
      %v2374 = vld [vmem:[%s2073 + $0x49] sm:$0xff]
      %v2375 = vld [vmem:[%s2073 + $0x51] sm:$0xff]
      %v2376 = vld [vmem:[%s2073 + $0x61] sm:$0xff]
      %v2377 = vld [vmem:[%s2073 + $0x69] sm:$0xff]
      %v2378 = vld [vmem:[%s2073 + $0x79] sm:$0xff]
      %v2379 = vld [vmem:[%s2073 + $0x81] sm:$0xff]
      %v2380 = vld [vmem:[%s2073 + $0x91] sm:$0xff]
      %v2381 = vld [vmem:[%s2073 + $0x99] sm:$0xff]
      %v2382 = vld [vmem:[%s2073 + $0xa9] sm:$0xff]
      %v2383 = vld [vmem:[%s2073 + $0xb1] sm:$0xff]
      %v2384 = vld [vmem:[%s2073 + $0xc1] sm:$0xff]
      %v2385 = vld [vmem:[%s2073 + $0xc9] sm:$0xff]
      %v2386 = vld [vmem:[%s2073 + $0xd9] sm:$0xff]
      %v2387 = vld [vmem:[%s2073 + $0xe1] sm:$0xff]
      %v2388 = vld [vmem:[%s2073 + $0xf1] sm:$0xff]
      %v2389 = vld [vmem:[%s2073 + $0xf9] sm:$0xff]
      %v2390 = vld [vmem:[%s2073 + $0x109] sm:$0xff]
      %v2391 = vld [vmem:[%s2073 + $0x111] sm:$0xff]
      %v2392 = vld [vmem:[%s2073 + $0x121] sm:$0xff]
      %v2393 = vld [vmem:[%s2073 + $0x129] sm:$0xff]
      %v2394 = vld [vmem:[%s2073 + $0x139] sm:$0xff]
      %v2395 = vld [vmem:[%s2073 + $0x141] sm:$0xff]
      %v2396 = vld [vmem:[%s2073 + $0x151] sm:$0xff]
      %v2397 = vld [vmem:[%s2073 + $0x159] sm:$0xff]
      %v2398 = vld [vmem:[%s2073 + $0x169] sm:$0xff]
      %v2399 = vld [vmem:[%s2073 + $0x171] sm:$0xff]
      %v2400 = vpack.c.bf16 %v2369, %v2368
      %v2401 = vpack.c.bf16 %v2371, %v2370
      %v2402 = vpack.c.bf16 %v2373, %v2372
      %v2403 = vpack.c.bf16 %v2375, %v2374
      %v2404 = vpack.c.bf16 %v2377, %v2376
      %v2405 = vpack.c.bf16 %v2379, %v2378
      %v2406 = vpack.c.bf16 %v2381, %v2380
      %v2407 = vpack.c.bf16 %v2383, %v2382
      %v2408 = vpack.c.bf16 %v2385, %v2384
      %v2409 = vpack.c.bf16 %v2387, %v2386
      %v2410 = vpack.c.bf16 %v2389, %v2388
      %v2411 = vpack.c.bf16 %v2391, %v2390
      %v2412 = vpack.c.bf16 %v2393, %v2392
      %v2413 = vpack.c.bf16 %v2395, %v2394
      %v2414 = vpack.c.bf16 %v2397, %v2396
      %v2415 = vpack.c.bf16 %v2399, %v2398
      %s2416 = scalar_lea.vmem %s1, 14
      %v2417 = vld [vmem:[%s2416] sm:$0x3]
      %v2419 = vsel %vm220, %v2400, 0
      %v2422 = vsel %vm220, %v2401, 0
      %v2425 = vsel %vm220, %v2402, 0
      %v2428 = vsel %vm220, %v2403, 0
      %v2431 = vsel %vm220, %v2404, 0
      %v2434 = vsel %vm220, %v2405, 0
      %v2437 = vsel %vm220, %v2406, 0
      %v2440 = vsel %vm220, %v2407, 0
      %v2443 = vsel %vm220, %v2408, 0
      %v2446 = vsel %vm220, %v2409, 0
      %v2449 = vsel %vm220, %v2410, 0
      %v2452 = vsel %vm220, %v2411, 0
      %v2455 = vsel %vm220, %v2412, 0
      %v2458 = vsel %vm220, %v2413, 0
      %v2461 = vsel %vm220, %v2414, 0
      %v2464 = vsel %vm220, %v2415, 0
      %v2467 = vsel %vm520, %v2417, 0
      %2469 = vmatprep.subr.bf16.mxu0 0
      %2470 = vmatpush1.bf16.msra.mxu0 %v2467
      %2471 = vmatprep.subr.bf16.mxu0 0
      %2472 = vmatpush1.bf16.msra.mxu0 0
      %2473 = vmatprep.subr.bf16.mxu0 0
      %2474 = vmatpush1.bf16.msra.mxu0 0
      %2475 = vmatprep.subr.bf16.mxu0 0
      %2476 = vmatpush1.bf16.msra.mxu0 0
      %2477 = vmatprep.subr.bf16.mxu0 0
      %2478 = vmatpush1.bf16.msra.mxu0 0
      %2479 = vmatprep.subr.bf16.mxu0 0
      %2480 = vmatpush1.bf16.msra.mxu0 0
      %2481 = vmatprep.subr.bf16.mxu0 0
      %2482 = vmatpush1.bf16.msra.mxu0 0
      %2483 = vmatprep.subr.bf16.mxu0 0
      %2484 = vmatpush1.bf16.msra.mxu0 0
      %2485 = vmatprep.subr.bf16.mxu0 0
      %2486 = vmatpush1.bf16.msra.mxu0 0
      %2487 = vmatprep.subr.bf16.mxu0 0
      %2488 = vmatpush1.bf16.msra.mxu0 0
      %2489 = vmatprep.subr.bf16.mxu0 0
      %2490 = vmatpush1.bf16.msra.mxu0 0
      %2491 = vmatprep.subr.bf16.mxu0 0
      %2492 = vmatpush1.bf16.msra.mxu0 0
      %2493 = vmatprep.subr.bf16.mxu0 0
      %2494 = vmatpush1.bf16.msra.mxu0 0
      %2495 = vmatprep.subr.bf16.mxu0 0
      %2496 = vmatpush1.bf16.msra.mxu0 0
      %2497 = vmatprep.subr.bf16.mxu0 0
      %2498 = vmatpush1.bf16.msra.mxu0 0
      %2499 = vmatprep.subr.bf16.mxu0 0
      %2500 = vmatpush1.bf16.msra.mxu0 0
      %2501 = vmatprep.mubr.bf16.mxu0 0
      %2502 = vmatmul.mubr.bf16.gmra.mrb[0].mxu0 %v2419
      %v2503 = vpop.f32.mrb[0].mxu0
      %v2504 = vadd.f32 0.0, %v2503
      %v2505 = vpop.f32.mrb[0].mxu0
      %v2506 = vpop.f32.mrb[0].mxu0
      %v2507 = vadd.f32 0.0, %v2506
      %v2508 = vpop.f32.mrb[0].mxu0
      %2509 = vmatprep.mubr.bf16.mxu0 0
      %2510 = vmatmul.mubr.bf16.gmra.mrb[0].mxu0 %v2422
      %v2511 = vpop.f32.mrb[0].mxu0
      %v2512 = vadd.f32 0.0, %v2511
      %v2513 = vpop.f32.mrb[0].mxu0
      %v2514 = vpop.f32.mrb[0].mxu0
      %v2515 = vadd.f32 0.0, %v2514
      %v2516 = vpop.f32.mrb[0].mxu0
      %2517 = vmatprep.mubr.bf16.mxu0 0
      %2518 = vmatmul.mubr.bf16.gmra.mrb[0].mxu0 %v2425
      %v2519 = vpop.f32.mrb[0].mxu0
      %v2520 = vadd.f32 0.0, %v2519
      %v2521 = vpop.f32.mrb[0].mxu0
      %v2522 = vpop.f32.mrb[0].mxu0
      %v2523 = vadd.f32 0.0, %v2522
      %v2524 = vpop.f32.mrb[0].mxu0
      %2525 = vmatprep.mubr.bf16.mxu0 0
      %2526 = vmatmul.mubr.bf16.gmra.mrb[0].mxu0 %v2428
      %v2527 = vpop.f32.mrb[0].mxu0
      %v2528 = vadd.f32 0.0, %v2527
      %v2529 = vpop.f32.mrb[0].mxu0
      %v2530 = vpop.f32.mrb[0].mxu0
      %v2531 = vadd.f32 0.0, %v2530
      %v2532 = vpop.f32.mrb[0].mxu0
      %2533 = vmatprep.mubr.bf16.mxu0 0
      %2534 = vmatmul.mubr.bf16.gmra.mrb[0].mxu0 %v2431
      %v2535 = vpop.f32.mrb[0].mxu0
      %v2536 = vadd.f32 0.0, %v2535
      %v2537 = vpop.f32.mrb[0].mxu0
      %v2538 = vpop.f32.mrb[0].mxu0
      %v2539 = vadd.f32 0.0, %v2538
      %v2540 = vpop.f32.mrb[0].mxu0
      %2541 = vmatprep.mubr.bf16.mxu0 0
      %2542 = vmatmul.mubr.bf16.gmra.mrb[0].mxu0 %v2434
      %v2543 = vpop.f32.mrb[0].mxu0
      %v2544 = vadd.f32 0.0, %v2543
      %v2545 = vpop.f32.mrb[0].mxu0
      %v2546 = vpop.f32.mrb[0].mxu0
      %v2547 = vadd.f32 0.0, %v2546
      %v2548 = vpop.f32.mrb[0].mxu0
      %2549 = vmatprep.mubr.bf16.mxu0 0
      %2550 = vmatmul.mubr.bf16.gmra.mrb[0].mxu0 %v2437
      %v2551 = vpop.f32.mrb[0].mxu0
      %v2552 = vadd.f32 0.0, %v2551
      %v2553 = vpop.f32.mrb[0].mxu0
      %v2554 = vpop.f32.mrb[0].mxu0
      %v2555 = vadd.f32 0.0, %v2554
      %v2556 = vpop.f32.mrb[0].mxu0
      %2557 = vmatprep.mubr.bf16.mxu0 0
      %2558 = vmatmul.mubr.bf16.gmra.mrb[0].mxu0 %v2440
      %v2559 = vpop.f32.mrb[0].mxu0
      %v2560 = vadd.f32 0.0, %v2559
      %v2561 = vpop.f32.mrb[0].mxu0
      %v2562 = vpop.f32.mrb[0].mxu0
      %v2563 = vadd.f32 0.0, %v2562
      %v2564 = vpop.f32.mrb[0].mxu0
      %2565 = vmatprep.mubr.bf16.mxu0 0
      %2566 = vmatmul.mubr.bf16.gmra.mrb[0].mxu0 %v2443
      %v2567 = vpop.f32.mrb[0].mxu0
      %v2568 = vadd.f32 0.0, %v2567
      %v2569 = vpop.f32.mrb[0].mxu0
      %v2570 = vpop.f32.mrb[0].mxu0
      %v2571 = vadd.f32 0.0, %v2570
      %v2572 = vpop.f32.mrb[0].mxu0
      %2573 = vmatprep.mubr.bf16.mxu0 0
      %2574 = vmatmul.mubr.bf16.gmra.mrb[0].mxu0 %v2446
      %v2575 = vpop.f32.mrb[0].mxu0
      %v2576 = vadd.f32 0.0, %v2575
      %v2577 = vpop.f32.mrb[0].mxu0
      %v2578 = vpop.f32.mrb[0].mxu0
      %v2579 = vadd.f32 0.0, %v2578
      %v2580 = vpop.f32.mrb[0].mxu0
      %2581 = vmatprep.mubr.bf16.mxu0 0
      %2582 = vmatmul.mubr.bf16.gmra.mrb[0].mxu0 %v2449
      %v2583 = vpop.f32.mrb[0].mxu0
      %v2584 = vadd.f32 0.0, %v2583
      %v2585 = vpop.f32.mrb[0].mxu0
      %v2586 = vpop.f32.mrb[0].mxu0
      %v2587 = vadd.f32 0.0, %v2586
      %v2588 = vpop.f32.mrb[0].mxu0
      %2589 = vmatprep.mubr.bf16.mxu0 0
      %2590 = vmatmul.mubr.bf16.gmra.mrb[0].mxu0 %v2452
      %v2591 = vpop.f32.mrb[0].mxu0
      %v2592 = vadd.f32 0.0, %v2591
      %v2593 = vpop.f32.mrb[0].mxu0
      %v2594 = vpop.f32.mrb[0].mxu0
      %v2595 = vadd.f32 0.0, %v2594
      %v2596 = vpop.f32.mrb[0].mxu0
      %2597 = vmatprep.mubr.bf16.mxu0 0
      %2598 = vmatmul.mubr.bf16.gmra.mrb[0].mxu0 %v2455
      %v2599 = vpop.f32.mrb[0].mxu0
      %v2600 = vadd.f32 0.0, %v2599
      %v2601 = vpop.f32.mrb[0].mxu0
      %v2602 = vpop.f32.mrb[0].mxu0
      %v2603 = vadd.f32 0.0, %v2602
      %v2604 = vpop.f32.mrb[0].mxu0
      %2605 = vmatprep.mubr.bf16.mxu0 0
      %2606 = vmatmul.mubr.bf16.gmra.mrb[0].mxu0 %v2458
      %v2607 = vpop.f32.mrb[0].mxu0
      %v2608 = vadd.f32 0.0, %v2607
      %v2609 = vpop.f32.mrb[0].mxu0
      %v2610 = vpop.f32.mrb[0].mxu0
      %v2611 = vadd.f32 0.0, %v2610
      %v2612 = vpop.f32.mrb[0].mxu0
      %2613 = vmatprep.mubr.bf16.mxu0 0
      %2614 = vmatmul.mubr.bf16.gmra.mrb[0].mxu0 %v2461
      %v2615 = vpop.f32.mrb[0].mxu0
      %v2616 = vadd.f32 0.0, %v2615
      %v2617 = vpop.f32.mrb[0].mxu0
      %v2618 = vpop.f32.mrb[0].mxu0
      %v2619 = vadd.f32 0.0, %v2618
      %v2620 = vpop.f32.mrb[0].mxu0
      %2621 = vmatprep.mubr.bf16.mxu0 0
      %2622 = vmatmul.mubr.bf16.gmra.mrb[0].mxu0 %v2464
      %v2623 = vpop.f32.mrb[0].mxu0
      %v2624 = vadd.f32 0.0, %v2623
      %v2625 = vpop.f32.mrb[0].mxu0
      %v2626 = vpop.f32.mrb[0].mxu0
      %v2627 = vadd.f32 0.0, %v2626
      %v2628 = vpop.f32.mrb[0].mxu0
      %2629 = vdwg.mxu0
      %v2630 = vadd.f32 %v2336, %v2504
      %v2631 = vadd.f32 %v2337, %v2507
      %v2632 = vadd.f32 %v2338, %v2512
      %v2633 = vadd.f32 %v2339, %v2515
      %v2634 = vadd.f32 %v2340, %v2520
      %v2635 = vadd.f32 %v2341, %v2523
      %v2636 = vadd.f32 %v2342, %v2528
      %v2637 = vadd.f32 %v2343, %v2531
      %v2638 = vadd.f32 %v2344, %v2536
      %v2639 = vadd.f32 %v2345, %v2539
      %v2640 = vadd.f32 %v2346, %v2544
      %v2641 = vadd.f32 %v2347, %v2547
      %v2642 = vadd.f32 %v2348, %v2552
      %v2643 = vadd.f32 %v2349, %v2555
      %v2644 = vadd.f32 %v2350, %v2560
      %v2645 = vadd.f32 %v2351, %v2563
      %v2646 = vadd.f32 %v2352, %v2568
      %v2647 = vadd.f32 %v2353, %v2571
      %v2648 = vadd.f32 %v2354, %v2576
      %v2649 = vadd.f32 %v2355, %v2579
      %v2650 = vadd.f32 %v2356, %v2584
      %v2651 = vadd.f32 %v2357, %v2587
      %v2652 = vadd.f32 %v2358, %v2592
      %v2653 = vadd.f32 %v2359, %v2595
      %v2654 = vadd.f32 %v2360, %v2600
      %v2655 = vadd.f32 %v2361, %v2603
      %v2656 = vadd.f32 %v2362, %v2608
      %v2657 = vadd.f32 %v2363, %v2611
      %v2658 = vadd.f32 %v2364, %v2616
      %v2659 = vadd.f32 %v2365, %v2619
      %v2660 = vadd.f32 %v2366, %v2624
      %v2661 = vadd.f32 %v2367, %v2627
      %v2662 = vld [vmem:[%s2073 + $0x2] sm:$0xff]
      %v2663 = vld [vmem:[%s2073 + $0xa] sm:$0xff]
      %v2664 = vld [vmem:[%s2073 + $0x1a] sm:$0xff]
      %v2665 = vld [vmem:[%s2073 + $0x22] sm:$0xff]
      %v2666 = vld [vmem:[%s2073 + $0x32] sm:$0xff]
      %v2667 = vld [vmem:[%s2073 + $0x3a] sm:$0xff]
      %v2668 = vld [vmem:[%s2073 + $0x4a] sm:$0xff]
      %v2669 = vld [vmem:[%s2073 + $0x52] sm:$0xff]
      %v2670 = vld [vmem:[%s2073 + $0x62] sm:$0xff]
      %v2671 = vld [vmem:[%s2073 + $0x6a] sm:$0xff]
      %v2672 = vld [vmem:[%s2073 + $0x7a] sm:$0xff]
      %v2673 = vld [vmem:[%s2073 + $0x82] sm:$0xff]
      %v2674 = vld [vmem:[%s2073 + $0x92] sm:$0xff]
      %v2675 = vld [vmem:[%s2073 + $0x9a] sm:$0xff]
      %v2676 = vld [vmem:[%s2073 + $0xaa] sm:$0xff]
      %v2677 = vld [vmem:[%s2073 + $0xb2] sm:$0xff]
      %v2678 = vld [vmem:[%s2073 + $0xc2] sm:$0xff]
      %v2679 = vld [vmem:[%s2073 + $0xca] sm:$0xff]
      %v2680 = vld [vmem:[%s2073 + $0xda] sm:$0xff]
      %v2681 = vld [vmem:[%s2073 + $0xe2] sm:$0xff]
      %v2682 = vld [vmem:[%s2073 + $0xf2] sm:$0xff]
      %v2683 = vld [vmem:[%s2073 + $0xfa] sm:$0xff]
      %v2684 = vld [vmem:[%s2073 + $0x10a] sm:$0xff]
      %v2685 = vld [vmem:[%s2073 + $0x112] sm:$0xff]
      %v2686 = vld [vmem:[%s2073 + $0x122] sm:$0xff]
      %v2687 = vld [vmem:[%s2073 + $0x12a] sm:$0xff]
      %v2688 = vld [vmem:[%s2073 + $0x13a] sm:$0xff]
      %v2689 = vld [vmem:[%s2073 + $0x142] sm:$0xff]
      %v2690 = vld [vmem:[%s2073 + $0x152] sm:$0xff]
      %v2691 = vld [vmem:[%s2073 + $0x15a] sm:$0xff]
      %v2692 = vld [vmem:[%s2073 + $0x16a] sm:$0xff]
      %v2693 = vld [vmem:[%s2073 + $0x172] sm:$0xff]
      %v2694 = vpack.c.bf16 %v2663, %v2662
      %v2695 = vpack.c.bf16 %v2665, %v2664
      %v2696 = vpack.c.bf16 %v2667, %v2666
      %v2697 = vpack.c.bf16 %v2669, %v2668
      %v2698 = vpack.c.bf16 %v2671, %v2670
      %v2699 = vpack.c.bf16 %v2673, %v2672
      %v2700 = vpack.c.bf16 %v2675, %v2674
      %v2701 = vpack.c.bf16 %v2677, %v2676
      %v2702 = vpack.c.bf16 %v2679, %v2678
      %v2703 = vpack.c.bf16 %v2681, %v2680
      %v2704 = vpack.c.bf16 %v2683, %v2682
      %v2705 = vpack.c.bf16 %v2685, %v2684
      %v2706 = vpack.c.bf16 %v2687, %v2686
      %v2707 = vpack.c.bf16 %v2689, %v2688
      %v2708 = vpack.c.bf16 %v2691, %v2690
      %v2709 = vpack.c.bf16 %v2693, %v2692
      %s2710 = scalar_lea.vmem %s1, 16
      %v2711 = vld [vmem:[%s2710] sm:$0x3]
      %v2713 = vsel %vm220, %v2694, 0
      %v2716 = vsel %vm220, %v2695, 0
      %v2719 = vsel %vm220, %v2696, 0
      %v2722 = vsel %vm220, %v2697, 0
      %v2725 = vsel %vm220, %v2698, 0
      %v2728 = vsel %vm220, %v2699, 0
      %v2731 = vsel %vm220, %v2700, 0
      %v2734 = vsel %vm220, %v2701, 0
      %v2737 = vsel %vm220, %v2702, 0
      %v2740 = vsel %vm220, %v2703, 0
      %v2743 = vsel %vm220, %v2704, 0
      %v2746 = vsel %vm220, %v2705, 0
      %v2749 = vsel %vm220, %v2706, 0
      %v2752 = vsel %vm220, %v2707, 0
      %v2755 = vsel %vm220, %v2708, 0
      %v2758 = vsel %vm220, %v2709, 0
      %v2761 = vsel %vm520, %v2711, 0
      %2763 = vmatprep.subr.bf16.mxu0 0
      %2764 = vmatpush1.bf16.msra.mxu0 %v2761
      %2765 = vmatprep.subr.bf16.mxu0 0
      %2766 = vmatpush1.bf16.msra.mxu0 0
      %2767 = vmatprep.subr.bf16.mxu0 0
      %2768 = vmatpush1.bf16.msra.mxu0 0
      %2769 = vmatprep.subr.bf16.mxu0 0
      %2770 = vmatpush1.bf16.msra.mxu0 0
      %2771 = vmatprep.subr.bf16.mxu0 0
      %2772 = vmatpush1.bf16.msra.mxu0 0
      %2773 = vmatprep.subr.bf16.mxu0 0
      %2774 = vmatpush1.bf16.msra.mxu0 0
      %2775 = vmatprep.subr.bf16.mxu0 0
      %2776 = vmatpush1.bf16.msra.mxu0 0
      %2777 = vmatprep.subr.bf16.mxu0 0
      %2778 = vmatpush1.bf16.msra.mxu0 0
      %2779 = vmatprep.subr.bf16.mxu0 0
      %2780 = vmatpush1.bf16.msra.mxu0 0
      %2781 = vmatprep.subr.bf16.mxu0 0
      %2782 = vmatpush1.bf16.msra.mxu0 0
      %2783 = vmatprep.subr.bf16.mxu0 0
      %2784 = vmatpush1.bf16.msra.mxu0 0
      %2785 = vmatprep.subr.bf16.mxu0 0
      %2786 = vmatpush1.bf16.msra.mxu0 0
      %2787 = vmatprep.subr.bf16.mxu0 0
      %2788 = vmatpush1.bf16.msra.mxu0 0
      %2789 = vmatprep.subr.bf16.mxu0 0
      %2790 = vmatpush1.bf16.msra.mxu0 0
      %2791 = vmatprep.subr.bf16.mxu0 0
      %2792 = vmatpush1.bf16.msra.mxu0 0
      %2793 = vmatprep.subr.bf16.mxu0 0
      %2794 = vmatpush1.bf16.msra.mxu0 0
      %2795 = vmatprep.mubr.bf16.mxu0 0
      %2796 = vmatmul.mubr.bf16.gmra.mrb[0].mxu0 %v2713
      %v2797 = vpop.f32.mrb[0].mxu0
      %v2798 = vadd.f32 0.0, %v2797
      %v2799 = vpop.f32.mrb[0].mxu0
      %v2800 = vpop.f32.mrb[0].mxu0
      %v2801 = vadd.f32 0.0, %v2800
      %v2802 = vpop.f32.mrb[0].mxu0
      %2803 = vmatprep.mubr.bf16.mxu0 0
      %2804 = vmatmul.mubr.bf16.gmra.mrb[0].mxu0 %v2716
      %v2805 = vpop.f32.mrb[0].mxu0
      %v2806 = vadd.f32 0.0, %v2805
      %v2807 = vpop.f32.mrb[0].mxu0
      %v2808 = vpop.f32.mrb[0].mxu0
      %v2809 = vadd.f32 0.0, %v2808
      %v2810 = vpop.f32.mrb[0].mxu0
      %2811 = vmatprep.mubr.bf16.mxu0 0
      %2812 = vmatmul.mubr.bf16.gmra.mrb[0].mxu0 %v2719
      %v2813 = vpop.f32.mrb[0].mxu0
      %v2814 = vadd.f32 0.0, %v2813
      %v2815 = vpop.f32.mrb[0].mxu0
      %v2816 = vpop.f32.mrb[0].mxu0
      %v2817 = vadd.f32 0.0, %v2816
      %v2818 = vpop.f32.mrb[0].mxu0
      %2819 = vmatprep.mubr.bf16.mxu0 0
      %2820 = vmatmul.mubr.bf16.gmra.mrb[0].mxu0 %v2722
      %v2821 = vpop.f32.mrb[0].mxu0
      %v2822 = vadd.f32 0.0, %v2821
      %v2823 = vpop.f32.mrb[0].mxu0
      %v2824 = vpop.f32.mrb[0].mxu0
      %v2825 = vadd.f32 0.0, %v2824
      %v2826 = vpop.f32.mrb[0].mxu0
      %2827 = vmatprep.mubr.bf16.mxu0 0
      %2828 = vmatmul.mubr.bf16.gmra.mrb[0].mxu0 %v2725
      %v2829 = vpop.f32.mrb[0].mxu0
      %v2830 = vadd.f32 0.0, %v2829
      %v2831 = vpop.f32.mrb[0].mxu0
      %v2832 = vpop.f32.mrb[0].mxu0
      %v2833 = vadd.f32 0.0, %v2832
      %v2834 = vpop.f32.mrb[0].mxu0
      %2835 = vmatprep.mubr.bf16.mxu0 0
      %2836 = vmatmul.mubr.bf16.gmra.mrb[0].mxu0 %v2728
      %v2837 = vpop.f32.mrb[0].mxu0
      %v2838 = vadd.f32 0.0, %v2837
      %v2839 = vpop.f32.mrb[0].mxu0
      %v2840 = vpop.f32.mrb[0].mxu0
      %v2841 = vadd.f32 0.0, %v2840
      %v2842 = vpop.f32.mrb[0].mxu0
      %2843 = vmatprep.mubr.bf16.mxu0 0
      %2844 = vmatmul.mubr.bf16.gmra.mrb[0].mxu0 %v2731
      %v2845 = vpop.f32.mrb[0].mxu0
      %v2846 = vadd.f32 0.0, %v2845
      %v2847 = vpop.f32.mrb[0].mxu0
      %v2848 = vpop.f32.mrb[0].mxu0
      %v2849 = vadd.f32 0.0, %v2848
      %v2850 = vpop.f32.mrb[0].mxu0
      %2851 = vmatprep.mubr.bf16.mxu0 0
      %2852 = vmatmul.mubr.bf16.gmra.mrb[0].mxu0 %v2734
      %v2853 = vpop.f32.mrb[0].mxu0
      %v2854 = vadd.f32 0.0, %v2853
      %v2855 = vpop.f32.mrb[0].mxu0
      %v2856 = vpop.f32.mrb[0].mxu0
      %v2857 = vadd.f32 0.0, %v2856
      %v2858 = vpop.f32.mrb[0].mxu0
      %2859 = vmatprep.mubr.bf16.mxu0 0
      %2860 = vmatmul.mubr.bf16.gmra.mrb[0].mxu0 %v2737
      %v2861 = vpop.f32.mrb[0].mxu0
      %v2862 = vadd.f32 0.0, %v2861
      %v2863 = vpop.f32.mrb[0].mxu0
      %v2864 = vpop.f32.mrb[0].mxu0
      %v2865 = vadd.f32 0.0, %v2864
      %v2866 = vpop.f32.mrb[0].mxu0
      %2867 = vmatprep.mubr.bf16.mxu0 0
      %2868 = vmatmul.mubr.bf16.gmra.mrb[0].mxu0 %v2740
      %v2869 = vpop.f32.mrb[0].mxu0
      %v2870 = vadd.f32 0.0, %v2869
      %v2871 = vpop.f32.mrb[0].mxu0
      %v2872 = vpop.f32.mrb[0].mxu0
      %v2873 = vadd.f32 0.0, %v2872
      %v2874 = vpop.f32.mrb[0].mxu0
      %2875 = vmatprep.mubr.bf16.mxu0 0
      %2876 = vmatmul.mubr.bf16.gmra.mrb[0].mxu0 %v2743
      %v2877 = vpop.f32.mrb[0].mxu0
      %v2878 = vadd.f32 0.0, %v2877
      %v2879 = vpop.f32.mrb[0].mxu0
      %v2880 = vpop.f32.mrb[0].mxu0
      %v2881 = vadd.f32 0.0, %v2880
      %v2882 = vpop.f32.mrb[0].mxu0
      %2883 = vmatprep.mubr.bf16.mxu0 0
      %2884 = vmatmul.mubr.bf16.gmra.mrb[0].mxu0 %v2746
      %v2885 = vpop.f32.mrb[0].mxu0
      %v2886 = vadd.f32 0.0, %v2885
      %v2887 = vpop.f32.mrb[0].mxu0
      %v2888 = vpop.f32.mrb[0].mxu0
      %v2889 = vadd.f32 0.0, %v2888
      %v2890 = vpop.f32.mrb[0].mxu0
      %2891 = vmatprep.mubr.bf16.mxu0 0
      %2892 = vmatmul.mubr.bf16.gmra.mrb[0].mxu0 %v2749
      %v2893 = vpop.f32.mrb[0].mxu0
      %v2894 = vadd.f32 0.0, %v2893
      %v2895 = vpop.f32.mrb[0].mxu0
      %v2896 = vpop.f32.mrb[0].mxu0
      %v2897 = vadd.f32 0.0, %v2896
      %v2898 = vpop.f32.mrb[0].mxu0
      %2899 = vmatprep.mubr.bf16.mxu0 0
      %2900 = vmatmul.mubr.bf16.gmra.mrb[0].mxu0 %v2752
      %v2901 = vpop.f32.mrb[0].mxu0
      %v2902 = vadd.f32 0.0, %v2901
      %v2903 = vpop.f32.mrb[0].mxu0
      %v2904 = vpop.f32.mrb[0].mxu0
      %v2905 = vadd.f32 0.0, %v2904
      %v2906 = vpop.f32.mrb[0].mxu0
      %2907 = vmatprep.mubr.bf16.mxu0 0
      %2908 = vmatmul.mubr.bf16.gmra.mrb[0].mxu0 %v2755
      %v2909 = vpop.f32.mrb[0].mxu0
      %v2910 = vadd.f32 0.0, %v2909
      %v2911 = vpop.f32.mrb[0].mxu0
      %v2912 = vpop.f32.mrb[0].mxu0
      %v2913 = vadd.f32 0.0, %v2912
      %v2914 = vpop.f32.mrb[0].mxu0
      %2915 = vmatprep.mubr.bf16.mxu0 0
      %2916 = vmatmul.mubr.bf16.gmra.mrb[0].mxu0 %v2758
      %v2917 = vpop.f32.mrb[0].mxu0
      %v2918 = vadd.f32 0.0, %v2917
      %v2919 = vpop.f32.mrb[0].mxu0
      %v2920 = vpop.f32.mrb[0].mxu0
      %v2921 = vadd.f32 0.0, %v2920
      %v2922 = vpop.f32.mrb[0].mxu0
      %2923 = vdwg.mxu0
      %v2924 = vadd.f32 %v2630, %v2798
      %v2925 = vadd.f32 %v2631, %v2801
      %v2926 = vadd.f32 %v2632, %v2806
      %v2927 = vadd.f32 %v2633, %v2809
      %v2928 = vadd.f32 %v2634, %v2814
      %v2929 = vadd.f32 %v2635, %v2817
      %v2930 = vadd.f32 %v2636, %v2822
      %v2931 = vadd.f32 %v2637, %v2825
      %v2932 = vadd.f32 %v2638, %v2830
      %v2933 = vadd.f32 %v2639, %v2833
      %v2934 = vadd.f32 %v2640, %v2838
      %v2935 = vadd.f32 %v2641, %v2841
      %v2936 = vadd.f32 %v2642, %v2846
      %v2937 = vadd.f32 %v2643, %v2849
      %v2938 = vadd.f32 %v2644, %v2854
      %v2939 = vadd.f32 %v2645, %v2857
      %v2940 = vadd.f32 %v2646, %v2862
      %v2941 = vadd.f32 %v2647, %v2865
      %v2942 = vadd.f32 %v2648, %v2870
      %v2943 = vadd.f32 %v2649, %v2873
      %v2944 = vadd.f32 %v2650, %v2878
      %v2945 = vadd.f32 %v2651, %v2881
      %v2946 = vadd.f32 %v2652, %v2886
      %v2947 = vadd.f32 %v2653, %v2889
      %v2948 = vadd.f32 %v2654, %v2894
      %v2949 = vadd.f32 %v2655, %v2897
      %v2950 = vadd.f32 %v2656, %v2902
      %v2951 = vadd.f32 %v2657, %v2905
      %v2952 = vadd.f32 %v2658, %v2910
      %v2953 = vadd.f32 %v2659, %v2913
      %v2954 = vadd.f32 %v2660, %v2918
      %v2955 = vadd.f32 %v2661, %v2921
      %2956 = vst [vmem:[%s210] sm:$0xff] %v2924
      %2957 = vst [vmem:[%s210 + $0x8] sm:$0xff] %v2925
      %2958 = vst [vmem:[%s210 + $0x10] sm:$0xff] %v2926
      %2959 = vst [vmem:[%s210 + $0x18] sm:$0xff] %v2927
      %2960 = vst [vmem:[%s210 + $0x20] sm:$0xff] %v2928
      %2961 = vst [vmem:[%s210 + $0x28] sm:$0xff] %v2929
      %2962 = vst [vmem:[%s210 + $0x30] sm:$0xff] %v2930
      %2963 = vst [vmem:[%s210 + $0x38] sm:$0xff] %v2931
      %2964 = vst [vmem:[%s210 + $0x40] sm:$0xff] %v2932
      %2965 = vst [vmem:[%s210 + $0x48] sm:$0xff] %v2933
      %2966 = vst [vmem:[%s210 + $0x50] sm:$0xff] %v2934
      %2967 = vst [vmem:[%s210 + $0x58] sm:$0xff] %v2935
      %2968 = vst [vmem:[%s210 + $0x60] sm:$0xff] %v2936
      %2969 = vst [vmem:[%s210 + $0x68] sm:$0xff] %v2937
      %2970 = vst [vmem:[%s210 + $0x70] sm:$0xff] %v2938
      %2971 = vst [vmem:[%s210 + $0x78] sm:$0xff] %v2939
      %2972 = vst [vmem:[%s210 + $0x80] sm:$0xff] %v2940
      %2973 = vst [vmem:[%s210 + $0x88] sm:$0xff] %v2941
      %2974 = vst [vmem:[%s210 + $0x90] sm:$0xff] %v2942
      %2975 = vst [vmem:[%s210 + $0x98] sm:$0xff] %v2943
      %2976 = vst [vmem:[%s210 + $0xa0] sm:$0xff] %v2944
      %2977 = vst [vmem:[%s210 + $0xa8] sm:$0xff] %v2945
      %2978 = vst [vmem:[%s210 + $0xb0] sm:$0xff] %v2946
      %2979 = vst [vmem:[%s210 + $0xb8] sm:$0xff] %v2947
      %2980 = vst [vmem:[%s210 + $0xc0] sm:$0xff] %v2948
      %2981 = vst [vmem:[%s210 + $0xc8] sm:$0xff] %v2949
      %2982 = vst [vmem:[%s210 + $0xd0] sm:$0xff] %v2950
      %2983 = vst [vmem:[%s210 + $0xd8] sm:$0xff] %v2951
      %2984 = vst [vmem:[%s210 + $0xe0] sm:$0xff] %v2952
      %2985 = vst [vmem:[%s210 + $0xe8] sm:$0xff] %v2953
      %2986 = vst [vmem:[%s210 + $0xf0] sm:$0xff] %v2954
      %2987 = vst [vmem:[%s210 + $0xf8] sm:$0xff] %v2955
      %v2988 = vadd.f32 %v2924, %v2925
      %v2989 = vadd.f32 %v2988, %v2926
      %v2990 = vadd.f32 %v2989, %v2927
      %v2991 = vadd.f32 %v2990, %v2928
      %v2992 = vadd.f32 %v2991, %v2929
      %v2993 = vadd.f32 %v2992, %v2930
      %v2994 = vadd.f32 %v2993, %v2931
      %v2995 = vadd.f32 %v2994, %v2932
      %v2996 = vadd.f32 %v2995, %v2933
      %v2997 = vadd.f32 %v2996, %v2934
      %v2998 = vadd.f32 %v2997, %v2935
      %v2999 = vadd.f32 %v2998, %v2936
      %v3000 = vadd.f32 %v2999, %v2937
      %v3001 = vadd.f32 %v3000, %v2938
      %v3002 = vadd.f32 %v3001, %v2939
      %v3003 = vadd.f32 %v3002, %v2940
      %v3004 = vadd.f32 %v3003, %v2941
      %v3005 = vadd.f32 %v3004, %v2942
      %v3006 = vadd.f32 %v3005, %v2943
      %v3007 = vadd.f32 %v3006, %v2944
      %v3008 = vadd.f32 %v3007, %v2945
      %v3009 = vadd.f32 %v3008, %v2946
      %v3010 = vadd.f32 %v3009, %v2947
      %v3011 = vadd.f32 %v3010, %v2948
      %v3012 = vadd.f32 %v3011, %v2949
      %v3013 = vadd.f32 %v3012, %v2950
      %v3014 = vadd.f32 %v3013, %v2951
      %v3015 = vadd.f32 %v3014, %v2952
      %v3016 = vadd.f32 %v3015, %v2953
      %v3017 = vadd.f32 %v3016, %v2954
      %v3018 = vadd.f32 %v3017, %v2955
      %v3019 = vrot.slane %v3018, 4
      %v3020 = vadd.f32 %v3018, %v3019
      %v3021 = vrot.slane %v3020, 2
      %v3022 = vadd.f32 %v3020, %v3021
      %v3023 = vrot.slane %v3022, 1
      %v3024 = vadd.f32 %v3022, %v3023
      %v3025 = vmul.f32 %v2924, %v2924
      %v3026 = vmul.f32 %v2925, %v2925
      %v3027 = vmul.f32 %v2926, %v2926
      %v3028 = vmul.f32 %v2927, %v2927
      %v3029 = vmul.f32 %v2928, %v2928
      %v3030 = vmul.f32 %v2929, %v2929
      %v3031 = vmul.f32 %v2930, %v2930
      %v3032 = vmul.f32 %v2931, %v2931
      %v3033 = vmul.f32 %v2932, %v2932
      %v3034 = vmul.f32 %v2933, %v2933
      %v3035 = vmul.f32 %v2934, %v2934
      %v3036 = vmul.f32 %v2935, %v2935
      %v3037 = vmul.f32 %v2936, %v2936
      %v3038 = vmul.f32 %v2937, %v2937
      %v3039 = vmul.f32 %v2938, %v2938
      %v3040 = vmul.f32 %v2939, %v2939
      %v3041 = vmul.f32 %v2940, %v2940
      %v3042 = vmul.f32 %v2941, %v2941
      %v3043 = vmul.f32 %v2942, %v2942
      %v3044 = vmul.f32 %v2943, %v2943
      %v3045 = vmul.f32 %v2944, %v2944
      %v3046 = vmul.f32 %v2945, %v2945
      %v3047 = vmul.f32 %v2946, %v2946
      %v3048 = vmul.f32 %v2947, %v2947
      %v3049 = vmul.f32 %v2948, %v2948
      %v3050 = vmul.f32 %v2949, %v2949
      %v3051 = vmul.f32 %v2950, %v2950
      %v3052 = vmul.f32 %v2951, %v2951
      %v3053 = vmul.f32 %v2952, %v2952
      %v3054 = vmul.f32 %v2953, %v2953
      %v3055 = vmul.f32 %v2954, %v2954
      %v3056 = vmul.f32 %v2955, %v2955
      %v3057 = vadd.f32 %v3025, %v3026
      %v3058 = vadd.f32 %v3057, %v3027
      %v3059 = vadd.f32 %v3058, %v3028
      %v3060 = vadd.f32 %v3059, %v3029
      %v3061 = vadd.f32 %v3060, %v3030
      %v3062 = vadd.f32 %v3061, %v3031
      %v3063 = vadd.f32 %v3062, %v3032
      %v3064 = vadd.f32 %v3063, %v3033
      %v3065 = vadd.f32 %v3064, %v3034
      %v3066 = vadd.f32 %v3065, %v3035
      %v3067 = vadd.f32 %v3066, %v3036
      %v3068 = vadd.f32 %v3067, %v3037
      %v3069 = vadd.f32 %v3068, %v3038
      %v3070 = vadd.f32 %v3069, %v3039
      %v3071 = vadd.f32 %v3070, %v3040
      %v3072 = vadd.f32 %v3071, %v3041
      %v3073 = vadd.f32 %v3072, %v3042
      %v3074 = vadd.f32 %v3073, %v3043
      %v3075 = vadd.f32 %v3074, %v3044
      %v3076 = vadd.f32 %v3075, %v3045
      %v3077 = vadd.f32 %v3076, %v3046
      %v3078 = vadd.f32 %v3077, %v3047
      %v3079 = vadd.f32 %v3078, %v3048
      %v3080 = vadd.f32 %v3079, %v3049
      %v3081 = vadd.f32 %v3080, %v3050
      %v3082 = vadd.f32 %v3081, %v3051
      %v3083 = vadd.f32 %v3082, %v3052
      %v3084 = vadd.f32 %v3083, %v3053
      %v3085 = vadd.f32 %v3084, %v3054
      %v3086 = vadd.f32 %v3085, %v3055
      %v3087 = vadd.f32 %v3086, %v3056
      %v3088 = vrot.slane %v3087, 4
      %v3089 = vadd.f32 %v3087, %v3088
      %v3090 = vrot.slane %v3089, 2
      %v3091 = vadd.f32 %v3089, %v3090
      %v3092 = vrot.slane %v3091, 1
      %v3093 = vadd.f32 %v3091, %v3092
      %3094 = vst [vmem:[%s214] sm:$0xff] %v3024
      %3095 = vst [vmem:[%s218] sm:$0xff] %v3093
      %p3096 = scmp.lt.s32.totalorder %s16, 1
      %s3097 = scalar_select %p3096, %s16, 1
      %s3098 = smul.addr %s3097, 32
      %s3099 = smul.addr %s3098, 8
      %s3100 = scalar_lea.vmem %s2, %s3099
      %p3101 = scmp.lt.s32.totalorder %s16, 1
      %s3102 = scalar_select %p3101, %s16, 1
      %s3103 = smul.addr %s3102, 8
      %s3104 = scalar_lea.vmem %s3, %s3103
      %p3105 = scmp.lt.s32.totalorder %s16, 1
      %s3106 = scalar_select %p3105, %s16, 1
      %s3107 = smul.addr %s3106, 8
      %s3108 = scalar_lea.vmem %s4, %s3107
      // Predicated region
      $region29: #{conv_block_forward.3} parent=27 // pred_check
        %p3109 = pneg %p81
      $region30: #{conv_block_forward.3} parent=27 // pred_check_branch
        %3111 = sbr.rel (%p3109) target = $region32
      $region31: #{conv_block_forward.3} parent=27 // pred_region
        _
      $region32: #{conv_block_forward.3} parent=27 // pred_fallthru
        _
      // Predicated region
      $region33: #{conv_block_forward.3} parent=27 // pred_check
        %p3112 = pneg %p107
      $region34: #{conv_block_forward.3} parent=27 // pred_check_branch
        %3114 = sbr.rel (%p3112) target = $region36
      $region35: #{conv_block_forward.3} parent=27 // pred_region
        _
      $region36: #{conv_block_forward.3} parent=27 // pred_fallthru
        _
      // Predicated region
      $region37: #{conv_block_forward.3} parent=27 // pred_check
        %p3115 = pneg %p133
      $region38: #{conv_block_forward.3} parent=27 // pred_check_branch
        %3117 = sbr.rel (%p3115) target = $region40
      $region39: #{conv_block_forward.3} parent=27 // pred_region
        _
      $region40: #{conv_block_forward.3} parent=27 // pred_fallthru
        _
    $region28: #{conv_block_forward.3} parent=5 // pred_fallthru
      _
    %p3118 = scmp.le.s32.totalorder 2, %s11
    // Predicated region
    $region41: #{conv_block_forward.3} parent=5 // pred_check
      %p3119 = pneg %p3118
    $region42: #{conv_block_forward.3} parent=5 // pred_check_branch
      %3121 = sbr.rel (%p3119) target = $region44
    $region43: #{conv_block_forward.3} parent=5 // pred_region
      %s3122 = ssub.s32 %s11, 2
      // Predicated region
      $region45: #{conv_block_forward.3} parent=43 // pred_check
        %p3123 = pneg %p87
      $region46: #{conv_block_forward.3} parent=43 // pred_check_branch
        %3125 = sbr.rel (%p3123) target = $region48
      $region47: #{conv_block_forward.3} parent=43 // pred_region
        %p3126 = scmp.lt.s32.totalorder %s17, 1
        %s3127 = scalar_select %p3126, %s17, 1
        %s3128 = smul.addr %s3127, 32
        %s3129 = smul.addr %s3128, 8
        %s3130 = scalar_lea.vmem %s2, %s3129
      $region48: #{conv_block_forward.3} parent=43 // pred_fallthru
        _
      // Predicated region
      $region49: #{conv_block_forward.3} parent=43 // pred_check
        %p3131 = pneg %p113
      $region50: #{conv_block_forward.3} parent=43 // pred_check_branch
        %3133 = sbr.rel (%p3131) target = $region52
      $region51: #{conv_block_forward.3} parent=43 // pred_region
        %p3134 = scmp.lt.s32.totalorder %s17, 1
        %s3135 = scalar_select %p3134, %s17, 1
        %s3136 = smul.addr %s3135, 8
        %s3137 = scalar_lea.vmem %s3, %s3136
      $region52: #{conv_block_forward.3} parent=43 // pred_fallthru
        _
      // Predicated region
      $region53: #{conv_block_forward.3} parent=43 // pred_check
        %p3138 = pneg %p139
      $region54: #{conv_block_forward.3} parent=43 // pred_check_branch
        %3140 = sbr.rel (%p3138) target = $region56
      $region55: #{conv_block_forward.3} parent=43 // pred_region
        %p3141 = scmp.lt.s32.totalorder %s17, 1
        %s3142 = scalar_select %p3141, %s17, 1
        %s3143 = smul.addr %s3142, 8
        %s3144 = scalar_lea.vmem %s4, %s3143
      $region56: #{conv_block_forward.3} parent=43 // pred_fallthru
        _
    $region44: #{conv_block_forward.3} parent=5 // pred_fallthru
      _
  $region6: #{conv_block_forward.3} parent=0 // loop_footer
    %s15 = sadd.s32 1, %s11
  $region7: #{conv_block_forward.3} parent=0 // loop_footer_branch
    %10 = sbr.rel target = $region3
  $region8: #{conv_block_forward.3} parent=0 // loop_exit
    _

</llo_original>
